<compile_context>
chip_gen: v7x
topology: tpu7x:2x2x1
jax: 0.10.0
libtpu: 0.0.40
codegen_flags: <defaults>
</compile_context>

<pallas_src>
import functools

import jax
import jax.numpy as jnp
from jax.experimental import pallas as pl
from jax.experimental.pallas import tpu as pltpu

NEG_SLOPE = 0.01


def _round_up(x, m):
    return (x + m - 1) // m * m


def _pick_tile_m(M):
    # biggest lane-aligned tile that still gives >=2 grid steps (pipelining /
    # megacore); otherwise a single whole-array block (tiny layers).
    for t in (2048, 1024, 512, 256, 128):
        if M % t == 0 and M // t >= 2:
            return t
    return M


# ----------------------------------------------------------------------------
# Pallas kernels
# ----------------------------------------------------------------------------
def _matmul_t_act_kernel(w_ref, p_ref, o_ref, *, act, neg_slope):
    # w: (OC, Kp) bf16, p: (Kp, tile_M) bf16 -> o: (OC, tile_M); bias folded.
    y = jnp.dot(w_ref[...], p_ref[...], preferred_element_type=jnp.float32)
    if act == "leaky_relu":
        y = jnp.where(y >= 0.0, y, neg_slope * y)
    elif act == "sigmoid":
        y = jax.nn.sigmoid(y)
    elif act == "tanh":
        y = jnp.tanh(y)
    # act == "none": identity
    o_ref[...] = y.astype(o_ref.dtype)


def matmul_t_act(wmat, patches, act, neg_slope, out_dtype):
    """out(OC, M) = act(wmat(OC, Kp) @ patches(Kp, M)); lane-dense output."""
    OC, Kp = wmat.shape
    Kp2, M = patches.shape
    assert Kp == Kp2
    tile = _pick_tile_m(M)
    kern = functools.partial(_matmul_t_act_kernel, act=act, neg_slope=neg_slope)
    return pl.pallas_call(
        kern,
        out_shape=jax.ShapeDtypeStruct((OC, M), out_dtype),
        grid=(M // tile,),
        in_specs=[pl.BlockSpec((OC, Kp), lambda i: (0, 0)),
                  pl.BlockSpec((Kp, tile), lambda i: (0, i))],
        out_specs=pl.BlockSpec((OC, tile), lambda i: (0, i)),
        compiler_params=pltpu.CompilerParams(
            dimension_semantics=("parallel",)),
    )(wmat, patches)


def _bottleneck_kernel(z_ref, ewt_ref, eb_ref, cwt_ref, dwt_ref, db_ref,
                       emb_ref, clu_ref, dec_ref, *, alpha, neg_slope):
    # Fused: embedding matmul -> Student-t clustering -> deembedding matmul.
    z = z_ref[...]
    e = jnp.dot(z, ewt_ref[...], preferred_element_type=jnp.float32) + eb_ref[...]
    emb_ref[...] = e.astype(emb_ref.dtype)

    cwt = cwt_ref[...]                                    # (nc_in, nc_out)
    d = (jnp.sum(e * e, axis=1, keepdims=True)
         + jnp.sum(cwt * cwt, axis=0, keepdims=True)
         - 2.0 * jnp.dot(e, cwt, preferred_element_type=jnp.float32))
    d = jnp.maximum(d, 0.0)
    q = pl.reciprocal(1.0 + d * (1.0 / alpha), approx=True)
    p = (alpha + 1.0) / 2.0
    if p != 1.0:
        q = q ** p
    clu_ref[...] = (q / jnp.sum(q, axis=1, keepdims=True)).astype(clu_ref.dtype)

    h = jnp.dot(e, dwt_ref[...], preferred_element_type=jnp.float32) + db_ref[...]
    dec_ref[...] = jnp.where(h >= 0.0, h, neg_slope * h).astype(dec_ref.dtype)


def bottleneck(z, emb_w, emb_b, clu_w, deemb_w, deemb_b, alpha, neg_slope):
    """z: (N, lin_len) -> (embedded (N,nc), clustering (N,nc), decoded (N,lin_len))."""
    N, L = z.shape
    nc = emb_w.shape[0]
    kern = functools.partial(_bottleneck_kernel, alpha=alpha, neg_slope=neg_slope)
    vmem = pl.BlockSpec(memory_space=pltpu.MemorySpace.VMEM)
    return pl.pallas_call(
        kern,
        out_shape=(jax.ShapeDtypeStruct((N, nc), jnp.float32),
                   jax.ShapeDtypeStruct((N, nc), jnp.float32),
                   jax.ShapeDtypeStruct((N, L), jnp.float32)),
        in_specs=[vmem] * 6,
        out_specs=(vmem, vmem, vmem),
    )(z.astype(jnp.float32),
      emb_w.T.astype(jnp.float32), emb_b.reshape(1, nc).astype(jnp.float32),
      clu_w.T.astype(jnp.float32),
      deemb_w.T.astype(jnp.float32), deemb_b.reshape(1, L).astype(jnp.float32))


# ----------------------------------------------------------------------------
# Conv / ConvTranspose lowering (glue in JAX, matmul in Pallas)
# ----------------------------------------------------------------------------
def conv2d_cm(x, w, bias, stride, padding, act, neg_slope=NEG_SLOPE,
              out_dtype=jnp.bfloat16):
    """x: (C, N, H, W) channel-major; w: (OC, IC, KH, KW) (PyTorch Conv2d).
    Returns (OC, N, OH, OW)."""
    OC, IC, KH, KW = w.shape
    C, N, H, W_ = x.shape
    assert C == IC
    if padding:
        x = jnp.pad(x, ((0, 0), (0, 0), (padding, padding), (padding, padding)))
    Hp, Wp = H + 2 * padding, W_ + 2 * padding
    OH = (Hp - KH) // stride + 1
    OW = (Wp - KW) // stride + 1
    M = N * OH * OW
    K = IC * KH * KW
    Kp = _round_up(K + 1, 8)              # +1 bias row, 8-sublane aligned

    taps = []
    for ky in range(KH):
        for kx in range(KW):
            taps.append(
                x[:, :, ky: ky + stride * (OH - 1) + 1: stride,
                        kx: kx + stride * (OW - 1) + 1: stride].reshape(IC, M))
    taps.append(jnp.ones((1, M), x.dtype))            # bias row (bias folded)
    if Kp > K + 1:
        taps.append(jnp.zeros((Kp - K - 1, M), x.dtype))
    patches = jnp.concatenate(taps, axis=0).astype(jnp.bfloat16)   # (Kp, M)

    # weight rows ordered (ky, kx, ic) to match the patch row ordering
    wmat = w.transpose(0, 2, 3, 1).reshape(OC, K).astype(jnp.float32)
    wcols = [wmat, bias.reshape(OC, 1).astype(jnp.float32)]
    if Kp > K + 1:
        wcols.append(jnp.zeros((OC, Kp - K - 1), jnp.float32))
    wmat = jnp.concatenate(wcols, axis=1).astype(jnp.bfloat16)     # (OC, Kp)

    out = matmul_t_act(wmat, patches, act, neg_slope, out_dtype)   # (OC, M)
    return out.reshape(OC, N, OH, OW)


def conv_transpose2d_cm(x, w, bias, stride, padding, output_padding, act,
                        neg_slope=NEG_SLOPE, out_dtype=jnp.bfloat16):
    """x: (C, N, H, W) channel-major; w: (IC, OC, KH, KW) (PyTorch
    ConvTranspose2d).  Sub-pixel decomposition: stride**2 small stride-1
    convs instead of a zero-dilated input (~stride^2 fewer MACs)."""
    IC, OC, KH, KW = w.shape
    C, N, H, W_ = x.shape
    assert C == IC
    s = stride
    OH = (H - 1) * s - 2 * padding + KH + output_padding
    OW = (W_ - 1) * s - 2 * padding + KW + output_padding

    def phase(a, Ksz, out_full):
        k0 = (a + padding) % s
        taps = list(range(k0, Ksz, s))
        n = len(taps)
        out_n = (out_full - a + s - 1) // s
        off = (a + padding - k0) // s - (n - 1) if n > 0 else 0
        return taps, n, out_n, off

    outs = {}
    for a in range(s):
        kyt, nj, OHa, offa = phase(a, KH, OH)
        if nj == 0 or OHa <= 0:
            # TODO(synk): a tap-less phase would be act(bias) only; cannot
            # happen for kernel >= stride (always true in CAE_5).
            continue
        for bph in range(s):
            kxt, ni, OWb, offb = phase(bph, KW, OW)
            if ni == 0 or OWb <= 0:
                continue
            # flipped sub-kernel, channel axes swapped to Conv2d layout
            wsub = w[:, :, kyt[::-1], :][:, :, :, kxt[::-1]].transpose(1, 0, 2, 3)
            pad_t = max(0, -offa)
            pad_b = max(0, offa + OHa + nj - 1 - H)
            pad_l = max(0, -offb)
            pad_r = max(0, offb + OWb + ni - 1 - W_)
            xp = jnp.pad(x, ((0, 0), (0, 0), (pad_t, pad_b), (pad_l, pad_r)))
            xs = xp[:, :, offa + pad_t: offa + pad_t + OHa + nj - 1,
                          offb + pad_l: offb + pad_l + OWb + ni - 1]
            outs[(a, bph)] = conv2d_cm(xs, wsub, bias, 1, 0, act, neg_slope,
                                       out_dtype)       # (OC, N, OHa, OWb)

    if OH % s == 0 and OW % s == 0 and len(outs) == s * s:
        # pixel-shuffle assembly: (OC,N,OH//s,s,OW//s,s) -> (OC,N,OH,OW)
        y = jnp.stack(
            [jnp.stack([outs[(a, bph)] for bph in range(s)], axis=-1)
             for a in range(s)], axis=3)
        return y.reshape(OC, N, OH, OW)
    # general fallback: strided scatter per phase
    y = jnp.zeros((OC, N, OH, OW), out_dtype)
    for (a, bph), ph in outs.items():
        y = y.at[:, :, a::s, bph::s].set(ph)
    return y


# ----------------------------------------------------------------------------
# Parameter init (deterministic, synthetic; PyTorch layouts)
# ----------------------------------------------------------------------------
def init_params(key, input_shape, filters, num_clusters):
    f = filters
    in_ch = input_shape[2]
    lin_len = ((input_shape[0] // 16 - 1) // 2) ** 2 * f[4]
    keys = iter(jax.random.split(key, 40))

    def unif(k, shape, bound):
        return jax.random.uniform(k, shape, jnp.float32, -bound, bound)

    def conv(k_w, k_b, oc, ic, ks):
        bound = 1.0 / (ic * ks * ks) ** 0.5
        return unif(k_w, (oc, ic, ks, ks), bound), unif(k_b, (oc,), bound)

    def convt(k_w, k_b, ic, oc, ks):
        bound = 1.0 / (ic * ks * ks) ** 0.5
        return unif(k_w, (ic, oc, ks, ks), bound), unif(k_b, (oc,), bound)

    def linear(k_w, k_b, out_f, in_f):
        bound = 1.0 / in_f ** 0.5
        return unif(k_w, (out_f, in_f), bound), unif(k_b, (out_f,), bound)

    p = {}
    p["conv1_w"], p["conv1_b"] = conv(next(keys), next(keys), f[0], in_ch, 5)
    p["conv2_w"], p["conv2_b"] = conv(next(keys), next(keys), f[1], f[0], 5)
    p["conv3_w"], p["conv3_b"] = conv(next(keys), next(keys), f[2], f[1], 5)
    p["conv4_w"], p["conv4_b"] = conv(next(keys), next(keys), f[3], f[2], 5)
    p["conv5_w"], p["conv5_b"] = conv(next(keys), next(keys), f[4], f[3], 3)
    p["emb_w"], p["emb_b"] = linear(next(keys), next(keys), num_clusters, lin_len)
    p["deemb_w"], p["deemb_b"] = linear(next(keys), next(keys), lin_len, num_clusters)
    p["deconv5_w"], p["deconv5_b"] = convt(next(keys), next(keys), f[4], f[3], 3)
    p["deconv4_w"], p["deconv4_b"] = convt(next(keys), next(keys), f[3], f[2], 5)
    p["deconv3_w"], p["deconv3_b"] = convt(next(keys), next(keys), f[2], f[1], 5)
    p["deconv2_w"], p["deconv2_b"] = convt(next(keys), next(keys), f[1], f[0], 5)
    p["deconv1_w"], p["deconv1_b"] = convt(next(keys), next(keys), f[0], in_ch, 5)
    xav = (6.0 / (num_clusters + num_clusters)) ** 0.5     # xavier_uniform_
    p["clu_w"] = unif(next(keys), (num_clusters, num_clusters), xav)
    return p


# ----------------------------------------------------------------------------
# CAE_5 forward
# ----------------------------------------------------------------------------
def cae5_forward(params, x_nchw, input_shape, filters, num_clusters,
                 activations=False, neg_slope=NEG_SLOPE, alpha=1.0):
    f = filters
    H = input_shape[0]

    # single entry transpose into channel-major layout; bf16 between layers
    x = jnp.transpose(x_nchw, (1, 0, 2, 3)).astype(jnp.bfloat16)

    x = conv2d_cm(x, params["conv1_w"], params["conv1_b"], 2, 2, "leaky_relu", neg_slope)
    x = conv2d_cm(x, params["conv2_w"], params["conv2_b"], 2, 2, "leaky_relu", neg_slope)
    x = conv2d_cm(x, params["conv3_w"], params["conv3_b"], 2, 2, "leaky_relu", neg_slope)
    x = conv2d_cm(x, params["conv4_w"], params["conv4_b"], 2, 2, "leaky_relu", neg_slope)
    act5 = "sigmoid" if activations else "leaky_relu"
    x = conv2d_cm(x, params["conv5_w"], params["conv5_b"], 2, 0, act5, neg_slope)

    C5, N, h5, w5 = x.shape
    # PyTorch flattens NCHW; bottleneck tensors are tiny so this is cheap
    z = jnp.transpose(x, (1, 0, 2, 3)).reshape(N, C5 * h5 * w5)

    extra_out, clustering_out, dec = bottleneck(
        z, params["emb_w"], params["emb_b"], params["clu_w"],
        params["deemb_w"], params["deemb_b"], alpha, neg_slope)

    side = (H // 16 - 1) // 2
    xd = dec.reshape(N, f[4], side, side).transpose(1, 0, 2, 3).astype(jnp.bfloat16)

    op5 = 1 if H // 16 % 2 == 0 else 0
    op4 = 1 if H // 8 % 2 == 0 else 0
    op3 = 1 if H // 4 % 2 == 0 else 0
    op2 = 1 if H // 2 % 2 == 0 else 0
    op1 = 1 if H % 2 == 0 else 0

    xd = conv_transpose2d_cm(xd, params["deconv5_w"], params["deconv5_b"], 2, 0, op5, "leaky_relu", neg_slope)
    xd = conv_transpose2d_cm(xd, params["deconv4_w"], params["deconv4_b"], 2, 2, op4, "leaky_relu", neg_slope)
    xd = conv_transpose2d_cm(xd, params["deconv3_w"], params["deconv3_b"], 2, 2, op3, "leaky_relu", neg_slope)
    xd = conv_transpose2d_cm(xd, params["deconv2_w"], params["deconv2_b"], 2, 2, op2, "leaky_relu", neg_slope)
    act_last = "tanh" if activations else "none"
    xd = conv_transpose2d_cm(xd, params["deconv1_w"], params["deconv1_b"], 2, 2, op1, act_last, neg_slope,
                             out_dtype=jnp.float32)
    recon = jnp.transpose(xd, (1, 0, 2, 3))            # back to NCHW (once)
    return recon, clustering_out, extra_out


# ----------------------------------------------------------------------------
if __name__ == "__main__":
    # Small, consistent configuration (H must satisfy (H//16-1)//2 >= 1).
    input_shape = [64, 64, 3]
    filters = [4, 8, 16, 32, 64]
    num_clusters = 10
    batch = 2

    key = jax.random.PRNGKey(0)
    kx, kp = jax.random.split(key)
    params = init_params(kp, input_shape, filters, num_clusters)
    x = jax.random.normal(
        kx, (batch, input_shape[2], input_shape[0], input_shape[1]), jnp.float32)

    fwd = jax.jit(functools.partial(
        cae5_forward, input_shape=input_shape, filters=filters,
        num_clusters=num_clusters, activations=False))
    recon, clustering_out, extra_out = fwd(params, x)
    recon = jax.block_until_ready(recon)
    clustering_out = jax.block_until_ready(clustering_out)
    extra_out = jax.block_until_ready(extra_out)

    assert recon.shape == (batch, input_shape[2], input_shape[0], input_shape[1])
    assert clustering_out.shape == (batch, num_clusters)
    assert extra_out.shape == (batch, num_clusters)
    assert bool(jnp.all(jnp.isfinite(recon)))
    # clustering rows sum to 1
    assert bool(jnp.allclose(jnp.sum(clustering_out, axis=1), 1.0, atol=1e-5))
    print("KERNEL_OK")
</pallas_src>

<mosaic_0001>
module attributes {stable_mosaic.version = 11 : i64} {
  func.func @_matmul_t_act_kernel(%arg0: i32, %arg1: memref<4x80xbf16, #tpu.memory_space<vmem>>, %arg2: memref<80x1024xbf16, #tpu.memory_space<vmem>>, %arg3: memref<4x1024xbf16, #tpu.memory_space<vmem>>) attributes {dimension_semantics = [#tpu.dimension_semantics<parallel>], iteration_bounds = array<i64: 2>, scalar_prefetch = 0 : i64, scratch_operands = 0 : i64, tpu.core_type = #tpu.core_type<tc>, window_params = [{pipeline_mode = #tpu.pipeline_mode<synchronous>, transform_indices = @transform_0, window_bounds = array<i64: 4, 80>}, {transform_indices = @transform_1, window_bounds = array<i64: 80, 1024>}, {transform_indices = @transform_2, window_bounds = array<i64: 4, 1024>}]} {
    %c0 = arith.constant 0 : index
    %c0_0 = arith.constant 0 : index
    %0 = vector.load %arg1[%c0, %c0_0] : memref<4x80xbf16, #tpu.memory_space<vmem>>, vector<4x80xbf16>
    %c0_1 = arith.constant 0 : index
    %c0_2 = arith.constant 0 : index
    %1 = vector.load %arg2[%c0_1, %c0_2] : memref<80x1024xbf16, #tpu.memory_space<vmem>>, vector<80x1024xbf16>
    %cst = arith.constant dense<0.000000e+00> : vector<4x1024xf32>
    %2 = tpu.matmul %0, %1, %cst {dimension_numbers = #tpu.dot_dimension_numbers<[1], [0], [0], [1], [0, 0, 1, 1], [], []>} : vector<4x80xbf16>, vector<80x1024xbf16>, vector<4x1024xf32> -> vector<4x1024xf32>
    %cst_3 = arith.constant 0.000000e+00 : f32
    %3 = vector.broadcast %cst_3 : f32 to vector<4x1024xf32>
    %4 = arith.cmpf oge, %2, %3 : vector<4x1024xf32>
    %cst_4 = arith.constant 0.00999999977 : f32
    %5 = vector.broadcast %cst_4 : f32 to vector<4x1024xf32>
    %6 = arith.mulf %5, %2 : vector<4x1024xf32>
    %7 = arith.select %4, %2, %6 : vector<4x1024xi1>, vector<4x1024xf32>
    %8 = arith.truncf %7 : vector<4x1024xf32> to vector<4x1024xbf16>
    %c0_5 = arith.constant 0 : index
    %c0_6 = arith.constant 0 : index
    %9 = vector.load %arg3[%c0_5, %c0_6] : memref<4x1024xbf16, #tpu.memory_space<vmem>>, vector<4x1024xbf16>
    tpu.vector_store %arg3[%c0_5, %c0_6], %8 {strides = array<i32>} : memref<4x1024xbf16, #tpu.memory_space<vmem>>, vector<4x1024xbf16>,
    return
  }
  func.func @transform_0(%arg0: i32) -> (i32, i32) {
    %c0_i32 = arith.constant 0 : i32
    %c0_i32_0 = arith.constant 0 : i32
    %c0_i32_1 = arith.constant 0 : i32
    return %c0_i32, %c0_i32_0 : i32, i32
  }
  func.func @transform_1(%arg0: i32) -> (i32, i32) {
    %c0_i32 = arith.constant 0 : i32
    %c0_i32_0 = arith.constant 0 : i32
    return %c0_i32, %arg0 : i32, i32
  }
  func.func @transform_2(%arg0: i32) -> (i32, i32) {
    %c0_i32 = arith.constant 0 : i32
    %c0_i32_0 = arith.constant 0 : i32
    return %c0_i32, %arg0 : i32, i32
  }
}

module attributes {stable_mosaic.version = 11 : i64} {
  func.func @_matmul_t_act_kernel(%arg0: i32, %arg1: memref<8x104xbf16, #tpu.memory_space<vmem>>, %arg2: memref<104x256xbf16, #tpu.memory_space<vmem>>, %arg3: memref<8x256xbf16, #tpu.memory_space<vmem>>) attributes {dimension_semantics = [#tpu.dimension_semantics<parallel>], iteration_bounds = array<i64: 2>, scalar_prefetch = 0 : i64, scratch_operands = 0 : i64, tpu.core_type = #tpu.core_type<tc>, window_params = [{pipeline_mode = #tpu.pipeline_mode<synchronous>, transform_indices = @transform_0, window_bounds = array<i64: 8, 104>}, {transform_indices = @transform_1, window_bounds = array<i64: 104, 256>}, {transform_indices = @transform_2, window_bounds = array<i64: 8, 256>}]} {
    %c0 = arith.constant 0 : index
    %c0_0 = arith.constant 0 : index
    %0 = vector.load %arg1[%c0, %c0_0] : memref<8x104xbf16, #tpu.memory_space<vmem>>, vector<8x104xbf16>
    %c0_1 = arith.constant 0 : index
    %c0_2 = arith.constant 0 : index
    %1 = vector.load %arg2[%c0_1, %c0_2] : memref<104x256xbf16, #tpu.memory_space<vmem>>, vector<104x256xbf16>
    %cst = arith.constant dense<0.000000e+00> : vector<8x256xf32>
    %2 = tpu.matmul %0, %1, %cst {dimension_numbers = #tpu.dot_dimension_numbers<[1], [0], [0], [1], [0, 0, 1, 1], [], []>} : vector<8x104xbf16>, vector<104x256xbf16>, vector<8x256xf32> -> vector<8x256xf32>
    %cst_3 = arith.constant 0.000000e+00 : f32
    %3 = vector.broadcast %cst_3 : f32 to vector<8x256xf32>
    %4 = arith.cmpf oge, %2, %3 : vector<8x256xf32>
    %cst_4 = arith.constant 0.00999999977 : f32
    %5 = vector.broadcast %cst_4 : f32 to vector<8x256xf32>
    %6 = arith.mulf %5, %2 : vector<8x256xf32>
    %7 = arith.select %4, %2, %6 : vector<8x256xi1>, vector<8x256xf32>
    %8 = arith.truncf %7 : vector<8x256xf32> to vector<8x256xbf16>
    %c0_5 = arith.constant 0 : index
    %c0_6 = arith.constant 0 : index
    %9 = vector.load %arg3[%c0_5, %c0_6] : memref<8x256xbf16, #tpu.memory_space<vmem>>, vector<8x256xbf16>
    tpu.vector_store %arg3[%c0_5, %c0_6], %8 {strides = array<i32>} : memref<8x256xbf16, #tpu.memory_space<vmem>>, vector<8x256xbf16>,
    return
  }
  func.func @transform_0(%arg0: i32) -> (i32, i32) {
    %c0_i32 = arith.constant 0 : i32
    %c0_i32_0 = arith.constant 0 : i32
    %c0_i32_1 = arith.constant 0 : i32
    return %c0_i32, %c0_i32_0 : i32, i32
  }
  func.func @transform_1(%arg0: i32) -> (i32, i32) {
    %c0_i32 = arith.constant 0 : i32
    %c0_i32_0 = arith.constant 0 : i32
    return %c0_i32, %arg0 : i32, i32
  }
  func.func @transform_2(%arg0: i32) -> (i32, i32) {
    %c0_i32 = arith.constant 0 : i32
    %c0_i32_0 = arith.constant 0 : i32
    return %c0_i32, %arg0 : i32, i32
  }
}

module attributes {stable_mosaic.version = 11 : i64} {
  func.func @_matmul_t_act_kernel(%arg0: i32, %arg1: memref<16x208xbf16, #tpu.memory_space<vmem>>, %arg2: memref<208x128xbf16, #tpu.memory_space<vmem>>, %arg3: memref<16x128xbf16, #tpu.memory_space<vmem>>) attributes {dimension_semantics = [#tpu.dimension_semantics<parallel>], iteration_bounds = array<i64: 1>, scalar_prefetch = 0 : i64, scratch_operands = 0 : i64, tpu.core_type = #tpu.core_type<tc>, window_params = [{pipeline_mode = #tpu.pipeline_mode<synchronous>, transform_indices = @transform_0, window_bounds = array<i64: 16, 208>}, {transform_indices = @transform_1, window_bounds = array<i64: 208, 128>}, {transform_indices = @transform_2, window_bounds = array<i64: 16, 128>}]} {
    %c0 = arith.constant 0 : index
    %c0_0 = arith.constant 0 : index
    %0 = vector.load %arg1[%c0, %c0_0] : memref<16x208xbf16, #tpu.memory_space<vmem>>, vector<16x208xbf16>
    %c0_1 = arith.constant 0 : index
    %c0_2 = arith.constant 0 : index
    %1 = vector.load %arg2[%c0_1, %c0_2] : memref<208x128xbf16, #tpu.memory_space<vmem>>, vector<208x128xbf16>
    %cst = arith.constant dense<0.000000e+00> : vector<16x128xf32>
    %2 = tpu.matmul %0, %1, %cst {dimension_numbers = #tpu.dot_dimension_numbers<[1], [0], [0], [1], [0, 0, 1, 1], [], []>} : vector<16x208xbf16>, vector<208x128xbf16>, vector<16x128xf32> -> vector<16x128xf32>
    %cst_3 = arith.constant 0.000000e+00 : f32
    %3 = vector.broadcast %cst_3 : f32 to vector<16x128xf32>
    %4 = arith.cmpf oge, %2, %3 : vector<16x128xf32>
    %cst_4 = arith.constant 0.00999999977 : f32
    %5 = vector.broadcast %cst_4 : f32 to vector<16x128xf32>
    %6 = arith.mulf %5, %2 : vector<16x128xf32>
    %7 = arith.select %4, %2, %6 : vector<16x128xi1>, vector<16x128xf32>
    %8 = arith.truncf %7 : vector<16x128xf32> to vector<16x128xbf16>
    %c0_5 = arith.constant 0 : index
    %c0_6 = arith.constant 0 : index
    %9 = vector.load %arg3[%c0_5, %c0_6] : memref<16x128xbf16, #tpu.memory_space<vmem>>, vector<16x128xbf16>
    tpu.vector_store %arg3[%c0_5, %c0_6], %8 {strides = array<i32>} : memref<16x128xbf16, #tpu.memory_space<vmem>>, vector<16x128xbf16>,
    return
  }
  func.func @transform_0(%arg0: i32) -> (i32, i32) {
    %c0_i32 = arith.constant 0 : i32
    %c0_i32_0 = arith.constant 0 : i32
    %c0_i32_1 = arith.constant 0 : i32
    return %c0_i32, %c0_i32_0 : i32, i32
  }
  func.func @transform_1(%arg0: i32) -> (i32, i32) {
    %c0_i32 = arith.constant 0 : i32
    %c0_i32_0 = arith.constant 0 : i32
    return %c0_i32, %arg0 : i32, i32
  }
  func.func @transform_2(%arg0: i32) -> (i32, i32) {
    %c0_i32 = arith.constant 0 : i32
    %c0_i32_0 = arith.constant 0 : i32
    return %c0_i32, %arg0 : i32, i32
  }
}

module attributes {stable_mosaic.version = 11 : i64} {
  func.func @_matmul_t_act_kernel(%arg0: i32, %arg1: memref<32x408xbf16, #tpu.memory_space<vmem>>, %arg2: memref<408x32xbf16, #tpu.memory_space<vmem>>, %arg3: memref<32x32xbf16, #tpu.memory_space<vmem>>) attributes {dimension_semantics = [#tpu.dimension_semantics<parallel>], iteration_bounds = array<i64: 1>, scalar_prefetch = 0 : i64, scratch_operands = 0 : i64, tpu.core_type = #tpu.core_type<tc>, window_params = [{pipeline_mode = #tpu.pipeline_mode<synchronous>, transform_indices = @transform_0, window_bounds = array<i64: 32, 408>}, {transform_indices = @transform_1, window_bounds = array<i64: 408, 32>}, {transform_indices = @transform_2, window_bounds = array<i64: 32, 32>}]} {
    %c0 = arith.constant 0 : index
    %c0_0 = arith.constant 0 : index
    %0 = vector.load %arg1[%c0, %c0_0] : memref<32x408xbf16, #tpu.memory_space<vmem>>, vector<32x408xbf16>
    %c0_1 = arith.constant 0 : index
    %c0_2 = arith.constant 0 : index
    %1 = vector.load %arg2[%c0_1, %c0_2] : memref<408x32xbf16, #tpu.memory_space<vmem>>, vector<408x32xbf16>
    %cst = arith.constant dense<0.000000e+00> : vector<32x32xf32>
    %2 = tpu.matmul %0, %1, %cst {dimension_numbers = #tpu.dot_dimension_numbers<[1], [0], [0], [1], [0, 0, 1, 1], [], []>} : vector<32x408xbf16>, vector<408x32xbf16>, vector<32x32xf32> -> vector<32x32xf32>
    %cst_3 = arith.constant 0.000000e+00 : f32
    %3 = vector.broadcast %cst_3 : f32 to vector<32x32xf32>
    %4 = arith.cmpf oge, %2, %3 : vector<32x32xf32>
    %cst_4 = arith.constant 0.00999999977 : f32
    %5 = vector.broadcast %cst_4 : f32 to vector<32x32xf32>
    %6 = arith.mulf %5, %2 : vector<32x32xf32>
    %7 = arith.select %4, %2, %6 : vector<32x32xi1>, vector<32x32xf32>
    %8 = arith.truncf %7 : vector<32x32xf32> to vector<32x32xbf16>
    %c0_5 = arith.constant 0 : index
    %c0_6 = arith.constant 0 : index
    %9 = vector.load %arg3[%c0_5, %c0_6] : memref<32x32xbf16, #tpu.memory_space<vmem>>, vector<32x32xbf16>
    tpu.vector_store %arg3[%c0_5, %c0_6], %8 {strides = array<i32>} : memref<32x32xbf16, #tpu.memory_space<vmem>>, vector<32x32xbf16>,
    return
  }
  func.func @transform_0(%arg0: i32) -> (i32, i32) {
    %c0_i32 = arith.constant 0 : i32
    %c0_i32_0 = arith.constant 0 : i32
    %c0_i32_1 = arith.constant 0 : i32
    return %c0_i32, %c0_i32_0 : i32, i32
  }
  func.func @transform_1(%arg0: i32) -> (i32, i32) {
    %c0_i32 = arith.constant 0 : i32
    %c0_i32_0 = arith.constant 0 : i32
    return %c0_i32, %arg0 : i32, i32
  }
  func.func @transform_2(%arg0: i32) -> (i32, i32) {
    %c0_i32 = arith.constant 0 : i32
    %c0_i32_0 = arith.constant 0 : i32
    return %c0_i32, %arg0 : i32, i32
  }
}

module attributes {stable_mosaic.version = 11 : i64} {
  func.func @_bottleneck_kernel(%arg0: memref<2x64xf32, #tpu.memory_space<vmem>>, %arg1: memref<64x10xf32, #tpu.memory_space<vmem>>, %arg2: memref<1x10xf32, #tpu.memory_space<vmem>>, %arg3: memref<10x10xf32, #tpu.memory_space<vmem>>, %arg4: memref<10x64xf32, #tpu.memory_space<vmem>>, %arg5: memref<1x64xf32, #tpu.memory_space<vmem>>, %arg6: memref<2x10xf32, #tpu.memory_space<vmem>>, %arg7: memref<2x10xf32, #tpu.memory_space<vmem>>, %arg8: memref<2x64xf32, #tpu.memory_space<vmem>>) attributes {dimension_semantics = [], scalar_prefetch = 0 : i64, scratch_operands = 0 : i64, tpu.core_type = #tpu.core_type<tc>} {
    %c0 = arith.constant 0 : index
    %c0_0 = arith.constant 0 : index
    %0 = vector.load %arg0[%c0, %c0_0] : memref<2x64xf32, #tpu.memory_space<vmem>>, vector<2x64xf32>
    %c0_1 = arith.constant 0 : index
    %c0_2 = arith.constant 0 : index
    %1 = vector.load %arg1[%c0_1, %c0_2] : memref<64x10xf32, #tpu.memory_space<vmem>>, vector<64x10xf32>
    %cst = arith.constant dense<0.000000e+00> : vector<2x10xf32>
    %2 = tpu.matmul %0, %1, %cst {dimension_numbers = #tpu.dot_dimension_numbers<[1], [0], [0], [1], [0, 0, 1, 1], [], []>} : vector<2x64xf32>, vector<64x10xf32>, vector<2x10xf32> -> vector<2x10xf32>
    %c0_3 = arith.constant 0 : index
    %c0_4 = arith.constant 0 : index
    %3 = vector.load %arg2[%c0_3, %c0_4] : memref<1x10xf32, #tpu.memory_space<vmem>>, vector<1x10xf32>
    %4 = vector.broadcast %3 : vector<1x10xf32> to vector<2x10xf32>
    %5 = arith.addf %2, %4 : vector<2x10xf32>
    %c0_5 = arith.constant 0 : index
    %c0_6 = arith.constant 0 : index
    %6 = vector.load %arg6[%c0_5, %c0_6] : memref<2x10xf32, #tpu.memory_space<vmem>>, vector<2x10xf32>
    tpu.vector_store %arg6[%c0_5, %c0_6], %5 {strides = array<i32>} : memref<2x10xf32, #tpu.memory_space<vmem>>, vector<2x10xf32>,
    %c0_7 = arith.constant 0 : index
    %c0_8 = arith.constant 0 : index
    %7 = vector.load %arg3[%c0_7, %c0_8] : memref<10x10xf32, #tpu.memory_space<vmem>>, vector<10x10xf32>
    %8 = arith.mulf %5, %5 : vector<2x10xf32>
    %cst_9 = arith.constant dense<0.000000e+00> : vector<2xf32>
    %9 = vector.multi_reduction <add>, %8, %cst_9 [1] : vector<2x10xf32> to vector<2xf32>
    %10 = vector.shape_cast %9 : vector<2xf32> to vector<2x1xf32>
    %11 = arith.mulf %7, %7 : vector<10x10xf32>
    %cst_10 = arith.constant dense<0.000000e+00> : vector<10xf32>
    %12 = vector.multi_reduction <add>, %11, %cst_10 [0] : vector<10x10xf32> to vector<10xf32>
    %13 = vector.shape_cast %12 : vector<10xf32> to vector<1x10xf32>
    %14 = vector.broadcast %10 : vector<2x1xf32> to vector<2x10xf32>
    %15 = vector.broadcast %13 : vector<1x10xf32> to vector<2x10xf32>
    %16 = arith.addf %14, %15 : vector<2x10xf32>
    %cst_11 = arith.constant dense<0.000000e+00> : vector<2x10xf32>
    %17 = tpu.matmul %5, %7, %cst_11 {dimension_numbers = #tpu.dot_dimension_numbers<[1], [0], [0], [1], [0, 0, 1, 1], [], []>} : vector<2x10xf32>, vector<10x10xf32>, vector<2x10xf32> -> vector<2x10xf32>
    %cst_12 = arith.constant 2.000000e+00 : f32
    %18 = vector.broadcast %cst_12 : f32 to vector<2x10xf32>
    %19 = arith.mulf %18, %17 : vector<2x10xf32>
    %20 = arith.subf %16, %19 : vector<2x10xf32>
    %cst_13 = arith.constant 0.000000e+00 : f32
    %21 = vector.broadcast %cst_13 : f32 to vector<2x10xf32>
    %22 = arith.maximumf %20, %21 : vector<2x10xf32>
    %cst_14 = arith.constant 1.000000e+00 : f32
    %23 = vector.broadcast %cst_14 : f32 to vector<2x10xf32>
    %24 = arith.mulf %22, %23 : vector<2x10xf32>
    %cst_15 = arith.constant 1.000000e+00 : f32
    %25 = vector.broadcast %cst_15 : f32 to vector<2x10xf32>
    %26 = arith.addf %25, %24 : vector<2x10xf32>
    %27 = tpu.reciprocal %26 {approx = true} : vector<2x10xf32> -> vector<2x10xf32>
    %cst_16 = arith.constant dense<0.000000e+00> : vector<2xf32>
    %28 = vector.multi_reduction <add>, %27, %cst_16 [1] : vector<2x10xf32> to vector<2xf32>
    %29 = vector.shape_cast %28 : vector<2xf32> to vector<2x1xf32>
    %30 = vector.broadcast %29 : vector<2x1xf32> to vector<2x10xf32>
    %31 = arith.divf %27, %30 : vector<2x10xf32>
    %c0_17 = arith.constant 0 : index
    %c0_18 = arith.constant 0 : index
    %32 = vector.load %arg7[%c0_17, %c0_18] : memref<2x10xf32, #tpu.memory_space<vmem>>, vector<2x10xf32>
    tpu.vector_store %arg7[%c0_17, %c0_18], %31 {strides = array<i32>} : memref<2x10xf32, #tpu.memory_space<vmem>>, vector<2x10xf32>,
    %c0_19 = arith.constant 0 : index
    %c0_20 = arith.constant 0 : index
    %33 = vector.load %arg4[%c0_19, %c0_20] : memref<10x64xf32, #tpu.memory_space<vmem>>, vector<10x64xf32>
    %cst_21 = arith.constant dense<0.000000e+00> : vector<2x64xf32>
    %34 = tpu.matmul %5, %33, %cst_21 {dimension_numbers = #tpu.dot_dimension_numbers<[1], [0], [0], [1], [0, 0, 1, 1], [], []>} : vector<2x10xf32>, vector<10x64xf32>, vector<2x64xf32> -> vector<2x64xf32>
    %c0_22 = arith.constant 0 : index
    %c0_23 = arith.constant 0 : index
    %35 = vector.load %arg5[%c0_22, %c0_23] : memref<1x64xf32, #tpu.memory_space<vmem>>, vector<1x64xf32>
    %36 = vector.broadcast %35 : vector<1x64xf32> to vector<2x64xf32>
    %37 = arith.addf %34, %36 : vector<2x64xf32>
    %cst_24 = arith.constant 0.000000e+00 : f32
    %38 = vector.broadcast %cst_24 : f32 to vector<2x64xf32>
    %39 = arith.cmpf oge, %37, %38 : vector<2x64xf32>
    %cst_25 = arith.constant 0.00999999977 : f32
    %40 = vector.broadcast %cst_25 : f32 to vector<2x64xf32>
    %41 = arith.mulf %40, %37 : vector<2x64xf32>
    %42 = arith.select %39, %37, %41 : vector<2x64xi1>, vector<2x64xf32>
    %c0_26 = arith.constant 0 : index
    %c0_27 = arith.constant 0 : index
    %43 = vector.load %arg8[%c0_26, %c0_27] : memref<2x64xf32, #tpu.memory_space<vmem>>, vector<2x64xf32>
    tpu.vector_store %arg8[%c0_26, %c0_27], %42 {strides = array<i32>} : memref<2x64xf32, #tpu.memory_space<vmem>>, vector<2x64xf32>,
    return
  }
}

module attributes {stable_mosaic.version = 11 : i64} {
  func.func @_matmul_t_act_kernel(%arg0: i32, %arg1: memref<64x296xbf16, #tpu.memory_space<vmem>>, %arg2: memref<296x2xbf16, #tpu.memory_space<vmem>>, %arg3: memref<64x2xbf16, #tpu.memory_space<vmem>>) attributes {dimension_semantics = [#tpu.dimension_semantics<parallel>], iteration_bounds = array<i64: 1>, scalar_prefetch = 0 : i64, scratch_operands = 0 : i64, tpu.core_type = #tpu.core_type<tc>, window_params = [{pipeline_mode = #tpu.pipeline_mode<synchronous>, transform_indices = @transform_0, window_bounds = array<i64: 64, 296>}, {transform_indices = @transform_1, window_bounds = array<i64: 296, 2>}, {transform_indices = @transform_2, window_bounds = array<i64: 64, 2>}]} {
    %c0 = arith.constant 0 : index
    %c0_0 = arith.constant 0 : index
    %0 = vector.load %arg1[%c0, %c0_0] : memref<64x296xbf16, #tpu.memory_space<vmem>>, vector<64x296xbf16>
    %c0_1 = arith.constant 0 : index
    %c0_2 = arith.constant 0 : index
    %1 = vector.load %arg2[%c0_1, %c0_2] : memref<296x2xbf16, #tpu.memory_space<vmem>>, vector<296x2xbf16>
    %cst = arith.constant dense<0.000000e+00> : vector<64x2xf32>
    %2 = tpu.matmul %0, %1, %cst {dimension_numbers = #tpu.dot_dimension_numbers<[1], [0], [0], [1], [0, 0, 1, 1], [], []>} : vector<64x296xbf16>, vector<296x2xbf16>, vector<64x2xf32> -> vector<64x2xf32>
    %cst_3 = arith.constant 0.000000e+00 : f32
    %3 = vector.broadcast %cst_3 : f32 to vector<64x2xf32>
    %4 = arith.cmpf oge, %2, %3 : vector<64x2xf32>
    %cst_4 = arith.constant 0.00999999977 : f32
    %5 = vector.broadcast %cst_4 : f32 to vector<64x2xf32>
    %6 = arith.mulf %5, %2 : vector<64x2xf32>
    %7 = arith.select %4, %2, %6 : vector<64x2xi1>, vector<64x2xf32>
    %8 = arith.truncf %7 : vector<64x2xf32> to vector<64x2xbf16>
    %c0_5 = arith.constant 0 : index
    %c0_6 = arith.constant 0 : index
    %9 = vector.load %arg3[%c0_5, %c0_6] : memref<64x2xbf16, #tpu.memory_space<vmem>>, vector<64x2xbf16>
    tpu.vector_store %arg3[%c0_5, %c0_6], %8 {strides = array<i32>} : memref<64x2xbf16, #tpu.memory_space<vmem>>, vector<64x2xbf16>,
    return
  }
  func.func @transform_0(%arg0: i32) -> (i32, i32) {
    %c0_i32 = arith.constant 0 : i32
    %c0_i32_0 = arith.constant 0 : i32
    %c0_i32_1 = arith.constant 0 : i32
    return %c0_i32, %c0_i32_0 : i32, i32
  }
  func.func @transform_1(%arg0: i32) -> (i32, i32) {
    %c0_i32 = arith.constant 0 : i32
    %c0_i32_0 = arith.constant 0 : i32
    return %c0_i32, %arg0 : i32, i32
  }
  func.func @transform_2(%arg0: i32) -> (i32, i32) {
    %c0_i32 = arith.constant 0 : i32
    %c0_i32_0 = arith.constant 0 : i32
    return %c0_i32, %arg0 : i32, i32
  }
}

module attributes {stable_mosaic.version = 11 : i64} {
  func.func @_matmul_t_act_kernel(%arg0: i32, %arg1: memref<32x264xbf16, #tpu.memory_space<vmem>>, %arg2: memref<264x8xbf16, #tpu.memory_space<vmem>>, %arg3: memref<32x8xbf16, #tpu.memory_space<vmem>>) attributes {dimension_semantics = [#tpu.dimension_semantics<parallel>], iteration_bounds = array<i64: 1>, scalar_prefetch = 0 : i64, scratch_operands = 0 : i64, tpu.core_type = #tpu.core_type<tc>, window_params = [{pipeline_mode = #tpu.pipeline_mode<synchronous>, transform_indices = @transform_0, window_bounds = array<i64: 32, 264>}, {transform_indices = @transform_1, window_bounds = array<i64: 264, 8>}, {transform_indices = @transform_2, window_bounds = array<i64: 32, 8>}]} {
    %c0 = arith.constant 0 : index
    %c0_0 = arith.constant 0 : index
    %0 = vector.load %arg1[%c0, %c0_0] : memref<32x264xbf16, #tpu.memory_space<vmem>>, vector<32x264xbf16>
    %c0_1 = arith.constant 0 : index
    %c0_2 = arith.constant 0 : index
    %1 = vector.load %arg2[%c0_1, %c0_2] : memref<264x8xbf16, #tpu.memory_space<vmem>>, vector<264x8xbf16>
    %cst = arith.constant dense<0.000000e+00> : vector<32x8xf32>
    %2 = tpu.matmul %0, %1, %cst {dimension_numbers = #tpu.dot_dimension_numbers<[1], [0], [0], [1], [0, 0, 1, 1], [], []>} : vector<32x264xbf16>, vector<264x8xbf16>, vector<32x8xf32> -> vector<32x8xf32>
    %cst_3 = arith.constant 0.000000e+00 : f32
    %3 = vector.broadcast %cst_3 : f32 to vector<32x8xf32>
    %4 = arith.cmpf oge, %2, %3 : vector<32x8xf32>
    %cst_4 = arith.constant 0.00999999977 : f32
    %5 = vector.broadcast %cst_4 : f32 to vector<32x8xf32>
    %6 = arith.mulf %5, %2 : vector<32x8xf32>
    %7 = arith.select %4, %2, %6 : vector<32x8xi1>, vector<32x8xf32>
    %8 = arith.truncf %7 : vector<32x8xf32> to vector<32x8xbf16>
    %c0_5 = arith.constant 0 : index
    %c0_6 = arith.constant 0 : index
    %9 = vector.load %arg3[%c0_5, %c0_6] : memref<32x8xbf16, #tpu.memory_space<vmem>>, vector<32x8xbf16>
    tpu.vector_store %arg3[%c0_5, %c0_6], %8 {strides = array<i32>} : memref<32x8xbf16, #tpu.memory_space<vmem>>, vector<32x8xbf16>,
    return
  }
  func.func @transform_0(%arg0: i32) -> (i32, i32) {
    %c0_i32 = arith.constant 0 : i32
    %c0_i32_0 = arith.constant 0 : i32
    %c0_i32_1 = arith.constant 0 : i32
    return %c0_i32, %c0_i32_0 : i32, i32
  }
  func.func @transform_1(%arg0: i32) -> (i32, i32) {
    %c0_i32 = arith.constant 0 : i32
    %c0_i32_0 = arith.constant 0 : i32
    return %c0_i32, %arg0 : i32, i32
  }
  func.func @transform_2(%arg0: i32) -> (i32, i32) {
    %c0_i32 = arith.constant 0 : i32
    %c0_i32_0 = arith.constant 0 : i32
    return %c0_i32, %arg0 : i32, i32
  }
}

module attributes {stable_mosaic.version = 11 : i64} {
  func.func @_matmul_t_act_kernel(%arg0: i32, %arg1: memref<32x136xbf16, #tpu.memory_space<vmem>>, %arg2: memref<136x8xbf16, #tpu.memory_space<vmem>>, %arg3: memref<32x8xbf16, #tpu.memory_space<vmem>>) attributes {dimension_semantics = [#tpu.dimension_semantics<parallel>], iteration_bounds = array<i64: 1>, scalar_prefetch = 0 : i64, scratch_operands = 0 : i64, tpu.core_type = #tpu.core_type<tc>, window_params = [{pipeline_mode = #tpu.pipeline_mode<synchronous>, transform_indices = @transform_0, window_bounds = array<i64: 32, 136>}, {transform_indices = @transform_1, window_bounds = array<i64: 136, 8>}, {transform_indices = @transform_2, window_bounds = array<i64: 32, 8>}]} {
    %c0 = arith.constant 0 : index
    %c0_0 = arith.constant 0 : index
    %0 = vector.load %arg1[%c0, %c0_0] : memref<32x136xbf16, #tpu.memory_space<vmem>>, vector<32x136xbf16>
    %c0_1 = arith.constant 0 : index
    %c0_2 = arith.constant 0 : index
    %1 = vector.load %arg2[%c0_1, %c0_2] : memref<136x8xbf16, #tpu.memory_space<vmem>>, vector<136x8xbf16>
    %cst = arith.constant dense<0.000000e+00> : vector<32x8xf32>
    %2 = tpu.matmul %0, %1, %cst {dimension_numbers = #tpu.dot_dimension_numbers<[1], [0], [0], [1], [0, 0, 1, 1], [], []>} : vector<32x136xbf16>, vector<136x8xbf16>, vector<32x8xf32> -> vector<32x8xf32>
    %cst_3 = arith.constant 0.000000e+00 : f32
    %3 = vector.broadcast %cst_3 : f32 to vector<32x8xf32>
    %4 = arith.cmpf oge, %2, %3 : vector<32x8xf32>
    %cst_4 = arith.constant 0.00999999977 : f32
    %5 = vector.broadcast %cst_4 : f32 to vector<32x8xf32>
    %6 = arith.mulf %5, %2 : vector<32x8xf32>
    %7 = arith.select %4, %2, %6 : vector<32x8xi1>, vector<32x8xf32>
    %8 = arith.truncf %7 : vector<32x8xf32> to vector<32x8xbf16>
    %c0_5 = arith.constant 0 : index
    %c0_6 = arith.constant 0 : index
    %9 = vector.load %arg3[%c0_5, %c0_6] : memref<32x8xbf16, #tpu.memory_space<vmem>>, vector<32x8xbf16>
    tpu.vector_store %arg3[%c0_5, %c0_6], %8 {strides = array<i32>} : memref<32x8xbf16, #tpu.memory_space<vmem>>, vector<32x8xbf16>,
    return
  }
  func.func @transform_0(%arg0: i32) -> (i32, i32) {
    %c0_i32 = arith.constant 0 : i32
    %c0_i32_0 = arith.constant 0 : i32
    %c0_i32_1 = arith.constant 0 : i32
    return %c0_i32, %c0_i32_0 : i32, i32
  }
  func.func @transform_1(%arg0: i32) -> (i32, i32) {
    %c0_i32 = arith.constant 0 : i32
    %c0_i32_0 = arith.constant 0 : i32
    return %c0_i32, %arg0 : i32, i32
  }
  func.func @transform_2(%arg0: i32) -> (i32, i32) {
    %c0_i32 = arith.constant 0 : i32
    %c0_i32_0 = arith.constant 0 : i32
    return %c0_i32, %arg0 : i32, i32
  }
}

module attributes {stable_mosaic.version = 11 : i64} {
  func.func @_matmul_t_act_kernel(%arg0: i32, %arg1: memref<32x72xbf16, #tpu.memory_space<vmem>>, %arg2: memref<72x8xbf16, #tpu.memory_space<vmem>>, %arg3: memref<32x8xbf16, #tpu.memory_space<vmem>>) attributes {dimension_semantics = [#tpu.dimension_semantics<parallel>], iteration_bounds = array<i64: 1>, scalar_prefetch = 0 : i64, scratch_operands = 0 : i64, tpu.core_type = #tpu.core_type<tc>, window_params = [{pipeline_mode = #tpu.pipeline_mode<synchronous>, transform_indices = @transform_0, window_bounds = array<i64: 32, 72>}, {transform_indices = @transform_1, window_bounds = array<i64: 72, 8>}, {transform_indices = @transform_2, window_bounds = array<i64: 32, 8>}]} {
    %c0 = arith.constant 0 : index
    %c0_0 = arith.constant 0 : index
    %0 = vector.load %arg1[%c0, %c0_0] : memref<32x72xbf16, #tpu.memory_space<vmem>>, vector<32x72xbf16>
    %c0_1 = arith.constant 0 : index
    %c0_2 = arith.constant 0 : index
    %1 = vector.load %arg2[%c0_1, %c0_2] : memref<72x8xbf16, #tpu.memory_space<vmem>>, vector<72x8xbf16>
    %cst = arith.constant dense<0.000000e+00> : vector<32x8xf32>
    %2 = tpu.matmul %0, %1, %cst {dimension_numbers = #tpu.dot_dimension_numbers<[1], [0], [0], [1], [0, 0, 1, 1], [], []>} : vector<32x72xbf16>, vector<72x8xbf16>, vector<32x8xf32> -> vector<32x8xf32>
    %cst_3 = arith.constant 0.000000e+00 : f32
    %3 = vector.broadcast %cst_3 : f32 to vector<32x8xf32>
    %4 = arith.cmpf oge, %2, %3 : vector<32x8xf32>
    %cst_4 = arith.constant 0.00999999977 : f32
    %5 = vector.broadcast %cst_4 : f32 to vector<32x8xf32>
    %6 = arith.mulf %5, %2 : vector<32x8xf32>
    %7 = arith.select %4, %2, %6 : vector<32x8xi1>, vector<32x8xf32>
    %8 = arith.truncf %7 : vector<32x8xf32> to vector<32x8xbf16>
    %c0_5 = arith.constant 0 : index
    %c0_6 = arith.constant 0 : index
    %9 = vector.load %arg3[%c0_5, %c0_6] : memref<32x8xbf16, #tpu.memory_space<vmem>>, vector<32x8xbf16>
    tpu.vector_store %arg3[%c0_5, %c0_6], %8 {strides = array<i32>} : memref<32x8xbf16, #tpu.memory_space<vmem>>, vector<32x8xbf16>,
    return
  }
  func.func @transform_0(%arg0: i32) -> (i32, i32) {
    %c0_i32 = arith.constant 0 : i32
    %c0_i32_0 = arith.constant 0 : i32
    %c0_i32_1 = arith.constant 0 : i32
    return %c0_i32, %c0_i32_0 : i32, i32
  }
  func.func @transform_1(%arg0: i32) -> (i32, i32) {
    %c0_i32 = arith.constant 0 : i32
    %c0_i32_0 = arith.constant 0 : i32
    return %c0_i32, %arg0 : i32, i32
  }
  func.func @transform_2(%arg0: i32) -> (i32, i32) {
    %c0_i32 = arith.constant 0 : i32
    %c0_i32_0 = arith.constant 0 : i32
    return %c0_i32, %arg0 : i32, i32
  }
}

module attributes {stable_mosaic.version = 11 : i64} {
  func.func @_matmul_t_act_kernel(%arg0: i32, %arg1: memref<16x296xbf16, #tpu.memory_space<vmem>>, %arg2: memref<296x32xbf16, #tpu.memory_space<vmem>>, %arg3: memref<16x32xbf16, #tpu.memory_space<vmem>>) attributes {dimension_semantics = [#tpu.dimension_semantics<parallel>], iteration_bounds = array<i64: 1>, scalar_prefetch = 0 : i64, scratch_operands = 0 : i64, tpu.core_type = #tpu.core_type<tc>, window_params = [{pipeline_mode = #tpu.pipeline_mode<synchronous>, transform_indices = @transform_0, window_bounds = array<i64: 16, 296>}, {transform_indices = @transform_1, window_bounds = array<i64: 296, 32>}, {transform_indices = @transform_2, window_bounds = array<i64: 16, 32>}]} {
    %c0 = arith.constant 0 : index
    %c0_0 = arith.constant 0 : index
    %0 = vector.load %arg1[%c0, %c0_0] : memref<16x296xbf16, #tpu.memory_space<vmem>>, vector<16x296xbf16>
    %c0_1 = arith.constant 0 : index
    %c0_2 = arith.constant 0 : index
    %1 = vector.load %arg2[%c0_1, %c0_2] : memref<296x32xbf16, #tpu.memory_space<vmem>>, vector<296x32xbf16>
    %cst = arith.constant dense<0.000000e+00> : vector<16x32xf32>
    %2 = tpu.matmul %0, %1, %cst {dimension_numbers = #tpu.dot_dimension_numbers<[1], [0], [0], [1], [0, 0, 1, 1], [], []>} : vector<16x296xbf16>, vector<296x32xbf16>, vector<16x32xf32> -> vector<16x32xf32>
    %cst_3 = arith.constant 0.000000e+00 : f32
    %3 = vector.broadcast %cst_3 : f32 to vector<16x32xf32>
    %4 = arith.cmpf oge, %2, %3 : vector<16x32xf32>
    %cst_4 = arith.constant 0.00999999977 : f32
    %5 = vector.broadcast %cst_4 : f32 to vector<16x32xf32>
    %6 = arith.mulf %5, %2 : vector<16x32xf32>
    %7 = arith.select %4, %2, %6 : vector<16x32xi1>, vector<16x32xf32>
    %8 = arith.truncf %7 : vector<16x32xf32> to vector<16x32xbf16>
    %c0_5 = arith.constant 0 : index
    %c0_6 = arith.constant 0 : index
    %9 = vector.load %arg3[%c0_5, %c0_6] : memref<16x32xbf16, #tpu.memory_space<vmem>>, vector<16x32xbf16>
    tpu.vector_store %arg3[%c0_5, %c0_6], %8 {strides = array<i32>} : memref<16x32xbf16, #tpu.memory_space<vmem>>, vector<16x32xbf16>,
    return
  }
  func.func @transform_0(%arg0: i32) -> (i32, i32) {
    %c0_i32 = arith.constant 0 : i32
    %c0_i32_0 = arith.constant 0 : i32
    %c0_i32_1 = arith.constant 0 : i32
    return %c0_i32, %c0_i32_0 : i32, i32
  }
  func.func @transform_1(%arg0: i32) -> (i32, i32) {
    %c0_i32 = arith.constant 0 : i32
    %c0_i32_0 = arith.constant 0 : i32
    return %c0_i32, %arg0 : i32, i32
  }
  func.func @transform_2(%arg0: i32) -> (i32, i32) {
    %c0_i32 = arith.constant 0 : i32
    %c0_i32_0 = arith.constant 0 : i32
    return %c0_i32, %arg0 : i32, i32
  }
}

module attributes {stable_mosaic.version = 11 : i64} {
  func.func @_matmul_t_act_kernel(%arg0: i32, %arg1: memref<16x200xbf16, #tpu.memory_space<vmem>>, %arg2: memref<200x32xbf16, #tpu.memory_space<vmem>>, %arg3: memref<16x32xbf16, #tpu.memory_space<vmem>>) attributes {dimension_semantics = [#tpu.dimension_semantics<parallel>], iteration_bounds = array<i64: 1>, scalar_prefetch = 0 : i64, scratch_operands = 0 : i64, tpu.core_type = #tpu.core_type<tc>, window_params = [{pipeline_mode = #tpu.pipeline_mode<synchronous>, transform_indices = @transform_0, window_bounds = array<i64: 16, 200>}, {transform_indices = @transform_1, window_bounds = array<i64: 200, 32>}, {transform_indices = @transform_2, window_bounds = array<i64: 16, 32>}]} {
    %c0 = arith.constant 0 : index
    %c0_0 = arith.constant 0 : index
    %0 = vector.load %arg1[%c0, %c0_0] : memref<16x200xbf16, #tpu.memory_space<vmem>>, vector<16x200xbf16>
    %c0_1 = arith.constant 0 : index
    %c0_2 = arith.constant 0 : index
    %1 = vector.load %arg2[%c0_1, %c0_2] : memref<200x32xbf16, #tpu.memory_space<vmem>>, vector<200x32xbf16>
    %cst = arith.constant dense<0.000000e+00> : vector<16x32xf32>
    %2 = tpu.matmul %0, %1, %cst {dimension_numbers = #tpu.dot_dimension_numbers<[1], [0], [0], [1], [0, 0, 1, 1], [], []>} : vector<16x200xbf16>, vector<200x32xbf16>, vector<16x32xf32> -> vector<16x32xf32>
    %cst_3 = arith.constant 0.000000e+00 : f32
    %3 = vector.broadcast %cst_3 : f32 to vector<16x32xf32>
    %4 = arith.cmpf oge, %2, %3 : vector<16x32xf32>
    %cst_4 = arith.constant 0.00999999977 : f32
    %5 = vector.broadcast %cst_4 : f32 to vector<16x32xf32>
    %6 = arith.mulf %5, %2 : vector<16x32xf32>
    %7 = arith.select %4, %2, %6 : vector<16x32xi1>, vector<16x32xf32>
    %8 = arith.truncf %7 : vector<16x32xf32> to vector<16x32xbf16>
    %c0_5 = arith.constant 0 : index
    %c0_6 = arith.constant 0 : index
    %9 = vector.load %arg3[%c0_5, %c0_6] : memref<16x32xbf16, #tpu.memory_space<vmem>>, vector<16x32xbf16>
    tpu.vector_store %arg3[%c0_5, %c0_6], %8 {strides = array<i32>} : memref<16x32xbf16, #tpu.memory_space<vmem>>, vector<16x32xbf16>,
    return
  }
  func.func @transform_0(%arg0: i32) -> (i32, i32) {
    %c0_i32 = arith.constant 0 : i32
    %c0_i32_0 = arith.constant 0 : i32
    %c0_i32_1 = arith.constant 0 : i32
    return %c0_i32, %c0_i32_0 : i32, i32
  }
  func.func @transform_1(%arg0: i32) -> (i32, i32) {
    %c0_i32 = arith.constant 0 : i32
    %c0_i32_0 = arith.constant 0 : i32
    return %c0_i32, %arg0 : i32, i32
  }
  func.func @transform_2(%arg0: i32) -> (i32, i32) {
    %c0_i32 = arith.constant 0 : i32
    %c0_i32_0 = arith.constant 0 : i32
    return %c0_i32, %arg0 : i32, i32
  }
}

module attributes {stable_mosaic.version = 11 : i64} {
  func.func @_matmul_t_act_kernel(%arg0: i32, %arg1: memref<16x136xbf16, #tpu.memory_space<vmem>>, %arg2: memref<136x32xbf16, #tpu.memory_space<vmem>>, %arg3: memref<16x32xbf16, #tpu.memory_space<vmem>>) attributes {dimension_semantics = [#tpu.dimension_semantics<parallel>], iteration_bounds = array<i64: 1>, scalar_prefetch = 0 : i64, scratch_operands = 0 : i64, tpu.core_type = #tpu.core_type<tc>, window_params = [{pipeline_mode = #tpu.pipeline_mode<synchronous>, transform_indices = @transform_0, window_bounds = array<i64: 16, 136>}, {transform_indices = @transform_1, window_bounds = array<i64: 136, 32>}, {transform_indices = @transform_2, window_bounds = array<i64: 16, 32>}]} {
    %c0 = arith.constant 0 : index
    %c0_0 = arith.constant 0 : index
    %0 = vector.load %arg1[%c0, %c0_0] : memref<16x136xbf16, #tpu.memory_space<vmem>>, vector<16x136xbf16>
    %c0_1 = arith.constant 0 : index
    %c0_2 = arith.constant 0 : index
    %1 = vector.load %arg2[%c0_1, %c0_2] : memref<136x32xbf16, #tpu.memory_space<vmem>>, vector<136x32xbf16>
    %cst = arith.constant dense<0.000000e+00> : vector<16x32xf32>
    %2 = tpu.matmul %0, %1, %cst {dimension_numbers = #tpu.dot_dimension_numbers<[1], [0], [0], [1], [0, 0, 1, 1], [], []>} : vector<16x136xbf16>, vector<136x32xbf16>, vector<16x32xf32> -> vector<16x32xf32>
    %cst_3 = arith.constant 0.000000e+00 : f32
    %3 = vector.broadcast %cst_3 : f32 to vector<16x32xf32>
    %4 = arith.cmpf oge, %2, %3 : vector<16x32xf32>
    %cst_4 = arith.constant 0.00999999977 : f32
    %5 = vector.broadcast %cst_4 : f32 to vector<16x32xf32>
    %6 = arith.mulf %5, %2 : vector<16x32xf32>
    %7 = arith.select %4, %2, %6 : vector<16x32xi1>, vector<16x32xf32>
    %8 = arith.truncf %7 : vector<16x32xf32> to vector<16x32xbf16>
    %c0_5 = arith.constant 0 : index
    %c0_6 = arith.constant 0 : index
    %9 = vector.load %arg3[%c0_5, %c0_6] : memref<16x32xbf16, #tpu.memory_space<vmem>>, vector<16x32xbf16>
    tpu.vector_store %arg3[%c0_5, %c0_6], %8 {strides = array<i32>} : memref<16x32xbf16, #tpu.memory_space<vmem>>, vector<16x32xbf16>,
    return
  }
  func.func @transform_0(%arg0: i32) -> (i32, i32) {
    %c0_i32 = arith.constant 0 : i32
    %c0_i32_0 = arith.constant 0 : i32
    %c0_i32_1 = arith.constant 0 : i32
    return %c0_i32, %c0_i32_0 : i32, i32
  }
  func.func @transform_1(%arg0: i32) -> (i32, i32) {
    %c0_i32 = arith.constant 0 : i32
    %c0_i32_0 = arith.constant 0 : i32
    return %c0_i32, %arg0 : i32, i32
  }
  func.func @transform_2(%arg0: i32) -> (i32, i32) {
    %c0_i32 = arith.constant 0 : i32
    %c0_i32_0 = arith.constant 0 : i32
    return %c0_i32, %arg0 : i32, i32
  }
}

module attributes {stable_mosaic.version = 11 : i64} {
  func.func @_matmul_t_act_kernel(%arg0: i32, %arg1: memref<8x152xbf16, #tpu.memory_space<vmem>>, %arg2: memref<152x128xbf16, #tpu.memory_space<vmem>>, %arg3: memref<8x128xbf16, #tpu.memory_space<vmem>>) attributes {dimension_semantics = [#tpu.dimension_semantics<parallel>], iteration_bounds = array<i64: 1>, scalar_prefetch = 0 : i64, scratch_operands = 0 : i64, tpu.core_type = #tpu.core_type<tc>, window_params = [{pipeline_mode = #tpu.pipeline_mode<synchronous>, transform_indices = @transform_0, window_bounds = array<i64: 8, 152>}, {transform_indices = @transform_1, window_bounds = array<i64: 152, 128>}, {transform_indices = @transform_2, window_bounds = array<i64: 8, 128>}]} {
    %c0 = arith.constant 0 : index
    %c0_0 = arith.constant 0 : index
    %0 = vector.load %arg1[%c0, %c0_0] : memref<8x152xbf16, #tpu.memory_space<vmem>>, vector<8x152xbf16>
    %c0_1 = arith.constant 0 : index
    %c0_2 = arith.constant 0 : index
    %1 = vector.load %arg2[%c0_1, %c0_2] : memref<152x128xbf16, #tpu.memory_space<vmem>>, vector<152x128xbf16>
    %cst = arith.constant dense<0.000000e+00> : vector<8x128xf32>
    %2 = tpu.matmul %0, %1, %cst {dimension_numbers = #tpu.dot_dimension_numbers<[1], [0], [0], [1], [0, 0, 1, 1], [], []>} : vector<8x152xbf16>, vector<152x128xbf16>, vector<8x128xf32> -> vector<8x128xf32>
    %cst_3 = arith.constant 0.000000e+00 : f32
    %3 = vector.broadcast %cst_3 : f32 to vector<8x128xf32>
    %4 = arith.cmpf oge, %2, %3 : vector<8x128xf32>
    %cst_4 = arith.constant 0.00999999977 : f32
    %5 = vector.broadcast %cst_4 : f32 to vector<8x128xf32>
    %6 = arith.mulf %5, %2 : vector<8x128xf32>
    %7 = arith.select %4, %2, %6 : vector<8x128xi1>, vector<8x128xf32>
    %8 = arith.truncf %7 : vector<8x128xf32> to vector<8x128xbf16>
    %c0_5 = arith.constant 0 : index
    %c0_6 = arith.constant 0 : index
    %9 = vector.load %arg3[%c0_5, %c0_6] : memref<8x128xbf16, #tpu.memory_space<vmem>>, vector<8x128xbf16>
    tpu.vector_store %arg3[%c0_5, %c0_6], %8 {strides = array<i32>} : memref<8x128xbf16, #tpu.memory_space<vmem>>, vector<8x128xbf16>,
    return
  }
  func.func @transform_0(%arg0: i32) -> (i32, i32) {
    %c0_i32 = arith.constant 0 : i32
    %c0_i32_0 = arith.constant 0 : i32
    %c0_i32_1 = arith.constant 0 : i32
    return %c0_i32, %c0_i32_0 : i32, i32
  }
  func.func @transform_1(%arg0: i32) -> (i32, i32) {
    %c0_i32 = arith.constant 0 : i32
    %c0_i32_0 = arith.constant 0 : i32
    return %c0_i32, %arg0 : i32, i32
  }
  func.func @transform_2(%arg0: i32) -> (i32, i32) {
    %c0_i32 = arith.constant 0 : i32
    %c0_i32_0 = arith.constant 0 : i32
    return %c0_i32, %arg0 : i32, i32
  }
}

module attributes {stable_mosaic.version = 11 : i64} {
  func.func @_matmul_t_act_kernel(%arg0: i32, %arg1: memref<8x104xbf16, #tpu.memory_space<vmem>>, %arg2: memref<104x128xbf16, #tpu.memory_space<vmem>>, %arg3: memref<8x128xbf16, #tpu.memory_space<vmem>>) attributes {dimension_semantics = [#tpu.dimension_semantics<parallel>], iteration_bounds = array<i64: 1>, scalar_prefetch = 0 : i64, scratch_operands = 0 : i64, tpu.core_type = #tpu.core_type<tc>, window_params = [{pipeline_mode = #tpu.pipeline_mode<synchronous>, transform_indices = @transform_0, window_bounds = array<i64: 8, 104>}, {transform_indices = @transform_1, window_bounds = array<i64: 104, 128>}, {transform_indices = @transform_2, window_bounds = array<i64: 8, 128>}]} {
    %c0 = arith.constant 0 : index
    %c0_0 = arith.constant 0 : index
    %0 = vector.load %arg1[%c0, %c0_0] : memref<8x104xbf16, #tpu.memory_space<vmem>>, vector<8x104xbf16>
    %c0_1 = arith.constant 0 : index
    %c0_2 = arith.constant 0 : index
    %1 = vector.load %arg2[%c0_1, %c0_2] : memref<104x128xbf16, #tpu.memory_space<vmem>>, vector<104x128xbf16>
    %cst = arith.constant dense<0.000000e+00> : vector<8x128xf32>
    %2 = tpu.matmul %0, %1, %cst {dimension_numbers = #tpu.dot_dimension_numbers<[1], [0], [0], [1], [0, 0, 1, 1], [], []>} : vector<8x104xbf16>, vector<104x128xbf16>, vector<8x128xf32> -> vector<8x128xf32>
    %cst_3 = arith.constant 0.000000e+00 : f32
    %3 = vector.broadcast %cst_3 : f32 to vector<8x128xf32>
    %4 = arith.cmpf oge, %2, %3 : vector<8x128xf32>
    %cst_4 = arith.constant 0.00999999977 : f32
    %5 = vector.broadcast %cst_4 : f32 to vector<8x128xf32>
    %6 = arith.mulf %5, %2 : vector<8x128xf32>
    %7 = arith.select %4, %2, %6 : vector<8x128xi1>, vector<8x128xf32>
    %8 = arith.truncf %7 : vector<8x128xf32> to vector<8x128xbf16>
    %c0_5 = arith.constant 0 : index
    %c0_6 = arith.constant 0 : index
    %9 = vector.load %arg3[%c0_5, %c0_6] : memref<8x128xbf16, #tpu.memory_space<vmem>>, vector<8x128xbf16>
    tpu.vector_store %arg3[%c0_5, %c0_6], %8 {strides = array<i32>} : memref<8x128xbf16, #tpu.memory_space<vmem>>, vector<8x128xbf16>,
    return
  }
  func.func @transform_0(%arg0: i32) -> (i32, i32) {
    %c0_i32 = arith.constant 0 : i32
    %c0_i32_0 = arith.constant 0 : i32
    %c0_i32_1 = arith.constant 0 : i32
    return %c0_i32, %c0_i32_0 : i32, i32
  }
  func.func @transform_1(%arg0: i32) -> (i32, i32) {
    %c0_i32 = arith.constant 0 : i32
    %c0_i32_0 = arith.constant 0 : i32
    return %c0_i32, %arg0 : i32, i32
  }
  func.func @transform_2(%arg0: i32) -> (i32, i32) {
    %c0_i32 = arith.constant 0 : i32
    %c0_i32_0 = arith.constant 0 : i32
    return %c0_i32, %arg0 : i32, i32
  }
}

module attributes {stable_mosaic.version = 11 : i64} {
  func.func @_matmul_t_act_kernel(%arg0: i32, %arg1: memref<8x72xbf16, #tpu.memory_space<vmem>>, %arg2: memref<72x128xbf16, #tpu.memory_space<vmem>>, %arg3: memref<8x128xbf16, #tpu.memory_space<vmem>>) attributes {dimension_semantics = [#tpu.dimension_semantics<parallel>], iteration_bounds = array<i64: 1>, scalar_prefetch = 0 : i64, scratch_operands = 0 : i64, tpu.core_type = #tpu.core_type<tc>, window_params = [{pipeline_mode = #tpu.pipeline_mode<synchronous>, transform_indices = @transform_0, window_bounds = array<i64: 8, 72>}, {transform_indices = @transform_1, window_bounds = array<i64: 72, 128>}, {transform_indices = @transform_2, window_bounds = array<i64: 8, 128>}]} {
    %c0 = arith.constant 0 : index
    %c0_0 = arith.constant 0 : index
    %0 = vector.load %arg1[%c0, %c0_0] : memref<8x72xbf16, #tpu.memory_space<vmem>>, vector<8x72xbf16>
    %c0_1 = arith.constant 0 : index
    %c0_2 = arith.constant 0 : index
    %1 = vector.load %arg2[%c0_1, %c0_2] : memref<72x128xbf16, #tpu.memory_space<vmem>>, vector<72x128xbf16>
    %cst = arith.constant dense<0.000000e+00> : vector<8x128xf32>
    %2 = tpu.matmul %0, %1, %cst {dimension_numbers = #tpu.dot_dimension_numbers<[1], [0], [0], [1], [0, 0, 1, 1], [], []>} : vector<8x72xbf16>, vector<72x128xbf16>, vector<8x128xf32> -> vector<8x128xf32>
    %cst_3 = arith.constant 0.000000e+00 : f32
    %3 = vector.broadcast %cst_3 : f32 to vector<8x128xf32>
    %4 = arith.cmpf oge, %2, %3 : vector<8x128xf32>
    %cst_4 = arith.constant 0.00999999977 : f32
    %5 = vector.broadcast %cst_4 : f32 to vector<8x128xf32>
    %6 = arith.mulf %5, %2 : vector<8x128xf32>
    %7 = arith.select %4, %2, %6 : vector<8x128xi1>, vector<8x128xf32>
    %8 = arith.truncf %7 : vector<8x128xf32> to vector<8x128xbf16>
    %c0_5 = arith.constant 0 : index
    %c0_6 = arith.constant 0 : index
    %9 = vector.load %arg3[%c0_5, %c0_6] : memref<8x128xbf16, #tpu.memory_space<vmem>>, vector<8x128xbf16>
    tpu.vector_store %arg3[%c0_5, %c0_6], %8 {strides = array<i32>} : memref<8x128xbf16, #tpu.memory_space<vmem>>, vector<8x128xbf16>,
    return
  }
  func.func @transform_0(%arg0: i32) -> (i32, i32) {
    %c0_i32 = arith.constant 0 : i32
    %c0_i32_0 = arith.constant 0 : i32
    %c0_i32_1 = arith.constant 0 : i32
    return %c0_i32, %c0_i32_0 : i32, i32
  }
  func.func @transform_1(%arg0: i32) -> (i32, i32) {
    %c0_i32 = arith.constant 0 : i32
    %c0_i32_0 = arith.constant 0 : i32
    return %c0_i32, %arg0 : i32, i32
  }
  func.func @transform_2(%arg0: i32) -> (i32, i32) {
    %c0_i32 = arith.constant 0 : i32
    %c0_i32_0 = arith.constant 0 : i32
    return %c0_i32, %arg0 : i32, i32
  }
}

module attributes {stable_mosaic.version = 11 : i64} {
  func.func @_matmul_t_act_kernel(%arg0: i32, %arg1: memref<4x80xbf16, #tpu.memory_space<vmem>>, %arg2: memref<80x256xbf16, #tpu.memory_space<vmem>>, %arg3: memref<4x256xbf16, #tpu.memory_space<vmem>>) attributes {dimension_semantics = [#tpu.dimension_semantics<parallel>], iteration_bounds = array<i64: 2>, scalar_prefetch = 0 : i64, scratch_operands = 0 : i64, tpu.core_type = #tpu.core_type<tc>, window_params = [{pipeline_mode = #tpu.pipeline_mode<synchronous>, transform_indices = @transform_0, window_bounds = array<i64: 4, 80>}, {transform_indices = @transform_1, window_bounds = array<i64: 80, 256>}, {transform_indices = @transform_2, window_bounds = array<i64: 4, 256>}]} {
    %c0 = arith.constant 0 : index
    %c0_0 = arith.constant 0 : index
    %0 = vector.load %arg1[%c0, %c0_0] : memref<4x80xbf16, #tpu.memory_space<vmem>>, vector<4x80xbf16>
    %c0_1 = arith.constant 0 : index
    %c0_2 = arith.constant 0 : index
    %1 = vector.load %arg2[%c0_1, %c0_2] : memref<80x256xbf16, #tpu.memory_space<vmem>>, vector<80x256xbf16>
    %cst = arith.constant dense<0.000000e+00> : vector<4x256xf32>
    %2 = tpu.matmul %0, %1, %cst {dimension_numbers = #tpu.dot_dimension_numbers<[1], [0], [0], [1], [0, 0, 1, 1], [], []>} : vector<4x80xbf16>, vector<80x256xbf16>, vector<4x256xf32> -> vector<4x256xf32>
    %cst_3 = arith.constant 0.000000e+00 : f32
    %3 = vector.broadcast %cst_3 : f32 to vector<4x256xf32>
    %4 = arith.cmpf oge, %2, %3 : vector<4x256xf32>
    %cst_4 = arith.constant 0.00999999977 : f32
    %5 = vector.broadcast %cst_4 : f32 to vector<4x256xf32>
    %6 = arith.mulf %5, %2 : vector<4x256xf32>
    %7 = arith.select %4, %2, %6 : vector<4x256xi1>, vector<4x256xf32>
    %8 = arith.truncf %7 : vector<4x256xf32> to vector<4x256xbf16>
    %c0_5 = arith.constant 0 : index
    %c0_6 = arith.constant 0 : index
    %9 = vector.load %arg3[%c0_5, %c0_6] : memref<4x256xbf16, #tpu.memory_space<vmem>>, vector<4x256xbf16>
    tpu.vector_store %arg3[%c0_5, %c0_6], %8 {strides = array<i32>} : memref<4x256xbf16, #tpu.memory_space<vmem>>, vector<4x256xbf16>,
    return
  }
  func.func @transform_0(%arg0: i32) -> (i32, i32) {
    %c0_i32 = arith.constant 0 : i32
    %c0_i32_0 = arith.constant 0 : i32
    %c0_i32_1 = arith.constant 0 : i32
    return %c0_i32, %c0_i32_0 : i32, i32
  }
  func.func @transform_1(%arg0: i32) -> (i32, i32) {
    %c0_i32 = arith.constant 0 : i32
    %c0_i32_0 = arith.constant 0 : i32
    return %c0_i32, %arg0 : i32, i32
  }
  func.func @transform_2(%arg0: i32) -> (i32, i32) {
    %c0_i32 = arith.constant 0 : i32
    %c0_i32_0 = arith.constant 0 : i32
    return %c0_i32, %arg0 : i32, i32
  }
}

module attributes {stable_mosaic.version = 11 : i64} {
  func.func @_matmul_t_act_kernel(%arg0: i32, %arg1: memref<4x56xbf16, #tpu.memory_space<vmem>>, %arg2: memref<56x256xbf16, #tpu.memory_space<vmem>>, %arg3: memref<4x256xbf16, #tpu.memory_space<vmem>>) attributes {dimension_semantics = [#tpu.dimension_semantics<parallel>], iteration_bounds = array<i64: 2>, scalar_prefetch = 0 : i64, scratch_operands = 0 : i64, tpu.core_type = #tpu.core_type<tc>, window_params = [{pipeline_mode = #tpu.pipeline_mode<synchronous>, transform_indices = @transform_0, window_bounds = array<i64: 4, 56>}, {transform_indices = @transform_1, window_bounds = array<i64: 56, 256>}, {transform_indices = @transform_2, window_bounds = array<i64: 4, 256>}]} {
    %c0 = arith.constant 0 : index
    %c0_0 = arith.constant 0 : index
    %0 = vector.load %arg1[%c0, %c0_0] : memref<4x56xbf16, #tpu.memory_space<vmem>>, vector<4x56xbf16>
    %c0_1 = arith.constant 0 : index
    %c0_2 = arith.constant 0 : index
    %1 = vector.load %arg2[%c0_1, %c0_2] : memref<56x256xbf16, #tpu.memory_space<vmem>>, vector<56x256xbf16>
    %cst = arith.constant dense<0.000000e+00> : vector<4x256xf32>
    %2 = tpu.matmul %0, %1, %cst {dimension_numbers = #tpu.dot_dimension_numbers<[1], [0], [0], [1], [0, 0, 1, 1], [], []>} : vector<4x56xbf16>, vector<56x256xbf16>, vector<4x256xf32> -> vector<4x256xf32>
    %cst_3 = arith.constant 0.000000e+00 : f32
    %3 = vector.broadcast %cst_3 : f32 to vector<4x256xf32>
    %4 = arith.cmpf oge, %2, %3 : vector<4x256xf32>
    %cst_4 = arith.constant 0.00999999977 : f32
    %5 = vector.broadcast %cst_4 : f32 to vector<4x256xf32>
    %6 = arith.mulf %5, %2 : vector<4x256xf32>
    %7 = arith.select %4, %2, %6 : vector<4x256xi1>, vector<4x256xf32>
    %8 = arith.truncf %7 : vector<4x256xf32> to vector<4x256xbf16>
    %c0_5 = arith.constant 0 : index
    %c0_6 = arith.constant 0 : index
    %9 = vector.load %arg3[%c0_5, %c0_6] : memref<4x256xbf16, #tpu.memory_space<vmem>>, vector<4x256xbf16>
    tpu.vector_store %arg3[%c0_5, %c0_6], %8 {strides = array<i32>} : memref<4x256xbf16, #tpu.memory_space<vmem>>, vector<4x256xbf16>,
    return
  }
  func.func @transform_0(%arg0: i32) -> (i32, i32) {
    %c0_i32 = arith.constant 0 : i32
    %c0_i32_0 = arith.constant 0 : i32
    %c0_i32_1 = arith.constant 0 : i32
    return %c0_i32, %c0_i32_0 : i32, i32
  }
  func.func @transform_1(%arg0: i32) -> (i32, i32) {
    %c0_i32 = arith.constant 0 : i32
    %c0_i32_0 = arith.constant 0 : i32
    return %c0_i32, %arg0 : i32, i32
  }
  func.func @transform_2(%arg0: i32) -> (i32, i32) {
    %c0_i32 = arith.constant 0 : i32
    %c0_i32_0 = arith.constant 0 : i32
    return %c0_i32, %arg0 : i32, i32
  }
}

module attributes {stable_mosaic.version = 11 : i64} {
  func.func @_matmul_t_act_kernel(%arg0: i32, %arg1: memref<4x40xbf16, #tpu.memory_space<vmem>>, %arg2: memref<40x256xbf16, #tpu.memory_space<vmem>>, %arg3: memref<4x256xbf16, #tpu.memory_space<vmem>>) attributes {dimension_semantics = [#tpu.dimension_semantics<parallel>], iteration_bounds = array<i64: 2>, scalar_prefetch = 0 : i64, scratch_operands = 0 : i64, tpu.core_type = #tpu.core_type<tc>, window_params = [{pipeline_mode = #tpu.pipeline_mode<synchronous>, transform_indices = @transform_0, window_bounds = array<i64: 4, 40>}, {transform_indices = @transform_1, window_bounds = array<i64: 40, 256>}, {transform_indices = @transform_2, window_bounds = array<i64: 4, 256>}]} {
    %c0 = arith.constant 0 : index
    %c0_0 = arith.constant 0 : index
    %0 = vector.load %arg1[%c0, %c0_0] : memref<4x40xbf16, #tpu.memory_space<vmem>>, vector<4x40xbf16>
    %c0_1 = arith.constant 0 : index
    %c0_2 = arith.constant 0 : index
    %1 = vector.load %arg2[%c0_1, %c0_2] : memref<40x256xbf16, #tpu.memory_space<vmem>>, vector<40x256xbf16>
    %cst = arith.constant dense<0.000000e+00> : vector<4x256xf32>
    %2 = tpu.matmul %0, %1, %cst {dimension_numbers = #tpu.dot_dimension_numbers<[1], [0], [0], [1], [0, 0, 1, 1], [], []>} : vector<4x40xbf16>, vector<40x256xbf16>, vector<4x256xf32> -> vector<4x256xf32>
    %cst_3 = arith.constant 0.000000e+00 : f32
    %3 = vector.broadcast %cst_3 : f32 to vector<4x256xf32>
    %4 = arith.cmpf oge, %2, %3 : vector<4x256xf32>
    %cst_4 = arith.constant 0.00999999977 : f32
    %5 = vector.broadcast %cst_4 : f32 to vector<4x256xf32>
    %6 = arith.mulf %5, %2 : vector<4x256xf32>
    %7 = arith.select %4, %2, %6 : vector<4x256xi1>, vector<4x256xf32>
    %8 = arith.truncf %7 : vector<4x256xf32> to vector<4x256xbf16>
    %c0_5 = arith.constant 0 : index
    %c0_6 = arith.constant 0 : index
    %9 = vector.load %arg3[%c0_5, %c0_6] : memref<4x256xbf16, #tpu.memory_space<vmem>>, vector<4x256xbf16>
    tpu.vector_store %arg3[%c0_5, %c0_6], %8 {strides = array<i32>} : memref<4x256xbf16, #tpu.memory_space<vmem>>, vector<4x256xbf16>,
    return
  }
  func.func @transform_0(%arg0: i32) -> (i32, i32) {
    %c0_i32 = arith.constant 0 : i32
    %c0_i32_0 = arith.constant 0 : i32
    %c0_i32_1 = arith.constant 0 : i32
    return %c0_i32, %c0_i32_0 : i32, i32
  }
  func.func @transform_1(%arg0: i32) -> (i32, i32) {
    %c0_i32 = arith.constant 0 : i32
    %c0_i32_0 = arith.constant 0 : i32
    return %c0_i32, %arg0 : i32, i32
  }
  func.func @transform_2(%arg0: i32) -> (i32, i32) {
    %c0_i32 = arith.constant 0 : i32
    %c0_i32_0 = arith.constant 0 : i32
    return %c0_i32, %arg0 : i32, i32
  }
}

module attributes {stable_mosaic.version = 11 : i64} {
  func.func @_matmul_t_act_kernel(%arg0: i32, %arg1: memref<3x40xbf16, #tpu.memory_space<vmem>>, %arg2: memref<40x1024xbf16, #tpu.memory_space<vmem>>, %arg3: memref<3x1024xf32, #tpu.memory_space<vmem>>) attributes {dimension_semantics = [#tpu.dimension_semantics<parallel>], iteration_bounds = array<i64: 2>, scalar_prefetch = 0 : i64, scratch_operands = 0 : i64, tpu.core_type = #tpu.core_type<tc>, window_params = [{pipeline_mode = #tpu.pipeline_mode<synchronous>, transform_indices = @transform_0, window_bounds = array<i64: 3, 40>}, {transform_indices = @transform_1, window_bounds = array<i64: 40, 1024>}, {transform_indices = @transform_2, window_bounds = array<i64: 3, 1024>}]} {
    %c0 = arith.constant 0 : index
    %c0_0 = arith.constant 0 : index
    %0 = vector.load %arg1[%c0, %c0_0] : memref<3x40xbf16, #tpu.memory_space<vmem>>, vector<3x40xbf16>
    %c0_1 = arith.constant 0 : index
    %c0_2 = arith.constant 0 : index
    %1 = vector.load %arg2[%c0_1, %c0_2] : memref<40x1024xbf16, #tpu.memory_space<vmem>>, vector<40x1024xbf16>
    %cst = arith.constant dense<0.000000e+00> : vector<3x1024xf32>
    %2 = tpu.matmul %0, %1, %cst {dimension_numbers = #tpu.dot_dimension_numbers<[1], [0], [0], [1], [0, 0, 1, 1], [], []>} : vector<3x40xbf16>, vector<40x1024xbf16>, vector<3x1024xf32> -> vector<3x1024xf32>
    %c0_3 = arith.constant 0 : index
    %c0_4 = arith.constant 0 : index
    %3 = vector.load %arg3[%c0_3, %c0_4] : memref<3x1024xf32, #tpu.memory_space<vmem>>, vector<3x1024xf32>
    tpu.vector_store %arg3[%c0_3, %c0_4], %2 {strides = array<i32>} : memref<3x1024xf32, #tpu.memory_space<vmem>>, vector<3x1024xf32>,
    return
  }
  func.func @transform_0(%arg0: i32) -> (i32, i32) {
    %c0_i32 = arith.constant 0 : i32
    %c0_i32_0 = arith.constant 0 : i32
    %c0_i32_1 = arith.constant 0 : i32
    return %c0_i32, %c0_i32_0 : i32, i32
  }
  func.func @transform_1(%arg0: i32) -> (i32, i32) {
    %c0_i32 = arith.constant 0 : i32
    %c0_i32_0 = arith.constant 0 : i32
    return %c0_i32, %arg0 : i32, i32
  }
  func.func @transform_2(%arg0: i32) -> (i32, i32) {
    %c0_i32 = arith.constant 0 : i32
    %c0_i32_0 = arith.constant 0 : i32
    return %c0_i32, %arg0 : i32, i32
  }
}

module attributes {stable_mosaic.version = 11 : i64} {
  func.func @_matmul_t_act_kernel(%arg0: i32, %arg1: memref<3x32xbf16, #tpu.memory_space<vmem>>, %arg2: memref<32x1024xbf16, #tpu.memory_space<vmem>>, %arg3: memref<3x1024xf32, #tpu.memory_space<vmem>>) attributes {dimension_semantics = [#tpu.dimension_semantics<parallel>], iteration_bounds = array<i64: 2>, scalar_prefetch = 0 : i64, scratch_operands = 0 : i64, tpu.core_type = #tpu.core_type<tc>, window_params = [{pipeline_mode = #tpu.pipeline_mode<synchronous>, transform_indices = @transform_0, window_bounds = array<i64: 3, 32>}, {transform_indices = @transform_1, window_bounds = array<i64: 32, 1024>}, {transform_indices = @transform_2, window_bounds = array<i64: 3, 1024>}]} {
    %c0 = arith.constant 0 : index
    %c0_0 = arith.constant 0 : index
    %0 = vector.load %arg1[%c0, %c0_0] : memref<3x32xbf16, #tpu.memory_space<vmem>>, vector<3x32xbf16>
    %c0_1 = arith.constant 0 : index
    %c0_2 = arith.constant 0 : index
    %1 = vector.load %arg2[%c0_1, %c0_2] : memref<32x1024xbf16, #tpu.memory_space<vmem>>, vector<32x1024xbf16>
    %cst = arith.constant dense<0.000000e+00> : vector<3x1024xf32>
    %2 = tpu.matmul %0, %1, %cst {dimension_numbers = #tpu.dot_dimension_numbers<[1], [0], [0], [1], [0, 0, 1, 1], [], []>} : vector<3x32xbf16>, vector<32x1024xbf16>, vector<3x1024xf32> -> vector<3x1024xf32>
    %c0_3 = arith.constant 0 : index
    %c0_4 = arith.constant 0 : index
    %3 = vector.load %arg3[%c0_3, %c0_4] : memref<3x1024xf32, #tpu.memory_space<vmem>>, vector<3x1024xf32>
    tpu.vector_store %arg3[%c0_3, %c0_4], %2 {strides = array<i32>} : memref<3x1024xf32, #tpu.memory_space<vmem>>, vector<3x1024xf32>,
    return
  }
  func.func @transform_0(%arg0: i32) -> (i32, i32) {
    %c0_i32 = arith.constant 0 : i32
    %c0_i32_0 = arith.constant 0 : i32
    %c0_i32_1 = arith.constant 0 : i32
    return %c0_i32, %c0_i32_0 : i32, i32
  }
  func.func @transform_1(%arg0: i32) -> (i32, i32) {
    %c0_i32 = arith.constant 0 : i32
    %c0_i32_0 = arith.constant 0 : i32
    return %c0_i32, %arg0 : i32, i32
  }
  func.func @transform_2(%arg0: i32) -> (i32, i32) {
    %c0_i32 = arith.constant 0 : i32
    %c0_i32_0 = arith.constant 0 : i32
    return %c0_i32, %arg0 : i32, i32
  }
}

module attributes {stable_mosaic.version = 11 : i64} {
  func.func @_matmul_t_act_kernel(%arg0: i32, %arg1: memref<3x24xbf16, #tpu.memory_space<vmem>>, %arg2: memref<24x1024xbf16, #tpu.memory_space<vmem>>, %arg3: memref<3x1024xf32, #tpu.memory_space<vmem>>) attributes {dimension_semantics = [#tpu.dimension_semantics<parallel>], iteration_bounds = array<i64: 2>, scalar_prefetch = 0 : i64, scratch_operands = 0 : i64, tpu.core_type = #tpu.core_type<tc>, window_params = [{pipeline_mode = #tpu.pipeline_mode<synchronous>, transform_indices = @transform_0, window_bounds = array<i64: 3, 24>}, {transform_indices = @transform_1, window_bounds = array<i64: 24, 1024>}, {transform_indices = @transform_2, window_bounds = array<i64: 3, 1024>}]} {
    %c0 = arith.constant 0 : index
    %c0_0 = arith.constant 0 : index
    %0 = vector.load %arg1[%c0, %c0_0] : memref<3x24xbf16, #tpu.memory_space<vmem>>, vector<3x24xbf16>
    %c0_1 = arith.constant 0 : index
    %c0_2 = arith.constant 0 : index
    %1 = vector.load %arg2[%c0_1, %c0_2] : memref<24x1024xbf16, #tpu.memory_space<vmem>>, vector<24x1024xbf16>
    %cst = arith.constant dense<0.000000e+00> : vector<3x1024xf32>
    %2 = tpu.matmul %0, %1, %cst {dimension_numbers = #tpu.dot_dimension_numbers<[1], [0], [0], [1], [0, 0, 1, 1], [], []>} : vector<3x24xbf16>, vector<24x1024xbf16>, vector<3x1024xf32> -> vector<3x1024xf32>
    %c0_3 = arith.constant 0 : index
    %c0_4 = arith.constant 0 : index
    %3 = vector.load %arg3[%c0_3, %c0_4] : memref<3x1024xf32, #tpu.memory_space<vmem>>, vector<3x1024xf32>
    tpu.vector_store %arg3[%c0_3, %c0_4], %2 {strides = array<i32>} : memref<3x1024xf32, #tpu.memory_space<vmem>>, vector<3x1024xf32>,
    return
  }
  func.func @transform_0(%arg0: i32) -> (i32, i32) {
    %c0_i32 = arith.constant 0 : i32
    %c0_i32_0 = arith.constant 0 : i32
    %c0_i32_1 = arith.constant 0 : i32
    return %c0_i32, %c0_i32_0 : i32, i32
  }
  func.func @transform_1(%arg0: i32) -> (i32, i32) {
    %c0_i32 = arith.constant 0 : i32
    %c0_i32_0 = arith.constant 0 : i32
    return %c0_i32, %arg0 : i32, i32
  }
  func.func @transform_2(%arg0: i32) -> (i32, i32) {
    %c0_i32 = arith.constant 0 : i32
    %c0_i32_0 = arith.constant 0 : i32
    return %c0_i32, %arg0 : i32, i32
  }
}

</mosaic_0001>

<llo_original>
// kernel: cae5_forward.26
$region0: #{cae5_forward.26}
  #allocation0 [shape = 'u32[]', space=smem, size = 0x4, offset = 0x4, fixed_abs, tag = 'smem constant byte address 0x4 - core index']
  #allocation1 [shape = 'u32[144,128]{1,0:T(1,128)}', space=vmem, size = 0x12000, scoped, tag = 'internal scratch']
  %s0 = inlined_call_operand.vmem [shape: bf16[4,80], index: 0, kind: input, shape index: {}]
  %s1 = inlined_call_operand.vmem [shape: bf16[80,2048], index: 1, kind: input, shape index: {}]
  %s2 = inlined_call_operand.vmem [shape: bf16[4,2048], index: 2, kind: output, shape index: {}]
  %s3 = sld [smem:[#allocation0]]
  $region64: #{cae5_forward.26} parent=0
    _
  %s5 = ssub.s32 1, %s3
  %s6 = scalar_select 0, %s5, %s3
  $region1: #{cae5_forward.26} parent=0
    #allocation2 [shape = 'u8[327680]{0}', space=vmem, size = 0x50000, scoped, tag = 'input window, operand 1']
    loop: start=0, step=1, limit=4
    $region2: #{cae5_forward.26} parent=1 // loop_pre_header
      _
    $region3: #{cae5_forward.26} parent=1 // loop_header
      %s8 = sphi 0, %s12
      %p9 = scmp.ge.s32.totalorder %s8, 4
      %s16 = sphi 0, %s16
      %s18 = sphi 0, %s16
      %s19 = sphi 0, %s18
      %s33 = sphi 0, %s19
      %s39 = sphi 0, %s41
      %s42 = sphi 0, %s39
      %s43 = sphi 0, %s42
      %s59 = sphi 0, %s43
      %s65 = sphi 0, %s67
      %s68 = sphi 0, %s65
      %s69 = sphi 0, %s68
      %s85 = sphi 0, %s69
    $region4: #{cae5_forward.26} parent=1 // loop_header_branch
      %11 = sbr.rel (%p9) target = $region8
    $region5: #{cae5_forward.26} parent=1 // loop_body
      %s13 = ssub.s32 %s8, 1
      %s14 = ssub.s32 %s8, 2
      %s15 = sadd.s32 %s8, 1
      %s17 = sadd.s32 %s16, 1
      %p20 = scmp.eq.s32.totalorder %s8, 1
      %p21 = scmp.ne.s32.totalorder %s16, %s18
      %p22 = scmp.eq.s32.totalorder %s8, 0
      %p23 = por %p21, %p22
      %p24 = scmp.ne.s32.totalorder %s16, %s18
      %p25 = scmp.eq.s32.totalorder %s13, 1
      %p26 = por %p24, %p25
      %p27 = scmp.ne.s32.totalorder %s18, %s19
      %p28 = scmp.eq.s32.totalorder %s13, 0
      %p29 = por %p27, %p28
      %p30 = scmp.ne.s32.totalorder %s18, %s19
      %p31 = scmp.eq.s32.totalorder %s14, 1
      %p32 = por %p30, %p31
      %p34 = scmp.ne.s32.totalorder %s19, %s33
      %p35 = scmp.eq.s32.totalorder %s14, 0
      %p36 = por %p34, %p35
      %s37 = ssub.s32 %s8, %s15
      %p38 = scmp.eq.s32.totalorder %s37, 0
      %s40 = sadd.s32 %s39, 1
      %s41 = scalar_select %p38, %s39, %s40
      %p44 = pneg %p38
      %p45 = scmp.eq.s32.totalorder %s8, 1
      %p46 = por %p44, %p45
      %p47 = scmp.ne.s32.totalorder %s39, %s42
      %p48 = scmp.eq.s32.totalorder %s8, 0
      %p49 = por %p47, %p48
      %p50 = scmp.ne.s32.totalorder %s39, %s42
      %p51 = scmp.eq.s32.totalorder %s13, 1
      %p52 = por %p50, %p51
      %p53 = scmp.ne.s32.totalorder %s42, %s43
      %p54 = scmp.eq.s32.totalorder %s13, 0
      %p55 = por %p53, %p54
      %p56 = scmp.ne.s32.totalorder %s42, %s43
      %p57 = scmp.eq.s32.totalorder %s14, 1
      %p58 = por %p56, %p57
      %p60 = scmp.ne.s32.totalorder %s43, %s59
      %p61 = scmp.eq.s32.totalorder %s14, 0
      %p62 = por %p60, %p61
      %s63 = ssub.s32 %s8, %s15
      %p64 = scmp.eq.s32.totalorder %s63, 0
      %s66 = sadd.s32 %s65, 1
      %s67 = scalar_select %p64, %s65, %s66
      %p70 = pneg %p64
      %p71 = scmp.eq.s32.totalorder %s8, 1
      %p72 = por %p70, %p71
      %p73 = scmp.ne.s32.totalorder %s65, %s68
      %p74 = scmp.eq.s32.totalorder %s8, 0
      %p75 = por %p73, %p74
      %p76 = scmp.ne.s32.totalorder %s65, %s68
      %p77 = scmp.eq.s32.totalorder %s13, 1
      %p78 = por %p76, %p77
      %p79 = scmp.ne.s32.totalorder %s68, %s69
      %p80 = scmp.eq.s32.totalorder %s13, 0
      %p81 = por %p79, %p80
      %p82 = scmp.ne.s32.totalorder %s68, %s69
      %p83 = scmp.eq.s32.totalorder %s14, 1
      %p84 = por %p82, %p83
      %p86 = scmp.ne.s32.totalorder %s69, %s85
      %p87 = scmp.eq.s32.totalorder %s14, 0
      %p88 = por %p86, %p87
      %p89 = scmp.le.s32.totalorder 1, %s8
      %p90 = scmp.lt.s32.totalorder %s8, 3
      %p91 = pnand %p89, %p90
      %p92 = pneg %p91
      // Predicated region
      $region9: #{cae5_forward.26} parent=5 // pred_check
        _
      $region10: #{cae5_forward.26} parent=5 // pred_check_branch
        %94 = sbr.rel (%p91) target = $region12
      $region11: #{cae5_forward.26} parent=5 // pred_region
        %s95 = ssub.s32 %s8, 1
        // Predicated region
        $region13: #{cae5_forward.26} parent=11 // pred_check
          %p96 = pneg %p29
        $region14: #{cae5_forward.26} parent=11 // pred_check_branch
          %98 = sbr.rel (%p96) target = $region16
        $region15: #{cae5_forward.26} parent=11 // pred_region
          _
        $region16: #{cae5_forward.26} parent=11 // pred_fallthru
          _
      $region12: #{cae5_forward.26} parent=5 // pred_fallthru
        _
      %p99 = scmp.lt.s32.totalorder %s8, 2
      // Predicated region
      $region17: #{cae5_forward.26} parent=5 // pred_check
        %p100 = pneg %p99
      $region18: #{cae5_forward.26} parent=5 // pred_check_branch
        %102 = sbr.rel (%p100) target = $region20
      $region19: #{cae5_forward.26} parent=5 // pred_region
        // Predicated region
        $region21: #{cae5_forward.26} parent=19 // pred_check
          %p103 = pneg %p49
        $region22: #{cae5_forward.26} parent=19 // pred_check_branch
          %105 = sbr.rel (%p103) target = $region24
        $region23: #{cae5_forward.26} parent=19 // pred_region
          %s106 = sand.u32 %s39, 1
          %s107 = sand.u32 %s39, 1
          %s108 = smul.addr %s107, 320
          %s109 = scalar_lea.vmem [#allocation2], %s108
          %s110 = smul.u32 8, %s8
          %s111 = smul.addr %s110, 4
          %s112 = scalar_lea.vmem %s1, %s111
          // Predicated region
          $region25: #{cae5_forward.26} parent=23 // pred_check
            _
          $region26: #{cae5_forward.26} parent=23 // pred_check_branch
            %114 = sbr.rel (0) target = $region28
          $region27: #{cae5_forward.26} parent=23 // pred_region
            // Predicated region
            $region29: #{cae5_forward.26} parent=27 // pred_check
              _
            $region30: #{cae5_forward.26} parent=27 // pred_check_branch
              %116 = sbr.rel (0) target = $region32
            $region31: #{cae5_forward.26} parent=27 // pred_region
              loop: start=0, step=1, limit=1
              $region33: #{cae5_forward.26} parent=31 // loop_pre_header
                _
              $region34: #{cae5_forward.26} parent=31 // loop_header
                %s118 = sphi 0, %s122
                %p119 = scmp.ge.s32.totalorder %s118, 1
                %s123 = sphi %s112, %s112
                %s124 = sphi %s109, %s109
              $region35: #{cae5_forward.26} parent=31 // loop_header_branch
                %121 = sbr.rel (%p119) target = $region39
              $region36: #{cae5_forward.26} parent=31 // loop_body
                %v125 = vld [vmem:[%s123] sm:$0xff]
                %126 = vst [vmem:[%s124] sm:$0xff] %v125
                %v127 = vld [vmem:[%s123 + $0x8] sm:$0xff]
                %128 = vst [vmem:[%s124 + $0x8] sm:$0xff] %v127
                %v129 = vld [vmem:[%s123 + $0x10] sm:$0xff]
                %130 = vst [vmem:[%s124 + $0x10] sm:$0xff] %v129
                %v131 = vld [vmem:[%s123 + $0x18] sm:$0xff]
                %132 = vst [vmem:[%s124 + $0x18] sm:$0xff] %v131
                %v133 = vld [vmem:[%s123 + $0x40] sm:$0xff]
                %134 = vst [vmem:[%s124 + $0x20] sm:$0xff] %v133
                %v135 = vld [vmem:[%s123 + $0x48] sm:$0xff]
                %136 = vst [vmem:[%s124 + $0x28] sm:$0xff] %v135
                %v137 = vld [vmem:[%s123 + $0x50] sm:$0xff]
                %138 = vst [vmem:[%s124 + $0x30] sm:$0xff] %v137
                %v139 = vld [vmem:[%s123 + $0x58] sm:$0xff]
                %140 = vst [vmem:[%s124 + $0x38] sm:$0xff] %v139
                %v141 = vld [vmem:[%s123 + $0x80] sm:$0xff]
                %142 = vst [vmem:[%s124 + $0x40] sm:$0xff] %v141
                %v143 = vld [vmem:[%s123 + $0x88] sm:$0xff]
                %144 = vst [vmem:[%s124 + $0x48] sm:$0xff] %v143
                %v145 = vld [vmem:[%s123 + $0x90] sm:$0xff]
                %146 = vst [vmem:[%s124 + $0x50] sm:$0xff] %v145
                %v147 = vld [vmem:[%s123 + $0x98] sm:$0xff]
                %148 = vst [vmem:[%s124 + $0x58] sm:$0xff] %v147
                %v149 = vld [vmem:[%s123 + $0xc0] sm:$0xff]
                %150 = vst [vmem:[%s124 + $0x60] sm:$0xff] %v149
                %v151 = vld [vmem:[%s123 + $0xc8] sm:$0xff]
                %152 = vst [vmem:[%s124 + $0x68] sm:$0xff] %v151
                %v153 = vld [vmem:[%s123 + $0xd0] sm:$0xff]
                %154 = vst [vmem:[%s124 + $0x70] sm:$0xff] %v153
                %v155 = vld [vmem:[%s123 + $0xd8] sm:$0xff]
                %156 = vst [vmem:[%s124 + $0x78] sm:$0xff] %v155
                %v157 = vld [vmem:[%s123 + $0x100] sm:$0xff]
                %158 = vst [vmem:[%s124 + $0x80] sm:$0xff] %v157
                %v159 = vld [vmem:[%s123 + $0x108] sm:$0xff]
                %160 = vst [vmem:[%s124 + $0x88] sm:$0xff] %v159
                %v161 = vld [vmem:[%s123 + $0x110] sm:$0xff]
                %162 = vst [vmem:[%s124 + $0x90] sm:$0xff] %v161
                %v163 = vld [vmem:[%s123 + $0x118] sm:$0xff]
                %164 = vst [vmem:[%s124 + $0x98] sm:$0xff] %v163
                %v165 = vld [vmem:[%s123 + $0x140] sm:$0xff]
                %166 = vst [vmem:[%s124 + $0xa0] sm:$0xff] %v165
                %v167 = vld [vmem:[%s123 + $0x148] sm:$0xff]
                %168 = vst [vmem:[%s124 + $0xa8] sm:$0xff] %v167
                %v169 = vld [vmem:[%s123 + $0x150] sm:$0xff]
                %170 = vst [vmem:[%s124 + $0xb0] sm:$0xff] %v169
                %v171 = vld [vmem:[%s123 + $0x158] sm:$0xff]
                %172 = vst [vmem:[%s124 + $0xb8] sm:$0xff] %v171
                %v173 = vld [vmem:[%s123 + $0x180] sm:$0xff]
                %174 = vst [vmem:[%s124 + $0xc0] sm:$0xff] %v173
                %v175 = vld [vmem:[%s123 + $0x188] sm:$0xff]
                %176 = vst [vmem:[%s124 + $0xc8] sm:$0xff] %v175
                %v177 = vld [vmem:[%s123 + $0x190] sm:$0xff]
                %178 = vst [vmem:[%s124 + $0xd0] sm:$0xff] %v177
                %v179 = vld [vmem:[%s123 + $0x198] sm:$0xff]
                %180 = vst [vmem:[%s124 + $0xd8] sm:$0xff] %v179
                %v181 = vld [vmem:[%s123 + $0x1c0] sm:$0xff]
                %182 = vst [vmem:[%s124 + $0xe0] sm:$0xff] %v181
                %v183 = vld [vmem:[%s123 + $0x1c8] sm:$0xff]
                %184 = vst [vmem:[%s124 + $0xe8] sm:$0xff] %v183
                %v185 = vld [vmem:[%s123 + $0x1d0] sm:$0xff]
                %186 = vst [vmem:[%s124 + $0xf0] sm:$0xff] %v185
                %v187 = vld [vmem:[%s123 + $0x1d8] sm:$0xff]
                %188 = vst [vmem:[%s124 + $0xf8] sm:$0xff] %v187
                %v189 = vld [vmem:[%s123 + $0x200] sm:$0xff]
                %190 = vst [vmem:[%s124 + $0x100] sm:$0xff] %v189
                %v191 = vld [vmem:[%s123 + $0x208] sm:$0xff]
                %192 = vst [vmem:[%s124 + $0x108] sm:$0xff] %v191
                %v193 = vld [vmem:[%s123 + $0x210] sm:$0xff]
                %194 = vst [vmem:[%s124 + $0x110] sm:$0xff] %v193
                %v195 = vld [vmem:[%s123 + $0x218] sm:$0xff]
                %196 = vst [vmem:[%s124 + $0x118] sm:$0xff] %v195
                %v197 = vld [vmem:[%s123 + $0x240] sm:$0xff]
                %198 = vst [vmem:[%s124 + $0x120] sm:$0xff] %v197
                %v199 = vld [vmem:[%s123 + $0x248] sm:$0xff]
                %200 = vst [vmem:[%s124 + $0x128] sm:$0xff] %v199
                %v201 = vld [vmem:[%s123 + $0x250] sm:$0xff]
                %202 = vst [vmem:[%s124 + $0x130] sm:$0xff] %v201
                %v203 = vld [vmem:[%s123 + $0x258] sm:$0xff]
                %204 = vst [vmem:[%s124 + $0x138] sm:$0xff] %v203
              $region37: #{cae5_forward.26} parent=31 // loop_footer
                %s122 = sadd.s32 1, %s118
              $region38: #{cae5_forward.26} parent=31 // loop_footer_branch
                %117 = sbr.rel target = $region34
              $region39: #{cae5_forward.26} parent=31 // loop_exit
                _
            $region32: #{cae5_forward.26} parent=27 // pred_fallthru
              _
            // Predicated region
            $region40: #{cae5_forward.26} parent=27 // pred_check
              _
            $region41: #{cae5_forward.26} parent=27 // pred_check_branch
              %206 = sbr.rel target = $region43
            $region42: #{cae5_forward.26} parent=27 // pred_region
              _
            $region43: #{cae5_forward.26} parent=27 // pred_fallthru
              _
          $region28: #{cae5_forward.26} parent=23 // pred_fallthru
            _
          %207 = vnop
        $region24: #{cae5_forward.26} parent=19 // pred_fallthru
          _
      $region20: #{cae5_forward.26} parent=5 // pred_fallthru
        _
      %p208 = scmp.le.s32.totalorder 1, %s8
      %p209 = scmp.lt.s32.totalorder %s8, 3
      %p210 = pnand %p208, %p209
      %p211 = pneg %p210
      // Predicated region
      $region44: #{cae5_forward.26} parent=5 // pred_check
        _
      $region45: #{cae5_forward.26} parent=5 // pred_check_branch
        %213 = sbr.rel (%p210) target = $region47
      $region46: #{cae5_forward.26} parent=5 // pred_region
        %s214 = ssub.s32 %s8, 1
        %s215 = sand.u32 %s42, 1
        %s216 = sand.u32 %s42, 1
        %s217 = smul.addr %s216, 320
        %s218 = scalar_lea.vmem [#allocation2], %s217
        // Predicated region
        $region48: #{cae5_forward.26} parent=46 // pred_check
          %p219 = pneg %p55
        $region49: #{cae5_forward.26} parent=46 // pred_check_branch
          %221 = sbr.rel (%p219) target = $region51
        $region50: #{cae5_forward.26} parent=46 // pred_region
          _
        $region51: #{cae5_forward.26} parent=46 // pred_fallthru
          _
        %p222 = pneg %p29
        %p223 = pneg %p26
        %s224 = sand.u32 %s42, 1
        %s225 = sand.u32 %s42, 1
        %s226 = smul.addr %s225, 320
        %s227 = scalar_lea.vmem [#allocation2], %s226
        %p228 = pneg %p55
        %p229 = pneg %p52
        %p230 = pneg %p81
        %p231 = pneg %p78
        %s232 = smul.u32 8, %s13
        %p233 = scmp.lt.s32.totalorder %s232, 15
        %s234 = scalar_select %p233, %s232, 15
        %s235 = smul.addr %s234, 2
        %s236 = scalar_lea.vmem %s2, %s235
        %s237 = smul.u32 8, %s13
        %s238 = smul.u32 8, %s13
        %p239 = scmp.lt.s32.totalorder %s238, 15
        %s240 = scalar_select %p239, %s238, 15
        %s241 = smul.addr %s240, 2
        %s242 = scalar_lea.vmem %s2, %s241
        %s243 = smul.u32 8, %s13
        %v245 = vld [vmem:[%s0] sm:$0x3]
        %v246 = vld [vmem:[%s218] sm:$0xff]
        %v247 = vld [vmem:[%s218 + $0x8] sm:$0xff]
        %v248 = vld [vmem:[%s218 + $0x10] sm:$0xff]
        %v249 = vld [vmem:[%s218 + $0x18] sm:$0xff]
        %v250 = vld [vmem:[%s218 + $0x20] sm:$0xff]
        %v251 = vld [vmem:[%s218 + $0x28] sm:$0xff]
        %v252 = vld [vmem:[%s218 + $0x30] sm:$0xff]
        %v253 = vld [vmem:[%s218 + $0x38] sm:$0xff]
        %v254 = vld [vmem:[%s218 + $0x40] sm:$0xff]
        %v255 = vld [vmem:[%s218 + $0x48] sm:$0xff]
        %v256 = vld [vmem:[%s218 + $0x50] sm:$0xff]
        %v257 = vld [vmem:[%s218 + $0x58] sm:$0xff]
        %v258 = vld [vmem:[%s218 + $0x60] sm:$0xff]
        %v259 = vld [vmem:[%s218 + $0x68] sm:$0xff]
        %v260 = vld [vmem:[%s218 + $0x70] sm:$0xff]
        %v261 = vld [vmem:[%s218 + $0x78] sm:$0xff]
        %v262 = vld [vmem:[%s218 + $0x80] sm:$0xff]
        %v263 = vld [vmem:[%s218 + $0x88] sm:$0xff]
        %v264 = vld [vmem:[%s218 + $0x90] sm:$0xff]
        %v265 = vld [vmem:[%s218 + $0x98] sm:$0xff]
        %v266 = vld [vmem:[%s218 + $0xa0] sm:$0xff]
        %v267 = vld [vmem:[%s218 + $0xa8] sm:$0xff]
        %v268 = vld [vmem:[%s218 + $0xb0] sm:$0xff]
        %v269 = vld [vmem:[%s218 + $0xb8] sm:$0xff]
        %v270 = vld [vmem:[%s218 + $0xc0] sm:$0xff]
        %v271 = vld [vmem:[%s218 + $0xc8] sm:$0xff]
        %v272 = vld [vmem:[%s218 + $0xd0] sm:$0xff]
        %v273 = vld [vmem:[%s218 + $0xd8] sm:$0xff]
        %v274 = vld [vmem:[%s218 + $0xe0] sm:$0xff]
        %v275 = vld [vmem:[%s218 + $0xe8] sm:$0xff]
        %v276 = vld [vmem:[%s218 + $0xf0] sm:$0xff]
        %v277 = vld [vmem:[%s218 + $0xf8] sm:$0xff]
        %v278 = vld [vmem:[%s218 + $0x100] sm:$0xff]
        %v279 = vld [vmem:[%s218 + $0x108] sm:$0xff]
        %v280 = vld [vmem:[%s218 + $0x110] sm:$0xff]
        %v281 = vld [vmem:[%s218 + $0x118] sm:$0xff]
        %v282 = vld [vmem:[%s218 + $0x120] sm:$0xff]
        %v283 = vld [vmem:[%s218 + $0x128] sm:$0xff]
        %v284 = vld [vmem:[%s218 + $0x130] sm:$0xff]
        %v285 = vld [vmem:[%s218 + $0x138] sm:$0xff]
        %v326 = vunpack.c.l.b16 %v246
        %v327 = vunpack.c.h.b16 %v246
        %v328 = vunpack.c.l.b16 %v247
        %v329 = vunpack.c.h.b16 %v247
        %v330 = vunpack.c.l.b16 %v248
        %v331 = vunpack.c.h.b16 %v248
        %v332 = vunpack.c.l.b16 %v249
        %v333 = vunpack.c.h.b16 %v249
        %v334 = vunpack.c.l.b16 %v250
        %v335 = vunpack.c.h.b16 %v250
        %v336 = vunpack.c.l.b16 %v251
        %v337 = vunpack.c.h.b16 %v251
        %v338 = vunpack.c.l.b16 %v252
        %v339 = vunpack.c.h.b16 %v252
        %v340 = vunpack.c.l.b16 %v253
        %v341 = vunpack.c.h.b16 %v253
        %v342 = vunpack.c.l.b16 %v254
        %v343 = vunpack.c.h.b16 %v254
        %v344 = vunpack.c.l.b16 %v255
        %v345 = vunpack.c.h.b16 %v255
        %v346 = vunpack.c.l.b16 %v256
        %v347 = vunpack.c.h.b16 %v256
        %v348 = vunpack.c.l.b16 %v257
        %v349 = vunpack.c.h.b16 %v257
        %v350 = vunpack.c.l.b16 %v258
        %v351 = vunpack.c.h.b16 %v258
        %v352 = vunpack.c.l.b16 %v259
        %v353 = vunpack.c.h.b16 %v259
        %v354 = vunpack.c.l.b16 %v260
        %v355 = vunpack.c.h.b16 %v260
        %v356 = vunpack.c.l.b16 %v261
        %v357 = vunpack.c.h.b16 %v261
        %v358 = vunpack.c.l.b16 %v262
        %v359 = vunpack.c.h.b16 %v262
        %v360 = vunpack.c.l.b16 %v263
        %v361 = vunpack.c.h.b16 %v263
        %v362 = vunpack.c.l.b16 %v264
        %v363 = vunpack.c.h.b16 %v264
        %v364 = vunpack.c.l.b16 %v265
        %v365 = vunpack.c.h.b16 %v265
        %v366 = vunpack.c.l.b16 %v266
        %v367 = vunpack.c.h.b16 %v266
        %v368 = vunpack.c.l.b16 %v267
        %v369 = vunpack.c.h.b16 %v267
        %v370 = vunpack.c.l.b16 %v268
        %v371 = vunpack.c.h.b16 %v268
        %v372 = vunpack.c.l.b16 %v269
        %v373 = vunpack.c.h.b16 %v269
        %v374 = vunpack.c.l.b16 %v270
        %v375 = vunpack.c.h.b16 %v270
        %v376 = vunpack.c.l.b16 %v271
        %v377 = vunpack.c.h.b16 %v271
        %v378 = vunpack.c.l.b16 %v272
        %v379 = vunpack.c.h.b16 %v272
        %v380 = vunpack.c.l.b16 %v273
        %v381 = vunpack.c.h.b16 %v273
        %v382 = vunpack.c.l.b16 %v274
        %v383 = vunpack.c.h.b16 %v274
        %v384 = vunpack.c.l.b16 %v275
        %v385 = vunpack.c.h.b16 %v275
        %v386 = vunpack.c.l.b16 %v276
        %v387 = vunpack.c.h.b16 %v276
        %v388 = vunpack.c.l.b16 %v277
        %v389 = vunpack.c.h.b16 %v277
        %v390 = vunpack.c.l.b16 %v278
        %v391 = vunpack.c.h.b16 %v278
        %v392 = vunpack.c.l.b16 %v279
        %v393 = vunpack.c.h.b16 %v279
        %v394 = vunpack.c.l.b16 %v280
        %v395 = vunpack.c.h.b16 %v280
        %v396 = vunpack.c.l.b16 %v281
        %v397 = vunpack.c.h.b16 %v281
        %v398 = vunpack.c.l.b16 %v282
        %v399 = vunpack.c.h.b16 %v282
        %v400 = vunpack.c.l.b16 %v283
        %v401 = vunpack.c.h.b16 %v283
        %v402 = vunpack.c.l.b16 %v284
        %v403 = vunpack.c.h.b16 %v284
        %v404 = vunpack.c.l.b16 %v285
        %v405 = vunpack.c.h.b16 %v285
        %v406 = vpack.c.b16 %v334, %v326
        %v407 = vpack.c.b16 %v335, %v327
        %v408 = vpack.c.b16 %v336, %v328
        %v409 = vpack.c.b16 %v337, %v329
        %v410 = vpack.c.b16 %v338, %v330
        %v411 = vpack.c.b16 %v339, %v331
        %v412 = vpack.c.b16 %v340, %v332
        %v413 = vpack.c.b16 %v341, %v333
        %v414 = vpack.c.b16 %v350, %v342
        %v415 = vpack.c.b16 %v351, %v343
        %v416 = vpack.c.b16 %v352, %v344
        %v417 = vpack.c.b16 %v353, %v345
        %v418 = vpack.c.b16 %v354, %v346
        %v419 = vpack.c.b16 %v355, %v347
        %v420 = vpack.c.b16 %v356, %v348
        %v421 = vpack.c.b16 %v357, %v349
        %v422 = vpack.c.b16 %v366, %v358
        %v423 = vpack.c.b16 %v367, %v359
        %v424 = vpack.c.b16 %v368, %v360
        %v425 = vpack.c.b16 %v369, %v361
        %v426 = vpack.c.b16 %v370, %v362
        %v427 = vpack.c.b16 %v371, %v363
        %v428 = vpack.c.b16 %v372, %v364
        %v429 = vpack.c.b16 %v373, %v365
        %v430 = vpack.c.b16 %v382, %v374
        %v431 = vpack.c.b16 %v383, %v375
        %v432 = vpack.c.b16 %v384, %v376
        %v433 = vpack.c.b16 %v385, %v377
        %v434 = vpack.c.b16 %v386, %v378
        %v435 = vpack.c.b16 %v387, %v379
        %v436 = vpack.c.b16 %v388, %v380
        %v437 = vpack.c.b16 %v389, %v381
        %v438 = vpack.c.b16 %v398, %v390
        %v439 = vpack.c.b16 %v399, %v391
        %v440 = vpack.c.b16 %v400, %v392
        %v441 = vpack.c.b16 %v401, %v393
        %v442 = vpack.c.b16 %v402, %v394
        %v443 = vpack.c.b16 %v403, %v395
        %v444 = vpack.c.b16 %v404, %v396
        %v445 = vpack.c.b16 %v405, %v397
        %vm486 = vcmask 654336
        %v488 = vsel %vm486, %v245, 0
        %490 = vmatprep.subr.bf16.mxu0 %v407
        %491 = vmatpush1.bf16.msra.mxu0 %v406
        %492 = vmatprep.subr.bf16.mxu0 %v415
        %493 = vmatpush1.bf16.msra.mxu0 %v414
        %494 = vmatprep.subr.bf16.mxu0 %v423
        %495 = vmatpush1.bf16.msra.mxu0 %v422
        %496 = vmatprep.subr.bf16.mxu0 %v431
        %497 = vmatpush1.bf16.msra.mxu0 %v430
        %498 = vmatprep.subr.bf16.mxu0 %v439
        %499 = vmatpush1.bf16.msra.mxu0 %v438
        %500 = vmatprep.subr.bf16.mxu0 0
        %501 = vmatpush1.bf16.msra.mxu0 0
        %502 = vmatprep.subr.bf16.mxu0 0
        %503 = vmatpush1.bf16.msra.mxu0 0
        %504 = vmatprep.subr.bf16.mxu0 0
        %505 = vmatpush1.bf16.msra.mxu0 0
        %506 = vmatprep.subr.bf16.mxu0 0
        %507 = vmatpush1.bf16.msra.mxu0 0
        %508 = vmatprep.subr.bf16.mxu0 0
        %509 = vmatpush1.bf16.msra.mxu0 0
        %510 = vmatprep.subr.bf16.mxu0 0
        %511 = vmatpush1.bf16.msra.mxu0 0
        %512 = vmatprep.subr.bf16.mxu0 0
        %513 = vmatpush1.bf16.msra.mxu0 0
        %514 = vmatprep.subr.bf16.mxu0 0
        %515 = vmatpush1.bf16.msra.mxu0 0
        %516 = vmatprep.subr.bf16.mxu0 0
        %517 = vmatpush1.bf16.msra.mxu0 0
        %518 = vmatprep.subr.bf16.mxu0 0
        %519 = vmatpush1.bf16.msra.mxu0 0
        %520 = vmatprep.subr.bf16.mxu0 0
        %521 = vmatpush1.bf16.msra.mxu0 0
        %522 = vmatprep.mubr.bf16.mxu0 0
        %523 = vmatmul.mubr.bf16.gmra.mrb[0].mxu0 %v488
        %v524 = vpop.f32.mrb[0].mxu0
        %v525 = vadd.f32 0.0, %v524
        %v526 = vpop.f32.mrb[0].mxu0
        %v527 = vadd.f32 0.0, %v526
        %v528 = vpop.f32.mrb[0].mxu0
        %v529 = vpop.f32.mrb[0].mxu0
        %530 = vdwg.mxu0
        %531 = vmatprep.subr.bf16.mxu0 %v409
        %532 = vmatpush1.bf16.msra.mxu0 %v408
        %533 = vmatprep.subr.bf16.mxu0 %v417
        %534 = vmatpush1.bf16.msra.mxu0 %v416
        %535 = vmatprep.subr.bf16.mxu0 %v425
        %536 = vmatpush1.bf16.msra.mxu0 %v424
        %537 = vmatprep.subr.bf16.mxu0 %v433
        %538 = vmatpush1.bf16.msra.mxu0 %v432
        %539 = vmatprep.subr.bf16.mxu0 %v441
        %540 = vmatpush1.bf16.msra.mxu0 %v440
        %541 = vmatprep.subr.bf16.mxu0 0
        %542 = vmatpush1.bf16.msra.mxu0 0
        %543 = vmatprep.subr.bf16.mxu0 0
        %544 = vmatpush1.bf16.msra.mxu0 0
        %545 = vmatprep.subr.bf16.mxu0 0
        %546 = vmatpush1.bf16.msra.mxu0 0
        %547 = vmatprep.subr.bf16.mxu0 0
        %548 = vmatpush1.bf16.msra.mxu0 0
        %549 = vmatprep.subr.bf16.mxu0 0
        %550 = vmatpush1.bf16.msra.mxu0 0
        %551 = vmatprep.subr.bf16.mxu0 0
        %552 = vmatpush1.bf16.msra.mxu0 0
        %553 = vmatprep.subr.bf16.mxu0 0
        %554 = vmatpush1.bf16.msra.mxu0 0
        %555 = vmatprep.subr.bf16.mxu0 0
        %556 = vmatpush1.bf16.msra.mxu0 0
        %557 = vmatprep.subr.bf16.mxu0 0
        %558 = vmatpush1.bf16.msra.mxu0 0
        %559 = vmatprep.subr.bf16.mxu0 0
        %560 = vmatpush1.bf16.msra.mxu0 0
        %561 = vmatprep.subr.bf16.mxu0 0
        %562 = vmatpush1.bf16.msra.mxu0 0
        %563 = vmatprep.mubr.bf16.mxu0 0
        %564 = vmatmul.mubr.bf16.gmra.mrb[0].mxu0 %v488
        %v565 = vpop.f32.mrb[0].mxu0
        %v566 = vadd.f32 0.0, %v565
        %v567 = vpop.f32.mrb[0].mxu0
        %v568 = vadd.f32 0.0, %v567
        %v569 = vpop.f32.mrb[0].mxu0
        %v570 = vpop.f32.mrb[0].mxu0
        %571 = vdwg.mxu0
        %572 = vmatprep.subr.bf16.mxu0 %v411
        %573 = vmatpush1.bf16.msra.mxu0 %v410
        %574 = vmatprep.subr.bf16.mxu0 %v419
        %575 = vmatpush1.bf16.msra.mxu0 %v418
        %576 = vmatprep.subr.bf16.mxu0 %v427
        %577 = vmatpush1.bf16.msra.mxu0 %v426
        %578 = vmatprep.subr.bf16.mxu0 %v435
        %579 = vmatpush1.bf16.msra.mxu0 %v434
        %580 = vmatprep.subr.bf16.mxu0 %v443
        %581 = vmatpush1.bf16.msra.mxu0 %v442
        %582 = vmatprep.subr.bf16.mxu0 0
        %583 = vmatpush1.bf16.msra.mxu0 0
        %584 = vmatprep.subr.bf16.mxu0 0
        %585 = vmatpush1.bf16.msra.mxu0 0
        %586 = vmatprep.subr.bf16.mxu0 0
        %587 = vmatpush1.bf16.msra.mxu0 0
        %588 = vmatprep.subr.bf16.mxu0 0
        %589 = vmatpush1.bf16.msra.mxu0 0
        %590 = vmatprep.subr.bf16.mxu0 0
        %591 = vmatpush1.bf16.msra.mxu0 0
        %592 = vmatprep.subr.bf16.mxu0 0
        %593 = vmatpush1.bf16.msra.mxu0 0
        %594 = vmatprep.subr.bf16.mxu0 0
        %595 = vmatpush1.bf16.msra.mxu0 0
        %596 = vmatprep.subr.bf16.mxu0 0
        %597 = vmatpush1.bf16.msra.mxu0 0
        %598 = vmatprep.subr.bf16.mxu0 0
        %599 = vmatpush1.bf16.msra.mxu0 0
        %600 = vmatprep.subr.bf16.mxu0 0
        %601 = vmatpush1.bf16.msra.mxu0 0
        %602 = vmatprep.subr.bf16.mxu0 0
        %603 = vmatpush1.bf16.msra.mxu0 0
        %604 = vmatprep.mubr.bf16.mxu0 0
        %605 = vmatmul.mubr.bf16.gmra.mrb[0].mxu0 %v488
        %v606 = vpop.f32.mrb[0].mxu0
        %v607 = vadd.f32 0.0, %v606
        %v608 = vpop.f32.mrb[0].mxu0
        %v609 = vadd.f32 0.0, %v608
        %v610 = vpop.f32.mrb[0].mxu0
        %v611 = vpop.f32.mrb[0].mxu0
        %612 = vdwg.mxu0
        %613 = vmatprep.subr.bf16.mxu0 %v413
        %614 = vmatpush1.bf16.msra.mxu0 %v412
        %615 = vmatprep.subr.bf16.mxu0 %v421
        %616 = vmatpush1.bf16.msra.mxu0 %v420
        %617 = vmatprep.subr.bf16.mxu0 %v429
        %618 = vmatpush1.bf16.msra.mxu0 %v428
        %619 = vmatprep.subr.bf16.mxu0 %v437
        %620 = vmatpush1.bf16.msra.mxu0 %v436
        %621 = vmatprep.subr.bf16.mxu0 %v445
        %622 = vmatpush1.bf16.msra.mxu0 %v444
        %623 = vmatprep.subr.bf16.mxu0 0
        %624 = vmatpush1.bf16.msra.mxu0 0
        %625 = vmatprep.subr.bf16.mxu0 0
        %626 = vmatpush1.bf16.msra.mxu0 0
        %627 = vmatprep.subr.bf16.mxu0 0
        %628 = vmatpush1.bf16.msra.mxu0 0
        %629 = vmatprep.subr.bf16.mxu0 0
        %630 = vmatpush1.bf16.msra.mxu0 0
        %631 = vmatprep.subr.bf16.mxu0 0
        %632 = vmatpush1.bf16.msra.mxu0 0
        %633 = vmatprep.subr.bf16.mxu0 0
        %634 = vmatpush1.bf16.msra.mxu0 0
        %635 = vmatprep.subr.bf16.mxu0 0
        %636 = vmatpush1.bf16.msra.mxu0 0
        %637 = vmatprep.subr.bf16.mxu0 0
        %638 = vmatpush1.bf16.msra.mxu0 0
        %639 = vmatprep.subr.bf16.mxu0 0
        %640 = vmatpush1.bf16.msra.mxu0 0
        %641 = vmatprep.subr.bf16.mxu0 0
        %642 = vmatpush1.bf16.msra.mxu0 0
        %643 = vmatprep.subr.bf16.mxu0 0
        %644 = vmatpush1.bf16.msra.mxu0 0
        %645 = vmatprep.mubr.bf16.mxu0 0
        %646 = vmatmul.mubr.bf16.gmra.mrb[0].mxu0 %v488
        %v647 = vpop.f32.mrb[0].mxu0
        %v648 = vadd.f32 0.0, %v647
        %v649 = vpop.f32.mrb[0].mxu0
        %v650 = vadd.f32 0.0, %v649
        %v651 = vpop.f32.mrb[0].mxu0
        %v652 = vpop.f32.mrb[0].mxu0
        %653 = vdwg.mxu0
        %vm654 = vcmp.ge.f32.partialorder %v525, 0.0
        %vm655 = vcmp.ge.f32.partialorder %v527, 0.0
        %vm656 = vcmp.ge.f32.partialorder %v566, 0.0
        %vm657 = vcmp.ge.f32.partialorder %v568, 0.0
        %vm658 = vcmp.ge.f32.partialorder %v607, 0.0
        %vm659 = vcmp.ge.f32.partialorder %v609, 0.0
        %vm660 = vcmp.ge.f32.partialorder %v648, 0.0
        %vm661 = vcmp.ge.f32.partialorder %v650, 0.0
        %v662 = vmul.f32 %v525, 0.01
        %v663 = vmul.f32 %v527, 0.01
        %v664 = vmul.f32 %v566, 0.01
        %v665 = vmul.f32 %v568, 0.01
        %v666 = vmul.f32 %v607, 0.01
        %v667 = vmul.f32 %v609, 0.01
        %v668 = vmul.f32 %v648, 0.01
        %v669 = vmul.f32 %v650, 0.01
        %v670 = vsel %vm654, %v525, %v662
        %v671 = vsel %vm655, %v527, %v663
        %v672 = vsel %vm656, %v566, %v664
        %v673 = vsel %vm657, %v568, %v665
        %v674 = vsel %vm658, %v607, %v666
        %v675 = vsel %vm659, %v609, %v667
        %v676 = vsel %vm660, %v648, %v668
        %v677 = vsel %vm661, %v650, %v669
        %v678 = vpack.c.bf16 %v670, %v670
        %v679 = vpack.c.bf16 %v671, %v671
        %v680 = vpack.c.bf16 %v672, %v672
        %v681 = vpack.c.bf16 %v673, %v673
        %v682 = vpack.c.bf16 %v674, %v674
        %v683 = vpack.c.bf16 %v675, %v675
        %v684 = vpack.c.bf16 %v676, %v676
        %v685 = vpack.c.bf16 %v677, %v677
        %v694 = vcombine.low %v678, %v679
        %v695 = vcombine.low %v680, %v681
        %v697 = vunpack.c.l.s4 1983009808
        %v698 = vunpack.c.0.s8 %v697
        %v699 = vlaneseq
        %v700 = vshrl.u32 %v699, 7
        %v701 = vsub.s32 %v698, %v700
        %v702 = vrot.slane %v694, %v701
        %v704 = vunpack.c.l.s4 1983009808
        %v705 = vunpack.c.0.s8 %v704
        %v706 = vlaneseq
        %v707 = vshrl.u32 %v706, 7
        %v708 = vsub.s32 %v705, %v707
        %v709 = vrot.slane %v695, %v708
        %v710 = vcombine.low %v702, %v709
        %v711 = vcombine.low %v682, %v683
        %v712 = vcombine.low %v684, %v685
        %v714 = vunpack.c.l.s4 1983009808
        %v715 = vunpack.c.0.s8 %v714
        %v716 = vlaneseq
        %v717 = vshrl.u32 %v716, 7
        %v718 = vsub.s32 %v715, %v717
        %v719 = vrot.slane %v711, %v718
        %v721 = vunpack.c.l.s4 1983009808
        %v722 = vunpack.c.0.s8 %v721
        %v723 = vlaneseq
        %v724 = vshrl.u32 %v723, 7
        %v725 = vsub.s32 %v722, %v724
        %v726 = vrot.slane %v712, %v725
        %v727 = vcombine.low %v719, %v726
        %730 = vst [vmem:[%s242] sm:$0xff] %v710
        %731 = vst [vmem:[%s242 + $0x8] sm:$0xff] %v727
        %s732 = smul.u32 8, %s13
        %p733 = scmp.lt.s32.totalorder %s732, 15
        %s734 = scalar_select %p733, %s732, 15
        %s735 = smul.addr %s734, 2
        %s736 = scalar_lea.vmem %s2, %s735
        // Predicated region
        $region52: #{cae5_forward.26} parent=46 // pred_check
          %p737 = pneg %p78
        $region53: #{cae5_forward.26} parent=46 // pred_check_branch
          %739 = sbr.rel (%p737) target = $region55
        $region54: #{cae5_forward.26} parent=46 // pred_region
          %s740 = smul.u32 8, %s13
        $region55: #{cae5_forward.26} parent=46 // pred_fallthru
          _
      $region47: #{cae5_forward.26} parent=5 // pred_fallthru
        _
      %p741 = scmp.le.s32.totalorder 2, %s8
      // Predicated region
      $region56: #{cae5_forward.26} parent=5 // pred_check
        %p742 = pneg %p741
      $region57: #{cae5_forward.26} parent=5 // pred_check_branch
        %744 = sbr.rel (%p742) target = $region59
      $region58: #{cae5_forward.26} parent=5 // pred_region
        %s745 = ssub.s32 %s8, 2
        // Predicated region
        $region60: #{cae5_forward.26} parent=58 // pred_check
          %p746 = pneg %p84
        $region61: #{cae5_forward.26} parent=58 // pred_check_branch
          %748 = sbr.rel (%p746) target = $region63
        $region62: #{cae5_forward.26} parent=58 // pred_region
          %s749 = smul.u32 8, %s14
          %p750 = scmp.lt.s32.totalorder %s749, 15
          %s751 = scalar_select %p750, %s749, 15
          %s752 = smul.addr %s751, 2
          %s753 = scalar_lea.vmem %s2, %s752
        $region63: #{cae5_forward.26} parent=58 // pred_fallthru
          _
      $region59: #{cae5_forward.26} parent=5 // pred_fallthru
        _
    $region6: #{cae5_forward.26} parent=1 // loop_footer
      %s12 = sadd.s32 1, %s8
    $region7: #{cae5_forward.26} parent=1 // loop_footer_branch
      %7 = sbr.rel target = $region3
    $region8: #{cae5_forward.26} parent=1 // loop_exit
      _

// kernel: cae5_forward.27
$region0: #{cae5_forward.27}
  #allocation0 [shape = 'u32[]', space=smem, size = 0x4, offset = 0x4, fixed_abs, tag = 'smem constant byte address 0x4 - core index']
  #allocation1 [shape = 'u32[144,128]{1,0:T(1,128)}', space=vmem, size = 0x12000, scoped, tag = 'internal scratch']
  %s0 = inlined_call_operand.vmem [shape: bf16[8,104], index: 0, kind: input, shape index: {}]
  %s1 = inlined_call_operand.vmem [shape: bf16[104,512], index: 1, kind: input, shape index: {}]
  %s2 = inlined_call_operand.vmem [shape: bf16[8,512], index: 2, kind: output, shape index: {}]
  %s3 = sld [smem:[#allocation0]]
  $region79: #{cae5_forward.27} parent=0
    _
  %s5 = ssub.s32 1, %s3
  %s6 = scalar_select 0, %s5, %s3
  $region1: #{cae5_forward.27} parent=0
    #allocation2 [shape = 'u8[106496]{0}', space=vmem, size = 0x1a000, scoped, tag = 'input window, operand 1']
    loop: start=0, step=1, limit=4
    $region2: #{cae5_forward.27} parent=1 // loop_pre_header
      _
    $region3: #{cae5_forward.27} parent=1 // loop_header
      %s8 = sphi 0, %s12
      %p9 = scmp.ge.s32.totalorder %s8, 4
      %s16 = sphi 0, %s16
      %s18 = sphi 0, %s16
      %s19 = sphi 0, %s18
      %s33 = sphi 0, %s19
      %s39 = sphi 0, %s41
      %s42 = sphi 0, %s39
      %s43 = sphi 0, %s42
      %s59 = sphi 0, %s43
      %s65 = sphi 0, %s67
      %s68 = sphi 0, %s65
      %s69 = sphi 0, %s68
      %s85 = sphi 0, %s69
    $region4: #{cae5_forward.27} parent=1 // loop_header_branch
      %11 = sbr.rel (%p9) target = $region8
    $region5: #{cae5_forward.27} parent=1 // loop_body
      %s13 = ssub.s32 %s8, 1
      %s14 = ssub.s32 %s8, 2
      %s15 = sadd.s32 %s8, 1
      %s17 = sadd.s32 %s16, 1
      %p20 = scmp.eq.s32.totalorder %s8, 1
      %p21 = scmp.ne.s32.totalorder %s16, %s18
      %p22 = scmp.eq.s32.totalorder %s8, 0
      %p23 = por %p21, %p22
      %p24 = scmp.ne.s32.totalorder %s16, %s18
      %p25 = scmp.eq.s32.totalorder %s13, 1
      %p26 = por %p24, %p25
      %p27 = scmp.ne.s32.totalorder %s18, %s19
      %p28 = scmp.eq.s32.totalorder %s13, 0
      %p29 = por %p27, %p28
      %p30 = scmp.ne.s32.totalorder %s18, %s19
      %p31 = scmp.eq.s32.totalorder %s14, 1
      %p32 = por %p30, %p31
      %p34 = scmp.ne.s32.totalorder %s19, %s33
      %p35 = scmp.eq.s32.totalorder %s14, 0
      %p36 = por %p34, %p35
      %s37 = ssub.s32 %s8, %s15
      %p38 = scmp.eq.s32.totalorder %s37, 0
      %s40 = sadd.s32 %s39, 1
      %s41 = scalar_select %p38, %s39, %s40
      %p44 = pneg %p38
      %p45 = scmp.eq.s32.totalorder %s8, 1
      %p46 = por %p44, %p45
      %p47 = scmp.ne.s32.totalorder %s39, %s42
      %p48 = scmp.eq.s32.totalorder %s8, 0
      %p49 = por %p47, %p48
      %p50 = scmp.ne.s32.totalorder %s39, %s42
      %p51 = scmp.eq.s32.totalorder %s13, 1
      %p52 = por %p50, %p51
      %p53 = scmp.ne.s32.totalorder %s42, %s43
      %p54 = scmp.eq.s32.totalorder %s13, 0
      %p55 = por %p53, %p54
      %p56 = scmp.ne.s32.totalorder %s42, %s43
      %p57 = scmp.eq.s32.totalorder %s14, 1
      %p58 = por %p56, %p57
      %p60 = scmp.ne.s32.totalorder %s43, %s59
      %p61 = scmp.eq.s32.totalorder %s14, 0
      %p62 = por %p60, %p61
      %s63 = ssub.s32 %s8, %s15
      %p64 = scmp.eq.s32.totalorder %s63, 0
      %s66 = sadd.s32 %s65, 1
      %s67 = scalar_select %p64, %s65, %s66
      %p70 = pneg %p64
      %p71 = scmp.eq.s32.totalorder %s8, 1
      %p72 = por %p70, %p71
      %p73 = scmp.ne.s32.totalorder %s65, %s68
      %p74 = scmp.eq.s32.totalorder %s8, 0
      %p75 = por %p73, %p74
      %p76 = scmp.ne.s32.totalorder %s65, %s68
      %p77 = scmp.eq.s32.totalorder %s13, 1
      %p78 = por %p76, %p77
      %p79 = scmp.ne.s32.totalorder %s68, %s69
      %p80 = scmp.eq.s32.totalorder %s13, 0
      %p81 = por %p79, %p80
      %p82 = scmp.ne.s32.totalorder %s68, %s69
      %p83 = scmp.eq.s32.totalorder %s14, 1
      %p84 = por %p82, %p83
      %p86 = scmp.ne.s32.totalorder %s69, %s85
      %p87 = scmp.eq.s32.totalorder %s14, 0
      %p88 = por %p86, %p87
      %p89 = scmp.le.s32.totalorder 1, %s8
      %p90 = scmp.lt.s32.totalorder %s8, 3
      %p91 = pnand %p89, %p90
      %p92 = pneg %p91
      // Predicated region
      $region9: #{cae5_forward.27} parent=5 // pred_check
        _
      $region10: #{cae5_forward.27} parent=5 // pred_check_branch
        %94 = sbr.rel (%p91) target = $region12
      $region11: #{cae5_forward.27} parent=5 // pred_region
        %s95 = ssub.s32 %s8, 1
        // Predicated region
        $region13: #{cae5_forward.27} parent=11 // pred_check
          %p96 = pneg %p29
        $region14: #{cae5_forward.27} parent=11 // pred_check_branch
          %98 = sbr.rel (%p96) target = $region16
        $region15: #{cae5_forward.27} parent=11 // pred_region
          _
        $region16: #{cae5_forward.27} parent=11 // pred_fallthru
          _
      $region12: #{cae5_forward.27} parent=5 // pred_fallthru
        _
      %p99 = scmp.lt.s32.totalorder %s8, 2
      // Predicated region
      $region17: #{cae5_forward.27} parent=5 // pred_check
        %p100 = pneg %p99
      $region18: #{cae5_forward.27} parent=5 // pred_check_branch
        %102 = sbr.rel (%p100) target = $region20
      $region19: #{cae5_forward.27} parent=5 // pred_region
        // Predicated region
        $region21: #{cae5_forward.27} parent=19 // pred_check
          %p103 = pneg %p49
        $region22: #{cae5_forward.27} parent=19 // pred_check_branch
          %105 = sbr.rel (%p103) target = $region24
        $region23: #{cae5_forward.27} parent=19 // pred_region
          %s106 = sand.u32 %s39, 1
          %s107 = sand.u32 %s39, 1
          %s108 = smul.addr %s107, 104
          %s109 = scalar_lea.vmem [#allocation2], %s108
          %s110 = smul.u32 2, %s8
          %s111 = smul.addr %s110, 4
          %s112 = scalar_lea.vmem %s1, %s111
          // Predicated region
          $region25: #{cae5_forward.27} parent=23 // pred_check
            _
          $region26: #{cae5_forward.27} parent=23 // pred_check_branch
            %114 = sbr.rel (0) target = $region28
          $region27: #{cae5_forward.27} parent=23 // pred_region
            // Predicated region
            $region29: #{cae5_forward.27} parent=27 // pred_check
              _
            $region30: #{cae5_forward.27} parent=27 // pred_check_branch
              %116 = sbr.rel (0) target = $region32
            $region31: #{cae5_forward.27} parent=27 // pred_region
              // Predicated region
              $region44: #{cae5_forward.27} parent=31 // pred_check
                _
              $region45: #{cae5_forward.27} parent=31 // pred_check_branch
                %155 = sbr.rel (0) target = $region47
              $region46: #{cae5_forward.27} parent=31 // pred_region
                loop: start=0, step=1, limit=1
                $region48: #{cae5_forward.27} parent=46 // loop_pre_header
                  _
                $region49: #{cae5_forward.27} parent=46 // loop_header
                  %s157 = sphi 0, %s161
                  %p158 = scmp.ge.s32.totalorder %s157, 1
                  %s162 = sphi %s112, %s112
                  %s163 = sphi %s109, %s109
                $region50: #{cae5_forward.27} parent=46 // loop_header_branch
                  %160 = sbr.rel (%p158) target = $region54
                $region51: #{cae5_forward.27} parent=46 // loop_body
                  %v164 = vld [vmem:[%s162] sm:$0xff]
                  %165 = vst [vmem:[%s163] sm:$0xff] %v164
                  %v166 = vld [vmem:[%s162 + $0x10] sm:$0xff]
                  %167 = vst [vmem:[%s163 + $0x8] sm:$0xff] %v166
                  %v168 = vld [vmem:[%s162 + $0x20] sm:$0xff]
                  %169 = vst [vmem:[%s163 + $0x10] sm:$0xff] %v168
                  %v170 = vld [vmem:[%s162 + $0x30] sm:$0xff]
                  %171 = vst [vmem:[%s163 + $0x18] sm:$0xff] %v170
                  %v172 = vld [vmem:[%s162 + $0x40] sm:$0xff]
                  %173 = vst [vmem:[%s163 + $0x20] sm:$0xff] %v172
                  %v174 = vld [vmem:[%s162 + $0x50] sm:$0xff]
                  %175 = vst [vmem:[%s163 + $0x28] sm:$0xff] %v174
                  %v176 = vld [vmem:[%s162 + $0x60] sm:$0xff]
                  %177 = vst [vmem:[%s163 + $0x30] sm:$0xff] %v176
                  %v178 = vld [vmem:[%s162 + $0x70] sm:$0xff]
                  %179 = vst [vmem:[%s163 + $0x38] sm:$0xff] %v178
                  %v180 = vld [vmem:[%s162 + $0x80] sm:$0xff]
                  %181 = vst [vmem:[%s163 + $0x40] sm:$0xff] %v180
                  %v182 = vld [vmem:[%s162 + $0x90] sm:$0xff]
                  %183 = vst [vmem:[%s163 + $0x48] sm:$0xff] %v182
                  %v184 = vld [vmem:[%s162 + $0xa0] sm:$0xff]
                  %185 = vst [vmem:[%s163 + $0x50] sm:$0xff] %v184
                  %v186 = vld [vmem:[%s162 + $0xb0] sm:$0xff]
                  %187 = vst [vmem:[%s163 + $0x58] sm:$0xff] %v186
                  %v188 = vld [vmem:[%s162 + $0xc0] sm:$0xff]
                  %189 = vst [vmem:[%s163 + $0x60] sm:$0xff] %v188
                $region52: #{cae5_forward.27} parent=46 // loop_footer
                  %s161 = sadd.s32 1, %s157
                $region53: #{cae5_forward.27} parent=46 // loop_footer_branch
                  %156 = sbr.rel target = $region49
                $region54: #{cae5_forward.27} parent=46 // loop_exit
                  _
              $region47: #{cae5_forward.27} parent=31 // pred_fallthru
                _
              // Predicated region
              $region55: #{cae5_forward.27} parent=31 // pred_check
                _
              $region56: #{cae5_forward.27} parent=31 // pred_check_branch
                %191 = sbr.rel target = $region58
              $region57: #{cae5_forward.27} parent=31 // pred_region
                _
              $region58: #{cae5_forward.27} parent=31 // pred_fallthru
                _
            $region32: #{cae5_forward.27} parent=27 // pred_fallthru
              _
            // Predicated region
            $region33: #{cae5_forward.27} parent=27 // pred_check
              _
            $region34: #{cae5_forward.27} parent=27 // pred_check_branch
              %118 = sbr.rel target = $region36
            $region35: #{cae5_forward.27} parent=27 // pred_region
              loop: start=0, step=1, limit=1
              $region37: #{cae5_forward.27} parent=35 // loop_pre_header
                _
              $region38: #{cae5_forward.27} parent=35 // loop_header
                %s121 = sphi 0, %s125
                %p122 = scmp.ge.s32.totalorder %s121, 1
                %s126 = sphi %s112, %s112
                %s127 = sphi %s109, %s109
              $region39: #{cae5_forward.27} parent=35 // loop_header_branch
                %124 = sbr.rel (%p122) target = $region43
              $region40: #{cae5_forward.27} parent=35 // loop_body
                %v128 = vld [vmem:[%s126] sm:$0xff]
                %129 = vst [vmem:[%s127] sm:$0xff] %v128
                %v130 = vld [vmem:[%s126 + $0x10] sm:$0xff]
                %131 = vst [vmem:[%s127 + $0x8] sm:$0xff] %v130
                %v132 = vld [vmem:[%s126 + $0x20] sm:$0xff]
                %133 = vst [vmem:[%s127 + $0x10] sm:$0xff] %v132
                %v134 = vld [vmem:[%s126 + $0x30] sm:$0xff]
                %135 = vst [vmem:[%s127 + $0x18] sm:$0xff] %v134
                %v136 = vld [vmem:[%s126 + $0x40] sm:$0xff]
                %137 = vst [vmem:[%s127 + $0x20] sm:$0xff] %v136
                %v138 = vld [vmem:[%s126 + $0x50] sm:$0xff]
                %139 = vst [vmem:[%s127 + $0x28] sm:$0xff] %v138
                %v140 = vld [vmem:[%s126 + $0x60] sm:$0xff]
                %141 = vst [vmem:[%s127 + $0x30] sm:$0xff] %v140
                %v142 = vld [vmem:[%s126 + $0x70] sm:$0xff]
                %143 = vst [vmem:[%s127 + $0x38] sm:$0xff] %v142
                %v144 = vld [vmem:[%s126 + $0x80] sm:$0xff]
                %145 = vst [vmem:[%s127 + $0x40] sm:$0xff] %v144
                %v146 = vld [vmem:[%s126 + $0x90] sm:$0xff]
                %147 = vst [vmem:[%s127 + $0x48] sm:$0xff] %v146
                %v148 = vld [vmem:[%s126 + $0xa0] sm:$0xff]
                %149 = vst [vmem:[%s127 + $0x50] sm:$0xff] %v148
                %v150 = vld [vmem:[%s126 + $0xb0] sm:$0xff]
                %151 = vst [vmem:[%s127 + $0x58] sm:$0xff] %v150
                %v152 = vld [vmem:[%s126 + $0xc0] sm:$0xff]
                %153 = vst [vmem:[%s127 + $0x60] sm:$0xff] %v152
              $region41: #{cae5_forward.27} parent=35 // loop_footer
                %s125 = sadd.s32 1, %s121
              $region42: #{cae5_forward.27} parent=35 // loop_footer_branch
                %120 = sbr.rel target = $region38
              $region43: #{cae5_forward.27} parent=35 // loop_exit
                _
            $region36: #{cae5_forward.27} parent=27 // pred_fallthru
              _
          $region28: #{cae5_forward.27} parent=23 // pred_fallthru
            _
          %192 = vnop
        $region24: #{cae5_forward.27} parent=19 // pred_fallthru
          _
      $region20: #{cae5_forward.27} parent=5 // pred_fallthru
        _
      %p193 = scmp.le.s32.totalorder 1, %s8
      %p194 = scmp.lt.s32.totalorder %s8, 3
      %p195 = pnand %p193, %p194
      %p196 = pneg %p195
      // Predicated region
      $region59: #{cae5_forward.27} parent=5 // pred_check
        _
      $region60: #{cae5_forward.27} parent=5 // pred_check_branch
        %198 = sbr.rel (%p195) target = $region62
      $region61: #{cae5_forward.27} parent=5 // pred_region
        %s199 = ssub.s32 %s8, 1
        %s200 = sand.u32 %s42, 1
        %s201 = sand.u32 %s42, 1
        %s202 = smul.addr %s201, 104
        %s203 = scalar_lea.vmem [#allocation2], %s202
        // Predicated region
        $region63: #{cae5_forward.27} parent=61 // pred_check
          %p204 = pneg %p55
        $region64: #{cae5_forward.27} parent=61 // pred_check_branch
          %206 = sbr.rel (%p204) target = $region66
        $region65: #{cae5_forward.27} parent=61 // pred_region
          _
        $region66: #{cae5_forward.27} parent=61 // pred_fallthru
          _
        %p207 = pneg %p29
        %p208 = pneg %p26
        %s209 = sand.u32 %s42, 1
        %s210 = sand.u32 %s42, 1
        %s211 = smul.addr %s210, 104
        %s212 = scalar_lea.vmem [#allocation2], %s211
        %p213 = pneg %p55
        %p214 = pneg %p52
        %p215 = pneg %p81
        %p216 = pneg %p78
        %s217 = smul.u32 2, %s13
        %p218 = scmp.lt.s32.totalorder %s217, 3
        %s219 = scalar_select %p218, %s217, 3
        %s220 = smul.addr %s219, 4
        %s221 = scalar_lea.vmem %s2, %s220
        %s222 = smul.u32 2, %s13
        %s223 = smul.u32 2, %s13
        %p224 = scmp.lt.s32.totalorder %s223, 3
        %s225 = scalar_select %p224, %s223, 3
        %s226 = smul.addr %s225, 4
        %s227 = scalar_lea.vmem %s2, %s226
        %s228 = smul.u32 2, %s13
        %v230 = vld [vmem:[%s0] sm:$0xf]
        %v231 = vld [vmem:[%s203] sm:$0xff]
        %v232 = vld [vmem:[%s203 + $0x8] sm:$0xff]
        %v233 = vld [vmem:[%s203 + $0x10] sm:$0xff]
        %v234 = vld [vmem:[%s203 + $0x18] sm:$0xff]
        %v235 = vld [vmem:[%s203 + $0x20] sm:$0xff]
        %v236 = vld [vmem:[%s203 + $0x28] sm:$0xff]
        %v237 = vld [vmem:[%s203 + $0x30] sm:$0xff]
        %v238 = vld [vmem:[%s203 + $0x38] sm:$0xff]
        %v239 = vld [vmem:[%s203 + $0x40] sm:$0xff]
        %v240 = vld [vmem:[%s203 + $0x48] sm:$0xff]
        %v241 = vld [vmem:[%s203 + $0x50] sm:$0xff]
        %v242 = vld [vmem:[%s203 + $0x58] sm:$0xff]
        %v243 = vld [vmem:[%s203 + $0x60] sm:$0xff]
        %v257 = vunpack.c.l.b16 %v231
        %v258 = vunpack.c.h.b16 %v231
        %v259 = vunpack.c.l.b16 %v232
        %v260 = vunpack.c.h.b16 %v232
        %v261 = vunpack.c.l.b16 %v233
        %v262 = vunpack.c.h.b16 %v233
        %v263 = vunpack.c.l.b16 %v234
        %v264 = vunpack.c.h.b16 %v234
        %v265 = vunpack.c.l.b16 %v235
        %v266 = vunpack.c.h.b16 %v235
        %v267 = vunpack.c.l.b16 %v236
        %v268 = vunpack.c.h.b16 %v236
        %v269 = vunpack.c.l.b16 %v237
        %v270 = vunpack.c.h.b16 %v237
        %v271 = vunpack.c.l.b16 %v238
        %v272 = vunpack.c.h.b16 %v238
        %v273 = vunpack.c.l.b16 %v239
        %v274 = vunpack.c.h.b16 %v239
        %v275 = vunpack.c.l.b16 %v240
        %v276 = vunpack.c.h.b16 %v240
        %v277 = vunpack.c.l.b16 %v241
        %v278 = vunpack.c.h.b16 %v241
        %v279 = vunpack.c.l.b16 %v242
        %v280 = vunpack.c.h.b16 %v242
        %v281 = vunpack.c.l.b16 %v243
        %v282 = vunpack.c.h.b16 %v243
        %v283 = vpack.c.b16 %v259, %v257
        %v284 = vpack.c.b16 %v260, %v258
        %v285 = vpack.c.b16 %v263, %v261
        %v286 = vpack.c.b16 %v264, %v262
        %v287 = vpack.c.b16 %v267, %v265
        %v288 = vpack.c.b16 %v268, %v266
        %v289 = vpack.c.b16 %v271, %v269
        %v290 = vpack.c.b16 %v272, %v270
        %v291 = vpack.c.b16 %v275, %v273
        %v292 = vpack.c.b16 %v276, %v274
        %v293 = vpack.c.b16 %v279, %v277
        %v294 = vpack.c.b16 %v280, %v278
        %v295 = vpack.c.b16 %v281, %v281
        %v296 = vpack.c.b16 %v282, %v282
        %vm309 = vcmask 850944
        %v311 = vsel %vm309, %v230, 0
        %vm313 = vcmask 1043456
        %v315 = vsel %vm313, %v295, 0
        %v318 = vsel %vm313, %v296, 0
        %320 = vmatprep.subr.bf16.mxu0 %v284
        %321 = vmatpush1.bf16.msra.mxu0 %v283
        %322 = vmatprep.subr.bf16.mxu0 %v286
        %323 = vmatpush1.bf16.msra.mxu0 %v285
        %324 = vmatprep.subr.bf16.mxu0 %v288
        %325 = vmatpush1.bf16.msra.mxu0 %v287
        %326 = vmatprep.subr.bf16.mxu0 %v290
        %327 = vmatpush1.bf16.msra.mxu0 %v289
        %328 = vmatprep.subr.bf16.mxu0 %v292
        %329 = vmatpush1.bf16.msra.mxu0 %v291
        %330 = vmatprep.subr.bf16.mxu0 %v294
        %331 = vmatpush1.bf16.msra.mxu0 %v293
        %332 = vmatprep.subr.bf16.mxu0 %v318
        %333 = vmatpush1.bf16.msra.mxu0 %v315
        %334 = vmatprep.subr.bf16.mxu0 0
        %335 = vmatpush1.bf16.msra.mxu0 0
        %336 = vmatprep.subr.bf16.mxu0 0
        %337 = vmatpush1.bf16.msra.mxu0 0
        %338 = vmatprep.subr.bf16.mxu0 0
        %339 = vmatpush1.bf16.msra.mxu0 0
        %340 = vmatprep.subr.bf16.mxu0 0
        %341 = vmatpush1.bf16.msra.mxu0 0
        %342 = vmatprep.subr.bf16.mxu0 0
        %343 = vmatpush1.bf16.msra.mxu0 0
        %344 = vmatprep.subr.bf16.mxu0 0
        %345 = vmatpush1.bf16.msra.mxu0 0
        %346 = vmatprep.subr.bf16.mxu0 0
        %347 = vmatpush1.bf16.msra.mxu0 0
        %348 = vmatprep.subr.bf16.mxu0 0
        %349 = vmatpush1.bf16.msra.mxu0 0
        %350 = vmatprep.subr.bf16.mxu0 0
        %351 = vmatpush1.bf16.msra.mxu0 0
        %352 = vmatprep.mubr.bf16.mxu0 0
        %353 = vmatmul.mubr.bf16.gmra.mrb[0].mxu0 %v311
        %v354 = vpop.f32.mrb[0].mxu0
        %v355 = vadd.f32 0.0, %v354
        %v356 = vpop.f32.mrb[0].mxu0
        %v357 = vadd.f32 0.0, %v356
        %v358 = vpop.f32.mrb[0].mxu0
        %v359 = vpop.f32.mrb[0].mxu0
        %360 = vdwg.mxu0
        %vm361 = vcmp.ge.f32.partialorder %v355, 0.0
        %vm362 = vcmp.ge.f32.partialorder %v357, 0.0
        %v363 = vmul.f32 %v355, 0.01
        %v364 = vmul.f32 %v357, 0.01
        %v365 = vsel %vm361, %v355, %v363
        %v366 = vsel %vm362, %v357, %v364
        %v367 = vpack.c.bf16 %v365, %v365
        %v368 = vpack.c.bf16 %v366, %v366
        %v371 = vunpack.c.l.b16 %v367
        %v372 = vunpack.c.l.b16 %v368
        %v373 = vpack.c.b16 %v372, %v371
        %375 = vst [vmem:[%s227] sm:$0xff] %v373
        %s376 = smul.u32 2, %s13
        %p377 = scmp.lt.s32.totalorder %s376, 3
        %s378 = scalar_select %p377, %s376, 3
        %s379 = smul.addr %s378, 4
        %s380 = scalar_lea.vmem %s2, %s379
        // Predicated region
        $region67: #{cae5_forward.27} parent=61 // pred_check
          %p381 = pneg %p78
        $region68: #{cae5_forward.27} parent=61 // pred_check_branch
          %383 = sbr.rel (%p381) target = $region70
        $region69: #{cae5_forward.27} parent=61 // pred_region
          %s384 = smul.u32 2, %s13
        $region70: #{cae5_forward.27} parent=61 // pred_fallthru
          _
      $region62: #{cae5_forward.27} parent=5 // pred_fallthru
        _
      %p385 = scmp.le.s32.totalorder 2, %s8
      // Predicated region
      $region71: #{cae5_forward.27} parent=5 // pred_check
        %p386 = pneg %p385
      $region72: #{cae5_forward.27} parent=5 // pred_check_branch
        %388 = sbr.rel (%p386) target = $region74
      $region73: #{cae5_forward.27} parent=5 // pred_region
        %s389 = ssub.s32 %s8, 2
        // Predicated region
        $region75: #{cae5_forward.27} parent=73 // pred_check
          %p390 = pneg %p84
        $region76: #{cae5_forward.27} parent=73 // pred_check_branch
          %392 = sbr.rel (%p390) target = $region78
        $region77: #{cae5_forward.27} parent=73 // pred_region
          %s393 = smul.u32 2, %s14
          %p394 = scmp.lt.s32.totalorder %s393, 3
          %s395 = scalar_select %p394, %s393, 3
          %s396 = smul.addr %s395, 4
          %s397 = scalar_lea.vmem %s2, %s396
        $region78: #{cae5_forward.27} parent=73 // pred_fallthru
          _
      $region74: #{cae5_forward.27} parent=5 // pred_fallthru
        _
    $region6: #{cae5_forward.27} parent=1 // loop_footer
      %s12 = sadd.s32 1, %s8
    $region7: #{cae5_forward.27} parent=1 // loop_footer_branch
      %7 = sbr.rel target = $region3
    $region8: #{cae5_forward.27} parent=1 // loop_exit
      _

// kernel: cae5_forward.28
$region0: #{cae5_forward.28}
  #allocation0 [shape = 'u32[]', space=smem, size = 0x4, offset = 0x4, fixed_abs, tag = 'smem constant byte address 0x4 - core index']
  #allocation1 [shape = 'u32[144,128]{1,0:T(1,128)}', space=vmem, size = 0x12000, scoped, tag = 'internal scratch']
  %s0 = inlined_call_operand.vmem [shape: bf16[16,208], index: 0, kind: input, shape index: {}]
  %s1 = inlined_call_operand.vmem [shape: bf16[208,128], index: 1, kind: input, shape index: {}]
  %s2 = inlined_call_operand.vmem [shape: bf16[16,128], index: 2, kind: output, shape index: {}]
  %s3 = sld [smem:[#allocation0]]
  $region18: #{cae5_forward.28} parent=0
    _
  %s5 = ssub.s32 1, %s3
  %s6 = scalar_select 0, %s5, %s3
  // Predicated region
  $region2: #{cae5_forward.28} parent=0 // pred_check
    _
  $region3: #{cae5_forward.28} parent=0 // pred_check_branch
    %8 = sbr.rel (0) target = $region5
  $region4: #{cae5_forward.28} parent=0 // pred_region
    _
  $region5: #{cae5_forward.28} parent=0 // pred_fallthru
    _
  // Predicated region
  $region6: #{cae5_forward.28} parent=0 // pred_check
    _
  $region7: #{cae5_forward.28} parent=0 // pred_check_branch
    %10 = sbr.rel (0) target = $region9
  $region8: #{cae5_forward.28} parent=0 // pred_region
    _
  $region9: #{cae5_forward.28} parent=0 // pred_fallthru
    _
  %v12 = vld [vmem:[%s0] sm:$0xff]
  %v13 = vld [vmem:[%s0 + $0x8] sm:$0xff]
  %v14 = vld [vmem:[%s1] sm:$0xf]
  %v15 = vld [vmem:[%s1 + $0x4] sm:$0xf]
  %v16 = vld [vmem:[%s1 + $0x8] sm:$0xf]
  %v17 = vld [vmem:[%s1 + $0xc] sm:$0xf]
  %v18 = vld [vmem:[%s1 + $0x10] sm:$0xf]
  %v19 = vld [vmem:[%s1 + $0x14] sm:$0xf]
  %v20 = vld [vmem:[%s1 + $0x18] sm:$0xf]
  %v21 = vld [vmem:[%s1 + $0x1c] sm:$0xf]
  %v22 = vld [vmem:[%s1 + $0x20] sm:$0xf]
  %v23 = vld [vmem:[%s1 + $0x24] sm:$0xf]
  %v24 = vld [vmem:[%s1 + $0x28] sm:$0xf]
  %v25 = vld [vmem:[%s1 + $0x2c] sm:$0xf]
  %v26 = vld [vmem:[%s1 + $0x30] sm:$0xf]
  %v27 = vld [vmem:[%s1 + $0x34] sm:$0xf]
  %v28 = vld [vmem:[%s1 + $0x38] sm:$0xf]
  %v29 = vld [vmem:[%s1 + $0x3c] sm:$0xf]
  %v30 = vld [vmem:[%s1 + $0x40] sm:$0xf]
  %v31 = vld [vmem:[%s1 + $0x44] sm:$0xf]
  %v32 = vld [vmem:[%s1 + $0x48] sm:$0xf]
  %v33 = vld [vmem:[%s1 + $0x4c] sm:$0xf]
  %v34 = vld [vmem:[%s1 + $0x50] sm:$0xf]
  %v35 = vld [vmem:[%s1 + $0x54] sm:$0xf]
  %v36 = vld [vmem:[%s1 + $0x58] sm:$0xf]
  %v37 = vld [vmem:[%s1 + $0x5c] sm:$0xf]
  %v38 = vld [vmem:[%s1 + $0x60] sm:$0xf]
  %v39 = vld [vmem:[%s1 + $0x64] sm:$0xf]
  %v42 = vunpack.c.l.b16 %v12
  %v43 = vunpack.c.h.b16 %v12
  %v44 = vunpack.c.l.b16 %v13
  %v45 = vunpack.c.h.b16 %v13
  %v46 = vpack.c.b16 %v44, %v42
  %v47 = vpack.c.b16 %v45, %v43
  %v75 = vunpack.c.l.b16 %v14
  %v76 = vunpack.c.l.b16 %v15
  %v77 = vunpack.c.l.b16 %v16
  %v78 = vunpack.c.l.b16 %v17
  %v79 = vunpack.c.l.b16 %v18
  %v80 = vunpack.c.l.b16 %v19
  %v81 = vunpack.c.l.b16 %v20
  %v82 = vunpack.c.l.b16 %v21
  %v83 = vunpack.c.l.b16 %v22
  %v84 = vunpack.c.l.b16 %v23
  %v85 = vunpack.c.l.b16 %v24
  %v86 = vunpack.c.l.b16 %v25
  %v87 = vunpack.c.l.b16 %v26
  %v88 = vunpack.c.l.b16 %v27
  %v89 = vunpack.c.l.b16 %v28
  %v90 = vunpack.c.l.b16 %v29
  %v91 = vunpack.c.l.b16 %v30
  %v92 = vunpack.c.l.b16 %v31
  %v93 = vunpack.c.l.b16 %v32
  %v94 = vunpack.c.l.b16 %v33
  %v95 = vunpack.c.l.b16 %v34
  %v96 = vunpack.c.l.b16 %v35
  %v97 = vunpack.c.l.b16 %v36
  %v98 = vunpack.c.l.b16 %v37
  %v99 = vunpack.c.l.b16 %v38
  %v100 = vunpack.c.l.b16 %v39
  %v101 = vpack.c.b16 %v76, %v75
  %v102 = vpack.c.b16 %v78, %v77
  %v103 = vpack.c.b16 %v80, %v79
  %v104 = vpack.c.b16 %v82, %v81
  %v105 = vpack.c.b16 %v84, %v83
  %v106 = vpack.c.b16 %v86, %v85
  %v107 = vpack.c.b16 %v88, %v87
  %v108 = vpack.c.b16 %v90, %v89
  %v109 = vpack.c.b16 %v92, %v91
  %v110 = vpack.c.b16 %v94, %v93
  %v111 = vpack.c.b16 %v96, %v95
  %v112 = vpack.c.b16 %v98, %v97
  %v113 = vpack.c.b16 %v100, %v99
  %vm127 = vcmask 654336
  %v129 = vsel %vm127, %v47, 0
  %131 = vmatprep.subr.bf16.mxu0 0
  %132 = vmatpush1.bf16.msra.mxu0 %v101
  %133 = vmatprep.subr.bf16.mxu0 0
  %134 = vmatpush1.bf16.msra.mxu0 %v102
  %135 = vmatprep.subr.bf16.mxu0 0
  %136 = vmatpush1.bf16.msra.mxu0 %v103
  %137 = vmatprep.subr.bf16.mxu0 0
  %138 = vmatpush1.bf16.msra.mxu0 %v104
  %139 = vmatprep.subr.bf16.mxu0 0
  %140 = vmatpush1.bf16.msra.mxu0 %v105
  %141 = vmatprep.subr.bf16.mxu0 0
  %142 = vmatpush1.bf16.msra.mxu0 %v106
  %143 = vmatprep.subr.bf16.mxu0 0
  %144 = vmatpush1.bf16.msra.mxu0 %v107
  %145 = vmatprep.subr.bf16.mxu0 0
  %146 = vmatpush1.bf16.msra.mxu0 %v108
  %147 = vmatprep.subr.bf16.mxu0 0
  %148 = vmatpush1.bf16.msra.mxu0 %v109
  %149 = vmatprep.subr.bf16.mxu0 0
  %150 = vmatpush1.bf16.msra.mxu0 %v110
  %151 = vmatprep.subr.bf16.mxu0 0
  %152 = vmatpush1.bf16.msra.mxu0 %v111
  %153 = vmatprep.subr.bf16.mxu0 0
  %154 = vmatpush1.bf16.msra.mxu0 %v112
  %155 = vmatprep.subr.bf16.mxu0 0
  %156 = vmatpush1.bf16.msra.mxu0 %v113
  %157 = vmatprep.subr.bf16.mxu0 0
  %158 = vmatpush1.bf16.msra.mxu0 0
  %159 = vmatprep.subr.bf16.mxu0 0
  %160 = vmatpush1.bf16.msra.mxu0 0
  %161 = vmatprep.subr.bf16.mxu0 0
  %162 = vmatpush1.bf16.msra.mxu0 0
  %163 = vmatprep.mubr.bf16.mxu0 %v129
  %164 = vmatmul.mubr.bf16.gmra.mrb[0].mxu0 %v46
  %v165 = vpop.f32.mrb[0].mxu0
  %v166 = vadd.f32 0.0, %v165
  %v167 = vpop.f32.mrb[0].mxu0
  %v168 = vpop.f32.mrb[0].mxu0
  %v169 = vadd.f32 0.0, %v168
  %v170 = vpop.f32.mrb[0].mxu0
  %171 = vdwg.mxu0
  %vm172 = vcmp.ge.f32.partialorder %v166, 0.0
  %vm173 = vcmp.ge.f32.partialorder %v169, 0.0
  %v174 = vmul.f32 %v166, 0.01
  %v175 = vmul.f32 %v169, 0.01
  %v176 = vsel %vm172, %v166, %v174
  %v177 = vsel %vm173, %v169, %v175
  %v178 = vpack.c.bf16 %v177, %v176
  %v180 = vunpack.c.l.b16 %v178
  %v181 = vunpack.c.h.b16 %v178
  %v182 = vpack.c.b16 %v180, %v180
  %v183 = vpack.c.b16 %v181, %v181
  %186 = vst [vmem:[%s2] sm:$0xf] %v182
  %187 = vst [vmem:[%s2 + $0x4] sm:$0xf] %v183
  // Predicated region
  $region10: #{cae5_forward.28} parent=0 // pred_check
    _
  $region11: #{cae5_forward.28} parent=0 // pred_check_branch
    %189 = sbr.rel (0) target = $region13
  $region12: #{cae5_forward.28} parent=0 // pred_region
    _
  $region13: #{cae5_forward.28} parent=0 // pred_fallthru
    _
  // Predicated region
  $region14: #{cae5_forward.28} parent=0 // pred_check
    _
  $region15: #{cae5_forward.28} parent=0 // pred_check_branch
    %191 = sbr.rel (0) target = $region17
  $region16: #{cae5_forward.28} parent=0 // pred_region
    _
  $region17: #{cae5_forward.28} parent=0 // pred_fallthru
    _

// kernel: cae5_forward.29
$region0: #{cae5_forward.29}
  #allocation0 [shape = 'u32[]', space=smem, size = 0x4, offset = 0x4, fixed_abs, tag = 'smem constant byte address 0x4 - core index']
  #allocation1 [shape = 'u32[144,128]{1,0:T(1,128)}', space=vmem, size = 0x12000, scoped, tag = 'internal scratch']
  %s0 = inlined_call_operand.vmem [shape: bf16[32,408], index: 0, kind: input, shape index: {}]
  %s1 = inlined_call_operand.vmem [shape: bf16[408,32], index: 1, kind: input, shape index: {}]
  %s2 = inlined_call_operand.vmem [shape: bf16[32,32], index: 2, kind: output, shape index: {}]
  %s3 = sld [smem:[#allocation0]]
  $region18: #{cae5_forward.29} parent=0
    _
  %s5 = ssub.s32 1, %s3
  %s6 = scalar_select 0, %s5, %s3
  // Predicated region
  $region2: #{cae5_forward.29} parent=0 // pred_check
    _
  $region3: #{cae5_forward.29} parent=0 // pred_check_branch
    %8 = sbr.rel (0) target = $region5
  $region4: #{cae5_forward.29} parent=0 // pred_region
    _
  $region5: #{cae5_forward.29} parent=0 // pred_fallthru
    _
  // Predicated region
  $region6: #{cae5_forward.29} parent=0 // pred_check
    _
  $region7: #{cae5_forward.29} parent=0 // pred_check_branch
    %10 = sbr.rel (0) target = $region9
  $region8: #{cae5_forward.29} parent=0 // pred_region
    _
  $region9: #{cae5_forward.29} parent=0 // pred_fallthru
    _
  %v12 = vld [vmem:[%s0] sm:$0xff]
  %v13 = vld [vmem:[%s0 + $0x8] sm:$0xff]
  %v14 = vld [vmem:[%s0 + $0x10] sm:$0xff]
  %v15 = vld [vmem:[%s0 + $0x18] sm:$0xff]
  %v16 = vld [vmem:[%s0 + $0x20] sm:$0xff]
  %v17 = vld [vmem:[%s0 + $0x28] sm:$0xff]
  %v18 = vld [vmem:[%s0 + $0x30] sm:$0xff]
  %v19 = vld [vmem:[%s0 + $0x38] sm:$0xff]
  %v20 = vld [vmem:[%s1] sm:$0xf]
  %v21 = vld [vmem:[%s1 + $0x4] sm:$0xf]
  %v22 = vld [vmem:[%s1 + $0x8] sm:$0xf]
  %v23 = vld [vmem:[%s1 + $0xc] sm:$0xf]
  %v24 = vld [vmem:[%s1 + $0x10] sm:$0xf]
  %v25 = vld [vmem:[%s1 + $0x14] sm:$0xf]
  %v26 = vld [vmem:[%s1 + $0x18] sm:$0xf]
  %v27 = vld [vmem:[%s1 + $0x1c] sm:$0xf]
  %v28 = vld [vmem:[%s1 + $0x20] sm:$0xf]
  %v29 = vld [vmem:[%s1 + $0x24] sm:$0xf]
  %v30 = vld [vmem:[%s1 + $0x28] sm:$0xf]
  %v31 = vld [vmem:[%s1 + $0x2c] sm:$0xf]
  %v32 = vld [vmem:[%s1 + $0x30] sm:$0xf]
  %v33 = vld [vmem:[%s1 + $0x34] sm:$0xf]
  %v34 = vld [vmem:[%s1 + $0x38] sm:$0xf]
  %v35 = vld [vmem:[%s1 + $0x3c] sm:$0xf]
  %v36 = vld [vmem:[%s1 + $0x40] sm:$0xf]
  %v37 = vld [vmem:[%s1 + $0x44] sm:$0xf]
  %v38 = vld [vmem:[%s1 + $0x48] sm:$0xf]
  %v39 = vld [vmem:[%s1 + $0x4c] sm:$0xf]
  %v40 = vld [vmem:[%s1 + $0x50] sm:$0xf]
  %v41 = vld [vmem:[%s1 + $0x54] sm:$0xf]
  %v42 = vld [vmem:[%s1 + $0x58] sm:$0xf]
  %v43 = vld [vmem:[%s1 + $0x5c] sm:$0xf]
  %v44 = vld [vmem:[%s1 + $0x60] sm:$0xf]
  %v45 = vld [vmem:[%s1 + $0x64] sm:$0xf]
  %v46 = vld [vmem:[%s1 + $0x68] sm:$0xf]
  %v47 = vld [vmem:[%s1 + $0x6c] sm:$0xf]
  %v48 = vld [vmem:[%s1 + $0x70] sm:$0xf]
  %v49 = vld [vmem:[%s1 + $0x74] sm:$0xf]
  %v50 = vld [vmem:[%s1 + $0x78] sm:$0xf]
  %v51 = vld [vmem:[%s1 + $0x7c] sm:$0xf]
  %v52 = vld [vmem:[%s1 + $0x80] sm:$0xf]
  %v53 = vld [vmem:[%s1 + $0x84] sm:$0xf]
  %v54 = vld [vmem:[%s1 + $0x88] sm:$0xf]
  %v55 = vld [vmem:[%s1 + $0x8c] sm:$0xf]
  %v56 = vld [vmem:[%s1 + $0x90] sm:$0xf]
  %v57 = vld [vmem:[%s1 + $0x94] sm:$0xf]
  %v58 = vld [vmem:[%s1 + $0x98] sm:$0xf]
  %v59 = vld [vmem:[%s1 + $0x9c] sm:$0xf]
  %v60 = vld [vmem:[%s1 + $0xa0] sm:$0xf]
  %v61 = vld [vmem:[%s1 + $0xa4] sm:$0xf]
  %v62 = vld [vmem:[%s1 + $0xa8] sm:$0xf]
  %v63 = vld [vmem:[%s1 + $0xac] sm:$0xf]
  %v64 = vld [vmem:[%s1 + $0xb0] sm:$0xf]
  %v65 = vld [vmem:[%s1 + $0xb4] sm:$0xf]
  %v66 = vld [vmem:[%s1 + $0xb8] sm:$0xf]
  %v67 = vld [vmem:[%s1 + $0xbc] sm:$0xf]
  %v68 = vld [vmem:[%s1 + $0xc0] sm:$0xf]
  %v69 = vld [vmem:[%s1 + $0xc4] sm:$0xf]
  %v70 = vld [vmem:[%s1 + $0xc8] sm:$0xf]
  %v79 = vunpack.c.l.b16 %v12
  %v80 = vunpack.c.h.b16 %v12
  %v81 = vunpack.c.l.b16 %v13
  %v82 = vunpack.c.h.b16 %v13
  %v83 = vunpack.c.l.b16 %v14
  %v84 = vunpack.c.h.b16 %v14
  %v85 = vunpack.c.l.b16 %v15
  %v86 = vunpack.c.h.b16 %v15
  %v87 = vunpack.c.l.b16 %v16
  %v88 = vunpack.c.h.b16 %v16
  %v89 = vunpack.c.l.b16 %v17
  %v90 = vunpack.c.h.b16 %v17
  %v91 = vunpack.c.l.b16 %v18
  %v92 = vunpack.c.h.b16 %v18
  %v93 = vunpack.c.l.b16 %v19
  %v94 = vunpack.c.h.b16 %v19
  %v95 = vpack.c.b16 %v83, %v79
  %v96 = vpack.c.b16 %v84, %v80
  %v97 = vpack.c.b16 %v85, %v81
  %v98 = vpack.c.b16 %v86, %v82
  %v99 = vpack.c.b16 %v91, %v87
  %v100 = vpack.c.b16 %v92, %v88
  %v101 = vpack.c.b16 %v93, %v89
  %v102 = vpack.c.b16 %v94, %v90
  %v160 = vunpack.c.l.b16 %v20
  %v161 = vunpack.c.l.b16 %v21
  %v162 = vunpack.c.l.b16 %v22
  %v163 = vunpack.c.l.b16 %v23
  %v164 = vunpack.c.l.b16 %v24
  %v165 = vunpack.c.l.b16 %v25
  %v166 = vunpack.c.l.b16 %v26
  %v167 = vunpack.c.l.b16 %v27
  %v168 = vunpack.c.l.b16 %v28
  %v169 = vunpack.c.l.b16 %v29
  %v170 = vunpack.c.l.b16 %v30
  %v171 = vunpack.c.l.b16 %v31
  %v172 = vunpack.c.l.b16 %v32
  %v173 = vunpack.c.l.b16 %v33
  %v174 = vunpack.c.l.b16 %v34
  %v175 = vunpack.c.l.b16 %v35
  %v176 = vunpack.c.l.b16 %v36
  %v177 = vunpack.c.l.b16 %v37
  %v178 = vunpack.c.l.b16 %v38
  %v179 = vunpack.c.l.b16 %v39
  %v180 = vunpack.c.l.b16 %v40
  %v181 = vunpack.c.l.b16 %v41
  %v182 = vunpack.c.l.b16 %v42
  %v183 = vunpack.c.l.b16 %v43
  %v184 = vunpack.c.l.b16 %v44
  %v185 = vunpack.c.l.b16 %v45
  %v186 = vunpack.c.l.b16 %v46
  %v187 = vunpack.c.l.b16 %v47
  %v188 = vunpack.c.l.b16 %v48
  %v189 = vunpack.c.l.b16 %v49
  %v190 = vunpack.c.l.b16 %v50
  %v191 = vunpack.c.l.b16 %v51
  %v192 = vunpack.c.l.b16 %v52
  %v193 = vunpack.c.l.b16 %v53
  %v194 = vunpack.c.l.b16 %v54
  %v195 = vunpack.c.l.b16 %v55
  %v196 = vunpack.c.l.b16 %v56
  %v197 = vunpack.c.l.b16 %v57
  %v198 = vunpack.c.l.b16 %v58
  %v199 = vunpack.c.l.b16 %v59
  %v200 = vunpack.c.l.b16 %v60
  %v201 = vunpack.c.l.b16 %v61
  %v202 = vunpack.c.l.b16 %v62
  %v203 = vunpack.c.l.b16 %v63
  %v204 = vunpack.c.l.b16 %v64
  %v205 = vunpack.c.l.b16 %v65
  %v206 = vunpack.c.l.b16 %v66
  %v207 = vunpack.c.l.b16 %v67
  %v208 = vunpack.c.l.b16 %v68
  %v209 = vunpack.c.l.b16 %v69
  %v210 = vunpack.c.l.b16 %v70
  %v211 = vpack.c.b16 %v161, %v160
  %v212 = vpack.c.b16 %v163, %v162
  %v213 = vpack.c.b16 %v165, %v164
  %v214 = vpack.c.b16 %v167, %v166
  %v215 = vpack.c.b16 %v169, %v168
  %v216 = vpack.c.b16 %v171, %v170
  %v217 = vpack.c.b16 %v173, %v172
  %v218 = vpack.c.b16 %v175, %v174
  %v219 = vpack.c.b16 %v177, %v176
  %v220 = vpack.c.b16 %v179, %v178
  %v221 = vpack.c.b16 %v181, %v180
  %v222 = vpack.c.b16 %v183, %v182
  %v223 = vpack.c.b16 %v185, %v184
  %v224 = vpack.c.b16 %v187, %v186
  %v225 = vpack.c.b16 %v189, %v188
  %v226 = vpack.c.b16 %v191, %v190
  %v227 = vpack.c.b16 %v193, %v192
  %v228 = vpack.c.b16 %v195, %v194
  %v229 = vpack.c.b16 %v197, %v196
  %v230 = vpack.c.b16 %v199, %v198
  %v231 = vpack.c.b16 %v201, %v200
  %v232 = vpack.c.b16 %v203, %v202
  %v233 = vpack.c.b16 %v205, %v204
  %v234 = vpack.c.b16 %v207, %v206
  %v235 = vpack.c.b16 %v209, %v208
  %v236 = vpack.c.b16 %v210, %v210
  %vm262 = vcmask 195584
  %v264 = vsel %vm262, %v98, 0
  %v267 = vsel %vm262, %v102, 0
  %vm269 = vcmask 1043456
  %v271 = vsel %vm269, %v236, 0
  %273 = vmatprep.subr.bf16.mxu0 0
  %274 = vmatpush1.bf16.msra.mxu0 %v211
  %275 = vmatprep.subr.bf16.mxu0 0
  %276 = vmatpush1.bf16.msra.mxu0 %v212
  %277 = vmatprep.subr.bf16.mxu0 0
  %278 = vmatpush1.bf16.msra.mxu0 %v213
  %279 = vmatprep.subr.bf16.mxu0 0
  %280 = vmatpush1.bf16.msra.mxu0 %v214
  %281 = vmatprep.subr.bf16.mxu0 0
  %282 = vmatpush1.bf16.msra.mxu0 %v215
  %283 = vmatprep.subr.bf16.mxu0 0
  %284 = vmatpush1.bf16.msra.mxu0 %v216
  %285 = vmatprep.subr.bf16.mxu0 0
  %286 = vmatpush1.bf16.msra.mxu0 %v217
  %287 = vmatprep.subr.bf16.mxu0 0
  %288 = vmatpush1.bf16.msra.mxu0 %v218
  %289 = vmatprep.subr.bf16.mxu0 0
  %290 = vmatpush1.bf16.msra.mxu0 %v219
  %291 = vmatprep.subr.bf16.mxu0 0
  %292 = vmatpush1.bf16.msra.mxu0 %v220
  %293 = vmatprep.subr.bf16.mxu0 0
  %294 = vmatpush1.bf16.msra.mxu0 %v221
  %295 = vmatprep.subr.bf16.mxu0 0
  %296 = vmatpush1.bf16.msra.mxu0 %v222
  %297 = vmatprep.subr.bf16.mxu0 0
  %298 = vmatpush1.bf16.msra.mxu0 %v223
  %299 = vmatprep.subr.bf16.mxu0 0
  %300 = vmatpush1.bf16.msra.mxu0 %v224
  %301 = vmatprep.subr.bf16.mxu0 0
  %302 = vmatpush1.bf16.msra.mxu0 %v225
  %303 = vmatprep.subr.bf16.mxu0 0
  %304 = vmatpush1.bf16.msra.mxu0 %v226
  %305 = vmatprep.mubr.bf16.mxu0 %v96
  %306 = vmatmul.mubr.bf16.gmra.mrb[0].mxu0 %v95
  %v307 = vpop.f32.mrb[0].mxu0
  %v308 = vadd.f32 0.0, %v307
  %v309 = vpop.f32.mrb[0].mxu0
  %v310 = vpop.f32.mrb[0].mxu0
  %v311 = vadd.f32 0.0, %v310
  %v312 = vpop.f32.mrb[0].mxu0
  %313 = vmatprep.mubr.bf16.mxu0 %v100
  %314 = vmatmul.mubr.bf16.gmra.mrb[0].mxu0 %v99
  %v315 = vpop.f32.mrb[0].mxu0
  %v316 = vadd.f32 0.0, %v315
  %v317 = vpop.f32.mrb[0].mxu0
  %v318 = vpop.f32.mrb[0].mxu0
  %v319 = vadd.f32 0.0, %v318
  %v320 = vpop.f32.mrb[0].mxu0
  %321 = vdwg.mxu0
  %322 = vmatprep.subr.bf16.mxu0 0
  %323 = vmatpush1.bf16.msra.mxu0 %v227
  %324 = vmatprep.subr.bf16.mxu0 0
  %325 = vmatpush1.bf16.msra.mxu0 %v228
  %326 = vmatprep.subr.bf16.mxu0 0
  %327 = vmatpush1.bf16.msra.mxu0 %v229
  %328 = vmatprep.subr.bf16.mxu0 0
  %329 = vmatpush1.bf16.msra.mxu0 %v230
  %330 = vmatprep.subr.bf16.mxu0 0
  %331 = vmatpush1.bf16.msra.mxu0 %v231
  %332 = vmatprep.subr.bf16.mxu0 0
  %333 = vmatpush1.bf16.msra.mxu0 %v232
  %334 = vmatprep.subr.bf16.mxu0 0
  %335 = vmatpush1.bf16.msra.mxu0 %v233
  %336 = vmatprep.subr.bf16.mxu0 0
  %337 = vmatpush1.bf16.msra.mxu0 %v234
  %338 = vmatprep.subr.bf16.mxu0 0
  %339 = vmatpush1.bf16.msra.mxu0 %v235
  %340 = vmatprep.subr.bf16.mxu0 0
  %341 = vmatpush1.bf16.msra.mxu0 %v271
  %342 = vmatprep.subr.bf16.mxu0 0
  %343 = vmatpush1.bf16.msra.mxu0 0
  %344 = vmatprep.subr.bf16.mxu0 0
  %345 = vmatpush1.bf16.msra.mxu0 0
  %346 = vmatprep.subr.bf16.mxu0 0
  %347 = vmatpush1.bf16.msra.mxu0 0
  %348 = vmatprep.subr.bf16.mxu0 0
  %349 = vmatpush1.bf16.msra.mxu0 0
  %350 = vmatprep.subr.bf16.mxu0 0
  %351 = vmatpush1.bf16.msra.mxu0 0
  %352 = vmatprep.subr.bf16.mxu0 0
  %353 = vmatpush1.bf16.msra.mxu0 0
  %354 = vmatprep.mubr.bf16.mxu0 %v264
  %355 = vmatmul.mubr.bf16.gmra.mrb[0].mxu0 %v97
  %v356 = vpop.f32.mrb[0].mxu0
  %v357 = vadd.f32 %v308, %v356
  %v358 = vpop.f32.mrb[0].mxu0
  %v359 = vpop.f32.mrb[0].mxu0
  %v360 = vadd.f32 %v311, %v359
  %v361 = vpop.f32.mrb[0].mxu0
  %362 = vmatprep.mubr.bf16.mxu0 %v267
  %363 = vmatmul.mubr.bf16.gmra.mrb[0].mxu0 %v101
  %v364 = vpop.f32.mrb[0].mxu0
  %v365 = vadd.f32 %v316, %v364
  %v366 = vpop.f32.mrb[0].mxu0
  %v367 = vpop.f32.mrb[0].mxu0
  %v368 = vadd.f32 %v319, %v367
  %v369 = vpop.f32.mrb[0].mxu0
  %370 = vdwg.mxu0
  %vm371 = vcmp.ge.f32.partialorder %v357, 0.0
  %vm372 = vcmp.ge.f32.partialorder %v360, 0.0
  %vm373 = vcmp.ge.f32.partialorder %v365, 0.0
  %vm374 = vcmp.ge.f32.partialorder %v368, 0.0
  %v375 = vmul.f32 %v357, 0.01
  %v376 = vmul.f32 %v360, 0.01
  %v377 = vmul.f32 %v365, 0.01
  %v378 = vmul.f32 %v368, 0.01
  %v379 = vsel %vm371, %v357, %v375
  %v380 = vsel %vm372, %v360, %v376
  %v381 = vsel %vm373, %v365, %v377
  %v382 = vsel %vm374, %v368, %v378
  %v383 = vpack.c.bf16 %v380, %v379
  %v384 = vpack.c.bf16 %v382, %v381
  %v387 = vunpack.c.l.b16 %v383
  %v388 = vunpack.c.h.b16 %v383
  %v389 = vunpack.c.l.b16 %v384
  %v390 = vunpack.c.h.b16 %v384
  %v391 = vpack.c.b16 %v387, %v387
  %v392 = vpack.c.b16 %v388, %v388
  %v393 = vpack.c.b16 %v389, %v389
  %v394 = vpack.c.b16 %v390, %v390
  %vm399 = vcmask 257024
  %400 = vst.msk [vmem:[%s2] sm:$0xf] %vm399, %v391
  %401 = vst.msk [vmem:[%s2 + $0x4] sm:$0xf] %vm399, %v392
  %402 = vst.msk [vmem:[%s2 + $0x8] sm:$0xf] %vm399, %v393
  %403 = vst.msk [vmem:[%s2 + $0xc] sm:$0xf] %vm399, %v394
  // Predicated region
  $region10: #{cae5_forward.29} parent=0 // pred_check
    _
  $region11: #{cae5_forward.29} parent=0 // pred_check_branch
    %405 = sbr.rel (0) target = $region13
  $region12: #{cae5_forward.29} parent=0 // pred_region
    _
  $region13: #{cae5_forward.29} parent=0 // pred_fallthru
    _
  // Predicated region
  $region14: #{cae5_forward.29} parent=0 // pred_check
    _
  $region15: #{cae5_forward.29} parent=0 // pred_check_branch
    %407 = sbr.rel (0) target = $region17
  $region16: #{cae5_forward.29} parent=0 // pred_region
    _
  $region17: #{cae5_forward.29} parent=0 // pred_fallthru
    _

// kernel: cae5_forward.31
$region0: #{cae5_forward.31}
  #allocation0 [shape = 'u32[]', space=smem, size = 0x4, offset = 0x4, fixed_abs, tag = 'smem constant byte address 0x4 - core index']
  #allocation1 [shape = 'u32[144,128]{1,0:T(1,128)}', space=vmem, size = 0x12000, scoped, tag = 'internal scratch']
  %s0 = inlined_call_operand.vmem [shape: f32[2,64], index: 0, kind: input, shape index: {}]
  %s1 = inlined_call_operand.vmem [shape: f32[64,10], index: 1, kind: input, shape index: {}]
  %s2 = inlined_call_operand.vmem [shape: f32[1,10], index: 2, kind: input, shape index: {}]
  %s3 = inlined_call_operand.vmem [shape: f32[10,10], index: 3, kind: input, shape index: {}]
  %s4 = inlined_call_operand.vmem [shape: f32[10,64], index: 4, kind: input, shape index: {}]
  %s5 = inlined_call_operand.vmem [shape: f32[1,64], index: 5, kind: input, shape index: {}]
  %s6 = inlined_call_operand.hbm [shape: f32[2,10], index: 6, kind: output, shape index: {0}]
  %s7 = inlined_call_operand.hbm [shape: f32[2,10], index: 7, kind: output, shape index: {1}]
  %s8 = inlined_call_operand.vmem [shape: f32[2,64], index: 8, kind: output, shape index: {2}]
  %9 = xla_tuple %s6, %s7, %s8
  %s10 = sld [smem:[#allocation0]]
  $region50: #{cae5_forward.31} parent=0
    _
  %s12 = ssub.s32 1, %s10
  %s13 = scalar_select 0, %s12, %s10
  $region1: #{cae5_forward.31} parent=0
    #allocation2 [shape = 'u8[1024]{0}', space=vmem, size = 0x400, scoped, tag = 'output window, operand 0, single buffered']
    #allocation3 [shape = 's32[1]{0}', space=sflag, size = 0x4, scoped, tag = 'scoped memory for cae5_forward.31']
    #allocation4 [shape = 'u8[1024]{0}', space=vmem, size = 0x400, scoped, tag = 'output window, operand 1, single buffered']
    #allocation5 [shape = 's32[1]{0}', space=sflag, size = 0x4, scoped, tag = 'scoped memory for cae5_forward.31']
    %14 = vsyncpa [#allocation3], 0
    %15 = vsyncpa [#allocation5], 0
    // Predicated region
    $region2: #{cae5_forward.31} parent=1 // pred_check
      _
    $region3: #{cae5_forward.31} parent=1 // pred_check_branch
      %17 = sbr.rel (0) target = $region5
    $region4: #{cae5_forward.31} parent=1 // pred_region
      _
    $region5: #{cae5_forward.31} parent=1 // pred_fallthru
      _
    // Predicated region
    $region6: #{cae5_forward.31} parent=1 // pred_check
      _
    $region7: #{cae5_forward.31} parent=1 // pred_check_branch
      %19 = sbr.rel (0) target = $region9
    $region8: #{cae5_forward.31} parent=1 // pred_region
      _
    $region9: #{cae5_forward.31} parent=1 // pred_fallthru
      _
    // Predicated region
    $region10: #{cae5_forward.31} parent=1 // pred_check
      _
    $region11: #{cae5_forward.31} parent=1 // pred_check_branch
      %21 = sbr.rel (0) target = $region13
    $region12: #{cae5_forward.31} parent=1 // pred_region
      _
    $region13: #{cae5_forward.31} parent=1 // pred_fallthru
      _
    // Predicated region
    $region14: #{cae5_forward.31} parent=1 // pred_check
      _
    $region15: #{cae5_forward.31} parent=1 // pred_check_branch
      %23 = sbr.rel (0) target = $region17
    $region16: #{cae5_forward.31} parent=1 // pred_region
      _
    $region17: #{cae5_forward.31} parent=1 // pred_fallthru
      _
    // Predicated region
    $region18: #{cae5_forward.31} parent=1 // pred_check
      _
    $region19: #{cae5_forward.31} parent=1 // pred_check_branch
      %25 = sbr.rel (0) target = $region21
    $region20: #{cae5_forward.31} parent=1 // pred_region
      _
    $region21: #{cae5_forward.31} parent=1 // pred_fallthru
      _
    // Predicated region
    $region22: #{cae5_forward.31} parent=1 // pred_check
      _
    $region23: #{cae5_forward.31} parent=1 // pred_check_branch
      %27 = sbr.rel (0) target = $region25
    $region24: #{cae5_forward.31} parent=1 // pred_region
      _
    $region25: #{cae5_forward.31} parent=1 // pred_fallthru
      _
    %v28 = vld [vmem:[%s0] sm:$0x3]
    %v29 = vld [vmem:[%s1] sm:$0xff]
    %v30 = vld [vmem:[%s1 + $0x8] sm:$0xff]
    %v31 = vld [vmem:[%s1 + $0x10] sm:$0xff]
    %v32 = vld [vmem:[%s1 + $0x18] sm:$0xff]
    %v33 = vld [vmem:[%s1 + $0x20] sm:$0xff]
    %v34 = vld [vmem:[%s1 + $0x28] sm:$0xff]
    %v35 = vld [vmem:[%s1 + $0x30] sm:$0xff]
    %v36 = vld [vmem:[%s1 + $0x38] sm:$0xff]
    %v37 = vld [vmem:[%s2] sm:$0x1]
    %v39 = vlaneseq
    %v40 = vshrl.u32 %v39, 7
    %v41 = vsub.s32 0, %v40
    %v42 = vrot.slane %v37, %v41
    %vm44 = vcmask 523264
    %v46 = vsel %vm44, %v28, 0
    %48 = vmatprep.subr.mxu0 0.0
    %49 = vmatpush1.msra.mxu0 %v29
    %50 = vmatprep.subr.mxu0 0.0
    %51 = vmatpush1.msra.mxu0 %v30
    %52 = vmatprep.subr.mxu0 0.0
    %53 = vmatpush1.msra.mxu0 %v31
    %54 = vmatprep.subr.mxu0 0.0
    %55 = vmatpush1.msra.mxu0 %v32
    %56 = vmatprep.subr.mxu0 0.0
    %57 = vmatpush1.msra.mxu0 %v33
    %58 = vmatprep.subr.mxu0 0.0
    %59 = vmatpush1.msra.mxu0 %v34
    %60 = vmatprep.subr.mxu0 0.0
    %61 = vmatpush1.msra.mxu0 %v35
    %62 = vmatprep.subr.mxu0 0.0
    %63 = vmatpush1.msra.mxu0 %v36
    %64 = vmatprep.subr.mxu0 0.0
    %65 = vmatpush1.msra.mxu0 0.0
    %66 = vmatprep.subr.mxu0 0.0
    %67 = vmatpush1.msra.mxu0 0.0
    %68 = vmatprep.subr.mxu0 0.0
    %69 = vmatpush1.msra.mxu0 0.0
    %70 = vmatprep.subr.mxu0 0.0
    %71 = vmatpush1.msra.mxu0 0.0
    %72 = vmatprep.subr.mxu0 0.0
    %73 = vmatpush1.msra.mxu0 0.0
    %74 = vmatprep.subr.mxu0 0.0
    %75 = vmatpush1.msra.mxu0 0.0
    %76 = vmatprep.subr.mxu0 0.0
    %77 = vmatpush1.msra.mxu0 0.0
    %78 = vmatprep.subr.mxu0 0.0
    %79 = vmatpush1.msra.mxu0 0.0
    %80 = vmatprep.subr.mxu0 0.0
    %81 = vmatpush1.msra.mxu0 0.0
    %82 = vmatprep.subr.mxu0 0.0
    %83 = vmatpush1.msra.mxu0 0.0
    %84 = vmatprep.subr.mxu0 0.0
    %85 = vmatpush1.msra.mxu0 0.0
    %86 = vmatprep.subr.mxu0 0.0
    %87 = vmatpush1.msra.mxu0 0.0
    %88 = vmatprep.subr.mxu0 0.0
    %89 = vmatpush1.msra.mxu0 0.0
    %90 = vmatprep.subr.mxu0 0.0
    %91 = vmatpush1.msra.mxu0 0.0
    %92 = vmatprep.subr.mxu0 0.0
    %93 = vmatpush1.msra.mxu0 0.0
    %94 = vmatprep.subr.mxu0 0.0
    %95 = vmatpush1.msra.mxu0 0.0
    %96 = vmatprep.subr.mxu0 0.0
    %97 = vmatpush1.msra.mxu0 0.0
    %98 = vmatprep.subr.mxu0 0.0
    %99 = vmatpush1.msra.mxu0 0.0
    %100 = vmatprep.subr.mxu0 0.0
    %101 = vmatpush1.msra.mxu0 0.0
    %102 = vmatprep.subr.mxu0 0.0
    %103 = vmatpush1.msra.mxu0 0.0
    %104 = vmatprep.subr.mxu0 0.0
    %105 = vmatpush1.msra.mxu0 0.0
    %106 = vmatprep.subr.mxu0 0.0
    %107 = vmatpush1.msra.mxu0 0.0
    %108 = vmatprep.subr.mxu0 0.0
    %109 = vmatpush1.msra.mxu0 0.0
    %110 = vmatprep.subr.mxu0 0.0
    %111 = vmatpush1.msra.mxu0 0.0
    %112 = vmatprep.mubr.f32.mxu0 0.0
    %113 = vmatmul.mubr.f32.gmra.mrb[0].mxu0 %v46
    %v114 = vpop.f32.mrb[0].mxu0
    %v115 = vadd.f32 %v42, %v114
    %v116 = vpop.f32.mrb[0].mxu0
    %117 = vdwg.mxu0
    %vm118 = vcmask 74752
    %119 = vst.msk [vmem:[#allocation2] sm:$0x3] %vm118, %v115
    %v120 = vld [vmem:[%s3] sm:$0xff]
    %v121 = vld [vmem:[%s3 + $0x8] sm:$0x3]
    %v122 = vmul.f32 %v115, %v115
    %v123 = vsel %vm118, %v122, 0.0
    %124 = vadd.xlane.f32.xlu0 %v123
    %v125 = vpop.xlane.xlu0 %124
    %v126 = vmul.f32 %v120, %v120
    %v127 = vmul.f32 %v121, %v121
    %vm128 = vcmask 80896
    %v129 = vsel %vm128, %v126, 0.0
    %v130 = vsel %vm118, %v127, 0.0
    %v131 = vadd.f32 %v129, %v130
    %v132 = vrot.slane %v131, 4
    %v133 = vadd.f32 %v131, %v132
    %v134 = vrot.slane %v133, 2
    %v135 = vadd.f32 %v133, %v134
    %v136 = vrot.slane %v135, 1
    %v137 = vadd.f32 %v135, %v136
    %v138 = vadd.f32 %v125, %v137
    %v140 = vsel %vm128, %v115, 0
    %vm142 = vcmask 1041408
    %v144 = vsel %vm142, %v121, 0
    %146 = vmatprep.subr.mxu0 0.0
    %147 = vmatpush1.msra.mxu0 %v120
    %148 = vmatprep.subr.mxu0 0.0
    %149 = vmatpush1.msra.mxu0 %v144
    %150 = vmatprep.subr.mxu0 0.0
    %151 = vmatpush1.msra.mxu0 0.0
    %152 = vmatprep.subr.mxu0 0.0
    %153 = vmatpush1.msra.mxu0 0.0
    %154 = vmatprep.subr.mxu0 0.0
    %155 = vmatpush1.msra.mxu0 0.0
    %156 = vmatprep.subr.mxu0 0.0
    %157 = vmatpush1.msra.mxu0 0.0
    %158 = vmatprep.subr.mxu0 0.0
    %159 = vmatpush1.msra.mxu0 0.0
    %160 = vmatprep.subr.mxu0 0.0
    %161 = vmatpush1.msra.mxu0 0.0
    %162 = vmatprep.subr.mxu0 0.0
    %163 = vmatpush1.msra.mxu0 0.0
    %164 = vmatprep.subr.mxu0 0.0
    %165 = vmatpush1.msra.mxu0 0.0
    %166 = vmatprep.subr.mxu0 0.0
    %167 = vmatpush1.msra.mxu0 0.0
    %168 = vmatprep.subr.mxu0 0.0
    %169 = vmatpush1.msra.mxu0 0.0
    %170 = vmatprep.subr.mxu0 0.0
    %171 = vmatpush1.msra.mxu0 0.0
    %172 = vmatprep.subr.mxu0 0.0
    %173 = vmatpush1.msra.mxu0 0.0
    %174 = vmatprep.subr.mxu0 0.0
    %175 = vmatpush1.msra.mxu0 0.0
    %176 = vmatprep.subr.mxu0 0.0
    %177 = vmatpush1.msra.mxu0 0.0
    %178 = vmatprep.subr.mxu0 0.0
    %179 = vmatpush1.msra.mxu0 0.0
    %180 = vmatprep.subr.mxu0 0.0
    %181 = vmatpush1.msra.mxu0 0.0
    %182 = vmatprep.subr.mxu0 0.0
    %183 = vmatpush1.msra.mxu0 0.0
    %184 = vmatprep.subr.mxu0 0.0
    %185 = vmatpush1.msra.mxu0 0.0
    %186 = vmatprep.subr.mxu0 0.0
    %187 = vmatpush1.msra.mxu0 0.0
    %188 = vmatprep.subr.mxu0 0.0
    %189 = vmatpush1.msra.mxu0 0.0
    %190 = vmatprep.subr.mxu0 0.0
    %191 = vmatpush1.msra.mxu0 0.0
    %192 = vmatprep.subr.mxu0 0.0
    %193 = vmatpush1.msra.mxu0 0.0
    %194 = vmatprep.subr.mxu0 0.0
    %195 = vmatpush1.msra.mxu0 0.0
    %196 = vmatprep.subr.mxu0 0.0
    %197 = vmatpush1.msra.mxu0 0.0
    %198 = vmatprep.subr.mxu0 0.0
    %199 = vmatpush1.msra.mxu0 0.0
    %200 = vmatprep.subr.mxu0 0.0
    %201 = vmatpush1.msra.mxu0 0.0
    %202 = vmatprep.subr.mxu0 0.0
    %203 = vmatpush1.msra.mxu0 0.0
    %204 = vmatprep.subr.mxu0 0.0
    %205 = vmatpush1.msra.mxu0 0.0
    %206 = vmatprep.subr.mxu0 0.0
    %207 = vmatpush1.msra.mxu0 0.0
    %208 = vmatprep.subr.mxu0 0.0
    %209 = vmatpush1.msra.mxu0 0.0
    %210 = vmatprep.mubr.f32.mxu0 0.0
    %211 = vmatmul.mubr.f32.gmra.mrb[0].mxu0 %v140
    %v212 = vpop.f32.mrb[0].mxu0
    %v213 = vadd.f32 0.0, %v212
    %v214 = vpop.f32.mrb[0].mxu0
    %215 = vdwg.mxu0
    %v216 = vmul.f32 %v213, 2.0
    %v217 = vsub.f32 %v138, %v216
    %v218 = vmax.f32 %v217, 0.0
    %v219 = vadd.f32 %v218, 1.0
    %v220 = vrcp.pop %v219
    %v221 = vsel %vm118, %v220, 0.0
    %222 = vadd.xlane.f32.xlu0 %v221
    %v223 = vpop.xlane.xlu0 %222
    %v224 = vrcp.pop %v223
    %v225 = vmul.f32 %v220, %v224
    %226 = vst.msk [vmem:[#allocation4] sm:$0x3] %vm118, %v225
    %v227 = vld [vmem:[%s4] sm:$0xff]
    %v228 = vld [vmem:[%s4 + $0x8] sm:$0x3]
    %v229 = vld [vmem:[%s5] sm:$0x1]
    %v231 = vlaneseq
    %v232 = vshrl.u32 %v231, 7
    %v233 = vsub.s32 0, %v232
    %v234 = vrot.slane %v229, %v233
    %v237 = vsel %vm142, %v228, 0
    %239 = vmatprep.subr.mxu0 0.0
    %240 = vmatpush1.msra.mxu0 %v227
    %241 = vmatprep.subr.mxu0 0.0
    %242 = vmatpush1.msra.mxu0 %v237
    %243 = vmatprep.subr.mxu0 0.0
    %244 = vmatpush1.msra.mxu0 0.0
    %245 = vmatprep.subr.mxu0 0.0
    %246 = vmatpush1.msra.mxu0 0.0
    %247 = vmatprep.subr.mxu0 0.0
    %248 = vmatpush1.msra.mxu0 0.0
    %249 = vmatprep.subr.mxu0 0.0
    %250 = vmatpush1.msra.mxu0 0.0
    %251 = vmatprep.subr.mxu0 0.0
    %252 = vmatpush1.msra.mxu0 0.0
    %253 = vmatprep.subr.mxu0 0.0
    %254 = vmatpush1.msra.mxu0 0.0
    %255 = vmatprep.subr.mxu0 0.0
    %256 = vmatpush1.msra.mxu0 0.0
    %257 = vmatprep.subr.mxu0 0.0
    %258 = vmatpush1.msra.mxu0 0.0
    %259 = vmatprep.subr.mxu0 0.0
    %260 = vmatpush1.msra.mxu0 0.0
    %261 = vmatprep.subr.mxu0 0.0
    %262 = vmatpush1.msra.mxu0 0.0
    %263 = vmatprep.subr.mxu0 0.0
    %264 = vmatpush1.msra.mxu0 0.0
    %265 = vmatprep.subr.mxu0 0.0
    %266 = vmatpush1.msra.mxu0 0.0
    %267 = vmatprep.subr.mxu0 0.0
    %268 = vmatpush1.msra.mxu0 0.0
    %269 = vmatprep.subr.mxu0 0.0
    %270 = vmatpush1.msra.mxu0 0.0
    %271 = vmatprep.subr.mxu0 0.0
    %272 = vmatpush1.msra.mxu0 0.0
    %273 = vmatprep.subr.mxu0 0.0
    %274 = vmatpush1.msra.mxu0 0.0
    %275 = vmatprep.subr.mxu0 0.0
    %276 = vmatpush1.msra.mxu0 0.0
    %277 = vmatprep.subr.mxu0 0.0
    %278 = vmatpush1.msra.mxu0 0.0
    %279 = vmatprep.subr.mxu0 0.0
    %280 = vmatpush1.msra.mxu0 0.0
    %281 = vmatprep.subr.mxu0 0.0
    %282 = vmatpush1.msra.mxu0 0.0
    %283 = vmatprep.subr.mxu0 0.0
    %284 = vmatpush1.msra.mxu0 0.0
    %285 = vmatprep.subr.mxu0 0.0
    %286 = vmatpush1.msra.mxu0 0.0
    %287 = vmatprep.subr.mxu0 0.0
    %288 = vmatpush1.msra.mxu0 0.0
    %289 = vmatprep.subr.mxu0 0.0
    %290 = vmatpush1.msra.mxu0 0.0
    %291 = vmatprep.subr.mxu0 0.0
    %292 = vmatpush1.msra.mxu0 0.0
    %293 = vmatprep.subr.mxu0 0.0
    %294 = vmatpush1.msra.mxu0 0.0
    %295 = vmatprep.subr.mxu0 0.0
    %296 = vmatpush1.msra.mxu0 0.0
    %297 = vmatprep.subr.mxu0 0.0
    %298 = vmatpush1.msra.mxu0 0.0
    %299 = vmatprep.subr.mxu0 0.0
    %300 = vmatpush1.msra.mxu0 0.0
    %301 = vmatprep.subr.mxu0 0.0
    %302 = vmatpush1.msra.mxu0 0.0
    %303 = vmatprep.mubr.f32.mxu0 0.0
    %304 = vmatmul.mubr.f32.gmra.mrb[0].mxu0 %v140
    %v305 = vpop.f32.mrb[0].mxu0
    %v306 = vadd.f32 %v234, %v305
    %v307 = vpop.f32.mrb[0].mxu0
    %308 = vdwg.mxu0
    %vm309 = vcmp.ge.f32.partialorder %v306, 0.0
    %v310 = vmul.f32 %v306, 0.01
    %v311 = vsel %vm309, %v306, %v310
    %vm312 = vcmask 517120
    %313 = vst.msk [vmem:[%s8] sm:$0x3] %vm312, %v311
    // Predicated region
    $region26: #{cae5_forward.31} parent=1 // pred_check
      _
    $region27: #{cae5_forward.31} parent=1 // pred_check_branch
      %315 = sbr.rel (0) target = $region29
    $region28: #{cae5_forward.31} parent=1 // pred_region
      %s317 = ssub.s32 32, 32
      %318 = vsyncadd [#allocation3], %s317
      %s320 = sshll.u32 [#allocation2], 4
      %s321 = int_to_ptr.vmem [resolvable:$true] %s320
      %323 = dma.vmem_to_hbm [thread:$0]  %s321, 32, %s6, [#allocation3]
    $region29: #{cae5_forward.31} parent=1 // pred_fallthru
      _
    // Predicated region
    $region30: #{cae5_forward.31} parent=1 // pred_check
      _
    $region31: #{cae5_forward.31} parent=1 // pred_check_branch
      %325 = sbr.rel (0) target = $region33
    $region32: #{cae5_forward.31} parent=1 // pred_region
      %s327 = ssub.s32 32, 32
      %328 = vsyncadd [#allocation5], %s327
      %s330 = sshll.u32 [#allocation4], 4
      %s331 = int_to_ptr.vmem [resolvable:$true] %s330
      %333 = dma.vmem_to_hbm [thread:$0]  %s331, 32, %s7, [#allocation5]
    $region33: #{cae5_forward.31} parent=1 // pred_fallthru
      _
    // Predicated region
    $region34: #{cae5_forward.31} parent=1 // pred_check
      _
    $region35: #{cae5_forward.31} parent=1 // pred_check_branch
      %335 = sbr.rel (0) target = $region37
    $region36: #{cae5_forward.31} parent=1 // pred_region
      _
    $region37: #{cae5_forward.31} parent=1 // pred_fallthru
      _
    // Predicated region
    $region38: #{cae5_forward.31} parent=1 // pred_check
      _
    $region39: #{cae5_forward.31} parent=1 // pred_check_branch
      %337 = sbr.rel (0) target = $region41
    $region40: #{cae5_forward.31} parent=1 // pred_region
      %338 = dma.done [#allocation3], 32
    $region41: #{cae5_forward.31} parent=1 // pred_fallthru
      _
    // Predicated region
    $region42: #{cae5_forward.31} parent=1 // pred_check
      _
    $region43: #{cae5_forward.31} parent=1 // pred_check_branch
      %340 = sbr.rel (0) target = $region45
    $region44: #{cae5_forward.31} parent=1 // pred_region
      %341 = dma.done [#allocation5], 32
    $region45: #{cae5_forward.31} parent=1 // pred_fallthru
      _
    // Predicated region
    $region46: #{cae5_forward.31} parent=1 // pred_check
      _
    $region47: #{cae5_forward.31} parent=1 // pred_check_branch
      %343 = sbr.rel (0) target = $region49
    $region48: #{cae5_forward.31} parent=1 // pred_region
      _
    $region49: #{cae5_forward.31} parent=1 // pred_fallthru
      _
    %344 = vsyncpa [#allocation3], 1
    %345 = vsyncpa [#allocation5], 1

// kernel: cae5_forward.30
$region0: #{cae5_forward.30}
  #allocation0 [shape = 'u32[]', space=smem, size = 0x4, offset = 0x4, fixed_abs, tag = 'smem constant byte address 0x4 - core index']
  #allocation1 [shape = 'u32[144,128]{1,0:T(1,128)}', space=vmem, size = 0x12000, scoped, tag = 'internal scratch']
  %s0 = inlined_call_operand.vmem [shape: bf16[64,296], index: 0, kind: input, shape index: {}]
  %s1 = inlined_call_operand.vmem [shape: bf16[296,2], index: 1, kind: input, shape index: {}]
  %s2 = inlined_call_operand.vmem [shape: bf16[64,2], index: 2, kind: output, shape index: {}]
  %s3 = sld [smem:[#allocation0]]
  $region18: #{cae5_forward.30} parent=0
    _
  %s5 = ssub.s32 1, %s3
  %s6 = scalar_select 0, %s5, %s3
  // Predicated region
  $region2: #{cae5_forward.30} parent=0 // pred_check
    _
  $region3: #{cae5_forward.30} parent=0 // pred_check_branch
    %8 = sbr.rel (0) target = $region5
  $region4: #{cae5_forward.30} parent=0 // pred_region
    _
  $region5: #{cae5_forward.30} parent=0 // pred_fallthru
    _
  // Predicated region
  $region6: #{cae5_forward.30} parent=0 // pred_check
    _
  $region7: #{cae5_forward.30} parent=0 // pred_check_branch
    %10 = sbr.rel (0) target = $region9
  $region8: #{cae5_forward.30} parent=0 // pred_region
    _
  $region9: #{cae5_forward.30} parent=0 // pred_fallthru
    _
  %v12 = vld [vmem:[%s0] sm:$0xff]
  %v13 = vld [vmem:[%s0 + $0x8] sm:$0xf]
  %v14 = vld [vmem:[%s0 + $0xc] sm:$0xff]
  %v15 = vld [vmem:[%s0 + $0x14] sm:$0xf]
  %v16 = vld [vmem:[%s0 + $0x18] sm:$0xff]
  %v17 = vld [vmem:[%s0 + $0x20] sm:$0xf]
  %v18 = vld [vmem:[%s0 + $0x24] sm:$0xff]
  %v19 = vld [vmem:[%s0 + $0x2c] sm:$0xf]
  %v20 = vld [vmem:[%s0 + $0x30] sm:$0xff]
  %v21 = vld [vmem:[%s0 + $0x38] sm:$0xf]
  %v22 = vld [vmem:[%s0 + $0x3c] sm:$0xff]
  %v23 = vld [vmem:[%s0 + $0x44] sm:$0xf]
  %v24 = vld [vmem:[%s0 + $0x48] sm:$0xff]
  %v25 = vld [vmem:[%s0 + $0x50] sm:$0xf]
  %v26 = vld [vmem:[%s0 + $0x54] sm:$0xff]
  %v27 = vld [vmem:[%s0 + $0x5c] sm:$0xf]
  %v28 = vld [vmem:[%s1] sm:$0xf]
  %v29 = vld [vmem:[%s1 + $0x4] sm:$0xf]
  %v30 = vld [vmem:[%s1 + $0x8] sm:$0xf]
  %v31 = vld [vmem:[%s1 + $0xc] sm:$0xf]
  %v32 = vld [vmem:[%s1 + $0x10] sm:$0xf]
  %v33 = vld [vmem:[%s1 + $0x14] sm:$0xf]
  %v34 = vld [vmem:[%s1 + $0x18] sm:$0xf]
  %v35 = vld [vmem:[%s1 + $0x1c] sm:$0xf]
  %v36 = vld [vmem:[%s1 + $0x20] sm:$0xf]
  %v37 = vld [vmem:[%s1 + $0x24] sm:$0xf]
  %v38 = vld [vmem:[%s1 + $0x28] sm:$0xf]
  %v39 = vld [vmem:[%s1 + $0x2c] sm:$0xf]
  %v40 = vld [vmem:[%s1 + $0x30] sm:$0xf]
  %v41 = vld [vmem:[%s1 + $0x34] sm:$0xf]
  %v42 = vld [vmem:[%s1 + $0x38] sm:$0xf]
  %v43 = vld [vmem:[%s1 + $0x3c] sm:$0xf]
  %v44 = vld [vmem:[%s1 + $0x40] sm:$0xf]
  %v45 = vld [vmem:[%s1 + $0x44] sm:$0xf]
  %v46 = vld [vmem:[%s1 + $0x48] sm:$0xf]
  %v47 = vld [vmem:[%s1 + $0x4c] sm:$0xf]
  %v48 = vld [vmem:[%s1 + $0x50] sm:$0xf]
  %v49 = vld [vmem:[%s1 + $0x54] sm:$0xf]
  %v50 = vld [vmem:[%s1 + $0x58] sm:$0xf]
  %v51 = vld [vmem:[%s1 + $0x5c] sm:$0xf]
  %v52 = vld [vmem:[%s1 + $0x60] sm:$0xf]
  %v53 = vld [vmem:[%s1 + $0x64] sm:$0xf]
  %v54 = vld [vmem:[%s1 + $0x68] sm:$0xf]
  %v55 = vld [vmem:[%s1 + $0x6c] sm:$0xf]
  %v56 = vld [vmem:[%s1 + $0x70] sm:$0xf]
  %v57 = vld [vmem:[%s1 + $0x74] sm:$0xf]
  %v58 = vld [vmem:[%s1 + $0x78] sm:$0xf]
  %v59 = vld [vmem:[%s1 + $0x7c] sm:$0xf]
  %v60 = vld [vmem:[%s1 + $0x80] sm:$0xf]
  %v61 = vld [vmem:[%s1 + $0x84] sm:$0xf]
  %v62 = vld [vmem:[%s1 + $0x88] sm:$0xf]
  %v63 = vld [vmem:[%s1 + $0x8c] sm:$0xf]
  %v64 = vld [vmem:[%s1 + $0x90] sm:$0xf]
  %v81 = vunpack.c.l.b16 %v12
  %v82 = vunpack.c.h.b16 %v12
  %v83 = vunpack.c.l.b16 %v13
  %v84 = vunpack.c.l.b16 %v14
  %v85 = vunpack.c.h.b16 %v14
  %v86 = vunpack.c.l.b16 %v15
  %v87 = vunpack.c.l.b16 %v16
  %v88 = vunpack.c.h.b16 %v16
  %v89 = vunpack.c.l.b16 %v17
  %v90 = vunpack.c.l.b16 %v18
  %v91 = vunpack.c.h.b16 %v18
  %v92 = vunpack.c.l.b16 %v19
  %v93 = vunpack.c.l.b16 %v20
  %v94 = vunpack.c.h.b16 %v20
  %v95 = vunpack.c.l.b16 %v21
  %v96 = vunpack.c.l.b16 %v22
  %v97 = vunpack.c.h.b16 %v22
  %v98 = vunpack.c.l.b16 %v23
  %v99 = vunpack.c.l.b16 %v24
  %v100 = vunpack.c.h.b16 %v24
  %v101 = vunpack.c.l.b16 %v25
  %v102 = vunpack.c.l.b16 %v26
  %v103 = vunpack.c.h.b16 %v26
  %v104 = vunpack.c.l.b16 %v27
  %v105 = vpack.c.b16 %v84, %v81
  %v106 = vpack.c.b16 %v85, %v82
  %v107 = vpack.c.b16 %v86, %v83
  %v108 = vpack.c.b16 %v90, %v87
  %v109 = vpack.c.b16 %v91, %v88
  %v110 = vpack.c.b16 %v92, %v89
  %v111 = vpack.c.b16 %v96, %v93
  %v112 = vpack.c.b16 %v97, %v94
  %v113 = vpack.c.b16 %v98, %v95
  %v114 = vpack.c.b16 %v102, %v99
  %v115 = vpack.c.b16 %v103, %v100
  %v116 = vpack.c.b16 %v104, %v101
  %v162 = vunpack.c.l.b16 %v28
  %v163 = vunpack.c.l.b16 %v29
  %v164 = vunpack.c.l.b16 %v30
  %v165 = vunpack.c.l.b16 %v31
  %v166 = vunpack.c.l.b16 %v32
  %v167 = vunpack.c.l.b16 %v33
  %v168 = vunpack.c.l.b16 %v34
  %v169 = vunpack.c.l.b16 %v35
  %v170 = vunpack.c.l.b16 %v36
  %v171 = vunpack.c.l.b16 %v37
  %v172 = vunpack.c.l.b16 %v38
  %v173 = vunpack.c.l.b16 %v39
  %v174 = vunpack.c.l.b16 %v40
  %v175 = vunpack.c.l.b16 %v41
  %v176 = vunpack.c.l.b16 %v42
  %v177 = vunpack.c.l.b16 %v43
  %v178 = vunpack.c.l.b16 %v44
  %v179 = vunpack.c.l.b16 %v45
  %v180 = vunpack.c.l.b16 %v46
  %v181 = vunpack.c.l.b16 %v47
  %v182 = vunpack.c.l.b16 %v48
  %v183 = vunpack.c.l.b16 %v49
  %v184 = vunpack.c.l.b16 %v50
  %v185 = vunpack.c.l.b16 %v51
  %v186 = vunpack.c.l.b16 %v52
  %v187 = vunpack.c.l.b16 %v53
  %v188 = vunpack.c.l.b16 %v54
  %v189 = vunpack.c.l.b16 %v55
  %v190 = vunpack.c.l.b16 %v56
  %v191 = vunpack.c.l.b16 %v57
  %v192 = vunpack.c.l.b16 %v58
  %v193 = vunpack.c.l.b16 %v59
  %v194 = vunpack.c.l.b16 %v60
  %v195 = vunpack.c.l.b16 %v61
  %v196 = vunpack.c.l.b16 %v62
  %v197 = vunpack.c.l.b16 %v63
  %v198 = vunpack.c.l.b16 %v64
  %v199 = vpack.c.b16 %v163, %v162
  %v200 = vpack.c.b16 %v165, %v164
  %v201 = vpack.c.b16 %v167, %v166
  %v202 = vpack.c.b16 %v169, %v168
  %v203 = vpack.c.b16 %v171, %v170
  %v204 = vpack.c.b16 %v173, %v172
  %v205 = vpack.c.b16 %v175, %v174
  %v206 = vpack.c.b16 %v177, %v176
  %v207 = vpack.c.b16 %v179, %v178
  %v208 = vpack.c.b16 %v181, %v180
  %v209 = vpack.c.b16 %v183, %v182
  %v210 = vpack.c.b16 %v185, %v184
  %v211 = vpack.c.b16 %v187, %v186
  %v212 = vpack.c.b16 %v189, %v188
  %v213 = vpack.c.b16 %v191, %v190
  %v214 = vpack.c.b16 %v193, %v192
  %v215 = vpack.c.b16 %v195, %v194
  %v216 = vpack.c.b16 %v197, %v196
  %v217 = vpack.c.b16 %v198, %v198
  %vm236 = vcmask 326656
  %v238 = vsel %vm236, %v107, 0
  %v241 = vsel %vm236, %v110, 0
  %v244 = vsel %vm236, %v113, 0
  %v247 = vsel %vm236, %v116, 0
  %vm249 = vcmask 1043456
  %v251 = vsel %vm249, %v217, 0
  %253 = vmatprep.subr.bf16.mxu0 0
  %254 = vmatpush1.bf16.msra.mxu0 %v199
  %255 = vmatprep.subr.bf16.mxu0 0
  %256 = vmatpush1.bf16.msra.mxu0 %v200
  %257 = vmatprep.subr.bf16.mxu0 0
  %258 = vmatpush1.bf16.msra.mxu0 %v201
  %259 = vmatprep.subr.bf16.mxu0 0
  %260 = vmatpush1.bf16.msra.mxu0 %v202
  %261 = vmatprep.subr.bf16.mxu0 0
  %262 = vmatpush1.bf16.msra.mxu0 %v203
  %263 = vmatprep.subr.bf16.mxu0 0
  %264 = vmatpush1.bf16.msra.mxu0 %v204
  %265 = vmatprep.subr.bf16.mxu0 0
  %266 = vmatpush1.bf16.msra.mxu0 %v205
  %267 = vmatprep.subr.bf16.mxu0 0
  %268 = vmatpush1.bf16.msra.mxu0 %v206
  %269 = vmatprep.subr.bf16.mxu0 0
  %270 = vmatpush1.bf16.msra.mxu0 %v207
  %271 = vmatprep.subr.bf16.mxu0 0
  %272 = vmatpush1.bf16.msra.mxu0 %v208
  %273 = vmatprep.subr.bf16.mxu0 0
  %274 = vmatpush1.bf16.msra.mxu0 %v209
  %275 = vmatprep.subr.bf16.mxu0 0
  %276 = vmatpush1.bf16.msra.mxu0 %v210
  %277 = vmatprep.subr.bf16.mxu0 0
  %278 = vmatpush1.bf16.msra.mxu0 %v211
  %279 = vmatprep.subr.bf16.mxu0 0
  %280 = vmatpush1.bf16.msra.mxu0 %v212
  %281 = vmatprep.subr.bf16.mxu0 0
  %282 = vmatpush1.bf16.msra.mxu0 %v213
  %283 = vmatprep.subr.bf16.mxu0 0
  %284 = vmatpush1.bf16.msra.mxu0 %v214
  %285 = vmatprep.mubr.bf16.mxu0 %v106
  %286 = vmatmul.mubr.bf16.gmra.mrb[0].mxu0 %v105
  %v287 = vpop.f32.mrb[0].mxu0
  %v288 = vadd.f32 0.0, %v287
  %v289 = vpop.f32.mrb[0].mxu0
  %v290 = vpop.f32.mrb[0].mxu0
  %v291 = vadd.f32 0.0, %v290
  %v292 = vpop.f32.mrb[0].mxu0
  %293 = vmatprep.mubr.bf16.mxu0 %v109
  %294 = vmatmul.mubr.bf16.gmra.mrb[0].mxu0 %v108
  %v295 = vpop.f32.mrb[0].mxu0
  %v296 = vadd.f32 0.0, %v295
  %v297 = vpop.f32.mrb[0].mxu0
  %v298 = vpop.f32.mrb[0].mxu0
  %v299 = vadd.f32 0.0, %v298
  %v300 = vpop.f32.mrb[0].mxu0
  %301 = vmatprep.mubr.bf16.mxu0 %v112
  %302 = vmatmul.mubr.bf16.gmra.mrb[0].mxu0 %v111
  %v303 = vpop.f32.mrb[0].mxu0
  %v304 = vadd.f32 0.0, %v303
  %v305 = vpop.f32.mrb[0].mxu0
  %v306 = vpop.f32.mrb[0].mxu0
  %v307 = vadd.f32 0.0, %v306
  %v308 = vpop.f32.mrb[0].mxu0
  %309 = vmatprep.mubr.bf16.mxu0 %v115
  %310 = vmatmul.mubr.bf16.gmra.mrb[0].mxu0 %v114
  %v311 = vpop.f32.mrb[0].mxu0
  %v312 = vadd.f32 0.0, %v311
  %v313 = vpop.f32.mrb[0].mxu0
  %v314 = vpop.f32.mrb[0].mxu0
  %v315 = vadd.f32 0.0, %v314
  %v316 = vpop.f32.mrb[0].mxu0
  %317 = vdwg.mxu0
  %318 = vmatprep.subr.bf16.mxu0 0
  %319 = vmatpush1.bf16.msra.mxu0 %v215
  %320 = vmatprep.subr.bf16.mxu0 0
  %321 = vmatpush1.bf16.msra.mxu0 %v216
  %322 = vmatprep.subr.bf16.mxu0 0
  %323 = vmatpush1.bf16.msra.mxu0 %v251
  %324 = vmatprep.subr.bf16.mxu0 0
  %325 = vmatpush1.bf16.msra.mxu0 0
  %326 = vmatprep.subr.bf16.mxu0 0
  %327 = vmatpush1.bf16.msra.mxu0 0
  %328 = vmatprep.subr.bf16.mxu0 0
  %329 = vmatpush1.bf16.msra.mxu0 0
  %330 = vmatprep.subr.bf16.mxu0 0
  %331 = vmatpush1.bf16.msra.mxu0 0
  %332 = vmatprep.subr.bf16.mxu0 0
  %333 = vmatpush1.bf16.msra.mxu0 0
  %334 = vmatprep.subr.bf16.mxu0 0
  %335 = vmatpush1.bf16.msra.mxu0 0
  %336 = vmatprep.subr.bf16.mxu0 0
  %337 = vmatpush1.bf16.msra.mxu0 0
  %338 = vmatprep.subr.bf16.mxu0 0
  %339 = vmatpush1.bf16.msra.mxu0 0
  %340 = vmatprep.subr.bf16.mxu0 0
  %341 = vmatpush1.bf16.msra.mxu0 0
  %342 = vmatprep.subr.bf16.mxu0 0
  %343 = vmatpush1.bf16.msra.mxu0 0
  %344 = vmatprep.subr.bf16.mxu0 0
  %345 = vmatpush1.bf16.msra.mxu0 0
  %346 = vmatprep.subr.bf16.mxu0 0
  %347 = vmatpush1.bf16.msra.mxu0 0
  %348 = vmatprep.subr.bf16.mxu0 0
  %349 = vmatpush1.bf16.msra.mxu0 0
  %350 = vmatprep.mubr.bf16.mxu0 0
  %351 = vmatmul.mubr.bf16.gmra.mrb[0].mxu0 %v238
  %v352 = vpop.f32.mrb[0].mxu0
  %v353 = vadd.f32 %v288, %v352
  %v354 = vpop.f32.mrb[0].mxu0
  %v355 = vpop.f32.mrb[0].mxu0
  %v356 = vadd.f32 %v291, %v355
  %v357 = vpop.f32.mrb[0].mxu0
  %358 = vmatprep.mubr.bf16.mxu0 0
  %359 = vmatmul.mubr.bf16.gmra.mrb[0].mxu0 %v241
  %v360 = vpop.f32.mrb[0].mxu0
  %v361 = vadd.f32 %v296, %v360
  %v362 = vpop.f32.mrb[0].mxu0
  %v363 = vpop.f32.mrb[0].mxu0
  %v364 = vadd.f32 %v299, %v363
  %v365 = vpop.f32.mrb[0].mxu0
  %366 = vmatprep.mubr.bf16.mxu0 0
  %367 = vmatmul.mubr.bf16.gmra.mrb[0].mxu0 %v244
  %v368 = vpop.f32.mrb[0].mxu0
  %v369 = vadd.f32 %v304, %v368
  %v370 = vpop.f32.mrb[0].mxu0
  %v371 = vpop.f32.mrb[0].mxu0
  %v372 = vadd.f32 %v307, %v371
  %v373 = vpop.f32.mrb[0].mxu0
  %374 = vmatprep.mubr.bf16.mxu0 0
  %375 = vmatmul.mubr.bf16.gmra.mrb[0].mxu0 %v247
  %v376 = vpop.f32.mrb[0].mxu0
  %v377 = vadd.f32 %v312, %v376
  %v378 = vpop.f32.mrb[0].mxu0
  %v379 = vpop.f32.mrb[0].mxu0
  %v380 = vadd.f32 %v315, %v379
  %v381 = vpop.f32.mrb[0].mxu0
  %382 = vdwg.mxu0
  %vm383 = vcmp.ge.f32.partialorder %v353, 0.0
  %vm384 = vcmp.ge.f32.partialorder %v356, 0.0
  %vm385 = vcmp.ge.f32.partialorder %v361, 0.0
  %vm386 = vcmp.ge.f32.partialorder %v364, 0.0
  %vm387 = vcmp.ge.f32.partialorder %v369, 0.0
  %vm388 = vcmp.ge.f32.partialorder %v372, 0.0
  %vm389 = vcmp.ge.f32.partialorder %v377, 0.0
  %vm390 = vcmp.ge.f32.partialorder %v380, 0.0
  %v391 = vmul.f32 %v353, 0.01
  %v392 = vmul.f32 %v356, 0.01
  %v393 = vmul.f32 %v361, 0.01
  %v394 = vmul.f32 %v364, 0.01
  %v395 = vmul.f32 %v369, 0.01
  %v396 = vmul.f32 %v372, 0.01
  %v397 = vmul.f32 %v377, 0.01
  %v398 = vmul.f32 %v380, 0.01
  %v399 = vsel %vm383, %v353, %v391
  %v400 = vsel %vm384, %v356, %v392
  %v401 = vsel %vm385, %v361, %v393
  %v402 = vsel %vm386, %v364, %v394
  %v403 = vsel %vm387, %v369, %v395
  %v404 = vsel %vm388, %v372, %v396
  %v405 = vsel %vm389, %v377, %v397
  %v406 = vsel %vm390, %v380, %v398
  %v407 = vpack.c.bf16 %v400, %v399
  %v408 = vpack.c.bf16 %v402, %v401
  %v409 = vpack.c.bf16 %v404, %v403
  %v410 = vpack.c.bf16 %v406, %v405
  %v415 = vunpack.c.l.b16 %v407
  %v416 = vunpack.c.h.b16 %v407
  %v417 = vunpack.c.l.b16 %v408
  %v418 = vunpack.c.h.b16 %v408
  %v419 = vunpack.c.l.b16 %v409
  %v420 = vunpack.c.h.b16 %v409
  %v421 = vunpack.c.l.b16 %v410
  %v422 = vunpack.c.h.b16 %v410
  %v423 = vpack.c.b16 %v415, %v415
  %v424 = vpack.c.b16 %v416, %v416
  %v425 = vpack.c.b16 %v417, %v417
  %v426 = vpack.c.b16 %v418, %v418
  %v427 = vpack.c.b16 %v419, %v419
  %v428 = vpack.c.b16 %v420, %v420
  %v429 = vpack.c.b16 %v421, %v421
  %v430 = vpack.c.b16 %v422, %v422
  %vm439 = vcmask 11264
  %440 = vst.msk [vmem:[%s2] sm:$0xf] %vm439, %v423
  %441 = vst.msk [vmem:[%s2 + $0x4] sm:$0xf] %vm439, %v424
  %442 = vst.msk [vmem:[%s2 + $0x8] sm:$0xf] %vm439, %v425
  %443 = vst.msk [vmem:[%s2 + $0xc] sm:$0xf] %vm439, %v426
  %444 = vst.msk [vmem:[%s2 + $0x10] sm:$0xf] %vm439, %v427
  %445 = vst.msk [vmem:[%s2 + $0x14] sm:$0xf] %vm439, %v428
  %446 = vst.msk [vmem:[%s2 + $0x18] sm:$0xf] %vm439, %v429
  %447 = vst.msk [vmem:[%s2 + $0x1c] sm:$0xf] %vm439, %v430
  // Predicated region
  $region10: #{cae5_forward.30} parent=0 // pred_check
    _
  $region11: #{cae5_forward.30} parent=0 // pred_check_branch
    %449 = sbr.rel (0) target = $region13
  $region12: #{cae5_forward.30} parent=0 // pred_region
    _
  $region13: #{cae5_forward.30} parent=0 // pred_fallthru
    _
  // Predicated region
  $region14: #{cae5_forward.30} parent=0 // pred_check
    _
  $region15: #{cae5_forward.30} parent=0 // pred_check_branch
    %451 = sbr.rel (0) target = $region17
  $region16: #{cae5_forward.30} parent=0 // pred_region
    _
  $region17: #{cae5_forward.30} parent=0 // pred_fallthru
    _

// kernel: cae5_forward.32
$region0: #{cae5_forward.32}
  #allocation0 [shape = 'u32[]', space=smem, size = 0x4, offset = 0x4, fixed_abs, tag = 'smem constant byte address 0x4 - core index']
  #allocation1 [shape = 'u32[144,128]{1,0:T(1,128)}', space=vmem, size = 0x12000, scoped, tag = 'internal scratch']
  %s0 = inlined_call_operand.vmem [shape: bf16[32,264], index: 0, kind: input, shape index: {}]
  %s1 = inlined_call_operand.vmem [shape: bf16[264,8], index: 1, kind: input, shape index: {}]
  %s2 = inlined_call_operand.vmem [shape: bf16[32,8], index: 2, kind: output, shape index: {}]
  %s3 = sld [smem:[#allocation0]]
  $region18: #{cae5_forward.32} parent=0
    _
  %s5 = ssub.s32 1, %s3
  %s6 = scalar_select 0, %s5, %s3
  // Predicated region
  $region2: #{cae5_forward.32} parent=0 // pred_check
    _
  $region3: #{cae5_forward.32} parent=0 // pred_check_branch
    %8 = sbr.rel (0) target = $region5
  $region4: #{cae5_forward.32} parent=0 // pred_region
    _
  $region5: #{cae5_forward.32} parent=0 // pred_fallthru
    _
  // Predicated region
  $region6: #{cae5_forward.32} parent=0 // pred_check
    _
  $region7: #{cae5_forward.32} parent=0 // pred_check_branch
    %10 = sbr.rel (0) target = $region9
  $region8: #{cae5_forward.32} parent=0 // pred_region
    _
  $region9: #{cae5_forward.32} parent=0 // pred_fallthru
    _
  %v12 = vld [vmem:[%s0] sm:$0xff]
  %v13 = vld [vmem:[%s0 + $0x8] sm:$0xf]
  %v14 = vld [vmem:[%s0 + $0xc] sm:$0xff]
  %v15 = vld [vmem:[%s0 + $0x14] sm:$0xf]
  %v16 = vld [vmem:[%s0 + $0x18] sm:$0xff]
  %v17 = vld [vmem:[%s0 + $0x20] sm:$0xf]
  %v18 = vld [vmem:[%s0 + $0x24] sm:$0xff]
  %v19 = vld [vmem:[%s0 + $0x2c] sm:$0xf]
  %v20 = vld [vmem:[%s1] sm:$0xf]
  %v21 = vld [vmem:[%s1 + $0x4] sm:$0xf]
  %v22 = vld [vmem:[%s1 + $0x8] sm:$0xf]
  %v23 = vld [vmem:[%s1 + $0xc] sm:$0xf]
  %v24 = vld [vmem:[%s1 + $0x10] sm:$0xf]
  %v25 = vld [vmem:[%s1 + $0x14] sm:$0xf]
  %v26 = vld [vmem:[%s1 + $0x18] sm:$0xf]
  %v27 = vld [vmem:[%s1 + $0x1c] sm:$0xf]
  %v28 = vld [vmem:[%s1 + $0x20] sm:$0xf]
  %v29 = vld [vmem:[%s1 + $0x24] sm:$0xf]
  %v30 = vld [vmem:[%s1 + $0x28] sm:$0xf]
  %v31 = vld [vmem:[%s1 + $0x2c] sm:$0xf]
  %v32 = vld [vmem:[%s1 + $0x30] sm:$0xf]
  %v33 = vld [vmem:[%s1 + $0x34] sm:$0xf]
  %v34 = vld [vmem:[%s1 + $0x38] sm:$0xf]
  %v35 = vld [vmem:[%s1 + $0x3c] sm:$0xf]
  %v36 = vld [vmem:[%s1 + $0x40] sm:$0xf]
  %v37 = vld [vmem:[%s1 + $0x44] sm:$0xf]
  %v38 = vld [vmem:[%s1 + $0x48] sm:$0xf]
  %v39 = vld [vmem:[%s1 + $0x4c] sm:$0xf]
  %v40 = vld [vmem:[%s1 + $0x50] sm:$0xf]
  %v41 = vld [vmem:[%s1 + $0x54] sm:$0xf]
  %v42 = vld [vmem:[%s1 + $0x58] sm:$0xf]
  %v43 = vld [vmem:[%s1 + $0x5c] sm:$0xf]
  %v44 = vld [vmem:[%s1 + $0x60] sm:$0xf]
  %v45 = vld [vmem:[%s1 + $0x64] sm:$0xf]
  %v46 = vld [vmem:[%s1 + $0x68] sm:$0xf]
  %v47 = vld [vmem:[%s1 + $0x6c] sm:$0xf]
  %v48 = vld [vmem:[%s1 + $0x70] sm:$0xf]
  %v49 = vld [vmem:[%s1 + $0x74] sm:$0xf]
  %v50 = vld [vmem:[%s1 + $0x78] sm:$0xf]
  %v51 = vld [vmem:[%s1 + $0x7c] sm:$0xf]
  %v52 = vld [vmem:[%s1 + $0x80] sm:$0xf]
  %v61 = vunpack.c.l.b16 %v12
  %v62 = vunpack.c.h.b16 %v12
  %v63 = vunpack.c.l.b16 %v13
  %v64 = vunpack.c.l.b16 %v14
  %v65 = vunpack.c.h.b16 %v14
  %v66 = vunpack.c.l.b16 %v15
  %v67 = vunpack.c.l.b16 %v16
  %v68 = vunpack.c.h.b16 %v16
  %v69 = vunpack.c.l.b16 %v17
  %v70 = vunpack.c.l.b16 %v18
  %v71 = vunpack.c.h.b16 %v18
  %v72 = vunpack.c.l.b16 %v19
  %v73 = vpack.c.b16 %v64, %v61
  %v74 = vpack.c.b16 %v65, %v62
  %v75 = vpack.c.b16 %v66, %v63
  %v76 = vpack.c.b16 %v70, %v67
  %v77 = vpack.c.b16 %v71, %v68
  %v78 = vpack.c.b16 %v72, %v69
  %v116 = vunpack.c.l.b16 %v20
  %v117 = vunpack.c.l.b16 %v21
  %v118 = vunpack.c.l.b16 %v22
  %v119 = vunpack.c.l.b16 %v23
  %v120 = vunpack.c.l.b16 %v24
  %v121 = vunpack.c.l.b16 %v25
  %v122 = vunpack.c.l.b16 %v26
  %v123 = vunpack.c.l.b16 %v27
  %v124 = vunpack.c.l.b16 %v28
  %v125 = vunpack.c.l.b16 %v29
  %v126 = vunpack.c.l.b16 %v30
  %v127 = vunpack.c.l.b16 %v31
  %v128 = vunpack.c.l.b16 %v32
  %v129 = vunpack.c.l.b16 %v33
  %v130 = vunpack.c.l.b16 %v34
  %v131 = vunpack.c.l.b16 %v35
  %v132 = vunpack.c.l.b16 %v36
  %v133 = vunpack.c.l.b16 %v37
  %v134 = vunpack.c.l.b16 %v38
  %v135 = vunpack.c.l.b16 %v39
  %v136 = vunpack.c.l.b16 %v40
  %v137 = vunpack.c.l.b16 %v41
  %v138 = vunpack.c.l.b16 %v42
  %v139 = vunpack.c.l.b16 %v43
  %v140 = vunpack.c.l.b16 %v44
  %v141 = vunpack.c.l.b16 %v45
  %v142 = vunpack.c.l.b16 %v46
  %v143 = vunpack.c.l.b16 %v47
  %v144 = vunpack.c.l.b16 %v48
  %v145 = vunpack.c.l.b16 %v49
  %v146 = vunpack.c.l.b16 %v50
  %v147 = vunpack.c.l.b16 %v51
  %v148 = vunpack.c.l.b16 %v52
  %v149 = vpack.c.b16 %v117, %v116
  %v150 = vpack.c.b16 %v119, %v118
  %v151 = vpack.c.b16 %v121, %v120
  %v152 = vpack.c.b16 %v123, %v122
  %v153 = vpack.c.b16 %v125, %v124
  %v154 = vpack.c.b16 %v127, %v126
  %v155 = vpack.c.b16 %v129, %v128
  %v156 = vpack.c.b16 %v131, %v130
  %v157 = vpack.c.b16 %v133, %v132
  %v158 = vpack.c.b16 %v135, %v134
  %v159 = vpack.c.b16 %v137, %v136
  %v160 = vpack.c.b16 %v139, %v138
  %v161 = vpack.c.b16 %v141, %v140
  %v162 = vpack.c.b16 %v143, %v142
  %v163 = vpack.c.b16 %v145, %v144
  %v164 = vpack.c.b16 %v147, %v146
  %v165 = vpack.c.b16 %v148, %v148
  %vm182 = vcmask 64512
  %v184 = vsel %vm182, %v75, 0
  %v187 = vsel %vm182, %v78, 0
  %vm189 = vcmask 1043456
  %v191 = vsel %vm189, %v165, 0
  %193 = vmatprep.subr.bf16.mxu0 0
  %194 = vmatpush1.bf16.msra.mxu0 %v149
  %195 = vmatprep.subr.bf16.mxu0 0
  %196 = vmatpush1.bf16.msra.mxu0 %v150
  %197 = vmatprep.subr.bf16.mxu0 0
  %198 = vmatpush1.bf16.msra.mxu0 %v151
  %199 = vmatprep.subr.bf16.mxu0 0
  %200 = vmatpush1.bf16.msra.mxu0 %v152
  %201 = vmatprep.subr.bf16.mxu0 0
  %202 = vmatpush1.bf16.msra.mxu0 %v153
  %203 = vmatprep.subr.bf16.mxu0 0
  %204 = vmatpush1.bf16.msra.mxu0 %v154
  %205 = vmatprep.subr.bf16.mxu0 0
  %206 = vmatpush1.bf16.msra.mxu0 %v155
  %207 = vmatprep.subr.bf16.mxu0 0
  %208 = vmatpush1.bf16.msra.mxu0 %v156
  %209 = vmatprep.subr.bf16.mxu0 0
  %210 = vmatpush1.bf16.msra.mxu0 %v157
  %211 = vmatprep.subr.bf16.mxu0 0
  %212 = vmatpush1.bf16.msra.mxu0 %v158
  %213 = vmatprep.subr.bf16.mxu0 0
  %214 = vmatpush1.bf16.msra.mxu0 %v159
  %215 = vmatprep.subr.bf16.mxu0 0
  %216 = vmatpush1.bf16.msra.mxu0 %v160
  %217 = vmatprep.subr.bf16.mxu0 0
  %218 = vmatpush1.bf16.msra.mxu0 %v161
  %219 = vmatprep.subr.bf16.mxu0 0
  %220 = vmatpush1.bf16.msra.mxu0 %v162
  %221 = vmatprep.subr.bf16.mxu0 0
  %222 = vmatpush1.bf16.msra.mxu0 %v163
  %223 = vmatprep.subr.bf16.mxu0 0
  %224 = vmatpush1.bf16.msra.mxu0 %v164
  %225 = vmatprep.mubr.bf16.mxu0 %v74
  %226 = vmatmul.mubr.bf16.gmra.mrb[0].mxu0 %v73
  %v227 = vpop.f32.mrb[0].mxu0
  %v228 = vadd.f32 0.0, %v227
  %v229 = vpop.f32.mrb[0].mxu0
  %v230 = vpop.f32.mrb[0].mxu0
  %v231 = vadd.f32 0.0, %v230
  %v232 = vpop.f32.mrb[0].mxu0
  %233 = vmatprep.mubr.bf16.mxu0 %v77
  %234 = vmatmul.mubr.bf16.gmra.mrb[0].mxu0 %v76
  %v235 = vpop.f32.mrb[0].mxu0
  %v236 = vadd.f32 0.0, %v235
  %v237 = vpop.f32.mrb[0].mxu0
  %v238 = vpop.f32.mrb[0].mxu0
  %v239 = vadd.f32 0.0, %v238
  %v240 = vpop.f32.mrb[0].mxu0
  %241 = vdwg.mxu0
  %242 = vmatprep.subr.bf16.mxu0 0
  %243 = vmatpush1.bf16.msra.mxu0 %v191
  %244 = vmatprep.subr.bf16.mxu0 0
  %245 = vmatpush1.bf16.msra.mxu0 0
  %246 = vmatprep.subr.bf16.mxu0 0
  %247 = vmatpush1.bf16.msra.mxu0 0
  %248 = vmatprep.subr.bf16.mxu0 0
  %249 = vmatpush1.bf16.msra.mxu0 0
  %250 = vmatprep.subr.bf16.mxu0 0
  %251 = vmatpush1.bf16.msra.mxu0 0
  %252 = vmatprep.subr.bf16.mxu0 0
  %253 = vmatpush1.bf16.msra.mxu0 0
  %254 = vmatprep.subr.bf16.mxu0 0
  %255 = vmatpush1.bf16.msra.mxu0 0
  %256 = vmatprep.subr.bf16.mxu0 0
  %257 = vmatpush1.bf16.msra.mxu0 0
  %258 = vmatprep.subr.bf16.mxu0 0
  %259 = vmatpush1.bf16.msra.mxu0 0
  %260 = vmatprep.subr.bf16.mxu0 0
  %261 = vmatpush1.bf16.msra.mxu0 0
  %262 = vmatprep.subr.bf16.mxu0 0
  %263 = vmatpush1.bf16.msra.mxu0 0
  %264 = vmatprep.subr.bf16.mxu0 0
  %265 = vmatpush1.bf16.msra.mxu0 0
  %266 = vmatprep.subr.bf16.mxu0 0
  %267 = vmatpush1.bf16.msra.mxu0 0
  %268 = vmatprep.subr.bf16.mxu0 0
  %269 = vmatpush1.bf16.msra.mxu0 0
  %270 = vmatprep.subr.bf16.mxu0 0
  %271 = vmatpush1.bf16.msra.mxu0 0
  %272 = vmatprep.subr.bf16.mxu0 0
  %273 = vmatpush1.bf16.msra.mxu0 0
  %274 = vmatprep.mubr.bf16.mxu0 0
  %275 = vmatmul.mubr.bf16.gmra.mrb[0].mxu0 %v184
  %v276 = vpop.f32.mrb[0].mxu0
  %v277 = vadd.f32 %v228, %v276
  %v278 = vpop.f32.mrb[0].mxu0
  %v279 = vpop.f32.mrb[0].mxu0
  %v280 = vadd.f32 %v231, %v279
  %v281 = vpop.f32.mrb[0].mxu0
  %282 = vmatprep.mubr.bf16.mxu0 0
  %283 = vmatmul.mubr.bf16.gmra.mrb[0].mxu0 %v187
  %v284 = vpop.f32.mrb[0].mxu0
  %v285 = vadd.f32 %v236, %v284
  %v286 = vpop.f32.mrb[0].mxu0
  %v287 = vpop.f32.mrb[0].mxu0
  %v288 = vadd.f32 %v239, %v287
  %v289 = vpop.f32.mrb[0].mxu0
  %290 = vdwg.mxu0
  %vm291 = vcmp.ge.f32.partialorder %v277, 0.0
  %vm292 = vcmp.ge.f32.partialorder %v280, 0.0
  %vm293 = vcmp.ge.f32.partialorder %v285, 0.0
  %vm294 = vcmp.ge.f32.partialorder %v288, 0.0
  %v295 = vmul.f32 %v277, 0.01
  %v296 = vmul.f32 %v280, 0.01
  %v297 = vmul.f32 %v285, 0.01
  %v298 = vmul.f32 %v288, 0.01
  %v299 = vsel %vm291, %v277, %v295
  %v300 = vsel %vm292, %v280, %v296
  %v301 = vsel %vm293, %v285, %v297
  %v302 = vsel %vm294, %v288, %v298
  %v303 = vpack.c.bf16 %v300, %v299
  %v304 = vpack.c.bf16 %v302, %v301
  %v307 = vunpack.c.l.b16 %v303
  %v308 = vunpack.c.h.b16 %v303
  %v309 = vunpack.c.l.b16 %v304
  %v310 = vunpack.c.h.b16 %v304
  %v311 = vpack.c.b16 %v307, %v307
  %v312 = vpack.c.b16 %v308, %v308
  %v313 = vpack.c.b16 %v309, %v309
  %v314 = vpack.c.b16 %v310, %v310
  %vm319 = vcmask 60416
  %320 = vst.msk [vmem:[%s2] sm:$0xf] %vm319, %v311
  %321 = vst.msk [vmem:[%s2 + $0x4] sm:$0xf] %vm319, %v312
  %322 = vst.msk [vmem:[%s2 + $0x8] sm:$0xf] %vm319, %v313
  %323 = vst.msk [vmem:[%s2 + $0xc] sm:$0xf] %vm319, %v314
  // Predicated region
  $region10: #{cae5_forward.32} parent=0 // pred_check
    _
  $region11: #{cae5_forward.32} parent=0 // pred_check_branch
    %325 = sbr.rel (0) target = $region13
  $region12: #{cae5_forward.32} parent=0 // pred_region
    _
  $region13: #{cae5_forward.32} parent=0 // pred_fallthru
    _
  // Predicated region
  $region14: #{cae5_forward.32} parent=0 // pred_check
    _
  $region15: #{cae5_forward.32} parent=0 // pred_check_branch
    %327 = sbr.rel (0) target = $region17
  $region16: #{cae5_forward.32} parent=0 // pred_region
    _
  $region17: #{cae5_forward.32} parent=0 // pred_fallthru
    _

// kernel: cae5_forward.33
$region0: #{cae5_forward.33}
  #allocation0 [shape = 'u32[]', space=smem, size = 0x4, offset = 0x4, fixed_abs, tag = 'smem constant byte address 0x4 - core index']
  #allocation1 [shape = 'u32[144,128]{1,0:T(1,128)}', space=vmem, size = 0x12000, scoped, tag = 'internal scratch']
  %s0 = inlined_call_operand.vmem [shape: bf16[32,136], index: 0, kind: input, shape index: {}]
  %s1 = inlined_call_operand.vmem [shape: bf16[136,8], index: 1, kind: input, shape index: {}]
  %s2 = inlined_call_operand.vmem [shape: bf16[32,8], index: 2, kind: output, shape index: {}]
  %s3 = sld [smem:[#allocation0]]
  $region18: #{cae5_forward.33} parent=0
    _
  %s5 = ssub.s32 1, %s3
  %s6 = scalar_select 0, %s5, %s3
  // Predicated region
  $region2: #{cae5_forward.33} parent=0 // pred_check
    _
  $region3: #{cae5_forward.33} parent=0 // pred_check_branch
    %8 = sbr.rel (0) target = $region5
  $region4: #{cae5_forward.33} parent=0 // pred_region
    _
  $region5: #{cae5_forward.33} parent=0 // pred_fallthru
    _
  // Predicated region
  $region6: #{cae5_forward.33} parent=0 // pred_check
    _
  $region7: #{cae5_forward.33} parent=0 // pred_check_branch
    %10 = sbr.rel (0) target = $region9
  $region8: #{cae5_forward.33} parent=0 // pred_region
    _
  $region9: #{cae5_forward.33} parent=0 // pred_fallthru
    _
  %v12 = vld [vmem:[%s0] sm:$0xff]
  %v13 = vld [vmem:[%s0 + $0x8] sm:$0xff]
  %v14 = vld [vmem:[%s0 + $0x10] sm:$0xff]
  %v15 = vld [vmem:[%s0 + $0x18] sm:$0xff]
  %v16 = vld [vmem:[%s1] sm:$0xf]
  %v17 = vld [vmem:[%s1 + $0x4] sm:$0xf]
  %v18 = vld [vmem:[%s1 + $0x8] sm:$0xf]
  %v19 = vld [vmem:[%s1 + $0xc] sm:$0xf]
  %v20 = vld [vmem:[%s1 + $0x10] sm:$0xf]
  %v21 = vld [vmem:[%s1 + $0x14] sm:$0xf]
  %v22 = vld [vmem:[%s1 + $0x18] sm:$0xf]
  %v23 = vld [vmem:[%s1 + $0x1c] sm:$0xf]
  %v24 = vld [vmem:[%s1 + $0x20] sm:$0xf]
  %v25 = vld [vmem:[%s1 + $0x24] sm:$0xf]
  %v26 = vld [vmem:[%s1 + $0x28] sm:$0xf]
  %v27 = vld [vmem:[%s1 + $0x2c] sm:$0xf]
  %v28 = vld [vmem:[%s1 + $0x30] sm:$0xf]
  %v29 = vld [vmem:[%s1 + $0x34] sm:$0xf]
  %v30 = vld [vmem:[%s1 + $0x38] sm:$0xf]
  %v31 = vld [vmem:[%s1 + $0x3c] sm:$0xf]
  %v32 = vld [vmem:[%s1 + $0x40] sm:$0xf]
  %v37 = vunpack.c.l.b16 %v12
  %v38 = vunpack.c.h.b16 %v12
  %v39 = vunpack.c.l.b16 %v13
  %v40 = vunpack.c.h.b16 %v13
  %v41 = vunpack.c.l.b16 %v14
  %v42 = vunpack.c.h.b16 %v14
  %v43 = vunpack.c.l.b16 %v15
  %v44 = vunpack.c.h.b16 %v15
  %v45 = vpack.c.b16 %v39, %v37
  %v46 = vpack.c.b16 %v40, %v38
  %v47 = vpack.c.b16 %v43, %v41
  %v48 = vpack.c.b16 %v44, %v42
  %v68 = vunpack.c.l.b16 %v16
  %v69 = vunpack.c.l.b16 %v17
  %v70 = vunpack.c.l.b16 %v18
  %v71 = vunpack.c.l.b16 %v19
  %v72 = vunpack.c.l.b16 %v20
  %v73 = vunpack.c.l.b16 %v21
  %v74 = vunpack.c.l.b16 %v22
  %v75 = vunpack.c.l.b16 %v23
  %v76 = vunpack.c.l.b16 %v24
  %v77 = vunpack.c.l.b16 %v25
  %v78 = vunpack.c.l.b16 %v26
  %v79 = vunpack.c.l.b16 %v27
  %v80 = vunpack.c.l.b16 %v28
  %v81 = vunpack.c.l.b16 %v29
  %v82 = vunpack.c.l.b16 %v30
  %v83 = vunpack.c.l.b16 %v31
  %v84 = vunpack.c.l.b16 %v32
  %v85 = vpack.c.b16 %v69, %v68
  %v86 = vpack.c.b16 %v71, %v70
  %v87 = vpack.c.b16 %v73, %v72
  %v88 = vpack.c.b16 %v75, %v74
  %v89 = vpack.c.b16 %v77, %v76
  %v90 = vpack.c.b16 %v79, %v78
  %v91 = vpack.c.b16 %v81, %v80
  %v92 = vpack.c.b16 %v83, %v82
  %v93 = vpack.c.b16 %v84, %v84
  %vm102 = vcmask 64512
  %v104 = vsel %vm102, %v46, 0
  %v107 = vsel %vm102, %v48, 0
  %vm109 = vcmask 1043456
  %v111 = vsel %vm109, %v93, 0
  %113 = vmatprep.subr.bf16.mxu0 0
  %114 = vmatpush1.bf16.msra.mxu0 %v85
  %115 = vmatprep.subr.bf16.mxu0 0
  %116 = vmatpush1.bf16.msra.mxu0 %v86
  %117 = vmatprep.subr.bf16.mxu0 0
  %118 = vmatpush1.bf16.msra.mxu0 %v87
  %119 = vmatprep.subr.bf16.mxu0 0
  %120 = vmatpush1.bf16.msra.mxu0 %v88
  %121 = vmatprep.subr.bf16.mxu0 0
  %122 = vmatpush1.bf16.msra.mxu0 %v89
  %123 = vmatprep.subr.bf16.mxu0 0
  %124 = vmatpush1.bf16.msra.mxu0 %v90
  %125 = vmatprep.subr.bf16.mxu0 0
  %126 = vmatpush1.bf16.msra.mxu0 %v91
  %127 = vmatprep.subr.bf16.mxu0 0
  %128 = vmatpush1.bf16.msra.mxu0 %v92
  %129 = vmatprep.subr.bf16.mxu0 0
  %130 = vmatpush1.bf16.msra.mxu0 %v111
  %131 = vmatprep.subr.bf16.mxu0 0
  %132 = vmatpush1.bf16.msra.mxu0 0
  %133 = vmatprep.subr.bf16.mxu0 0
  %134 = vmatpush1.bf16.msra.mxu0 0
  %135 = vmatprep.subr.bf16.mxu0 0
  %136 = vmatpush1.bf16.msra.mxu0 0
  %137 = vmatprep.subr.bf16.mxu0 0
  %138 = vmatpush1.bf16.msra.mxu0 0
  %139 = vmatprep.subr.bf16.mxu0 0
  %140 = vmatpush1.bf16.msra.mxu0 0
  %141 = vmatprep.subr.bf16.mxu0 0
  %142 = vmatpush1.bf16.msra.mxu0 0
  %143 = vmatprep.subr.bf16.mxu0 0
  %144 = vmatpush1.bf16.msra.mxu0 0
  %145 = vmatprep.mubr.bf16.mxu0 %v104
  %146 = vmatmul.mubr.bf16.gmra.mrb[0].mxu0 %v45
  %v147 = vpop.f32.mrb[0].mxu0
  %v148 = vadd.f32 0.0, %v147
  %v149 = vpop.f32.mrb[0].mxu0
  %v150 = vpop.f32.mrb[0].mxu0
  %v151 = vadd.f32 0.0, %v150
  %v152 = vpop.f32.mrb[0].mxu0
  %153 = vmatprep.mubr.bf16.mxu0 %v107
  %154 = vmatmul.mubr.bf16.gmra.mrb[0].mxu0 %v47
  %v155 = vpop.f32.mrb[0].mxu0
  %v156 = vadd.f32 0.0, %v155
  %v157 = vpop.f32.mrb[0].mxu0
  %v158 = vpop.f32.mrb[0].mxu0
  %v159 = vadd.f32 0.0, %v158
  %v160 = vpop.f32.mrb[0].mxu0
  %161 = vdwg.mxu0
  %vm162 = vcmp.ge.f32.partialorder %v148, 0.0
  %vm163 = vcmp.ge.f32.partialorder %v151, 0.0
  %vm164 = vcmp.ge.f32.partialorder %v156, 0.0
  %vm165 = vcmp.ge.f32.partialorder %v159, 0.0
  %v166 = vmul.f32 %v148, 0.01
  %v167 = vmul.f32 %v151, 0.01
  %v168 = vmul.f32 %v156, 0.01
  %v169 = vmul.f32 %v159, 0.01
  %v170 = vsel %vm162, %v148, %v166
  %v171 = vsel %vm163, %v151, %v167
  %v172 = vsel %vm164, %v156, %v168
  %v173 = vsel %vm165, %v159, %v169
  %v174 = vpack.c.bf16 %v171, %v170
  %v175 = vpack.c.bf16 %v173, %v172
  %v178 = vunpack.c.l.b16 %v174
  %v179 = vunpack.c.h.b16 %v174
  %v180 = vunpack.c.l.b16 %v175
  %v181 = vunpack.c.h.b16 %v175
  %v182 = vpack.c.b16 %v178, %v178
  %v183 = vpack.c.b16 %v179, %v179
  %v184 = vpack.c.b16 %v180, %v180
  %v185 = vpack.c.b16 %v181, %v181
  %vm190 = vcmask 60416
  %191 = vst.msk [vmem:[%s2] sm:$0xf] %vm190, %v182
  %192 = vst.msk [vmem:[%s2 + $0x4] sm:$0xf] %vm190, %v183
  %193 = vst.msk [vmem:[%s2 + $0x8] sm:$0xf] %vm190, %v184
  %194 = vst.msk [vmem:[%s2 + $0xc] sm:$0xf] %vm190, %v185
  // Predicated region
  $region10: #{cae5_forward.33} parent=0 // pred_check
    _
  $region11: #{cae5_forward.33} parent=0 // pred_check_branch
    %196 = sbr.rel (0) target = $region13
  $region12: #{cae5_forward.33} parent=0 // pred_region
    _
  $region13: #{cae5_forward.33} parent=0 // pred_fallthru
    _
  // Predicated region
  $region14: #{cae5_forward.33} parent=0 // pred_check
    _
  $region15: #{cae5_forward.33} parent=0 // pred_check_branch
    %198 = sbr.rel (0) target = $region17
  $region16: #{cae5_forward.33} parent=0 // pred_region
    _
  $region17: #{cae5_forward.33} parent=0 // pred_fallthru
    _

// kernel: cae5_forward.35
$region0: #{cae5_forward.35}
  #allocation0 [shape = 'u32[]', space=smem, size = 0x4, offset = 0x4, fixed_abs, tag = 'smem constant byte address 0x4 - core index']
  #allocation1 [shape = 'u32[144,128]{1,0:T(1,128)}', space=vmem, size = 0x12000, scoped, tag = 'internal scratch']
  %s0 = inlined_call_operand.vmem [shape: bf16[32,72], index: 0, kind: input, shape index: {}]
  %s1 = inlined_call_operand.vmem [shape: bf16[72,8], index: 1, kind: input, shape index: {}]
  %s2 = inlined_call_operand.vmem [shape: bf16[32,8], index: 2, kind: output, shape index: {}]
  %s3 = sld [smem:[#allocation0]]
  $region18: #{cae5_forward.35} parent=0
    _
  %s5 = ssub.s32 1, %s3
  %s6 = scalar_select 0, %s5, %s3
  // Predicated region
  $region2: #{cae5_forward.35} parent=0 // pred_check
    _
  $region3: #{cae5_forward.35} parent=0 // pred_check_branch
    %8 = sbr.rel (0) target = $region5
  $region4: #{cae5_forward.35} parent=0 // pred_region
    _
  $region5: #{cae5_forward.35} parent=0 // pred_fallthru
    _
  // Predicated region
  $region6: #{cae5_forward.35} parent=0 // pred_check
    _
  $region7: #{cae5_forward.35} parent=0 // pred_check_branch
    %10 = sbr.rel (0) target = $region9
  $region8: #{cae5_forward.35} parent=0 // pred_region
    _
  $region9: #{cae5_forward.35} parent=0 // pred_fallthru
    _
  %v12 = vld [vmem:[%s0] sm:$0xf]
  %v13 = vld [vmem:[%s0 + $0x4] sm:$0xf]
  %v14 = vld [vmem:[%s0 + $0x8] sm:$0xf]
  %v15 = vld [vmem:[%s0 + $0xc] sm:$0xf]
  %v16 = vld [vmem:[%s1] sm:$0xf]
  %v17 = vld [vmem:[%s1 + $0x4] sm:$0xf]
  %v18 = vld [vmem:[%s1 + $0x8] sm:$0xf]
  %v19 = vld [vmem:[%s1 + $0xc] sm:$0xf]
  %v20 = vld [vmem:[%s1 + $0x10] sm:$0xf]
  %v21 = vld [vmem:[%s1 + $0x14] sm:$0xf]
  %v22 = vld [vmem:[%s1 + $0x18] sm:$0xf]
  %v23 = vld [vmem:[%s1 + $0x1c] sm:$0xf]
  %v24 = vld [vmem:[%s1 + $0x20] sm:$0xf]
  %v29 = vunpack.c.l.b16 %v12
  %v30 = vunpack.c.l.b16 %v13
  %v31 = vunpack.c.l.b16 %v14
  %v32 = vunpack.c.l.b16 %v15
  %v33 = vpack.c.b16 %v30, %v29
  %v34 = vpack.c.b16 %v32, %v31
  %v44 = vunpack.c.l.b16 %v16
  %v45 = vunpack.c.l.b16 %v17
  %v46 = vunpack.c.l.b16 %v18
  %v47 = vunpack.c.l.b16 %v19
  %v48 = vunpack.c.l.b16 %v20
  %v49 = vunpack.c.l.b16 %v21
  %v50 = vunpack.c.l.b16 %v22
  %v51 = vunpack.c.l.b16 %v23
  %v52 = vunpack.c.l.b16 %v24
  %v53 = vpack.c.b16 %v45, %v44
  %v54 = vpack.c.b16 %v47, %v46
  %v55 = vpack.c.b16 %v49, %v48
  %v56 = vpack.c.b16 %v51, %v50
  %v57 = vpack.c.b16 %v52, %v52
  %vm62 = vcmask 588800
  %v64 = vsel %vm62, %v33, 0
  %v67 = vsel %vm62, %v34, 0
  %vm69 = vcmask 1043456
  %v71 = vsel %vm69, %v57, 0
  %73 = vmatprep.subr.bf16.mxu0 0
  %74 = vmatpush1.bf16.msra.mxu0 %v53
  %75 = vmatprep.subr.bf16.mxu0 0
  %76 = vmatpush1.bf16.msra.mxu0 %v54
  %77 = vmatprep.subr.bf16.mxu0 0
  %78 = vmatpush1.bf16.msra.mxu0 %v55
  %79 = vmatprep.subr.bf16.mxu0 0
  %80 = vmatpush1.bf16.msra.mxu0 %v56
  %81 = vmatprep.subr.bf16.mxu0 0
  %82 = vmatpush1.bf16.msra.mxu0 %v71
  %83 = vmatprep.subr.bf16.mxu0 0
  %84 = vmatpush1.bf16.msra.mxu0 0
  %85 = vmatprep.subr.bf16.mxu0 0
  %86 = vmatpush1.bf16.msra.mxu0 0
  %87 = vmatprep.subr.bf16.mxu0 0
  %88 = vmatpush1.bf16.msra.mxu0 0
  %89 = vmatprep.subr.bf16.mxu0 0
  %90 = vmatpush1.bf16.msra.mxu0 0
  %91 = vmatprep.subr.bf16.mxu0 0
  %92 = vmatpush1.bf16.msra.mxu0 0
  %93 = vmatprep.subr.bf16.mxu0 0
  %94 = vmatpush1.bf16.msra.mxu0 0
  %95 = vmatprep.subr.bf16.mxu0 0
  %96 = vmatpush1.bf16.msra.mxu0 0
  %97 = vmatprep.subr.bf16.mxu0 0
  %98 = vmatpush1.bf16.msra.mxu0 0
  %99 = vmatprep.subr.bf16.mxu0 0
  %100 = vmatpush1.bf16.msra.mxu0 0
  %101 = vmatprep.subr.bf16.mxu0 0
  %102 = vmatpush1.bf16.msra.mxu0 0
  %103 = vmatprep.subr.bf16.mxu0 0
  %104 = vmatpush1.bf16.msra.mxu0 0
  %105 = vmatprep.mubr.bf16.mxu0 0
  %106 = vmatmul.mubr.bf16.gmra.mrb[0].mxu0 %v64
  %v107 = vpop.f32.mrb[0].mxu0
  %v108 = vadd.f32 0.0, %v107
  %v109 = vpop.f32.mrb[0].mxu0
  %v110 = vpop.f32.mrb[0].mxu0
  %v111 = vadd.f32 0.0, %v110
  %v112 = vpop.f32.mrb[0].mxu0
  %113 = vmatprep.mubr.bf16.mxu0 0
  %114 = vmatmul.mubr.bf16.gmra.mrb[0].mxu0 %v67
  %v115 = vpop.f32.mrb[0].mxu0
  %v116 = vadd.f32 0.0, %v115
  %v117 = vpop.f32.mrb[0].mxu0
  %v118 = vpop.f32.mrb[0].mxu0
  %v119 = vadd.f32 0.0, %v118
  %v120 = vpop.f32.mrb[0].mxu0
  %121 = vdwg.mxu0
  %vm122 = vcmp.ge.f32.partialorder %v108, 0.0
  %vm123 = vcmp.ge.f32.partialorder %v111, 0.0
  %vm124 = vcmp.ge.f32.partialorder %v116, 0.0
  %vm125 = vcmp.ge.f32.partialorder %v119, 0.0
  %v126 = vmul.f32 %v108, 0.01
  %v127 = vmul.f32 %v111, 0.01
  %v128 = vmul.f32 %v116, 0.01
  %v129 = vmul.f32 %v119, 0.01
  %v130 = vsel %vm122, %v108, %v126
  %v131 = vsel %vm123, %v111, %v127
  %v132 = vsel %vm124, %v116, %v128
  %v133 = vsel %vm125, %v119, %v129
  %v134 = vpack.c.bf16 %v131, %v130
  %v135 = vpack.c.bf16 %v133, %v132
  %v138 = vunpack.c.l.b16 %v134
  %v139 = vunpack.c.h.b16 %v134
  %v140 = vunpack.c.l.b16 %v135
  %v141 = vunpack.c.h.b16 %v135
  %v142 = vpack.c.b16 %v138, %v138
  %v143 = vpack.c.b16 %v139, %v139
  %v144 = vpack.c.b16 %v140, %v140
  %v145 = vpack.c.b16 %v141, %v141
  %vm150 = vcmask 60416
  %151 = vst.msk [vmem:[%s2] sm:$0xf] %vm150, %v142
  %152 = vst.msk [vmem:[%s2 + $0x4] sm:$0xf] %vm150, %v143
  %153 = vst.msk [vmem:[%s2 + $0x8] sm:$0xf] %vm150, %v144
  %154 = vst.msk [vmem:[%s2 + $0xc] sm:$0xf] %vm150, %v145
  // Predicated region
  $region10: #{cae5_forward.35} parent=0 // pred_check
    _
  $region11: #{cae5_forward.35} parent=0 // pred_check_branch
    %156 = sbr.rel (0) target = $region13
  $region12: #{cae5_forward.35} parent=0 // pred_region
    _
  $region13: #{cae5_forward.35} parent=0 // pred_fallthru
    _
  // Predicated region
  $region14: #{cae5_forward.35} parent=0 // pred_check
    _
  $region15: #{cae5_forward.35} parent=0 // pred_check_branch
    %158 = sbr.rel (0) target = $region17
  $region16: #{cae5_forward.35} parent=0 // pred_region
    _
  $region17: #{cae5_forward.35} parent=0 // pred_fallthru
    _

// kernel: cae5_forward.36
$region0: #{cae5_forward.36}
  #allocation0 [shape = 'u32[]', space=smem, size = 0x4, offset = 0x4, fixed_abs, tag = 'smem constant byte address 0x4 - core index']
  #allocation1 [shape = 'u32[144,128]{1,0:T(1,128)}', space=vmem, size = 0x12000, scoped, tag = 'internal scratch']
  %s0 = inlined_call_operand.vmem [shape: bf16[16,296], index: 0, kind: input, shape index: {}]
  %s1 = inlined_call_operand.vmem [shape: bf16[296,32], index: 1, kind: input, shape index: {}]
  %s2 = inlined_call_operand.vmem [shape: bf16[16,32], index: 2, kind: output, shape index: {}]
  %s3 = sld [smem:[#allocation0]]
  $region18: #{cae5_forward.36} parent=0
    _
  %s5 = ssub.s32 1, %s3
  %s6 = scalar_select 0, %s5, %s3
  // Predicated region
  $region2: #{cae5_forward.36} parent=0 // pred_check
    _
  $region3: #{cae5_forward.36} parent=0 // pred_check_branch
    %8 = sbr.rel (0) target = $region5
  $region4: #{cae5_forward.36} parent=0 // pred_region
    _
  $region5: #{cae5_forward.36} parent=0 // pred_fallthru
    _
  // Predicated region
  $region6: #{cae5_forward.36} parent=0 // pred_check
    _
  $region7: #{cae5_forward.36} parent=0 // pred_check_branch
    %10 = sbr.rel (0) target = $region9
  $region8: #{cae5_forward.36} parent=0 // pred_region
    _
  $region9: #{cae5_forward.36} parent=0 // pred_fallthru
    _
  %v12 = vld [vmem:[%s0] sm:$0xff]
  %v13 = vld [vmem:[%s0 + $0x8] sm:$0xf]
  %v14 = vld [vmem:[%s0 + $0xc] sm:$0xff]
  %v15 = vld [vmem:[%s0 + $0x14] sm:$0xf]
  %v16 = vld [vmem:[%s1] sm:$0xf]
  %v17 = vld [vmem:[%s1 + $0x4] sm:$0xf]
  %v18 = vld [vmem:[%s1 + $0x8] sm:$0xf]
  %v19 = vld [vmem:[%s1 + $0xc] sm:$0xf]
  %v20 = vld [vmem:[%s1 + $0x10] sm:$0xf]
  %v21 = vld [vmem:[%s1 + $0x14] sm:$0xf]
  %v22 = vld [vmem:[%s1 + $0x18] sm:$0xf]
  %v23 = vld [vmem:[%s1 + $0x1c] sm:$0xf]
  %v24 = vld [vmem:[%s1 + $0x20] sm:$0xf]
  %v25 = vld [vmem:[%s1 + $0x24] sm:$0xf]
  %v26 = vld [vmem:[%s1 + $0x28] sm:$0xf]
  %v27 = vld [vmem:[%s1 + $0x2c] sm:$0xf]
  %v28 = vld [vmem:[%s1 + $0x30] sm:$0xf]
  %v29 = vld [vmem:[%s1 + $0x34] sm:$0xf]
  %v30 = vld [vmem:[%s1 + $0x38] sm:$0xf]
  %v31 = vld [vmem:[%s1 + $0x3c] sm:$0xf]
  %v32 = vld [vmem:[%s1 + $0x40] sm:$0xf]
  %v33 = vld [vmem:[%s1 + $0x44] sm:$0xf]
  %v34 = vld [vmem:[%s1 + $0x48] sm:$0xf]
  %v35 = vld [vmem:[%s1 + $0x4c] sm:$0xf]
  %v36 = vld [vmem:[%s1 + $0x50] sm:$0xf]
  %v37 = vld [vmem:[%s1 + $0x54] sm:$0xf]
  %v38 = vld [vmem:[%s1 + $0x58] sm:$0xf]
  %v39 = vld [vmem:[%s1 + $0x5c] sm:$0xf]
  %v40 = vld [vmem:[%s1 + $0x60] sm:$0xf]
  %v41 = vld [vmem:[%s1 + $0x64] sm:$0xf]
  %v42 = vld [vmem:[%s1 + $0x68] sm:$0xf]
  %v43 = vld [vmem:[%s1 + $0x6c] sm:$0xf]
  %v44 = vld [vmem:[%s1 + $0x70] sm:$0xf]
  %v45 = vld [vmem:[%s1 + $0x74] sm:$0xf]
  %v46 = vld [vmem:[%s1 + $0x78] sm:$0xf]
  %v47 = vld [vmem:[%s1 + $0x7c] sm:$0xf]
  %v48 = vld [vmem:[%s1 + $0x80] sm:$0xf]
  %v49 = vld [vmem:[%s1 + $0x84] sm:$0xf]
  %v50 = vld [vmem:[%s1 + $0x88] sm:$0xf]
  %v51 = vld [vmem:[%s1 + $0x8c] sm:$0xf]
  %v52 = vld [vmem:[%s1 + $0x90] sm:$0xf]
  %v57 = vunpack.c.l.b16 %v12
  %v58 = vunpack.c.h.b16 %v12
  %v59 = vunpack.c.l.b16 %v13
  %v60 = vunpack.c.l.b16 %v14
  %v61 = vunpack.c.h.b16 %v14
  %v62 = vunpack.c.l.b16 %v15
  %v63 = vpack.c.b16 %v60, %v57
  %v64 = vpack.c.b16 %v61, %v58
  %v65 = vpack.c.b16 %v62, %v59
  %v105 = vunpack.c.l.b16 %v16
  %v106 = vunpack.c.l.b16 %v17
  %v107 = vunpack.c.l.b16 %v18
  %v108 = vunpack.c.l.b16 %v19
  %v109 = vunpack.c.l.b16 %v20
  %v110 = vunpack.c.l.b16 %v21
  %v111 = vunpack.c.l.b16 %v22
  %v112 = vunpack.c.l.b16 %v23
  %v113 = vunpack.c.l.b16 %v24
  %v114 = vunpack.c.l.b16 %v25
  %v115 = vunpack.c.l.b16 %v26
  %v116 = vunpack.c.l.b16 %v27
  %v117 = vunpack.c.l.b16 %v28
  %v118 = vunpack.c.l.b16 %v29
  %v119 = vunpack.c.l.b16 %v30
  %v120 = vunpack.c.l.b16 %v31
  %v121 = vunpack.c.l.b16 %v32
  %v122 = vunpack.c.l.b16 %v33
  %v123 = vunpack.c.l.b16 %v34
  %v124 = vunpack.c.l.b16 %v35
  %v125 = vunpack.c.l.b16 %v36
  %v126 = vunpack.c.l.b16 %v37
  %v127 = vunpack.c.l.b16 %v38
  %v128 = vunpack.c.l.b16 %v39
  %v129 = vunpack.c.l.b16 %v40
  %v130 = vunpack.c.l.b16 %v41
  %v131 = vunpack.c.l.b16 %v42
  %v132 = vunpack.c.l.b16 %v43
  %v133 = vunpack.c.l.b16 %v44
  %v134 = vunpack.c.l.b16 %v45
  %v135 = vunpack.c.l.b16 %v46
  %v136 = vunpack.c.l.b16 %v47
  %v137 = vunpack.c.l.b16 %v48
  %v138 = vunpack.c.l.b16 %v49
  %v139 = vunpack.c.l.b16 %v50
  %v140 = vunpack.c.l.b16 %v51
  %v141 = vunpack.c.l.b16 %v52
  %v142 = vpack.c.b16 %v106, %v105
  %v143 = vpack.c.b16 %v108, %v107
  %v144 = vpack.c.b16 %v110, %v109
  %v145 = vpack.c.b16 %v112, %v111
  %v146 = vpack.c.b16 %v114, %v113
  %v147 = vpack.c.b16 %v116, %v115
  %v148 = vpack.c.b16 %v118, %v117
  %v149 = vpack.c.b16 %v120, %v119
  %v150 = vpack.c.b16 %v122, %v121
  %v151 = vpack.c.b16 %v124, %v123
  %v152 = vpack.c.b16 %v126, %v125
  %v153 = vpack.c.b16 %v128, %v127
  %v154 = vpack.c.b16 %v130, %v129
  %v155 = vpack.c.b16 %v132, %v131
  %v156 = vpack.c.b16 %v134, %v133
  %v157 = vpack.c.b16 %v136, %v135
  %v158 = vpack.c.b16 %v138, %v137
  %v159 = vpack.c.b16 %v140, %v139
  %v160 = vpack.c.b16 %v141, %v141
  %vm179 = vcmask 326656
  %v181 = vsel %vm179, %v65, 0
  %vm183 = vcmask 1043456
  %v185 = vsel %vm183, %v160, 0
  %187 = vmatprep.subr.bf16.mxu0 0
  %188 = vmatpush1.bf16.msra.mxu0 %v142
  %189 = vmatprep.subr.bf16.mxu0 0
  %190 = vmatpush1.bf16.msra.mxu0 %v143
  %191 = vmatprep.subr.bf16.mxu0 0
  %192 = vmatpush1.bf16.msra.mxu0 %v144
  %193 = vmatprep.subr.bf16.mxu0 0
  %194 = vmatpush1.bf16.msra.mxu0 %v145
  %195 = vmatprep.subr.bf16.mxu0 0
  %196 = vmatpush1.bf16.msra.mxu0 %v146
  %197 = vmatprep.subr.bf16.mxu0 0
  %198 = vmatpush1.bf16.msra.mxu0 %v147
  %199 = vmatprep.subr.bf16.mxu0 0
  %200 = vmatpush1.bf16.msra.mxu0 %v148
  %201 = vmatprep.subr.bf16.mxu0 0
  %202 = vmatpush1.bf16.msra.mxu0 %v149
  %203 = vmatprep.subr.bf16.mxu0 0
  %204 = vmatpush1.bf16.msra.mxu0 %v150
  %205 = vmatprep.subr.bf16.mxu0 0
  %206 = vmatpush1.bf16.msra.mxu0 %v151
  %207 = vmatprep.subr.bf16.mxu0 0
  %208 = vmatpush1.bf16.msra.mxu0 %v152
  %209 = vmatprep.subr.bf16.mxu0 0
  %210 = vmatpush1.bf16.msra.mxu0 %v153
  %211 = vmatprep.subr.bf16.mxu0 0
  %212 = vmatpush1.bf16.msra.mxu0 %v154
  %213 = vmatprep.subr.bf16.mxu0 0
  %214 = vmatpush1.bf16.msra.mxu0 %v155
  %215 = vmatprep.subr.bf16.mxu0 0
  %216 = vmatpush1.bf16.msra.mxu0 %v156
  %217 = vmatprep.subr.bf16.mxu0 0
  %218 = vmatpush1.bf16.msra.mxu0 %v157
  %219 = vmatprep.mubr.bf16.mxu0 %v64
  %220 = vmatmul.mubr.bf16.gmra.mrb[0].mxu0 %v63
  %v221 = vpop.f32.mrb[0].mxu0
  %v222 = vadd.f32 0.0, %v221
  %v223 = vpop.f32.mrb[0].mxu0
  %v224 = vpop.f32.mrb[0].mxu0
  %v225 = vadd.f32 0.0, %v224
  %v226 = vpop.f32.mrb[0].mxu0
  %227 = vdwg.mxu0
  %228 = vmatprep.subr.bf16.mxu0 0
  %229 = vmatpush1.bf16.msra.mxu0 %v158
  %230 = vmatprep.subr.bf16.mxu0 0
  %231 = vmatpush1.bf16.msra.mxu0 %v159
  %232 = vmatprep.subr.bf16.mxu0 0
  %233 = vmatpush1.bf16.msra.mxu0 %v185
  %234 = vmatprep.subr.bf16.mxu0 0
  %235 = vmatpush1.bf16.msra.mxu0 0
  %236 = vmatprep.subr.bf16.mxu0 0
  %237 = vmatpush1.bf16.msra.mxu0 0
  %238 = vmatprep.subr.bf16.mxu0 0
  %239 = vmatpush1.bf16.msra.mxu0 0
  %240 = vmatprep.subr.bf16.mxu0 0
  %241 = vmatpush1.bf16.msra.mxu0 0
  %242 = vmatprep.subr.bf16.mxu0 0
  %243 = vmatpush1.bf16.msra.mxu0 0
  %244 = vmatprep.subr.bf16.mxu0 0
  %245 = vmatpush1.bf16.msra.mxu0 0
  %246 = vmatprep.subr.bf16.mxu0 0
  %247 = vmatpush1.bf16.msra.mxu0 0
  %248 = vmatprep.subr.bf16.mxu0 0
  %249 = vmatpush1.bf16.msra.mxu0 0
  %250 = vmatprep.subr.bf16.mxu0 0
  %251 = vmatpush1.bf16.msra.mxu0 0
  %252 = vmatprep.subr.bf16.mxu0 0
  %253 = vmatpush1.bf16.msra.mxu0 0
  %254 = vmatprep.subr.bf16.mxu0 0
  %255 = vmatpush1.bf16.msra.mxu0 0
  %256 = vmatprep.subr.bf16.mxu0 0
  %257 = vmatpush1.bf16.msra.mxu0 0
  %258 = vmatprep.subr.bf16.mxu0 0
  %259 = vmatpush1.bf16.msra.mxu0 0
  %260 = vmatprep.mubr.bf16.mxu0 0
  %261 = vmatmul.mubr.bf16.gmra.mrb[0].mxu0 %v181
  %v262 = vpop.f32.mrb[0].mxu0
  %v263 = vadd.f32 %v222, %v262
  %v264 = vpop.f32.mrb[0].mxu0
  %v265 = vpop.f32.mrb[0].mxu0
  %v266 = vadd.f32 %v225, %v265
  %v267 = vpop.f32.mrb[0].mxu0
  %268 = vdwg.mxu0
  %vm269 = vcmp.ge.f32.partialorder %v263, 0.0
  %vm270 = vcmp.ge.f32.partialorder %v266, 0.0
  %v271 = vmul.f32 %v263, 0.01
  %v272 = vmul.f32 %v266, 0.01
  %v273 = vsel %vm269, %v263, %v271
  %v274 = vsel %vm270, %v266, %v272
  %v275 = vpack.c.bf16 %v274, %v273
  %v277 = vunpack.c.l.b16 %v275
  %v278 = vunpack.c.h.b16 %v275
  %v279 = vpack.c.b16 %v277, %v277
  %v280 = vpack.c.b16 %v278, %v278
  %vm283 = vcmask 257024
  %284 = vst.msk [vmem:[%s2] sm:$0xf] %vm283, %v279
  %285 = vst.msk [vmem:[%s2 + $0x4] sm:$0xf] %vm283, %v280
  // Predicated region
  $region10: #{cae5_forward.36} parent=0 // pred_check
    _
  $region11: #{cae5_forward.36} parent=0 // pred_check_branch
    %287 = sbr.rel (0) target = $region13
  $region12: #{cae5_forward.36} parent=0 // pred_region
    _
  $region13: #{cae5_forward.36} parent=0 // pred_fallthru
    _
  // Predicated region
  $region14: #{cae5_forward.36} parent=0 // pred_check
    _
  $region15: #{cae5_forward.36} parent=0 // pred_check_branch
    %289 = sbr.rel (0) target = $region17
  $region16: #{cae5_forward.36} parent=0 // pred_region
    _
  $region17: #{cae5_forward.36} parent=0 // pred_fallthru
    _

// kernel: cae5_forward.37
$region0: #{cae5_forward.37}
  #allocation0 [shape = 'u32[]', space=smem, size = 0x4, offset = 0x4, fixed_abs, tag = 'smem constant byte address 0x4 - core index']
  #allocation1 [shape = 'u32[144,128]{1,0:T(1,128)}', space=vmem, size = 0x12000, scoped, tag = 'internal scratch']
  %s0 = inlined_call_operand.vmem [shape: bf16[16,200], index: 0, kind: input, shape index: {}]
  %s1 = inlined_call_operand.vmem [shape: bf16[200,32], index: 1, kind: input, shape index: {}]
  %s2 = inlined_call_operand.vmem [shape: bf16[16,32], index: 2, kind: output, shape index: {}]
  %s3 = sld [smem:[#allocation0]]
  $region18: #{cae5_forward.37} parent=0
    _
  %s5 = ssub.s32 1, %s3
  %s6 = scalar_select 0, %s5, %s3
  // Predicated region
  $region2: #{cae5_forward.37} parent=0 // pred_check
    _
  $region3: #{cae5_forward.37} parent=0 // pred_check_branch
    %8 = sbr.rel (0) target = $region5
  $region4: #{cae5_forward.37} parent=0 // pred_region
    _
  $region5: #{cae5_forward.37} parent=0 // pred_fallthru
    _
  // Predicated region
  $region6: #{cae5_forward.37} parent=0 // pred_check
    _
  $region7: #{cae5_forward.37} parent=0 // pred_check_branch
    %10 = sbr.rel (0) target = $region9
  $region8: #{cae5_forward.37} parent=0 // pred_region
    _
  $region9: #{cae5_forward.37} parent=0 // pred_fallthru
    _
  %v12 = vld [vmem:[%s0] sm:$0xff]
  %v13 = vld [vmem:[%s0 + $0x8] sm:$0xff]
  %v14 = vld [vmem:[%s1] sm:$0xf]
  %v15 = vld [vmem:[%s1 + $0x4] sm:$0xf]
  %v16 = vld [vmem:[%s1 + $0x8] sm:$0xf]
  %v17 = vld [vmem:[%s1 + $0xc] sm:$0xf]
  %v18 = vld [vmem:[%s1 + $0x10] sm:$0xf]
  %v19 = vld [vmem:[%s1 + $0x14] sm:$0xf]
  %v20 = vld [vmem:[%s1 + $0x18] sm:$0xf]
  %v21 = vld [vmem:[%s1 + $0x1c] sm:$0xf]
  %v22 = vld [vmem:[%s1 + $0x20] sm:$0xf]
  %v23 = vld [vmem:[%s1 + $0x24] sm:$0xf]
  %v24 = vld [vmem:[%s1 + $0x28] sm:$0xf]
  %v25 = vld [vmem:[%s1 + $0x2c] sm:$0xf]
  %v26 = vld [vmem:[%s1 + $0x30] sm:$0xf]
  %v27 = vld [vmem:[%s1 + $0x34] sm:$0xf]
  %v28 = vld [vmem:[%s1 + $0x38] sm:$0xf]
  %v29 = vld [vmem:[%s1 + $0x3c] sm:$0xf]
  %v30 = vld [vmem:[%s1 + $0x40] sm:$0xf]
  %v31 = vld [vmem:[%s1 + $0x44] sm:$0xf]
  %v32 = vld [vmem:[%s1 + $0x48] sm:$0xf]
  %v33 = vld [vmem:[%s1 + $0x4c] sm:$0xf]
  %v34 = vld [vmem:[%s1 + $0x50] sm:$0xf]
  %v35 = vld [vmem:[%s1 + $0x54] sm:$0xf]
  %v36 = vld [vmem:[%s1 + $0x58] sm:$0xf]
  %v37 = vld [vmem:[%s1 + $0x5c] sm:$0xf]
  %v38 = vld [vmem:[%s1 + $0x60] sm:$0xf]
  %v41 = vunpack.c.l.b16 %v12
  %v42 = vunpack.c.h.b16 %v12
  %v43 = vunpack.c.l.b16 %v13
  %v44 = vunpack.c.h.b16 %v13
  %v45 = vpack.c.b16 %v43, %v41
  %v46 = vpack.c.b16 %v44, %v42
  %v73 = vunpack.c.l.b16 %v14
  %v74 = vunpack.c.l.b16 %v15
  %v75 = vunpack.c.l.b16 %v16
  %v76 = vunpack.c.l.b16 %v17
  %v77 = vunpack.c.l.b16 %v18
  %v78 = vunpack.c.l.b16 %v19
  %v79 = vunpack.c.l.b16 %v20
  %v80 = vunpack.c.l.b16 %v21
  %v81 = vunpack.c.l.b16 %v22
  %v82 = vunpack.c.l.b16 %v23
  %v83 = vunpack.c.l.b16 %v24
  %v84 = vunpack.c.l.b16 %v25
  %v85 = vunpack.c.l.b16 %v26
  %v86 = vunpack.c.l.b16 %v27
  %v87 = vunpack.c.l.b16 %v28
  %v88 = vunpack.c.l.b16 %v29
  %v89 = vunpack.c.l.b16 %v30
  %v90 = vunpack.c.l.b16 %v31
  %v91 = vunpack.c.l.b16 %v32
  %v92 = vunpack.c.l.b16 %v33
  %v93 = vunpack.c.l.b16 %v34
  %v94 = vunpack.c.l.b16 %v35
  %v95 = vunpack.c.l.b16 %v36
  %v96 = vunpack.c.l.b16 %v37
  %v97 = vunpack.c.l.b16 %v38
  %v98 = vpack.c.b16 %v74, %v73
  %v99 = vpack.c.b16 %v76, %v75
  %v100 = vpack.c.b16 %v78, %v77
  %v101 = vpack.c.b16 %v80, %v79
  %v102 = vpack.c.b16 %v82, %v81
  %v103 = vpack.c.b16 %v84, %v83
  %v104 = vpack.c.b16 %v86, %v85
  %v105 = vpack.c.b16 %v88, %v87
  %v106 = vpack.c.b16 %v90, %v89
  %v107 = vpack.c.b16 %v92, %v91
  %v108 = vpack.c.b16 %v94, %v93
  %v109 = vpack.c.b16 %v96, %v95
  %v110 = vpack.c.b16 %v97, %v97
  %vm123 = vcmask 588800
  %v125 = vsel %vm123, %v46, 0
  %vm127 = vcmask 1043456
  %v129 = vsel %vm127, %v110, 0
  %131 = vmatprep.subr.bf16.mxu0 0
  %132 = vmatpush1.bf16.msra.mxu0 %v98
  %133 = vmatprep.subr.bf16.mxu0 0
  %134 = vmatpush1.bf16.msra.mxu0 %v99
  %135 = vmatprep.subr.bf16.mxu0 0
  %136 = vmatpush1.bf16.msra.mxu0 %v100
  %137 = vmatprep.subr.bf16.mxu0 0
  %138 = vmatpush1.bf16.msra.mxu0 %v101
  %139 = vmatprep.subr.bf16.mxu0 0
  %140 = vmatpush1.bf16.msra.mxu0 %v102
  %141 = vmatprep.subr.bf16.mxu0 0
  %142 = vmatpush1.bf16.msra.mxu0 %v103
  %143 = vmatprep.subr.bf16.mxu0 0
  %144 = vmatpush1.bf16.msra.mxu0 %v104
  %145 = vmatprep.subr.bf16.mxu0 0
  %146 = vmatpush1.bf16.msra.mxu0 %v105
  %147 = vmatprep.subr.bf16.mxu0 0
  %148 = vmatpush1.bf16.msra.mxu0 %v106
  %149 = vmatprep.subr.bf16.mxu0 0
  %150 = vmatpush1.bf16.msra.mxu0 %v107
  %151 = vmatprep.subr.bf16.mxu0 0
  %152 = vmatpush1.bf16.msra.mxu0 %v108
  %153 = vmatprep.subr.bf16.mxu0 0
  %154 = vmatpush1.bf16.msra.mxu0 %v109
  %155 = vmatprep.subr.bf16.mxu0 0
  %156 = vmatpush1.bf16.msra.mxu0 %v129
  %157 = vmatprep.subr.bf16.mxu0 0
  %158 = vmatpush1.bf16.msra.mxu0 0
  %159 = vmatprep.subr.bf16.mxu0 0
  %160 = vmatpush1.bf16.msra.mxu0 0
  %161 = vmatprep.subr.bf16.mxu0 0
  %162 = vmatpush1.bf16.msra.mxu0 0
  %163 = vmatprep.mubr.bf16.mxu0 %v125
  %164 = vmatmul.mubr.bf16.gmra.mrb[0].mxu0 %v45
  %v165 = vpop.f32.mrb[0].mxu0
  %v166 = vadd.f32 0.0, %v165
  %v167 = vpop.f32.mrb[0].mxu0
  %v168 = vpop.f32.mrb[0].mxu0
  %v169 = vadd.f32 0.0, %v168
  %v170 = vpop.f32.mrb[0].mxu0
  %171 = vdwg.mxu0
  %vm172 = vcmp.ge.f32.partialorder %v166, 0.0
  %vm173 = vcmp.ge.f32.partialorder %v169, 0.0
  %v174 = vmul.f32 %v166, 0.01
  %v175 = vmul.f32 %v169, 0.01
  %v176 = vsel %vm172, %v166, %v174
  %v177 = vsel %vm173, %v169, %v175
  %v178 = vpack.c.bf16 %v177, %v176
  %v180 = vunpack.c.l.b16 %v178
  %v181 = vunpack.c.h.b16 %v178
  %v182 = vpack.c.b16 %v180, %v180
  %v183 = vpack.c.b16 %v181, %v181
  %vm186 = vcmask 257024
  %187 = vst.msk [vmem:[%s2] sm:$0xf] %vm186, %v182
  %188 = vst.msk [vmem:[%s2 + $0x4] sm:$0xf] %vm186, %v183
  // Predicated region
  $region10: #{cae5_forward.37} parent=0 // pred_check
    _
  $region11: #{cae5_forward.37} parent=0 // pred_check_branch
    %190 = sbr.rel (0) target = $region13
  $region12: #{cae5_forward.37} parent=0 // pred_region
    _
  $region13: #{cae5_forward.37} parent=0 // pred_fallthru
    _
  // Predicated region
  $region14: #{cae5_forward.37} parent=0 // pred_check
    _
  $region15: #{cae5_forward.37} parent=0 // pred_check_branch
    %192 = sbr.rel (0) target = $region17
  $region16: #{cae5_forward.37} parent=0 // pred_region
    _
  $region17: #{cae5_forward.37} parent=0 // pred_fallthru
    _

// kernel: cae5_forward.39
$region0: #{cae5_forward.39}
  #allocation0 [shape = 'u32[]', space=smem, size = 0x4, offset = 0x4, fixed_abs, tag = 'smem constant byte address 0x4 - core index']
  #allocation1 [shape = 'u32[144,128]{1,0:T(1,128)}', space=vmem, size = 0x12000, scoped, tag = 'internal scratch']
  %s0 = inlined_call_operand.vmem [shape: bf16[16,136], index: 0, kind: input, shape index: {}]
  %s1 = inlined_call_operand.vmem [shape: bf16[136,32], index: 1, kind: input, shape index: {}]
  %s2 = inlined_call_operand.vmem [shape: bf16[16,32], index: 2, kind: output, shape index: {}]
  %s3 = sld [smem:[#allocation0]]
  $region18: #{cae5_forward.39} parent=0
    _
  %s5 = ssub.s32 1, %s3
  %s6 = scalar_select 0, %s5, %s3
  // Predicated region
  $region2: #{cae5_forward.39} parent=0 // pred_check
    _
  $region3: #{cae5_forward.39} parent=0 // pred_check_branch
    %8 = sbr.rel (0) target = $region5
  $region4: #{cae5_forward.39} parent=0 // pred_region
    _
  $region5: #{cae5_forward.39} parent=0 // pred_fallthru
    _
  // Predicated region
  $region6: #{cae5_forward.39} parent=0 // pred_check
    _
  $region7: #{cae5_forward.39} parent=0 // pred_check_branch
    %10 = sbr.rel (0) target = $region9
  $region8: #{cae5_forward.39} parent=0 // pred_region
    _
  $region9: #{cae5_forward.39} parent=0 // pred_fallthru
    _
  %v12 = vld [vmem:[%s0] sm:$0xff]
  %v13 = vld [vmem:[%s0 + $0x8] sm:$0xff]
  %v14 = vld [vmem:[%s1] sm:$0xf]
  %v15 = vld [vmem:[%s1 + $0x4] sm:$0xf]
  %v16 = vld [vmem:[%s1 + $0x8] sm:$0xf]
  %v17 = vld [vmem:[%s1 + $0xc] sm:$0xf]
  %v18 = vld [vmem:[%s1 + $0x10] sm:$0xf]
  %v19 = vld [vmem:[%s1 + $0x14] sm:$0xf]
  %v20 = vld [vmem:[%s1 + $0x18] sm:$0xf]
  %v21 = vld [vmem:[%s1 + $0x1c] sm:$0xf]
  %v22 = vld [vmem:[%s1 + $0x20] sm:$0xf]
  %v23 = vld [vmem:[%s1 + $0x24] sm:$0xf]
  %v24 = vld [vmem:[%s1 + $0x28] sm:$0xf]
  %v25 = vld [vmem:[%s1 + $0x2c] sm:$0xf]
  %v26 = vld [vmem:[%s1 + $0x30] sm:$0xf]
  %v27 = vld [vmem:[%s1 + $0x34] sm:$0xf]
  %v28 = vld [vmem:[%s1 + $0x38] sm:$0xf]
  %v29 = vld [vmem:[%s1 + $0x3c] sm:$0xf]
  %v30 = vld [vmem:[%s1 + $0x40] sm:$0xf]
  %v33 = vunpack.c.l.b16 %v12
  %v34 = vunpack.c.h.b16 %v12
  %v35 = vunpack.c.l.b16 %v13
  %v36 = vunpack.c.h.b16 %v13
  %v37 = vpack.c.b16 %v35, %v33
  %v38 = vpack.c.b16 %v36, %v34
  %v57 = vunpack.c.l.b16 %v14
  %v58 = vunpack.c.l.b16 %v15
  %v59 = vunpack.c.l.b16 %v16
  %v60 = vunpack.c.l.b16 %v17
  %v61 = vunpack.c.l.b16 %v18
  %v62 = vunpack.c.l.b16 %v19
  %v63 = vunpack.c.l.b16 %v20
  %v64 = vunpack.c.l.b16 %v21
  %v65 = vunpack.c.l.b16 %v22
  %v66 = vunpack.c.l.b16 %v23
  %v67 = vunpack.c.l.b16 %v24
  %v68 = vunpack.c.l.b16 %v25
  %v69 = vunpack.c.l.b16 %v26
  %v70 = vunpack.c.l.b16 %v27
  %v71 = vunpack.c.l.b16 %v28
  %v72 = vunpack.c.l.b16 %v29
  %v73 = vunpack.c.l.b16 %v30
  %v74 = vpack.c.b16 %v58, %v57
  %v75 = vpack.c.b16 %v60, %v59
  %v76 = vpack.c.b16 %v62, %v61
  %v77 = vpack.c.b16 %v64, %v63
  %v78 = vpack.c.b16 %v66, %v65
  %v79 = vpack.c.b16 %v68, %v67
  %v80 = vpack.c.b16 %v70, %v69
  %v81 = vpack.c.b16 %v72, %v71
  %v82 = vpack.c.b16 %v73, %v73
  %vm91 = vcmask 64512
  %v93 = vsel %vm91, %v38, 0
  %vm95 = vcmask 1043456
  %v97 = vsel %vm95, %v82, 0
  %99 = vmatprep.subr.bf16.mxu0 0
  %100 = vmatpush1.bf16.msra.mxu0 %v74
  %101 = vmatprep.subr.bf16.mxu0 0
  %102 = vmatpush1.bf16.msra.mxu0 %v75
  %103 = vmatprep.subr.bf16.mxu0 0
  %104 = vmatpush1.bf16.msra.mxu0 %v76
  %105 = vmatprep.subr.bf16.mxu0 0
  %106 = vmatpush1.bf16.msra.mxu0 %v77
  %107 = vmatprep.subr.bf16.mxu0 0
  %108 = vmatpush1.bf16.msra.mxu0 %v78
  %109 = vmatprep.subr.bf16.mxu0 0
  %110 = vmatpush1.bf16.msra.mxu0 %v79
  %111 = vmatprep.subr.bf16.mxu0 0
  %112 = vmatpush1.bf16.msra.mxu0 %v80
  %113 = vmatprep.subr.bf16.mxu0 0
  %114 = vmatpush1.bf16.msra.mxu0 %v81
  %115 = vmatprep.subr.bf16.mxu0 0
  %116 = vmatpush1.bf16.msra.mxu0 %v97
  %117 = vmatprep.subr.bf16.mxu0 0
  %118 = vmatpush1.bf16.msra.mxu0 0
  %119 = vmatprep.subr.bf16.mxu0 0
  %120 = vmatpush1.bf16.msra.mxu0 0
  %121 = vmatprep.subr.bf16.mxu0 0
  %122 = vmatpush1.bf16.msra.mxu0 0
  %123 = vmatprep.subr.bf16.mxu0 0
  %124 = vmatpush1.bf16.msra.mxu0 0
  %125 = vmatprep.subr.bf16.mxu0 0
  %126 = vmatpush1.bf16.msra.mxu0 0
  %127 = vmatprep.subr.bf16.mxu0 0
  %128 = vmatpush1.bf16.msra.mxu0 0
  %129 = vmatprep.subr.bf16.mxu0 0
  %130 = vmatpush1.bf16.msra.mxu0 0
  %131 = vmatprep.mubr.bf16.mxu0 %v93
  %132 = vmatmul.mubr.bf16.gmra.mrb[0].mxu0 %v37
  %v133 = vpop.f32.mrb[0].mxu0
  %v134 = vadd.f32 0.0, %v133
  %v135 = vpop.f32.mrb[0].mxu0
  %v136 = vpop.f32.mrb[0].mxu0
  %v137 = vadd.f32 0.0, %v136
  %v138 = vpop.f32.mrb[0].mxu0
  %139 = vdwg.mxu0
  %vm140 = vcmp.ge.f32.partialorder %v134, 0.0
  %vm141 = vcmp.ge.f32.partialorder %v137, 0.0
  %v142 = vmul.f32 %v134, 0.01
  %v143 = vmul.f32 %v137, 0.01
  %v144 = vsel %vm140, %v134, %v142
  %v145 = vsel %vm141, %v137, %v143
  %v146 = vpack.c.bf16 %v145, %v144
  %v148 = vunpack.c.l.b16 %v146
  %v149 = vunpack.c.h.b16 %v146
  %v150 = vpack.c.b16 %v148, %v148
  %v151 = vpack.c.b16 %v149, %v149
  %vm154 = vcmask 257024
  %155 = vst.msk [vmem:[%s2] sm:$0xf] %vm154, %v150
  %156 = vst.msk [vmem:[%s2 + $0x4] sm:$0xf] %vm154, %v151
  // Predicated region
  $region10: #{cae5_forward.39} parent=0 // pred_check
    _
  $region11: #{cae5_forward.39} parent=0 // pred_check_branch
    %158 = sbr.rel (0) target = $region13
  $region12: #{cae5_forward.39} parent=0 // pred_region
    _
  $region13: #{cae5_forward.39} parent=0 // pred_fallthru
    _
  // Predicated region
  $region14: #{cae5_forward.39} parent=0 // pred_check
    _
  $region15: #{cae5_forward.39} parent=0 // pred_check_branch
    %160 = sbr.rel (0) target = $region17
  $region16: #{cae5_forward.39} parent=0 // pred_region
    _
  $region17: #{cae5_forward.39} parent=0 // pred_fallthru
    _

// kernel: cae5_forward.40
$region0: #{cae5_forward.40}
  #allocation0 [shape = 'u32[]', space=smem, size = 0x4, offset = 0x4, fixed_abs, tag = 'smem constant byte address 0x4 - core index']
  #allocation1 [shape = 'u32[144,128]{1,0:T(1,128)}', space=vmem, size = 0x12000, scoped, tag = 'internal scratch']
  %s0 = inlined_call_operand.vmem [shape: bf16[8,152], index: 0, kind: input, shape index: {}]
  %s1 = inlined_call_operand.vmem [shape: bf16[152,128], index: 1, kind: input, shape index: {}]
  %s2 = inlined_call_operand.vmem [shape: bf16[8,128], index: 2, kind: output, shape index: {}]
  %s3 = sld [smem:[#allocation0]]
  $region18: #{cae5_forward.40} parent=0
    _
  %s5 = ssub.s32 1, %s3
  %s6 = scalar_select 0, %s5, %s3
  // Predicated region
  $region2: #{cae5_forward.40} parent=0 // pred_check
    _
  $region3: #{cae5_forward.40} parent=0 // pred_check_branch
    %8 = sbr.rel (0) target = $region5
  $region4: #{cae5_forward.40} parent=0 // pred_region
    _
  $region5: #{cae5_forward.40} parent=0 // pred_fallthru
    _
  // Predicated region
  $region6: #{cae5_forward.40} parent=0 // pred_check
    _
  $region7: #{cae5_forward.40} parent=0 // pred_check_branch
    %10 = sbr.rel (0) target = $region9
  $region8: #{cae5_forward.40} parent=0 // pred_region
    _
  $region9: #{cae5_forward.40} parent=0 // pred_fallthru
    _
  %v12 = vld [vmem:[%s0] sm:$0xff]
  %v13 = vld [vmem:[%s1] sm:$0xf]
  %v14 = vld [vmem:[%s1 + $0x4] sm:$0xf]
  %v15 = vld [vmem:[%s1 + $0x8] sm:$0xf]
  %v16 = vld [vmem:[%s1 + $0xc] sm:$0xf]
  %v17 = vld [vmem:[%s1 + $0x10] sm:$0xf]
  %v18 = vld [vmem:[%s1 + $0x14] sm:$0xf]
  %v19 = vld [vmem:[%s1 + $0x18] sm:$0xf]
  %v20 = vld [vmem:[%s1 + $0x1c] sm:$0xf]
  %v21 = vld [vmem:[%s1 + $0x20] sm:$0xf]
  %v22 = vld [vmem:[%s1 + $0x24] sm:$0xf]
  %v23 = vld [vmem:[%s1 + $0x28] sm:$0xf]
  %v24 = vld [vmem:[%s1 + $0x2c] sm:$0xf]
  %v25 = vld [vmem:[%s1 + $0x30] sm:$0xf]
  %v26 = vld [vmem:[%s1 + $0x34] sm:$0xf]
  %v27 = vld [vmem:[%s1 + $0x38] sm:$0xf]
  %v28 = vld [vmem:[%s1 + $0x3c] sm:$0xf]
  %v29 = vld [vmem:[%s1 + $0x40] sm:$0xf]
  %v30 = vld [vmem:[%s1 + $0x44] sm:$0xf]
  %v31 = vld [vmem:[%s1 + $0x48] sm:$0xf]
  %v33 = vunpack.c.l.b16 %v12
  %v34 = vunpack.c.h.b16 %v12
  %v35 = vpack.c.b16 %v33, %v33
  %v36 = vpack.c.b16 %v34, %v34
  %v57 = vunpack.c.l.b16 %v13
  %v58 = vunpack.c.l.b16 %v14
  %v59 = vunpack.c.l.b16 %v15
  %v60 = vunpack.c.l.b16 %v16
  %v61 = vunpack.c.l.b16 %v17
  %v62 = vunpack.c.l.b16 %v18
  %v63 = vunpack.c.l.b16 %v19
  %v64 = vunpack.c.l.b16 %v20
  %v65 = vunpack.c.l.b16 %v21
  %v66 = vunpack.c.l.b16 %v22
  %v67 = vunpack.c.l.b16 %v23
  %v68 = vunpack.c.l.b16 %v24
  %v69 = vunpack.c.l.b16 %v25
  %v70 = vunpack.c.l.b16 %v26
  %v71 = vunpack.c.l.b16 %v27
  %v72 = vunpack.c.l.b16 %v28
  %v73 = vunpack.c.l.b16 %v29
  %v74 = vunpack.c.l.b16 %v30
  %v75 = vunpack.c.l.b16 %v31
  %v76 = vpack.c.b16 %v58, %v57
  %v77 = vpack.c.b16 %v60, %v59
  %v78 = vpack.c.b16 %v62, %v61
  %v79 = vpack.c.b16 %v64, %v63
  %v80 = vpack.c.b16 %v66, %v65
  %v81 = vpack.c.b16 %v68, %v67
  %v82 = vpack.c.b16 %v70, %v69
  %v83 = vpack.c.b16 %v72, %v71
  %v84 = vpack.c.b16 %v74, %v73
  %v85 = vpack.c.b16 %v75, %v75
  %vm95 = vcmask 195584
  %v97 = vsel %vm95, %v36, 0
  %vm99 = vcmask 1043456
  %v101 = vsel %vm99, %v85, 0
  %103 = vmatprep.subr.bf16.mxu0 0
  %104 = vmatpush1.bf16.msra.mxu0 %v76
  %105 = vmatprep.subr.bf16.mxu0 0
  %106 = vmatpush1.bf16.msra.mxu0 %v77
  %107 = vmatprep.subr.bf16.mxu0 0
  %108 = vmatpush1.bf16.msra.mxu0 %v78
  %109 = vmatprep.subr.bf16.mxu0 0
  %110 = vmatpush1.bf16.msra.mxu0 %v79
  %111 = vmatprep.subr.bf16.mxu0 0
  %112 = vmatpush1.bf16.msra.mxu0 %v80
  %113 = vmatprep.subr.bf16.mxu0 0
  %114 = vmatpush1.bf16.msra.mxu0 %v81
  %115 = vmatprep.subr.bf16.mxu0 0
  %116 = vmatpush1.bf16.msra.mxu0 %v82
  %117 = vmatprep.subr.bf16.mxu0 0
  %118 = vmatpush1.bf16.msra.mxu0 %v83
  %119 = vmatprep.subr.bf16.mxu0 0
  %120 = vmatpush1.bf16.msra.mxu0 %v84
  %121 = vmatprep.subr.bf16.mxu0 0
  %122 = vmatpush1.bf16.msra.mxu0 %v101
  %123 = vmatprep.subr.bf16.mxu0 0
  %124 = vmatpush1.bf16.msra.mxu0 0
  %125 = vmatprep.subr.bf16.mxu0 0
  %126 = vmatpush1.bf16.msra.mxu0 0
  %127 = vmatprep.subr.bf16.mxu0 0
  %128 = vmatpush1.bf16.msra.mxu0 0
  %129 = vmatprep.subr.bf16.mxu0 0
  %130 = vmatpush1.bf16.msra.mxu0 0
  %131 = vmatprep.subr.bf16.mxu0 0
  %132 = vmatpush1.bf16.msra.mxu0 0
  %133 = vmatprep.subr.bf16.mxu0 0
  %134 = vmatpush1.bf16.msra.mxu0 0
  %135 = vmatprep.mubr.bf16.mxu0 %v97
  %136 = vmatmul.mubr.bf16.gmra.mrb[0].mxu0 %v35
  %v137 = vpop.f32.mrb[0].mxu0
  %v138 = vadd.f32 0.0, %v137
  %v139 = vpop.f32.mrb[0].mxu0
  %v140 = vpop.f32.mrb[0].mxu0
  %v141 = vpop.f32.mrb[0].mxu0
  %142 = vdwg.mxu0
  %vm143 = vcmp.ge.f32.partialorder %v138, 0.0
  %v144 = vmul.f32 %v138, 0.01
  %v145 = vsel %vm143, %v138, %v144
  %v146 = vpack.c.bf16 %v145, %v145
  %147 = vst [vmem:[%s2] sm:$0xf] %v146
  // Predicated region
  $region10: #{cae5_forward.40} parent=0 // pred_check
    _
  $region11: #{cae5_forward.40} parent=0 // pred_check_branch
    %149 = sbr.rel (0) target = $region13
  $region12: #{cae5_forward.40} parent=0 // pred_region
    _
  $region13: #{cae5_forward.40} parent=0 // pred_fallthru
    _
  // Predicated region
  $region14: #{cae5_forward.40} parent=0 // pred_check
    _
  $region15: #{cae5_forward.40} parent=0 // pred_check_branch
    %151 = sbr.rel (0) target = $region17
  $region16: #{cae5_forward.40} parent=0 // pred_region
    _
  $region17: #{cae5_forward.40} parent=0 // pred_fallthru
    _

// kernel: cae5_forward.41
$region0: #{cae5_forward.41}
  #allocation0 [shape = 'u32[]', space=smem, size = 0x4, offset = 0x4, fixed_abs, tag = 'smem constant byte address 0x4 - core index']
  #allocation1 [shape = 'u32[144,128]{1,0:T(1,128)}', space=vmem, size = 0x12000, scoped, tag = 'internal scratch']
  %s0 = inlined_call_operand.vmem [shape: bf16[8,104], index: 0, kind: input, shape index: {}]
  %s1 = inlined_call_operand.vmem [shape: bf16[104,128], index: 1, kind: input, shape index: {}]
  %s2 = inlined_call_operand.vmem [shape: bf16[8,128], index: 2, kind: output, shape index: {}]
  %s3 = sld [smem:[#allocation0]]
  $region18: #{cae5_forward.41} parent=0
    _
  %s5 = ssub.s32 1, %s3
  %s6 = scalar_select 0, %s5, %s3
  // Predicated region
  $region2: #{cae5_forward.41} parent=0 // pred_check
    _
  $region3: #{cae5_forward.41} parent=0 // pred_check_branch
    %8 = sbr.rel (0) target = $region5
  $region4: #{cae5_forward.41} parent=0 // pred_region
    _
  $region5: #{cae5_forward.41} parent=0 // pred_fallthru
    _
  // Predicated region
  $region6: #{cae5_forward.41} parent=0 // pred_check
    _
  $region7: #{cae5_forward.41} parent=0 // pred_check_branch
    %10 = sbr.rel (0) target = $region9
  $region8: #{cae5_forward.41} parent=0 // pred_region
    _
  $region9: #{cae5_forward.41} parent=0 // pred_fallthru
    _
  %v12 = vld [vmem:[%s0] sm:$0xf]
  %v13 = vld [vmem:[%s1] sm:$0xf]
  %v14 = vld [vmem:[%s1 + $0x4] sm:$0xf]
  %v15 = vld [vmem:[%s1 + $0x8] sm:$0xf]
  %v16 = vld [vmem:[%s1 + $0xc] sm:$0xf]
  %v17 = vld [vmem:[%s1 + $0x10] sm:$0xf]
  %v18 = vld [vmem:[%s1 + $0x14] sm:$0xf]
  %v19 = vld [vmem:[%s1 + $0x18] sm:$0xf]
  %v20 = vld [vmem:[%s1 + $0x1c] sm:$0xf]
  %v21 = vld [vmem:[%s1 + $0x20] sm:$0xf]
  %v22 = vld [vmem:[%s1 + $0x24] sm:$0xf]
  %v23 = vld [vmem:[%s1 + $0x28] sm:$0xf]
  %v24 = vld [vmem:[%s1 + $0x2c] sm:$0xf]
  %v25 = vld [vmem:[%s1 + $0x30] sm:$0xf]
  %v39 = vunpack.c.l.b16 %v13
  %v40 = vunpack.c.l.b16 %v14
  %v41 = vunpack.c.l.b16 %v15
  %v42 = vunpack.c.l.b16 %v16
  %v43 = vunpack.c.l.b16 %v17
  %v44 = vunpack.c.l.b16 %v18
  %v45 = vunpack.c.l.b16 %v19
  %v46 = vunpack.c.l.b16 %v20
  %v47 = vunpack.c.l.b16 %v21
  %v48 = vunpack.c.l.b16 %v22
  %v49 = vunpack.c.l.b16 %v23
  %v50 = vunpack.c.l.b16 %v24
  %v51 = vunpack.c.l.b16 %v25
  %v52 = vpack.c.b16 %v40, %v39
  %v53 = vpack.c.b16 %v42, %v41
  %v54 = vpack.c.b16 %v44, %v43
  %v55 = vpack.c.b16 %v46, %v45
  %v56 = vpack.c.b16 %v48, %v47
  %v57 = vpack.c.b16 %v50, %v49
  %v58 = vpack.c.b16 %v51, %v51
  %vm65 = vcmask 850944
  %v67 = vsel %vm65, %v12, 0
  %vm69 = vcmask 1043456
  %v71 = vsel %vm69, %v58, 0
  %73 = vmatprep.subr.bf16.mxu0 0
  %74 = vmatpush1.bf16.msra.mxu0 %v52
  %75 = vmatprep.subr.bf16.mxu0 0
  %76 = vmatpush1.bf16.msra.mxu0 %v53
  %77 = vmatprep.subr.bf16.mxu0 0
  %78 = vmatpush1.bf16.msra.mxu0 %v54
  %79 = vmatprep.subr.bf16.mxu0 0
  %80 = vmatpush1.bf16.msra.mxu0 %v55
  %81 = vmatprep.subr.bf16.mxu0 0
  %82 = vmatpush1.bf16.msra.mxu0 %v56
  %83 = vmatprep.subr.bf16.mxu0 0
  %84 = vmatpush1.bf16.msra.mxu0 %v57
  %85 = vmatprep.subr.bf16.mxu0 0
  %86 = vmatpush1.bf16.msra.mxu0 %v71
  %87 = vmatprep.subr.bf16.mxu0 0
  %88 = vmatpush1.bf16.msra.mxu0 0
  %89 = vmatprep.subr.bf16.mxu0 0
  %90 = vmatpush1.bf16.msra.mxu0 0
  %91 = vmatprep.subr.bf16.mxu0 0
  %92 = vmatpush1.bf16.msra.mxu0 0
  %93 = vmatprep.subr.bf16.mxu0 0
  %94 = vmatpush1.bf16.msra.mxu0 0
  %95 = vmatprep.subr.bf16.mxu0 0
  %96 = vmatpush1.bf16.msra.mxu0 0
  %97 = vmatprep.subr.bf16.mxu0 0
  %98 = vmatpush1.bf16.msra.mxu0 0
  %99 = vmatprep.subr.bf16.mxu0 0
  %100 = vmatpush1.bf16.msra.mxu0 0
  %101 = vmatprep.subr.bf16.mxu0 0
  %102 = vmatpush1.bf16.msra.mxu0 0
  %103 = vmatprep.subr.bf16.mxu0 0
  %104 = vmatpush1.bf16.msra.mxu0 0
  %105 = vmatprep.mubr.bf16.mxu0 0
  %106 = vmatmul.mubr.bf16.gmra.mrb[0].mxu0 %v67
  %v107 = vpop.f32.mrb[0].mxu0
  %v108 = vadd.f32 0.0, %v107
  %v109 = vpop.f32.mrb[0].mxu0
  %v110 = vpop.f32.mrb[0].mxu0
  %v111 = vpop.f32.mrb[0].mxu0
  %112 = vdwg.mxu0
  %vm113 = vcmp.ge.f32.partialorder %v108, 0.0
  %v114 = vmul.f32 %v108, 0.01
  %v115 = vsel %vm113, %v108, %v114
  %v116 = vpack.c.bf16 %v115, %v115
  %117 = vst [vmem:[%s2] sm:$0xf] %v116
  // Predicated region
  $region10: #{cae5_forward.41} parent=0 // pred_check
    _
  $region11: #{cae5_forward.41} parent=0 // pred_check_branch
    %119 = sbr.rel (0) target = $region13
  $region12: #{cae5_forward.41} parent=0 // pred_region
    _
  $region13: #{cae5_forward.41} parent=0 // pred_fallthru
    _
  // Predicated region
  $region14: #{cae5_forward.41} parent=0 // pred_check
    _
  $region15: #{cae5_forward.41} parent=0 // pred_check_branch
    %121 = sbr.rel (0) target = $region17
  $region16: #{cae5_forward.41} parent=0 // pred_region
    _
  $region17: #{cae5_forward.41} parent=0 // pred_fallthru
    _

// kernel: cae5_forward.43
$region0: #{cae5_forward.43}
  #allocation0 [shape = 'u32[]', space=smem, size = 0x4, offset = 0x4, fixed_abs, tag = 'smem constant byte address 0x4 - core index']
  #allocation1 [shape = 'u32[144,128]{1,0:T(1,128)}', space=vmem, size = 0x12000, scoped, tag = 'internal scratch']
  %s0 = inlined_call_operand.vmem [shape: bf16[8,72], index: 0, kind: input, shape index: {}]
  %s1 = inlined_call_operand.vmem [shape: bf16[72,128], index: 1, kind: input, shape index: {}]
  %s2 = inlined_call_operand.vmem [shape: bf16[8,128], index: 2, kind: output, shape index: {}]
  %s3 = sld [smem:[#allocation0]]
  $region18: #{cae5_forward.43} parent=0
    _
  %s5 = ssub.s32 1, %s3
  %s6 = scalar_select 0, %s5, %s3
  // Predicated region
  $region2: #{cae5_forward.43} parent=0 // pred_check
    _
  $region3: #{cae5_forward.43} parent=0 // pred_check_branch
    %8 = sbr.rel (0) target = $region5
  $region4: #{cae5_forward.43} parent=0 // pred_region
    _
  $region5: #{cae5_forward.43} parent=0 // pred_fallthru
    _
  // Predicated region
  $region6: #{cae5_forward.43} parent=0 // pred_check
    _
  $region7: #{cae5_forward.43} parent=0 // pred_check_branch
    %10 = sbr.rel (0) target = $region9
  $region8: #{cae5_forward.43} parent=0 // pred_region
    _
  $region9: #{cae5_forward.43} parent=0 // pred_fallthru
    _
  %v12 = vld [vmem:[%s0] sm:$0xf]
  %v13 = vld [vmem:[%s1] sm:$0xf]
  %v14 = vld [vmem:[%s1 + $0x4] sm:$0xf]
  %v15 = vld [vmem:[%s1 + $0x8] sm:$0xf]
  %v16 = vld [vmem:[%s1 + $0xc] sm:$0xf]
  %v17 = vld [vmem:[%s1 + $0x10] sm:$0xf]
  %v18 = vld [vmem:[%s1 + $0x14] sm:$0xf]
  %v19 = vld [vmem:[%s1 + $0x18] sm:$0xf]
  %v20 = vld [vmem:[%s1 + $0x1c] sm:$0xf]
  %v21 = vld [vmem:[%s1 + $0x20] sm:$0xf]
  %v31 = vunpack.c.l.b16 %v13
  %v32 = vunpack.c.l.b16 %v14
  %v33 = vunpack.c.l.b16 %v15
  %v34 = vunpack.c.l.b16 %v16
  %v35 = vunpack.c.l.b16 %v17
  %v36 = vunpack.c.l.b16 %v18
  %v37 = vunpack.c.l.b16 %v19
  %v38 = vunpack.c.l.b16 %v20
  %v39 = vunpack.c.l.b16 %v21
  %v40 = vpack.c.b16 %v32, %v31
  %v41 = vpack.c.b16 %v34, %v33
  %v42 = vpack.c.b16 %v36, %v35
  %v43 = vpack.c.b16 %v38, %v37
  %v44 = vpack.c.b16 %v39, %v39
  %vm49 = vcmask 588800
  %v51 = vsel %vm49, %v12, 0
  %vm53 = vcmask 1043456
  %v55 = vsel %vm53, %v44, 0
  %57 = vmatprep.subr.bf16.mxu0 0
  %58 = vmatpush1.bf16.msra.mxu0 %v40
  %59 = vmatprep.subr.bf16.mxu0 0
  %60 = vmatpush1.bf16.msra.mxu0 %v41
  %61 = vmatprep.subr.bf16.mxu0 0
  %62 = vmatpush1.bf16.msra.mxu0 %v42
  %63 = vmatprep.subr.bf16.mxu0 0
  %64 = vmatpush1.bf16.msra.mxu0 %v43
  %65 = vmatprep.subr.bf16.mxu0 0
  %66 = vmatpush1.bf16.msra.mxu0 %v55
  %67 = vmatprep.subr.bf16.mxu0 0
  %68 = vmatpush1.bf16.msra.mxu0 0
  %69 = vmatprep.subr.bf16.mxu0 0
  %70 = vmatpush1.bf16.msra.mxu0 0
  %71 = vmatprep.subr.bf16.mxu0 0
  %72 = vmatpush1.bf16.msra.mxu0 0
  %73 = vmatprep.subr.bf16.mxu0 0
  %74 = vmatpush1.bf16.msra.mxu0 0
  %75 = vmatprep.subr.bf16.mxu0 0
  %76 = vmatpush1.bf16.msra.mxu0 0
  %77 = vmatprep.subr.bf16.mxu0 0
  %78 = vmatpush1.bf16.msra.mxu0 0
  %79 = vmatprep.subr.bf16.mxu0 0
  %80 = vmatpush1.bf16.msra.mxu0 0
  %81 = vmatprep.subr.bf16.mxu0 0
  %82 = vmatpush1.bf16.msra.mxu0 0
  %83 = vmatprep.subr.bf16.mxu0 0
  %84 = vmatpush1.bf16.msra.mxu0 0
  %85 = vmatprep.subr.bf16.mxu0 0
  %86 = vmatpush1.bf16.msra.mxu0 0
  %87 = vmatprep.subr.bf16.mxu0 0
  %88 = vmatpush1.bf16.msra.mxu0 0
  %89 = vmatprep.mubr.bf16.mxu0 0
  %90 = vmatmul.mubr.bf16.gmra.mrb[0].mxu0 %v51
  %v91 = vpop.f32.mrb[0].mxu0
  %v92 = vadd.f32 0.0, %v91
  %v93 = vpop.f32.mrb[0].mxu0
  %v94 = vpop.f32.mrb[0].mxu0
  %v95 = vpop.f32.mrb[0].mxu0
  %96 = vdwg.mxu0
  %vm97 = vcmp.ge.f32.partialorder %v92, 0.0
  %v98 = vmul.f32 %v92, 0.01
  %v99 = vsel %vm97, %v92, %v98
  %v100 = vpack.c.bf16 %v99, %v99
  %101 = vst [vmem:[%s2] sm:$0xf] %v100
  // Predicated region
  $region10: #{cae5_forward.43} parent=0 // pred_check
    _
  $region11: #{cae5_forward.43} parent=0 // pred_check_branch
    %103 = sbr.rel (0) target = $region13
  $region12: #{cae5_forward.43} parent=0 // pred_region
    _
  $region13: #{cae5_forward.43} parent=0 // pred_fallthru
    _
  // Predicated region
  $region14: #{cae5_forward.43} parent=0 // pred_check
    _
  $region15: #{cae5_forward.43} parent=0 // pred_check_branch
    %105 = sbr.rel (0) target = $region17
  $region16: #{cae5_forward.43} parent=0 // pred_region
    _
  $region17: #{cae5_forward.43} parent=0 // pred_fallthru
    _

// kernel: cae5_forward.44
$region0: #{cae5_forward.44}
  #allocation0 [shape = 'u32[]', space=smem, size = 0x4, offset = 0x4, fixed_abs, tag = 'smem constant byte address 0x4 - core index']
  #allocation1 [shape = 'u32[144,128]{1,0:T(1,128)}', space=vmem, size = 0x12000, scoped, tag = 'internal scratch']
  %s0 = inlined_call_operand.vmem [shape: bf16[4,80], index: 0, kind: input, shape index: {}]
  %s1 = inlined_call_operand.vmem [shape: bf16[80,512], index: 1, kind: input, shape index: {}]
  %s2 = inlined_call_operand.vmem [shape: bf16[4,512], index: 2, kind: output, shape index: {}]
  %s3 = sld [smem:[#allocation0]]
  $region79: #{cae5_forward.44} parent=0
    _
  %s5 = ssub.s32 1, %s3
  %s6 = scalar_select 0, %s5, %s3
  $region1: #{cae5_forward.44} parent=0
    #allocation2 [shape = 'u8[81920]{0}', space=vmem, size = 0x14000, scoped, tag = 'input window, operand 1']
    loop: start=0, step=1, limit=4
    $region2: #{cae5_forward.44} parent=1 // loop_pre_header
      _
    $region3: #{cae5_forward.44} parent=1 // loop_header
      %s8 = sphi 0, %s12
      %p9 = scmp.ge.s32.totalorder %s8, 4
      %s16 = sphi 0, %s16
      %s18 = sphi 0, %s16
      %s19 = sphi 0, %s18
      %s33 = sphi 0, %s19
      %s39 = sphi 0, %s41
      %s42 = sphi 0, %s39
      %s43 = sphi 0, %s42
      %s59 = sphi 0, %s43
      %s65 = sphi 0, %s67
      %s68 = sphi 0, %s65
      %s69 = sphi 0, %s68
      %s85 = sphi 0, %s69
    $region4: #{cae5_forward.44} parent=1 // loop_header_branch
      %11 = sbr.rel (%p9) target = $region8
    $region5: #{cae5_forward.44} parent=1 // loop_body
      %s13 = ssub.s32 %s8, 1
      %s14 = ssub.s32 %s8, 2
      %s15 = sadd.s32 %s8, 1
      %s17 = sadd.s32 %s16, 1
      %p20 = scmp.eq.s32.totalorder %s8, 1
      %p21 = scmp.ne.s32.totalorder %s16, %s18
      %p22 = scmp.eq.s32.totalorder %s8, 0
      %p23 = por %p21, %p22
      %p24 = scmp.ne.s32.totalorder %s16, %s18
      %p25 = scmp.eq.s32.totalorder %s13, 1
      %p26 = por %p24, %p25
      %p27 = scmp.ne.s32.totalorder %s18, %s19
      %p28 = scmp.eq.s32.totalorder %s13, 0
      %p29 = por %p27, %p28
      %p30 = scmp.ne.s32.totalorder %s18, %s19
      %p31 = scmp.eq.s32.totalorder %s14, 1
      %p32 = por %p30, %p31
      %p34 = scmp.ne.s32.totalorder %s19, %s33
      %p35 = scmp.eq.s32.totalorder %s14, 0
      %p36 = por %p34, %p35
      %s37 = ssub.s32 %s8, %s15
      %p38 = scmp.eq.s32.totalorder %s37, 0
      %s40 = sadd.s32 %s39, 1
      %s41 = scalar_select %p38, %s39, %s40
      %p44 = pneg %p38
      %p45 = scmp.eq.s32.totalorder %s8, 1
      %p46 = por %p44, %p45
      %p47 = scmp.ne.s32.totalorder %s39, %s42
      %p48 = scmp.eq.s32.totalorder %s8, 0
      %p49 = por %p47, %p48
      %p50 = scmp.ne.s32.totalorder %s39, %s42
      %p51 = scmp.eq.s32.totalorder %s13, 1
      %p52 = por %p50, %p51
      %p53 = scmp.ne.s32.totalorder %s42, %s43
      %p54 = scmp.eq.s32.totalorder %s13, 0
      %p55 = por %p53, %p54
      %p56 = scmp.ne.s32.totalorder %s42, %s43
      %p57 = scmp.eq.s32.totalorder %s14, 1
      %p58 = por %p56, %p57
      %p60 = scmp.ne.s32.totalorder %s43, %s59
      %p61 = scmp.eq.s32.totalorder %s14, 0
      %p62 = por %p60, %p61
      %s63 = ssub.s32 %s8, %s15
      %p64 = scmp.eq.s32.totalorder %s63, 0
      %s66 = sadd.s32 %s65, 1
      %s67 = scalar_select %p64, %s65, %s66
      %p70 = pneg %p64
      %p71 = scmp.eq.s32.totalorder %s8, 1
      %p72 = por %p70, %p71
      %p73 = scmp.ne.s32.totalorder %s65, %s68
      %p74 = scmp.eq.s32.totalorder %s8, 0
      %p75 = por %p73, %p74
      %p76 = scmp.ne.s32.totalorder %s65, %s68
      %p77 = scmp.eq.s32.totalorder %s13, 1
      %p78 = por %p76, %p77
      %p79 = scmp.ne.s32.totalorder %s68, %s69
      %p80 = scmp.eq.s32.totalorder %s13, 0
      %p81 = por %p79, %p80
      %p82 = scmp.ne.s32.totalorder %s68, %s69
      %p83 = scmp.eq.s32.totalorder %s14, 1
      %p84 = por %p82, %p83
      %p86 = scmp.ne.s32.totalorder %s69, %s85
      %p87 = scmp.eq.s32.totalorder %s14, 0
      %p88 = por %p86, %p87
      %p89 = scmp.le.s32.totalorder 1, %s8
      %p90 = scmp.lt.s32.totalorder %s8, 3
      %p91 = pnand %p89, %p90
      %p92 = pneg %p91
      // Predicated region
      $region9: #{cae5_forward.44} parent=5 // pred_check
        _
      $region10: #{cae5_forward.44} parent=5 // pred_check_branch
        %94 = sbr.rel (%p91) target = $region12
      $region11: #{cae5_forward.44} parent=5 // pred_region
        %s95 = ssub.s32 %s8, 1
        // Predicated region
        $region13: #{cae5_forward.44} parent=11 // pred_check
          %p96 = pneg %p29
        $region14: #{cae5_forward.44} parent=11 // pred_check_branch
          %98 = sbr.rel (%p96) target = $region16
        $region15: #{cae5_forward.44} parent=11 // pred_region
          _
        $region16: #{cae5_forward.44} parent=11 // pred_fallthru
          _
      $region12: #{cae5_forward.44} parent=5 // pred_fallthru
        _
      %p99 = scmp.lt.s32.totalorder %s8, 2
      // Predicated region
      $region17: #{cae5_forward.44} parent=5 // pred_check
        %p100 = pneg %p99
      $region18: #{cae5_forward.44} parent=5 // pred_check_branch
        %102 = sbr.rel (%p100) target = $region20
      $region19: #{cae5_forward.44} parent=5 // pred_region
        // Predicated region
        $region21: #{cae5_forward.44} parent=19 // pred_check
          %p103 = pneg %p49
        $region22: #{cae5_forward.44} parent=19 // pred_check_branch
          %105 = sbr.rel (%p103) target = $region24
        $region23: #{cae5_forward.44} parent=19 // pred_region
          %s106 = sand.u32 %s39, 1
          %s107 = sand.u32 %s39, 1
          %s108 = smul.addr %s107, 80
          %s109 = scalar_lea.vmem [#allocation2], %s108
          %s110 = smul.u32 2, %s8
          %s111 = smul.addr %s110, 4
          %s112 = scalar_lea.vmem %s1, %s111
          // Predicated region
          $region25: #{cae5_forward.44} parent=23 // pred_check
            _
          $region26: #{cae5_forward.44} parent=23 // pred_check_branch
            %114 = sbr.rel (0) target = $region28
          $region27: #{cae5_forward.44} parent=23 // pred_region
            // Predicated region
            $region29: #{cae5_forward.44} parent=27 // pred_check
              _
            $region30: #{cae5_forward.44} parent=27 // pred_check_branch
              %116 = sbr.rel (0) target = $region32
            $region31: #{cae5_forward.44} parent=27 // pred_region
              // Predicated region
              $region44: #{cae5_forward.44} parent=31 // pred_check
                _
              $region45: #{cae5_forward.44} parent=31 // pred_check_branch
                %149 = sbr.rel (0) target = $region47
              $region46: #{cae5_forward.44} parent=31 // pred_region
                loop: start=0, step=1, limit=1
                $region48: #{cae5_forward.44} parent=46 // loop_pre_header
                  _
                $region49: #{cae5_forward.44} parent=46 // loop_header
                  %s151 = sphi 0, %s155
                  %p152 = scmp.ge.s32.totalorder %s151, 1
                  %s156 = sphi %s112, %s112
                  %s157 = sphi %s109, %s109
                $region50: #{cae5_forward.44} parent=46 // loop_header_branch
                  %154 = sbr.rel (%p152) target = $region54
                $region51: #{cae5_forward.44} parent=46 // loop_body
                  %v158 = vld [vmem:[%s156] sm:$0xff]
                  %159 = vst [vmem:[%s157] sm:$0xff] %v158
                  %v160 = vld [vmem:[%s156 + $0x10] sm:$0xff]
                  %161 = vst [vmem:[%s157 + $0x8] sm:$0xff] %v160
                  %v162 = vld [vmem:[%s156 + $0x20] sm:$0xff]
                  %163 = vst [vmem:[%s157 + $0x10] sm:$0xff] %v162
                  %v164 = vld [vmem:[%s156 + $0x30] sm:$0xff]
                  %165 = vst [vmem:[%s157 + $0x18] sm:$0xff] %v164
                  %v166 = vld [vmem:[%s156 + $0x40] sm:$0xff]
                  %167 = vst [vmem:[%s157 + $0x20] sm:$0xff] %v166
                  %v168 = vld [vmem:[%s156 + $0x50] sm:$0xff]
                  %169 = vst [vmem:[%s157 + $0x28] sm:$0xff] %v168
                  %v170 = vld [vmem:[%s156 + $0x60] sm:$0xff]
                  %171 = vst [vmem:[%s157 + $0x30] sm:$0xff] %v170
                  %v172 = vld [vmem:[%s156 + $0x70] sm:$0xff]
                  %173 = vst [vmem:[%s157 + $0x38] sm:$0xff] %v172
                  %v174 = vld [vmem:[%s156 + $0x80] sm:$0xff]
                  %175 = vst [vmem:[%s157 + $0x40] sm:$0xff] %v174
                  %v176 = vld [vmem:[%s156 + $0x90] sm:$0xff]
                  %177 = vst [vmem:[%s157 + $0x48] sm:$0xff] %v176
                $region52: #{cae5_forward.44} parent=46 // loop_footer
                  %s155 = sadd.s32 1, %s151
                $region53: #{cae5_forward.44} parent=46 // loop_footer_branch
                  %150 = sbr.rel target = $region49
                $region54: #{cae5_forward.44} parent=46 // loop_exit
                  _
              $region47: #{cae5_forward.44} parent=31 // pred_fallthru
                _
              // Predicated region
              $region55: #{cae5_forward.44} parent=31 // pred_check
                _
              $region56: #{cae5_forward.44} parent=31 // pred_check_branch
                %179 = sbr.rel target = $region58
              $region57: #{cae5_forward.44} parent=31 // pred_region
                _
              $region58: #{cae5_forward.44} parent=31 // pred_fallthru
                _
            $region32: #{cae5_forward.44} parent=27 // pred_fallthru
              _
            // Predicated region
            $region33: #{cae5_forward.44} parent=27 // pred_check
              _
            $region34: #{cae5_forward.44} parent=27 // pred_check_branch
              %118 = sbr.rel target = $region36
            $region35: #{cae5_forward.44} parent=27 // pred_region
              loop: start=0, step=1, limit=1
              $region37: #{cae5_forward.44} parent=35 // loop_pre_header
                _
              $region38: #{cae5_forward.44} parent=35 // loop_header
                %s121 = sphi 0, %s125
                %p122 = scmp.ge.s32.totalorder %s121, 1
                %s126 = sphi %s112, %s112
                %s127 = sphi %s109, %s109
              $region39: #{cae5_forward.44} parent=35 // loop_header_branch
                %124 = sbr.rel (%p122) target = $region43
              $region40: #{cae5_forward.44} parent=35 // loop_body
                %v128 = vld [vmem:[%s126] sm:$0xff]
                %129 = vst [vmem:[%s127] sm:$0xff] %v128
                %v130 = vld [vmem:[%s126 + $0x10] sm:$0xff]
                %131 = vst [vmem:[%s127 + $0x8] sm:$0xff] %v130
                %v132 = vld [vmem:[%s126 + $0x20] sm:$0xff]
                %133 = vst [vmem:[%s127 + $0x10] sm:$0xff] %v132
                %v134 = vld [vmem:[%s126 + $0x30] sm:$0xff]
                %135 = vst [vmem:[%s127 + $0x18] sm:$0xff] %v134
                %v136 = vld [vmem:[%s126 + $0x40] sm:$0xff]
                %137 = vst [vmem:[%s127 + $0x20] sm:$0xff] %v136
                %v138 = vld [vmem:[%s126 + $0x50] sm:$0xff]
                %139 = vst [vmem:[%s127 + $0x28] sm:$0xff] %v138
                %v140 = vld [vmem:[%s126 + $0x60] sm:$0xff]
                %141 = vst [vmem:[%s127 + $0x30] sm:$0xff] %v140
                %v142 = vld [vmem:[%s126 + $0x70] sm:$0xff]
                %143 = vst [vmem:[%s127 + $0x38] sm:$0xff] %v142
                %v144 = vld [vmem:[%s126 + $0x80] sm:$0xff]
                %145 = vst [vmem:[%s127 + $0x40] sm:$0xff] %v144
                %v146 = vld [vmem:[%s126 + $0x90] sm:$0xff]
                %147 = vst [vmem:[%s127 + $0x48] sm:$0xff] %v146
              $region41: #{cae5_forward.44} parent=35 // loop_footer
                %s125 = sadd.s32 1, %s121
              $region42: #{cae5_forward.44} parent=35 // loop_footer_branch
                %120 = sbr.rel target = $region38
              $region43: #{cae5_forward.44} parent=35 // loop_exit
                _
            $region36: #{cae5_forward.44} parent=27 // pred_fallthru
              _
          $region28: #{cae5_forward.44} parent=23 // pred_fallthru
            _
          %180 = vnop
        $region24: #{cae5_forward.44} parent=19 // pred_fallthru
          _
      $region20: #{cae5_forward.44} parent=5 // pred_fallthru
        _
      %p181 = scmp.le.s32.totalorder 1, %s8
      %p182 = scmp.lt.s32.totalorder %s8, 3
      %p183 = pnand %p181, %p182
      %p184 = pneg %p183
      // Predicated region
      $region59: #{cae5_forward.44} parent=5 // pred_check
        _
      $region60: #{cae5_forward.44} parent=5 // pred_check_branch
        %186 = sbr.rel (%p183) target = $region62
      $region61: #{cae5_forward.44} parent=5 // pred_region
        %s187 = ssub.s32 %s8, 1
        %s188 = sand.u32 %s42, 1
        %s189 = sand.u32 %s42, 1
        %s190 = smul.addr %s189, 80
        %s191 = scalar_lea.vmem [#allocation2], %s190
        // Predicated region
        $region63: #{cae5_forward.44} parent=61 // pred_check
          %p192 = pneg %p55
        $region64: #{cae5_forward.44} parent=61 // pred_check_branch
          %194 = sbr.rel (%p192) target = $region66
        $region65: #{cae5_forward.44} parent=61 // pred_region
          _
        $region66: #{cae5_forward.44} parent=61 // pred_fallthru
          _
        %p195 = pneg %p29
        %p196 = pneg %p26
        %s197 = sand.u32 %s42, 1
        %s198 = sand.u32 %s42, 1
        %s199 = smul.addr %s198, 80
        %s200 = scalar_lea.vmem [#allocation2], %s199
        %p201 = pneg %p55
        %p202 = pneg %p52
        %p203 = pneg %p81
        %p204 = pneg %p78
        %s205 = smul.u32 2, %s13
        %p206 = scmp.lt.s32.totalorder %s205, 3
        %s207 = scalar_select %p206, %s205, 3
        %s208 = smul.addr %s207, 2
        %s209 = scalar_lea.vmem %s2, %s208
        %s210 = smul.u32 2, %s13
        %s211 = smul.u32 2, %s13
        %p212 = scmp.lt.s32.totalorder %s211, 3
        %s213 = scalar_select %p212, %s211, 3
        %s214 = smul.addr %s213, 2
        %s215 = scalar_lea.vmem %s2, %s214
        %s216 = smul.u32 2, %s13
        %v218 = vld [vmem:[%s0] sm:$0x3]
        %v219 = vld [vmem:[%s191] sm:$0xff]
        %v220 = vld [vmem:[%s191 + $0x8] sm:$0xff]
        %v221 = vld [vmem:[%s191 + $0x10] sm:$0xff]
        %v222 = vld [vmem:[%s191 + $0x18] sm:$0xff]
        %v223 = vld [vmem:[%s191 + $0x20] sm:$0xff]
        %v224 = vld [vmem:[%s191 + $0x28] sm:$0xff]
        %v225 = vld [vmem:[%s191 + $0x30] sm:$0xff]
        %v226 = vld [vmem:[%s191 + $0x38] sm:$0xff]
        %v227 = vld [vmem:[%s191 + $0x40] sm:$0xff]
        %v228 = vld [vmem:[%s191 + $0x48] sm:$0xff]
        %v239 = vunpack.c.l.b16 %v219
        %v240 = vunpack.c.h.b16 %v219
        %v241 = vunpack.c.l.b16 %v220
        %v242 = vunpack.c.h.b16 %v220
        %v243 = vunpack.c.l.b16 %v221
        %v244 = vunpack.c.h.b16 %v221
        %v245 = vunpack.c.l.b16 %v222
        %v246 = vunpack.c.h.b16 %v222
        %v247 = vunpack.c.l.b16 %v223
        %v248 = vunpack.c.h.b16 %v223
        %v249 = vunpack.c.l.b16 %v224
        %v250 = vunpack.c.h.b16 %v224
        %v251 = vunpack.c.l.b16 %v225
        %v252 = vunpack.c.h.b16 %v225
        %v253 = vunpack.c.l.b16 %v226
        %v254 = vunpack.c.h.b16 %v226
        %v255 = vunpack.c.l.b16 %v227
        %v256 = vunpack.c.h.b16 %v227
        %v257 = vunpack.c.l.b16 %v228
        %v258 = vunpack.c.h.b16 %v228
        %v259 = vpack.c.b16 %v241, %v239
        %v260 = vpack.c.b16 %v242, %v240
        %v261 = vpack.c.b16 %v245, %v243
        %v262 = vpack.c.b16 %v246, %v244
        %v263 = vpack.c.b16 %v249, %v247
        %v264 = vpack.c.b16 %v250, %v248
        %v265 = vpack.c.b16 %v253, %v251
        %v266 = vpack.c.b16 %v254, %v252
        %v267 = vpack.c.b16 %v257, %v255
        %v268 = vpack.c.b16 %v258, %v256
        %vm279 = vcmask 654336
        %v281 = vsel %vm279, %v218, 0
        %283 = vmatprep.subr.bf16.mxu0 %v260
        %284 = vmatpush1.bf16.msra.mxu0 %v259
        %285 = vmatprep.subr.bf16.mxu0 %v262
        %286 = vmatpush1.bf16.msra.mxu0 %v261
        %287 = vmatprep.subr.bf16.mxu0 %v264
        %288 = vmatpush1.bf16.msra.mxu0 %v263
        %289 = vmatprep.subr.bf16.mxu0 %v266
        %290 = vmatpush1.bf16.msra.mxu0 %v265
        %291 = vmatprep.subr.bf16.mxu0 %v268
        %292 = vmatpush1.bf16.msra.mxu0 %v267
        %293 = vmatprep.subr.bf16.mxu0 0
        %294 = vmatpush1.bf16.msra.mxu0 0
        %295 = vmatprep.subr.bf16.mxu0 0
        %296 = vmatpush1.bf16.msra.mxu0 0
        %297 = vmatprep.subr.bf16.mxu0 0
        %298 = vmatpush1.bf16.msra.mxu0 0
        %299 = vmatprep.subr.bf16.mxu0 0
        %300 = vmatpush1.bf16.msra.mxu0 0
        %301 = vmatprep.subr.bf16.mxu0 0
        %302 = vmatpush1.bf16.msra.mxu0 0
        %303 = vmatprep.subr.bf16.mxu0 0
        %304 = vmatpush1.bf16.msra.mxu0 0
        %305 = vmatprep.subr.bf16.mxu0 0
        %306 = vmatpush1.bf16.msra.mxu0 0
        %307 = vmatprep.subr.bf16.mxu0 0
        %308 = vmatpush1.bf16.msra.mxu0 0
        %309 = vmatprep.subr.bf16.mxu0 0
        %310 = vmatpush1.bf16.msra.mxu0 0
        %311 = vmatprep.subr.bf16.mxu0 0
        %312 = vmatpush1.bf16.msra.mxu0 0
        %313 = vmatprep.subr.bf16.mxu0 0
        %314 = vmatpush1.bf16.msra.mxu0 0
        %315 = vmatprep.mubr.bf16.mxu0 0
        %316 = vmatmul.mubr.bf16.gmra.mrb[0].mxu0 %v281
        %v317 = vpop.f32.mrb[0].mxu0
        %v318 = vadd.f32 0.0, %v317
        %v319 = vpop.f32.mrb[0].mxu0
        %v320 = vadd.f32 0.0, %v319
        %v321 = vpop.f32.mrb[0].mxu0
        %v322 = vpop.f32.mrb[0].mxu0
        %323 = vdwg.mxu0
        %vm324 = vcmp.ge.f32.partialorder %v318, 0.0
        %vm325 = vcmp.ge.f32.partialorder %v320, 0.0
        %v326 = vmul.f32 %v318, 0.01
        %v327 = vmul.f32 %v320, 0.01
        %v328 = vsel %vm324, %v318, %v326
        %v329 = vsel %vm325, %v320, %v327
        %v330 = vpack.c.bf16 %v328, %v328
        %v331 = vpack.c.bf16 %v329, %v329
        %v334 = vcombine.low %v330, %v331
        %v336 = vunpack.c.l.s4 1983009808
        %v337 = vunpack.c.0.s8 %v336
        %v338 = vlaneseq
        %v339 = vshrl.u32 %v338, 7
        %v340 = vsub.s32 %v337, %v339
        %v341 = vrot.slane %v334, %v340
        %343 = vst [vmem:[%s215] sm:$0xf] %v341
        %s344 = smul.u32 2, %s13
        %p345 = scmp.lt.s32.totalorder %s344, 3
        %s346 = scalar_select %p345, %s344, 3
        %s347 = smul.addr %s346, 2
        %s348 = scalar_lea.vmem %s2, %s347
        // Predicated region
        $region67: #{cae5_forward.44} parent=61 // pred_check
          %p349 = pneg %p78
        $region68: #{cae5_forward.44} parent=61 // pred_check_branch
          %351 = sbr.rel (%p349) target = $region70
        $region69: #{cae5_forward.44} parent=61 // pred_region
          %s352 = smul.u32 2, %s13
        $region70: #{cae5_forward.44} parent=61 // pred_fallthru
          _
      $region62: #{cae5_forward.44} parent=5 // pred_fallthru
        _
      %p353 = scmp.le.s32.totalorder 2, %s8
      // Predicated region
      $region71: #{cae5_forward.44} parent=5 // pred_check
        %p354 = pneg %p353
      $region72: #{cae5_forward.44} parent=5 // pred_check_branch
        %356 = sbr.rel (%p354) target = $region74
      $region73: #{cae5_forward.44} parent=5 // pred_region
        %s357 = ssub.s32 %s8, 2
        // Predicated region
        $region75: #{cae5_forward.44} parent=73 // pred_check
          %p358 = pneg %p84
        $region76: #{cae5_forward.44} parent=73 // pred_check_branch
          %360 = sbr.rel (%p358) target = $region78
        $region77: #{cae5_forward.44} parent=73 // pred_region
          %s361 = smul.u32 2, %s14
          %p362 = scmp.lt.s32.totalorder %s361, 3
          %s363 = scalar_select %p362, %s361, 3
          %s364 = smul.addr %s363, 2
          %s365 = scalar_lea.vmem %s2, %s364
        $region78: #{cae5_forward.44} parent=73 // pred_fallthru
          _
      $region74: #{cae5_forward.44} parent=5 // pred_fallthru
        _
    $region6: #{cae5_forward.44} parent=1 // loop_footer
      %s12 = sadd.s32 1, %s8
    $region7: #{cae5_forward.44} parent=1 // loop_footer_branch
      %7 = sbr.rel target = $region3
    $region8: #{cae5_forward.44} parent=1 // loop_exit
      _

// kernel: cae5_forward.45
$region0: #{cae5_forward.45}
  #allocation0 [shape = 'u32[]', space=smem, size = 0x4, offset = 0x4, fixed_abs, tag = 'smem constant byte address 0x4 - core index']
  #allocation1 [shape = 'u32[144,128]{1,0:T(1,128)}', space=vmem, size = 0x12000, scoped, tag = 'internal scratch']
  %s0 = inlined_call_operand.vmem [shape: bf16[4,56], index: 0, kind: input, shape index: {}]
  %s1 = inlined_call_operand.vmem [shape: bf16[56,512], index: 1, kind: input, shape index: {}]
  %s2 = inlined_call_operand.vmem [shape: bf16[4,512], index: 2, kind: output, shape index: {}]
  %s3 = sld [smem:[#allocation0]]
  $region79: #{cae5_forward.45} parent=0
    _
  %s5 = ssub.s32 1, %s3
  %s6 = scalar_select 0, %s5, %s3
  $region1: #{cae5_forward.45} parent=0
    #allocation2 [shape = 'u8[57344]{0}', space=vmem, size = 0xe000, scoped, tag = 'input window, operand 1']
    loop: start=0, step=1, limit=4
    $region2: #{cae5_forward.45} parent=1 // loop_pre_header
      _
    $region3: #{cae5_forward.45} parent=1 // loop_header
      %s8 = sphi 0, %s12
      %p9 = scmp.ge.s32.totalorder %s8, 4
      %s16 = sphi 0, %s16
      %s18 = sphi 0, %s16
      %s19 = sphi 0, %s18
      %s33 = sphi 0, %s19
      %s39 = sphi 0, %s41
      %s42 = sphi 0, %s39
      %s43 = sphi 0, %s42
      %s59 = sphi 0, %s43
      %s65 = sphi 0, %s67
      %s68 = sphi 0, %s65
      %s69 = sphi 0, %s68
      %s85 = sphi 0, %s69
    $region4: #{cae5_forward.45} parent=1 // loop_header_branch
      %11 = sbr.rel (%p9) target = $region8
    $region5: #{cae5_forward.45} parent=1 // loop_body
      %s13 = ssub.s32 %s8, 1
      %s14 = ssub.s32 %s8, 2
      %s15 = sadd.s32 %s8, 1
      %s17 = sadd.s32 %s16, 1
      %p20 = scmp.eq.s32.totalorder %s8, 1
      %p21 = scmp.ne.s32.totalorder %s16, %s18
      %p22 = scmp.eq.s32.totalorder %s8, 0
      %p23 = por %p21, %p22
      %p24 = scmp.ne.s32.totalorder %s16, %s18
      %p25 = scmp.eq.s32.totalorder %s13, 1
      %p26 = por %p24, %p25
      %p27 = scmp.ne.s32.totalorder %s18, %s19
      %p28 = scmp.eq.s32.totalorder %s13, 0
      %p29 = por %p27, %p28
      %p30 = scmp.ne.s32.totalorder %s18, %s19
      %p31 = scmp.eq.s32.totalorder %s14, 1
      %p32 = por %p30, %p31
      %p34 = scmp.ne.s32.totalorder %s19, %s33
      %p35 = scmp.eq.s32.totalorder %s14, 0
      %p36 = por %p34, %p35
      %s37 = ssub.s32 %s8, %s15
      %p38 = scmp.eq.s32.totalorder %s37, 0
      %s40 = sadd.s32 %s39, 1
      %s41 = scalar_select %p38, %s39, %s40
      %p44 = pneg %p38
      %p45 = scmp.eq.s32.totalorder %s8, 1
      %p46 = por %p44, %p45
      %p47 = scmp.ne.s32.totalorder %s39, %s42
      %p48 = scmp.eq.s32.totalorder %s8, 0
      %p49 = por %p47, %p48
      %p50 = scmp.ne.s32.totalorder %s39, %s42
      %p51 = scmp.eq.s32.totalorder %s13, 1
      %p52 = por %p50, %p51
      %p53 = scmp.ne.s32.totalorder %s42, %s43
      %p54 = scmp.eq.s32.totalorder %s13, 0
      %p55 = por %p53, %p54
      %p56 = scmp.ne.s32.totalorder %s42, %s43
      %p57 = scmp.eq.s32.totalorder %s14, 1
      %p58 = por %p56, %p57
      %p60 = scmp.ne.s32.totalorder %s43, %s59
      %p61 = scmp.eq.s32.totalorder %s14, 0
      %p62 = por %p60, %p61
      %s63 = ssub.s32 %s8, %s15
      %p64 = scmp.eq.s32.totalorder %s63, 0
      %s66 = sadd.s32 %s65, 1
      %s67 = scalar_select %p64, %s65, %s66
      %p70 = pneg %p64
      %p71 = scmp.eq.s32.totalorder %s8, 1
      %p72 = por %p70, %p71
      %p73 = scmp.ne.s32.totalorder %s65, %s68
      %p74 = scmp.eq.s32.totalorder %s8, 0
      %p75 = por %p73, %p74
      %p76 = scmp.ne.s32.totalorder %s65, %s68
      %p77 = scmp.eq.s32.totalorder %s13, 1
      %p78 = por %p76, %p77
      %p79 = scmp.ne.s32.totalorder %s68, %s69
      %p80 = scmp.eq.s32.totalorder %s13, 0
      %p81 = por %p79, %p80
      %p82 = scmp.ne.s32.totalorder %s68, %s69
      %p83 = scmp.eq.s32.totalorder %s14, 1
      %p84 = por %p82, %p83
      %p86 = scmp.ne.s32.totalorder %s69, %s85
      %p87 = scmp.eq.s32.totalorder %s14, 0
      %p88 = por %p86, %p87
      %p89 = scmp.le.s32.totalorder 1, %s8
      %p90 = scmp.lt.s32.totalorder %s8, 3
      %p91 = pnand %p89, %p90
      %p92 = pneg %p91
      // Predicated region
      $region9: #{cae5_forward.45} parent=5 // pred_check
        _
      $region10: #{cae5_forward.45} parent=5 // pred_check_branch
        %94 = sbr.rel (%p91) target = $region12
      $region11: #{cae5_forward.45} parent=5 // pred_region
        %s95 = ssub.s32 %s8, 1
        // Predicated region
        $region13: #{cae5_forward.45} parent=11 // pred_check
          %p96 = pneg %p29
        $region14: #{cae5_forward.45} parent=11 // pred_check_branch
          %98 = sbr.rel (%p96) target = $region16
        $region15: #{cae5_forward.45} parent=11 // pred_region
          _
        $region16: #{cae5_forward.45} parent=11 // pred_fallthru
          _
      $region12: #{cae5_forward.45} parent=5 // pred_fallthru
        _
      %p99 = scmp.lt.s32.totalorder %s8, 2
      // Predicated region
      $region17: #{cae5_forward.45} parent=5 // pred_check
        %p100 = pneg %p99
      $region18: #{cae5_forward.45} parent=5 // pred_check_branch
        %102 = sbr.rel (%p100) target = $region20
      $region19: #{cae5_forward.45} parent=5 // pred_region
        // Predicated region
        $region21: #{cae5_forward.45} parent=19 // pred_check
          %p103 = pneg %p49
        $region22: #{cae5_forward.45} parent=19 // pred_check_branch
          %105 = sbr.rel (%p103) target = $region24
        $region23: #{cae5_forward.45} parent=19 // pred_region
          %s106 = sand.u32 %s39, 1
          %s107 = sand.u32 %s39, 1
          %s108 = smul.addr %s107, 56
          %s109 = scalar_lea.vmem [#allocation2], %s108
          %s110 = smul.u32 2, %s8
          %s111 = smul.addr %s110, 4
          %s112 = scalar_lea.vmem %s1, %s111
          // Predicated region
          $region25: #{cae5_forward.45} parent=23 // pred_check
            _
          $region26: #{cae5_forward.45} parent=23 // pred_check_branch
            %114 = sbr.rel (0) target = $region28
          $region27: #{cae5_forward.45} parent=23 // pred_region
            // Predicated region
            $region29: #{cae5_forward.45} parent=27 // pred_check
              _
            $region30: #{cae5_forward.45} parent=27 // pred_check_branch
              %116 = sbr.rel (0) target = $region32
            $region31: #{cae5_forward.45} parent=27 // pred_region
              // Predicated region
              $region44: #{cae5_forward.45} parent=31 // pred_check
                _
              $region45: #{cae5_forward.45} parent=31 // pred_check_branch
                %143 = sbr.rel (0) target = $region47
              $region46: #{cae5_forward.45} parent=31 // pred_region
                loop: start=0, step=1, limit=1
                $region48: #{cae5_forward.45} parent=46 // loop_pre_header
                  _
                $region49: #{cae5_forward.45} parent=46 // loop_header
                  %s145 = sphi 0, %s149
                  %p146 = scmp.ge.s32.totalorder %s145, 1
                  %s150 = sphi %s112, %s112
                  %s151 = sphi %s109, %s109
                $region50: #{cae5_forward.45} parent=46 // loop_header_branch
                  %148 = sbr.rel (%p146) target = $region54
                $region51: #{cae5_forward.45} parent=46 // loop_body
                  %v152 = vld [vmem:[%s150] sm:$0xff]
                  %153 = vst [vmem:[%s151] sm:$0xff] %v152
                  %v154 = vld [vmem:[%s150 + $0x10] sm:$0xff]
                  %155 = vst [vmem:[%s151 + $0x8] sm:$0xff] %v154
                  %v156 = vld [vmem:[%s150 + $0x20] sm:$0xff]
                  %157 = vst [vmem:[%s151 + $0x10] sm:$0xff] %v156
                  %v158 = vld [vmem:[%s150 + $0x30] sm:$0xff]
                  %159 = vst [vmem:[%s151 + $0x18] sm:$0xff] %v158
                  %v160 = vld [vmem:[%s150 + $0x40] sm:$0xff]
                  %161 = vst [vmem:[%s151 + $0x20] sm:$0xff] %v160
                  %v162 = vld [vmem:[%s150 + $0x50] sm:$0xff]
                  %163 = vst [vmem:[%s151 + $0x28] sm:$0xff] %v162
                  %v164 = vld [vmem:[%s150 + $0x60] sm:$0xff]
                  %165 = vst [vmem:[%s151 + $0x30] sm:$0xff] %v164
                $region52: #{cae5_forward.45} parent=46 // loop_footer
                  %s149 = sadd.s32 1, %s145
                $region53: #{cae5_forward.45} parent=46 // loop_footer_branch
                  %144 = sbr.rel target = $region49
                $region54: #{cae5_forward.45} parent=46 // loop_exit
                  _
              $region47: #{cae5_forward.45} parent=31 // pred_fallthru
                _
              // Predicated region
              $region55: #{cae5_forward.45} parent=31 // pred_check
                _
              $region56: #{cae5_forward.45} parent=31 // pred_check_branch
                %167 = sbr.rel target = $region58
              $region57: #{cae5_forward.45} parent=31 // pred_region
                _
              $region58: #{cae5_forward.45} parent=31 // pred_fallthru
                _
            $region32: #{cae5_forward.45} parent=27 // pred_fallthru
              _
            // Predicated region
            $region33: #{cae5_forward.45} parent=27 // pred_check
              _
            $region34: #{cae5_forward.45} parent=27 // pred_check_branch
              %118 = sbr.rel target = $region36
            $region35: #{cae5_forward.45} parent=27 // pred_region
              loop: start=0, step=1, limit=1
              $region37: #{cae5_forward.45} parent=35 // loop_pre_header
                _
              $region38: #{cae5_forward.45} parent=35 // loop_header
                %s121 = sphi 0, %s125
                %p122 = scmp.ge.s32.totalorder %s121, 1
                %s126 = sphi %s112, %s112
                %s127 = sphi %s109, %s109
              $region39: #{cae5_forward.45} parent=35 // loop_header_branch
                %124 = sbr.rel (%p122) target = $region43
              $region40: #{cae5_forward.45} parent=35 // loop_body
                %v128 = vld [vmem:[%s126] sm:$0xff]
                %129 = vst [vmem:[%s127] sm:$0xff] %v128
                %v130 = vld [vmem:[%s126 + $0x10] sm:$0xff]
                %131 = vst [vmem:[%s127 + $0x8] sm:$0xff] %v130
                %v132 = vld [vmem:[%s126 + $0x20] sm:$0xff]
                %133 = vst [vmem:[%s127 + $0x10] sm:$0xff] %v132
                %v134 = vld [vmem:[%s126 + $0x30] sm:$0xff]
                %135 = vst [vmem:[%s127 + $0x18] sm:$0xff] %v134
                %v136 = vld [vmem:[%s126 + $0x40] sm:$0xff]
                %137 = vst [vmem:[%s127 + $0x20] sm:$0xff] %v136
                %v138 = vld [vmem:[%s126 + $0x50] sm:$0xff]
                %139 = vst [vmem:[%s127 + $0x28] sm:$0xff] %v138
                %v140 = vld [vmem:[%s126 + $0x60] sm:$0xff]
                %141 = vst [vmem:[%s127 + $0x30] sm:$0xff] %v140
              $region41: #{cae5_forward.45} parent=35 // loop_footer
                %s125 = sadd.s32 1, %s121
              $region42: #{cae5_forward.45} parent=35 // loop_footer_branch
                %120 = sbr.rel target = $region38
              $region43: #{cae5_forward.45} parent=35 // loop_exit
                _
            $region36: #{cae5_forward.45} parent=27 // pred_fallthru
              _
          $region28: #{cae5_forward.45} parent=23 // pred_fallthru
            _
          %168 = vnop
        $region24: #{cae5_forward.45} parent=19 // pred_fallthru
          _
      $region20: #{cae5_forward.45} parent=5 // pred_fallthru
        _
      %p169 = scmp.le.s32.totalorder 1, %s8
      %p170 = scmp.lt.s32.totalorder %s8, 3
      %p171 = pnand %p169, %p170
      %p172 = pneg %p171
      // Predicated region
      $region59: #{cae5_forward.45} parent=5 // pred_check
        _
      $region60: #{cae5_forward.45} parent=5 // pred_check_branch
        %174 = sbr.rel (%p171) target = $region62
      $region61: #{cae5_forward.45} parent=5 // pred_region
        %s175 = ssub.s32 %s8, 1
        %s176 = sand.u32 %s42, 1
        %s177 = sand.u32 %s42, 1
        %s178 = smul.addr %s177, 56
        %s179 = scalar_lea.vmem [#allocation2], %s178
        // Predicated region
        $region63: #{cae5_forward.45} parent=61 // pred_check
          %p180 = pneg %p55
        $region64: #{cae5_forward.45} parent=61 // pred_check_branch
          %182 = sbr.rel (%p180) target = $region66
        $region65: #{cae5_forward.45} parent=61 // pred_region
          _
        $region66: #{cae5_forward.45} parent=61 // pred_fallthru
          _
        %p183 = pneg %p29
        %p184 = pneg %p26
        %s185 = sand.u32 %s42, 1
        %s186 = sand.u32 %s42, 1
        %s187 = smul.addr %s186, 56
        %s188 = scalar_lea.vmem [#allocation2], %s187
        %p189 = pneg %p55
        %p190 = pneg %p52
        %p191 = pneg %p81
        %p192 = pneg %p78
        %s193 = smul.u32 2, %s13
        %p194 = scmp.lt.s32.totalorder %s193, 3
        %s195 = scalar_select %p194, %s193, 3
        %s196 = smul.addr %s195, 2
        %s197 = scalar_lea.vmem %s2, %s196
        %s198 = smul.u32 2, %s13
        %s199 = smul.u32 2, %s13
        %p200 = scmp.lt.s32.totalorder %s199, 3
        %s201 = scalar_select %p200, %s199, 3
        %s202 = smul.addr %s201, 2
        %s203 = scalar_lea.vmem %s2, %s202
        %s204 = smul.u32 2, %s13
        %v206 = vld [vmem:[%s0] sm:$0x3]
        %v207 = vld [vmem:[%s179] sm:$0xff]
        %v208 = vld [vmem:[%s179 + $0x8] sm:$0xff]
        %v209 = vld [vmem:[%s179 + $0x10] sm:$0xff]
        %v210 = vld [vmem:[%s179 + $0x18] sm:$0xff]
        %v211 = vld [vmem:[%s179 + $0x20] sm:$0xff]
        %v212 = vld [vmem:[%s179 + $0x28] sm:$0xff]
        %v213 = vld [vmem:[%s179 + $0x30] sm:$0xff]
        %v221 = vunpack.c.l.b16 %v207
        %v222 = vunpack.c.h.b16 %v207
        %v223 = vunpack.c.l.b16 %v208
        %v224 = vunpack.c.h.b16 %v208
        %v225 = vunpack.c.l.b16 %v209
        %v226 = vunpack.c.h.b16 %v209
        %v227 = vunpack.c.l.b16 %v210
        %v228 = vunpack.c.h.b16 %v210
        %v229 = vunpack.c.l.b16 %v211
        %v230 = vunpack.c.h.b16 %v211
        %v231 = vunpack.c.l.b16 %v212
        %v232 = vunpack.c.h.b16 %v212
        %v233 = vunpack.c.l.b16 %v213
        %v234 = vunpack.c.h.b16 %v213
        %v235 = vpack.c.b16 %v223, %v221
        %v236 = vpack.c.b16 %v224, %v222
        %v237 = vpack.c.b16 %v227, %v225
        %v238 = vpack.c.b16 %v228, %v226
        %v239 = vpack.c.b16 %v231, %v229
        %v240 = vpack.c.b16 %v232, %v230
        %v241 = vpack.c.b16 %v233, %v233
        %v242 = vpack.c.b16 %v234, %v234
        %vm249 = vcmask 457728
        %v251 = vsel %vm249, %v206, 0
        %vm253 = vcmask 1043456
        %v255 = vsel %vm253, %v241, 0
        %v258 = vsel %vm253, %v242, 0
        %260 = vmatprep.subr.bf16.mxu0 %v236
        %261 = vmatpush1.bf16.msra.mxu0 %v235
        %262 = vmatprep.subr.bf16.mxu0 %v238
        %263 = vmatpush1.bf16.msra.mxu0 %v237
        %264 = vmatprep.subr.bf16.mxu0 %v240
        %265 = vmatpush1.bf16.msra.mxu0 %v239
        %266 = vmatprep.subr.bf16.mxu0 %v258
        %267 = vmatpush1.bf16.msra.mxu0 %v255
        %268 = vmatprep.subr.bf16.mxu0 0
        %269 = vmatpush1.bf16.msra.mxu0 0
        %270 = vmatprep.subr.bf16.mxu0 0
        %271 = vmatpush1.bf16.msra.mxu0 0
        %272 = vmatprep.subr.bf16.mxu0 0
        %273 = vmatpush1.bf16.msra.mxu0 0
        %274 = vmatprep.subr.bf16.mxu0 0
        %275 = vmatpush1.bf16.msra.mxu0 0
        %276 = vmatprep.subr.bf16.mxu0 0
        %277 = vmatpush1.bf16.msra.mxu0 0
        %278 = vmatprep.subr.bf16.mxu0 0
        %279 = vmatpush1.bf16.msra.mxu0 0
        %280 = vmatprep.subr.bf16.mxu0 0
        %281 = vmatpush1.bf16.msra.mxu0 0
        %282 = vmatprep.subr.bf16.mxu0 0
        %283 = vmatpush1.bf16.msra.mxu0 0
        %284 = vmatprep.subr.bf16.mxu0 0
        %285 = vmatpush1.bf16.msra.mxu0 0
        %286 = vmatprep.subr.bf16.mxu0 0
        %287 = vmatpush1.bf16.msra.mxu0 0
        %288 = vmatprep.subr.bf16.mxu0 0
        %289 = vmatpush1.bf16.msra.mxu0 0
        %290 = vmatprep.subr.bf16.mxu0 0
        %291 = vmatpush1.bf16.msra.mxu0 0
        %292 = vmatprep.mubr.bf16.mxu0 0
        %293 = vmatmul.mubr.bf16.gmra.mrb[0].mxu0 %v251
        %v294 = vpop.f32.mrb[0].mxu0
        %v295 = vadd.f32 0.0, %v294
        %v296 = vpop.f32.mrb[0].mxu0
        %v297 = vadd.f32 0.0, %v296
        %v298 = vpop.f32.mrb[0].mxu0
        %v299 = vpop.f32.mrb[0].mxu0
        %300 = vdwg.mxu0
        %vm301 = vcmp.ge.f32.partialorder %v295, 0.0
        %vm302 = vcmp.ge.f32.partialorder %v297, 0.0
        %v303 = vmul.f32 %v295, 0.01
        %v304 = vmul.f32 %v297, 0.01
        %v305 = vsel %vm301, %v295, %v303
        %v306 = vsel %vm302, %v297, %v304
        %v307 = vpack.c.bf16 %v305, %v305
        %v308 = vpack.c.bf16 %v306, %v306
        %v311 = vcombine.low %v307, %v308
        %v313 = vunpack.c.l.s4 1983009808
        %v314 = vunpack.c.0.s8 %v313
        %v315 = vlaneseq
        %v316 = vshrl.u32 %v315, 7
        %v317 = vsub.s32 %v314, %v316
        %v318 = vrot.slane %v311, %v317
        %320 = vst [vmem:[%s203] sm:$0xf] %v318
        %s321 = smul.u32 2, %s13
        %p322 = scmp.lt.s32.totalorder %s321, 3
        %s323 = scalar_select %p322, %s321, 3
        %s324 = smul.addr %s323, 2
        %s325 = scalar_lea.vmem %s2, %s324
        // Predicated region
        $region67: #{cae5_forward.45} parent=61 // pred_check
          %p326 = pneg %p78
        $region68: #{cae5_forward.45} parent=61 // pred_check_branch
          %328 = sbr.rel (%p326) target = $region70
        $region69: #{cae5_forward.45} parent=61 // pred_region
          %s329 = smul.u32 2, %s13
        $region70: #{cae5_forward.45} parent=61 // pred_fallthru
          _
      $region62: #{cae5_forward.45} parent=5 // pred_fallthru
        _
      %p330 = scmp.le.s32.totalorder 2, %s8
      // Predicated region
      $region71: #{cae5_forward.45} parent=5 // pred_check
        %p331 = pneg %p330
      $region72: #{cae5_forward.45} parent=5 // pred_check_branch
        %333 = sbr.rel (%p331) target = $region74
      $region73: #{cae5_forward.45} parent=5 // pred_region
        %s334 = ssub.s32 %s8, 2
        // Predicated region
        $region75: #{cae5_forward.45} parent=73 // pred_check
          %p335 = pneg %p84
        $region76: #{cae5_forward.45} parent=73 // pred_check_branch
          %337 = sbr.rel (%p335) target = $region78
        $region77: #{cae5_forward.45} parent=73 // pred_region
          %s338 = smul.u32 2, %s14
          %p339 = scmp.lt.s32.totalorder %s338, 3
          %s340 = scalar_select %p339, %s338, 3
          %s341 = smul.addr %s340, 2
          %s342 = scalar_lea.vmem %s2, %s341
        $region78: #{cae5_forward.45} parent=73 // pred_fallthru
          _
      $region74: #{cae5_forward.45} parent=5 // pred_fallthru
        _
    $region6: #{cae5_forward.45} parent=1 // loop_footer
      %s12 = sadd.s32 1, %s8
    $region7: #{cae5_forward.45} parent=1 // loop_footer_branch
      %7 = sbr.rel target = $region3
    $region8: #{cae5_forward.45} parent=1 // loop_exit
      _

// kernel: cae5_forward.47
$region0: #{cae5_forward.47}
  #allocation0 [shape = 'u32[]', space=smem, size = 0x4, offset = 0x4, fixed_abs, tag = 'smem constant byte address 0x4 - core index']
  #allocation1 [shape = 'u32[144,128]{1,0:T(1,128)}', space=vmem, size = 0x12000, scoped, tag = 'internal scratch']
  %s0 = inlined_call_operand.vmem [shape: bf16[4,40], index: 0, kind: input, shape index: {}]
  %s1 = inlined_call_operand.vmem [shape: bf16[40,512], index: 1, kind: input, shape index: {}]
  %s2 = inlined_call_operand.vmem [shape: bf16[4,512], index: 2, kind: output, shape index: {}]
  %s3 = sld [smem:[#allocation0]]
  $region79: #{cae5_forward.47} parent=0
    _
  %s5 = ssub.s32 1, %s3
  %s6 = scalar_select 0, %s5, %s3
  $region1: #{cae5_forward.47} parent=0
    #allocation2 [shape = 'u8[40960]{0}', space=vmem, size = 0xa000, scoped, tag = 'input window, operand 1']
    loop: start=0, step=1, limit=4
    $region2: #{cae5_forward.47} parent=1 // loop_pre_header
      _
    $region3: #{cae5_forward.47} parent=1 // loop_header
      %s8 = sphi 0, %s12
      %p9 = scmp.ge.s32.totalorder %s8, 4
      %s16 = sphi 0, %s16
      %s18 = sphi 0, %s16
      %s19 = sphi 0, %s18
      %s33 = sphi 0, %s19
      %s39 = sphi 0, %s41
      %s42 = sphi 0, %s39
      %s43 = sphi 0, %s42
      %s59 = sphi 0, %s43
      %s65 = sphi 0, %s67
      %s68 = sphi 0, %s65
      %s69 = sphi 0, %s68
      %s85 = sphi 0, %s69
    $region4: #{cae5_forward.47} parent=1 // loop_header_branch
      %11 = sbr.rel (%p9) target = $region8
    $region5: #{cae5_forward.47} parent=1 // loop_body
      %s13 = ssub.s32 %s8, 1
      %s14 = ssub.s32 %s8, 2
      %s15 = sadd.s32 %s8, 1
      %s17 = sadd.s32 %s16, 1
      %p20 = scmp.eq.s32.totalorder %s8, 1
      %p21 = scmp.ne.s32.totalorder %s16, %s18
      %p22 = scmp.eq.s32.totalorder %s8, 0
      %p23 = por %p21, %p22
      %p24 = scmp.ne.s32.totalorder %s16, %s18
      %p25 = scmp.eq.s32.totalorder %s13, 1
      %p26 = por %p24, %p25
      %p27 = scmp.ne.s32.totalorder %s18, %s19
      %p28 = scmp.eq.s32.totalorder %s13, 0
      %p29 = por %p27, %p28
      %p30 = scmp.ne.s32.totalorder %s18, %s19
      %p31 = scmp.eq.s32.totalorder %s14, 1
      %p32 = por %p30, %p31
      %p34 = scmp.ne.s32.totalorder %s19, %s33
      %p35 = scmp.eq.s32.totalorder %s14, 0
      %p36 = por %p34, %p35
      %s37 = ssub.s32 %s8, %s15
      %p38 = scmp.eq.s32.totalorder %s37, 0
      %s40 = sadd.s32 %s39, 1
      %s41 = scalar_select %p38, %s39, %s40
      %p44 = pneg %p38
      %p45 = scmp.eq.s32.totalorder %s8, 1
      %p46 = por %p44, %p45
      %p47 = scmp.ne.s32.totalorder %s39, %s42
      %p48 = scmp.eq.s32.totalorder %s8, 0
      %p49 = por %p47, %p48
      %p50 = scmp.ne.s32.totalorder %s39, %s42
      %p51 = scmp.eq.s32.totalorder %s13, 1
      %p52 = por %p50, %p51
      %p53 = scmp.ne.s32.totalorder %s42, %s43
      %p54 = scmp.eq.s32.totalorder %s13, 0
      %p55 = por %p53, %p54
      %p56 = scmp.ne.s32.totalorder %s42, %s43
      %p57 = scmp.eq.s32.totalorder %s14, 1
      %p58 = por %p56, %p57
      %p60 = scmp.ne.s32.totalorder %s43, %s59
      %p61 = scmp.eq.s32.totalorder %s14, 0
      %p62 = por %p60, %p61
      %s63 = ssub.s32 %s8, %s15
      %p64 = scmp.eq.s32.totalorder %s63, 0
      %s66 = sadd.s32 %s65, 1
      %s67 = scalar_select %p64, %s65, %s66
      %p70 = pneg %p64
      %p71 = scmp.eq.s32.totalorder %s8, 1
      %p72 = por %p70, %p71
      %p73 = scmp.ne.s32.totalorder %s65, %s68
      %p74 = scmp.eq.s32.totalorder %s8, 0
      %p75 = por %p73, %p74
      %p76 = scmp.ne.s32.totalorder %s65, %s68
      %p77 = scmp.eq.s32.totalorder %s13, 1
      %p78 = por %p76, %p77
      %p79 = scmp.ne.s32.totalorder %s68, %s69
      %p80 = scmp.eq.s32.totalorder %s13, 0
      %p81 = por %p79, %p80
      %p82 = scmp.ne.s32.totalorder %s68, %s69
      %p83 = scmp.eq.s32.totalorder %s14, 1
      %p84 = por %p82, %p83
      %p86 = scmp.ne.s32.totalorder %s69, %s85
      %p87 = scmp.eq.s32.totalorder %s14, 0
      %p88 = por %p86, %p87
      %p89 = scmp.le.s32.totalorder 1, %s8
      %p90 = scmp.lt.s32.totalorder %s8, 3
      %p91 = pnand %p89, %p90
      %p92 = pneg %p91
      // Predicated region
      $region9: #{cae5_forward.47} parent=5 // pred_check
        _
      $region10: #{cae5_forward.47} parent=5 // pred_check_branch
        %94 = sbr.rel (%p91) target = $region12
      $region11: #{cae5_forward.47} parent=5 // pred_region
        %s95 = ssub.s32 %s8, 1
        // Predicated region
        $region13: #{cae5_forward.47} parent=11 // pred_check
          %p96 = pneg %p29
        $region14: #{cae5_forward.47} parent=11 // pred_check_branch
          %98 = sbr.rel (%p96) target = $region16
        $region15: #{cae5_forward.47} parent=11 // pred_region
          _
        $region16: #{cae5_forward.47} parent=11 // pred_fallthru
          _
      $region12: #{cae5_forward.47} parent=5 // pred_fallthru
        _
      %p99 = scmp.lt.s32.totalorder %s8, 2
      // Predicated region
      $region17: #{cae5_forward.47} parent=5 // pred_check
        %p100 = pneg %p99
      $region18: #{cae5_forward.47} parent=5 // pred_check_branch
        %102 = sbr.rel (%p100) target = $region20
      $region19: #{cae5_forward.47} parent=5 // pred_region
        // Predicated region
        $region21: #{cae5_forward.47} parent=19 // pred_check
          %p103 = pneg %p49
        $region22: #{cae5_forward.47} parent=19 // pred_check_branch
          %105 = sbr.rel (%p103) target = $region24
        $region23: #{cae5_forward.47} parent=19 // pred_region
          %s106 = sand.u32 %s39, 1
          %s107 = sand.u32 %s39, 1
          %s108 = smul.addr %s107, 40
          %s109 = scalar_lea.vmem [#allocation2], %s108
          %s110 = smul.u32 2, %s8
          %s111 = smul.addr %s110, 4
          %s112 = scalar_lea.vmem %s1, %s111
          // Predicated region
          $region25: #{cae5_forward.47} parent=23 // pred_check
            _
          $region26: #{cae5_forward.47} parent=23 // pred_check_branch
            %114 = sbr.rel (0) target = $region28
          $region27: #{cae5_forward.47} parent=23 // pred_region
            // Predicated region
            $region29: #{cae5_forward.47} parent=27 // pred_check
              _
            $region30: #{cae5_forward.47} parent=27 // pred_check_branch
              %116 = sbr.rel (0) target = $region32
            $region31: #{cae5_forward.47} parent=27 // pred_region
              // Predicated region
              $region44: #{cae5_forward.47} parent=31 // pred_check
                _
              $region45: #{cae5_forward.47} parent=31 // pred_check_branch
                %139 = sbr.rel (0) target = $region47
              $region46: #{cae5_forward.47} parent=31 // pred_region
                loop: start=0, step=1, limit=1
                $region48: #{cae5_forward.47} parent=46 // loop_pre_header
                  _
                $region49: #{cae5_forward.47} parent=46 // loop_header
                  %s141 = sphi 0, %s145
                  %p142 = scmp.ge.s32.totalorder %s141, 1
                  %s146 = sphi %s112, %s112
                  %s147 = sphi %s109, %s109
                $region50: #{cae5_forward.47} parent=46 // loop_header_branch
                  %144 = sbr.rel (%p142) target = $region54
                $region51: #{cae5_forward.47} parent=46 // loop_body
                  %v148 = vld [vmem:[%s146] sm:$0xff]
                  %149 = vst [vmem:[%s147] sm:$0xff] %v148
                  %v150 = vld [vmem:[%s146 + $0x10] sm:$0xff]
                  %151 = vst [vmem:[%s147 + $0x8] sm:$0xff] %v150
                  %v152 = vld [vmem:[%s146 + $0x20] sm:$0xff]
                  %153 = vst [vmem:[%s147 + $0x10] sm:$0xff] %v152
                  %v154 = vld [vmem:[%s146 + $0x30] sm:$0xff]
                  %155 = vst [vmem:[%s147 + $0x18] sm:$0xff] %v154
                  %v156 = vld [vmem:[%s146 + $0x40] sm:$0xff]
                  %157 = vst [vmem:[%s147 + $0x20] sm:$0xff] %v156
                $region52: #{cae5_forward.47} parent=46 // loop_footer
                  %s145 = sadd.s32 1, %s141
                $region53: #{cae5_forward.47} parent=46 // loop_footer_branch
                  %140 = sbr.rel target = $region49
                $region54: #{cae5_forward.47} parent=46 // loop_exit
                  _
              $region47: #{cae5_forward.47} parent=31 // pred_fallthru
                _
              // Predicated region
              $region55: #{cae5_forward.47} parent=31 // pred_check
                _
              $region56: #{cae5_forward.47} parent=31 // pred_check_branch
                %159 = sbr.rel target = $region58
              $region57: #{cae5_forward.47} parent=31 // pred_region
                _
              $region58: #{cae5_forward.47} parent=31 // pred_fallthru
                _
            $region32: #{cae5_forward.47} parent=27 // pred_fallthru
              _
            // Predicated region
            $region33: #{cae5_forward.47} parent=27 // pred_check
              _
            $region34: #{cae5_forward.47} parent=27 // pred_check_branch
              %118 = sbr.rel target = $region36
            $region35: #{cae5_forward.47} parent=27 // pred_region
              loop: start=0, step=1, limit=1
              $region37: #{cae5_forward.47} parent=35 // loop_pre_header
                _
              $region38: #{cae5_forward.47} parent=35 // loop_header
                %s121 = sphi 0, %s125
                %p122 = scmp.ge.s32.totalorder %s121, 1
                %s126 = sphi %s112, %s112
                %s127 = sphi %s109, %s109
              $region39: #{cae5_forward.47} parent=35 // loop_header_branch
                %124 = sbr.rel (%p122) target = $region43
              $region40: #{cae5_forward.47} parent=35 // loop_body
                %v128 = vld [vmem:[%s126] sm:$0xff]
                %129 = vst [vmem:[%s127] sm:$0xff] %v128
                %v130 = vld [vmem:[%s126 + $0x10] sm:$0xff]
                %131 = vst [vmem:[%s127 + $0x8] sm:$0xff] %v130
                %v132 = vld [vmem:[%s126 + $0x20] sm:$0xff]
                %133 = vst [vmem:[%s127 + $0x10] sm:$0xff] %v132
                %v134 = vld [vmem:[%s126 + $0x30] sm:$0xff]
                %135 = vst [vmem:[%s127 + $0x18] sm:$0xff] %v134
                %v136 = vld [vmem:[%s126 + $0x40] sm:$0xff]
                %137 = vst [vmem:[%s127 + $0x20] sm:$0xff] %v136
              $region41: #{cae5_forward.47} parent=35 // loop_footer
                %s125 = sadd.s32 1, %s121
              $region42: #{cae5_forward.47} parent=35 // loop_footer_branch
                %120 = sbr.rel target = $region38
              $region43: #{cae5_forward.47} parent=35 // loop_exit
                _
            $region36: #{cae5_forward.47} parent=27 // pred_fallthru
              _
          $region28: #{cae5_forward.47} parent=23 // pred_fallthru
            _
          %160 = vnop
        $region24: #{cae5_forward.47} parent=19 // pred_fallthru
          _
      $region20: #{cae5_forward.47} parent=5 // pred_fallthru
        _
      %p161 = scmp.le.s32.totalorder 1, %s8
      %p162 = scmp.lt.s32.totalorder %s8, 3
      %p163 = pnand %p161, %p162
      %p164 = pneg %p163
      // Predicated region
      $region59: #{cae5_forward.47} parent=5 // pred_check
        _
      $region60: #{cae5_forward.47} parent=5 // pred_check_branch
        %166 = sbr.rel (%p163) target = $region62
      $region61: #{cae5_forward.47} parent=5 // pred_region
        %s167 = ssub.s32 %s8, 1
        %s168 = sand.u32 %s42, 1
        %s169 = sand.u32 %s42, 1
        %s170 = smul.addr %s169, 40
        %s171 = scalar_lea.vmem [#allocation2], %s170
        // Predicated region
        $region63: #{cae5_forward.47} parent=61 // pred_check
          %p172 = pneg %p55
        $region64: #{cae5_forward.47} parent=61 // pred_check_branch
          %174 = sbr.rel (%p172) target = $region66
        $region65: #{cae5_forward.47} parent=61 // pred_region
          _
        $region66: #{cae5_forward.47} parent=61 // pred_fallthru
          _
        %p175 = pneg %p29
        %p176 = pneg %p26
        %s177 = sand.u32 %s42, 1
        %s178 = sand.u32 %s42, 1
        %s179 = smul.addr %s178, 40
        %s180 = scalar_lea.vmem [#allocation2], %s179
        %p181 = pneg %p55
        %p182 = pneg %p52
        %p183 = pneg %p81
        %p184 = pneg %p78
        %s185 = smul.u32 2, %s13
        %p186 = scmp.lt.s32.totalorder %s185, 3
        %s187 = scalar_select %p186, %s185, 3
        %s188 = smul.addr %s187, 2
        %s189 = scalar_lea.vmem %s2, %s188
        %s190 = smul.u32 2, %s13
        %s191 = smul.u32 2, %s13
        %p192 = scmp.lt.s32.totalorder %s191, 3
        %s193 = scalar_select %p192, %s191, 3
        %s194 = smul.addr %s193, 2
        %s195 = scalar_lea.vmem %s2, %s194
        %s196 = smul.u32 2, %s13
        %v198 = vld [vmem:[%s0] sm:$0x3]
        %v199 = vld [vmem:[%s171] sm:$0xff]
        %v200 = vld [vmem:[%s171 + $0x8] sm:$0xff]
        %v201 = vld [vmem:[%s171 + $0x10] sm:$0xff]
        %v202 = vld [vmem:[%s171 + $0x18] sm:$0xff]
        %v203 = vld [vmem:[%s171 + $0x20] sm:$0xff]
        %v209 = vunpack.c.l.b16 %v199
        %v210 = vunpack.c.h.b16 %v199
        %v211 = vunpack.c.l.b16 %v200
        %v212 = vunpack.c.h.b16 %v200
        %v213 = vunpack.c.l.b16 %v201
        %v214 = vunpack.c.h.b16 %v201
        %v215 = vunpack.c.l.b16 %v202
        %v216 = vunpack.c.h.b16 %v202
        %v217 = vunpack.c.l.b16 %v203
        %v218 = vunpack.c.h.b16 %v203
        %v219 = vpack.c.b16 %v211, %v209
        %v220 = vpack.c.b16 %v212, %v210
        %v221 = vpack.c.b16 %v215, %v213
        %v222 = vpack.c.b16 %v216, %v214
        %v223 = vpack.c.b16 %v217, %v217
        %v224 = vpack.c.b16 %v218, %v218
        %vm229 = vcmask 326656
        %v231 = vsel %vm229, %v198, 0
        %vm233 = vcmask 1043456
        %v235 = vsel %vm233, %v223, 0
        %v238 = vsel %vm233, %v224, 0
        %240 = vmatprep.subr.bf16.mxu0 %v220
        %241 = vmatpush1.bf16.msra.mxu0 %v219
        %242 = vmatprep.subr.bf16.mxu0 %v222
        %243 = vmatpush1.bf16.msra.mxu0 %v221
        %244 = vmatprep.subr.bf16.mxu0 %v238
        %245 = vmatpush1.bf16.msra.mxu0 %v235
        %246 = vmatprep.subr.bf16.mxu0 0
        %247 = vmatpush1.bf16.msra.mxu0 0
        %248 = vmatprep.subr.bf16.mxu0 0
        %249 = vmatpush1.bf16.msra.mxu0 0
        %250 = vmatprep.subr.bf16.mxu0 0
        %251 = vmatpush1.bf16.msra.mxu0 0
        %252 = vmatprep.subr.bf16.mxu0 0
        %253 = vmatpush1.bf16.msra.mxu0 0
        %254 = vmatprep.subr.bf16.mxu0 0
        %255 = vmatpush1.bf16.msra.mxu0 0
        %256 = vmatprep.subr.bf16.mxu0 0
        %257 = vmatpush1.bf16.msra.mxu0 0
        %258 = vmatprep.subr.bf16.mxu0 0
        %259 = vmatpush1.bf16.msra.mxu0 0
        %260 = vmatprep.subr.bf16.mxu0 0
        %261 = vmatpush1.bf16.msra.mxu0 0
        %262 = vmatprep.subr.bf16.mxu0 0
        %263 = vmatpush1.bf16.msra.mxu0 0
        %264 = vmatprep.subr.bf16.mxu0 0
        %265 = vmatpush1.bf16.msra.mxu0 0
        %266 = vmatprep.subr.bf16.mxu0 0
        %267 = vmatpush1.bf16.msra.mxu0 0
        %268 = vmatprep.subr.bf16.mxu0 0
        %269 = vmatpush1.bf16.msra.mxu0 0
        %270 = vmatprep.subr.bf16.mxu0 0
        %271 = vmatpush1.bf16.msra.mxu0 0
        %272 = vmatprep.mubr.bf16.mxu0 0
        %273 = vmatmul.mubr.bf16.gmra.mrb[0].mxu0 %v231
        %v274 = vpop.f32.mrb[0].mxu0
        %v275 = vadd.f32 0.0, %v274
        %v276 = vpop.f32.mrb[0].mxu0
        %v277 = vadd.f32 0.0, %v276
        %v278 = vpop.f32.mrb[0].mxu0
        %v279 = vpop.f32.mrb[0].mxu0
        %280 = vdwg.mxu0
        %vm281 = vcmp.ge.f32.partialorder %v275, 0.0
        %vm282 = vcmp.ge.f32.partialorder %v277, 0.0
        %v283 = vmul.f32 %v275, 0.01
        %v284 = vmul.f32 %v277, 0.01
        %v285 = vsel %vm281, %v275, %v283
        %v286 = vsel %vm282, %v277, %v284
        %v287 = vpack.c.bf16 %v285, %v285
        %v288 = vpack.c.bf16 %v286, %v286
        %v291 = vcombine.low %v287, %v288
        %v293 = vunpack.c.l.s4 1983009808
        %v294 = vunpack.c.0.s8 %v293
        %v295 = vlaneseq
        %v296 = vshrl.u32 %v295, 7
        %v297 = vsub.s32 %v294, %v296
        %v298 = vrot.slane %v291, %v297
        %300 = vst [vmem:[%s195] sm:$0xf] %v298
        %s301 = smul.u32 2, %s13
        %p302 = scmp.lt.s32.totalorder %s301, 3
        %s303 = scalar_select %p302, %s301, 3
        %s304 = smul.addr %s303, 2
        %s305 = scalar_lea.vmem %s2, %s304
        // Predicated region
        $region67: #{cae5_forward.47} parent=61 // pred_check
          %p306 = pneg %p78
        $region68: #{cae5_forward.47} parent=61 // pred_check_branch
          %308 = sbr.rel (%p306) target = $region70
        $region69: #{cae5_forward.47} parent=61 // pred_region
          %s309 = smul.u32 2, %s13
        $region70: #{cae5_forward.47} parent=61 // pred_fallthru
          _
      $region62: #{cae5_forward.47} parent=5 // pred_fallthru
        _
      %p310 = scmp.le.s32.totalorder 2, %s8
      // Predicated region
      $region71: #{cae5_forward.47} parent=5 // pred_check
        %p311 = pneg %p310
      $region72: #{cae5_forward.47} parent=5 // pred_check_branch
        %313 = sbr.rel (%p311) target = $region74
      $region73: #{cae5_forward.47} parent=5 // pred_region
        %s314 = ssub.s32 %s8, 2
        // Predicated region
        $region75: #{cae5_forward.47} parent=73 // pred_check
          %p315 = pneg %p84
        $region76: #{cae5_forward.47} parent=73 // pred_check_branch
          %317 = sbr.rel (%p315) target = $region78
        $region77: #{cae5_forward.47} parent=73 // pred_region
          %s318 = smul.u32 2, %s14
          %p319 = scmp.lt.s32.totalorder %s318, 3
          %s320 = scalar_select %p319, %s318, 3
          %s321 = smul.addr %s320, 2
          %s322 = scalar_lea.vmem %s2, %s321
        $region78: #{cae5_forward.47} parent=73 // pred_fallthru
          _
      $region74: #{cae5_forward.47} parent=5 // pred_fallthru
        _
    $region6: #{cae5_forward.47} parent=1 // loop_footer
      %s12 = sadd.s32 1, %s8
    $region7: #{cae5_forward.47} parent=1 // loop_footer_branch
      %7 = sbr.rel target = $region3
    $region8: #{cae5_forward.47} parent=1 // loop_exit
      _

// kernel: cae5_forward.48
$region0: #{cae5_forward.48}
  #allocation0 [shape = 'u32[]', space=smem, size = 0x4, offset = 0x4, fixed_abs, tag = 'smem constant byte address 0x4 - core index']
  #allocation1 [shape = 'u32[144,128]{1,0:T(1,128)}', space=vmem, size = 0x12000, scoped, tag = 'internal scratch']
  %s0 = inlined_call_operand.vmem [shape: bf16[3,40], index: 0, kind: input, shape index: {}]
  %s1 = inlined_call_operand.vmem [shape: bf16[40,2048], index: 1, kind: input, shape index: {}]
  %s2 = inlined_call_operand.vmem [shape: f32[3,2048], index: 2, kind: output, shape index: {}]
  %s3 = sld [smem:[#allocation0]]
  $region64: #{cae5_forward.48} parent=0
    _
  %s5 = ssub.s32 1, %s3
  %s6 = scalar_select 0, %s5, %s3
  $region1: #{cae5_forward.48} parent=0
    #allocation2 [shape = 'u8[163840]{0}', space=vmem, size = 0x28000, scoped, tag = 'input window, operand 1']
    loop: start=0, step=1, limit=4
    $region2: #{cae5_forward.48} parent=1 // loop_pre_header
      _
    $region3: #{cae5_forward.48} parent=1 // loop_header
      %s8 = sphi 0, %s12
      %p9 = scmp.ge.s32.totalorder %s8, 4
      %s16 = sphi 0, %s16
      %s18 = sphi 0, %s16
      %s19 = sphi 0, %s18
      %s33 = sphi 0, %s19
      %s39 = sphi 0, %s41
      %s42 = sphi 0, %s39
      %s43 = sphi 0, %s42
      %s59 = sphi 0, %s43
      %s65 = sphi 0, %s67
      %s68 = sphi 0, %s65
      %s69 = sphi 0, %s68
      %s85 = sphi 0, %s69
    $region4: #{cae5_forward.48} parent=1 // loop_header_branch
      %11 = sbr.rel (%p9) target = $region8
    $region5: #{cae5_forward.48} parent=1 // loop_body
      %s13 = ssub.s32 %s8, 1
      %s14 = ssub.s32 %s8, 2
      %s15 = sadd.s32 %s8, 1
      %s17 = sadd.s32 %s16, 1
      %p20 = scmp.eq.s32.totalorder %s8, 1
      %p21 = scmp.ne.s32.totalorder %s16, %s18
      %p22 = scmp.eq.s32.totalorder %s8, 0
      %p23 = por %p21, %p22
      %p24 = scmp.ne.s32.totalorder %s16, %s18
      %p25 = scmp.eq.s32.totalorder %s13, 1
      %p26 = por %p24, %p25
      %p27 = scmp.ne.s32.totalorder %s18, %s19
      %p28 = scmp.eq.s32.totalorder %s13, 0
      %p29 = por %p27, %p28
      %p30 = scmp.ne.s32.totalorder %s18, %s19
      %p31 = scmp.eq.s32.totalorder %s14, 1
      %p32 = por %p30, %p31
      %p34 = scmp.ne.s32.totalorder %s19, %s33
      %p35 = scmp.eq.s32.totalorder %s14, 0
      %p36 = por %p34, %p35
      %s37 = ssub.s32 %s8, %s15
      %p38 = scmp.eq.s32.totalorder %s37, 0
      %s40 = sadd.s32 %s39, 1
      %s41 = scalar_select %p38, %s39, %s40
      %p44 = pneg %p38
      %p45 = scmp.eq.s32.totalorder %s8, 1
      %p46 = por %p44, %p45
      %p47 = scmp.ne.s32.totalorder %s39, %s42
      %p48 = scmp.eq.s32.totalorder %s8, 0
      %p49 = por %p47, %p48
      %p50 = scmp.ne.s32.totalorder %s39, %s42
      %p51 = scmp.eq.s32.totalorder %s13, 1
      %p52 = por %p50, %p51
      %p53 = scmp.ne.s32.totalorder %s42, %s43
      %p54 = scmp.eq.s32.totalorder %s13, 0
      %p55 = por %p53, %p54
      %p56 = scmp.ne.s32.totalorder %s42, %s43
      %p57 = scmp.eq.s32.totalorder %s14, 1
      %p58 = por %p56, %p57
      %p60 = scmp.ne.s32.totalorder %s43, %s59
      %p61 = scmp.eq.s32.totalorder %s14, 0
      %p62 = por %p60, %p61
      %s63 = ssub.s32 %s8, %s15
      %p64 = scmp.eq.s32.totalorder %s63, 0
      %s66 = sadd.s32 %s65, 1
      %s67 = scalar_select %p64, %s65, %s66
      %p70 = pneg %p64
      %p71 = scmp.eq.s32.totalorder %s8, 1
      %p72 = por %p70, %p71
      %p73 = scmp.ne.s32.totalorder %s65, %s68
      %p74 = scmp.eq.s32.totalorder %s8, 0
      %p75 = por %p73, %p74
      %p76 = scmp.ne.s32.totalorder %s65, %s68
      %p77 = scmp.eq.s32.totalorder %s13, 1
      %p78 = por %p76, %p77
      %p79 = scmp.ne.s32.totalorder %s68, %s69
      %p80 = scmp.eq.s32.totalorder %s13, 0
      %p81 = por %p79, %p80
      %p82 = scmp.ne.s32.totalorder %s68, %s69
      %p83 = scmp.eq.s32.totalorder %s14, 1
      %p84 = por %p82, %p83
      %p86 = scmp.ne.s32.totalorder %s69, %s85
      %p87 = scmp.eq.s32.totalorder %s14, 0
      %p88 = por %p86, %p87
      %p89 = scmp.le.s32.totalorder 1, %s8
      %p90 = scmp.lt.s32.totalorder %s8, 3
      %p91 = pnand %p89, %p90
      %p92 = pneg %p91
      // Predicated region
      $region9: #{cae5_forward.48} parent=5 // pred_check
        _
      $region10: #{cae5_forward.48} parent=5 // pred_check_branch
        %94 = sbr.rel (%p91) target = $region12
      $region11: #{cae5_forward.48} parent=5 // pred_region
        %s95 = ssub.s32 %s8, 1
        // Predicated region
        $region13: #{cae5_forward.48} parent=11 // pred_check
          %p96 = pneg %p29
        $region14: #{cae5_forward.48} parent=11 // pred_check_branch
          %98 = sbr.rel (%p96) target = $region16
        $region15: #{cae5_forward.48} parent=11 // pred_region
          _
        $region16: #{cae5_forward.48} parent=11 // pred_fallthru
          _
      $region12: #{cae5_forward.48} parent=5 // pred_fallthru
        _
      %p99 = scmp.lt.s32.totalorder %s8, 2
      // Predicated region
      $region17: #{cae5_forward.48} parent=5 // pred_check
        %p100 = pneg %p99
      $region18: #{cae5_forward.48} parent=5 // pred_check_branch
        %102 = sbr.rel (%p100) target = $region20
      $region19: #{cae5_forward.48} parent=5 // pred_region
        // Predicated region
        $region21: #{cae5_forward.48} parent=19 // pred_check
          %p103 = pneg %p49
        $region22: #{cae5_forward.48} parent=19 // pred_check_branch
          %105 = sbr.rel (%p103) target = $region24
        $region23: #{cae5_forward.48} parent=19 // pred_region
          %s106 = sand.u32 %s39, 1
          %s107 = sand.u32 %s39, 1
          %s108 = smul.addr %s107, 160
          %s109 = scalar_lea.vmem [#allocation2], %s108
          %s110 = smul.u32 8, %s8
          %s111 = smul.addr %s110, 4
          %s112 = scalar_lea.vmem %s1, %s111
          // Predicated region
          $region25: #{cae5_forward.48} parent=23 // pred_check
            _
          $region26: #{cae5_forward.48} parent=23 // pred_check_branch
            %114 = sbr.rel (0) target = $region28
          $region27: #{cae5_forward.48} parent=23 // pred_region
            // Predicated region
            $region29: #{cae5_forward.48} parent=27 // pred_check
              _
            $region30: #{cae5_forward.48} parent=27 // pred_check_branch
              %116 = sbr.rel (0) target = $region32
            $region31: #{cae5_forward.48} parent=27 // pred_region
              loop: start=0, step=1, limit=1
              $region33: #{cae5_forward.48} parent=31 // loop_pre_header
                _
              $region34: #{cae5_forward.48} parent=31 // loop_header
                %s118 = sphi 0, %s122
                %p119 = scmp.ge.s32.totalorder %s118, 1
                %s123 = sphi %s112, %s112
                %s124 = sphi %s109, %s109
              $region35: #{cae5_forward.48} parent=31 // loop_header_branch
                %121 = sbr.rel (%p119) target = $region39
              $region36: #{cae5_forward.48} parent=31 // loop_body
                %v125 = vld [vmem:[%s123] sm:$0xff]
                %126 = vst [vmem:[%s124] sm:$0xff] %v125
                %v127 = vld [vmem:[%s123 + $0x8] sm:$0xff]
                %128 = vst [vmem:[%s124 + $0x8] sm:$0xff] %v127
                %v129 = vld [vmem:[%s123 + $0x10] sm:$0xff]
                %130 = vst [vmem:[%s124 + $0x10] sm:$0xff] %v129
                %v131 = vld [vmem:[%s123 + $0x18] sm:$0xff]
                %132 = vst [vmem:[%s124 + $0x18] sm:$0xff] %v131
                %v133 = vld [vmem:[%s123 + $0x40] sm:$0xff]
                %134 = vst [vmem:[%s124 + $0x20] sm:$0xff] %v133
                %v135 = vld [vmem:[%s123 + $0x48] sm:$0xff]
                %136 = vst [vmem:[%s124 + $0x28] sm:$0xff] %v135
                %v137 = vld [vmem:[%s123 + $0x50] sm:$0xff]
                %138 = vst [vmem:[%s124 + $0x30] sm:$0xff] %v137
                %v139 = vld [vmem:[%s123 + $0x58] sm:$0xff]
                %140 = vst [vmem:[%s124 + $0x38] sm:$0xff] %v139
                %v141 = vld [vmem:[%s123 + $0x80] sm:$0xff]
                %142 = vst [vmem:[%s124 + $0x40] sm:$0xff] %v141
                %v143 = vld [vmem:[%s123 + $0x88] sm:$0xff]
                %144 = vst [vmem:[%s124 + $0x48] sm:$0xff] %v143
                %v145 = vld [vmem:[%s123 + $0x90] sm:$0xff]
                %146 = vst [vmem:[%s124 + $0x50] sm:$0xff] %v145
                %v147 = vld [vmem:[%s123 + $0x98] sm:$0xff]
                %148 = vst [vmem:[%s124 + $0x58] sm:$0xff] %v147
                %v149 = vld [vmem:[%s123 + $0xc0] sm:$0xff]
                %150 = vst [vmem:[%s124 + $0x60] sm:$0xff] %v149
                %v151 = vld [vmem:[%s123 + $0xc8] sm:$0xff]
                %152 = vst [vmem:[%s124 + $0x68] sm:$0xff] %v151
                %v153 = vld [vmem:[%s123 + $0xd0] sm:$0xff]
                %154 = vst [vmem:[%s124 + $0x70] sm:$0xff] %v153
                %v155 = vld [vmem:[%s123 + $0xd8] sm:$0xff]
                %156 = vst [vmem:[%s124 + $0x78] sm:$0xff] %v155
                %v157 = vld [vmem:[%s123 + $0x100] sm:$0xff]
                %158 = vst [vmem:[%s124 + $0x80] sm:$0xff] %v157
                %v159 = vld [vmem:[%s123 + $0x108] sm:$0xff]
                %160 = vst [vmem:[%s124 + $0x88] sm:$0xff] %v159
                %v161 = vld [vmem:[%s123 + $0x110] sm:$0xff]
                %162 = vst [vmem:[%s124 + $0x90] sm:$0xff] %v161
                %v163 = vld [vmem:[%s123 + $0x118] sm:$0xff]
                %164 = vst [vmem:[%s124 + $0x98] sm:$0xff] %v163
              $region37: #{cae5_forward.48} parent=31 // loop_footer
                %s122 = sadd.s32 1, %s118
              $region38: #{cae5_forward.48} parent=31 // loop_footer_branch
                %117 = sbr.rel target = $region34
              $region39: #{cae5_forward.48} parent=31 // loop_exit
                _
            $region32: #{cae5_forward.48} parent=27 // pred_fallthru
              _
            // Predicated region
            $region40: #{cae5_forward.48} parent=27 // pred_check
              _
            $region41: #{cae5_forward.48} parent=27 // pred_check_branch
              %166 = sbr.rel target = $region43
            $region42: #{cae5_forward.48} parent=27 // pred_region
              _
            $region43: #{cae5_forward.48} parent=27 // pred_fallthru
              _
          $region28: #{cae5_forward.48} parent=23 // pred_fallthru
            _
          %167 = vnop
        $region24: #{cae5_forward.48} parent=19 // pred_fallthru
          _
      $region20: #{cae5_forward.48} parent=5 // pred_fallthru
        _
      %p168 = scmp.le.s32.totalorder 1, %s8
      %p169 = scmp.lt.s32.totalorder %s8, 3
      %p170 = pnand %p168, %p169
      %p171 = pneg %p170
      // Predicated region
      $region44: #{cae5_forward.48} parent=5 // pred_check
        _
      $region45: #{cae5_forward.48} parent=5 // pred_check_branch
        %173 = sbr.rel (%p170) target = $region47
      $region46: #{cae5_forward.48} parent=5 // pred_region
        %s174 = ssub.s32 %s8, 1
        %s175 = sand.u32 %s42, 1
        %s176 = sand.u32 %s42, 1
        %s177 = smul.addr %s176, 160
        %s178 = scalar_lea.vmem [#allocation2], %s177
        // Predicated region
        $region48: #{cae5_forward.48} parent=46 // pred_check
          %p179 = pneg %p55
        $region49: #{cae5_forward.48} parent=46 // pred_check_branch
          %181 = sbr.rel (%p179) target = $region51
        $region50: #{cae5_forward.48} parent=46 // pred_region
          _
        $region51: #{cae5_forward.48} parent=46 // pred_fallthru
          _
        %p182 = pneg %p29
        %p183 = pneg %p26
        %s184 = sand.u32 %s42, 1
        %s185 = sand.u32 %s42, 1
        %s186 = smul.addr %s185, 160
        %s187 = scalar_lea.vmem [#allocation2], %s186
        %p188 = pneg %p55
        %p189 = pneg %p52
        %p190 = pneg %p81
        %p191 = pneg %p78
        %s192 = smul.u32 8, %s13
        %p193 = scmp.lt.s32.totalorder %s192, 15
        %s194 = scalar_select %p193, %s192, 15
        %s195 = smul.addr %s194, 4
        %s196 = scalar_lea.vmem %s2, %s195
        %s197 = smul.u32 8, %s13
        %s198 = smul.u32 8, %s13
        %p199 = scmp.lt.s32.totalorder %s198, 15
        %s200 = scalar_select %p199, %s198, 15
        %s201 = smul.addr %s200, 4
        %s202 = scalar_lea.vmem %s2, %s201
        %s203 = smul.u32 8, %s13
        %v205 = vld [vmem:[%s0] sm:$0x3]
        %v206 = vld [vmem:[%s178] sm:$0xff]
        %v207 = vld [vmem:[%s178 + $0x8] sm:$0xff]
        %v208 = vld [vmem:[%s178 + $0x10] sm:$0xff]
        %v209 = vld [vmem:[%s178 + $0x18] sm:$0xff]
        %v210 = vld [vmem:[%s178 + $0x20] sm:$0xff]
        %v211 = vld [vmem:[%s178 + $0x28] sm:$0xff]
        %v212 = vld [vmem:[%s178 + $0x30] sm:$0xff]
        %v213 = vld [vmem:[%s178 + $0x38] sm:$0xff]
        %v214 = vld [vmem:[%s178 + $0x40] sm:$0xff]
        %v215 = vld [vmem:[%s178 + $0x48] sm:$0xff]
        %v216 = vld [vmem:[%s178 + $0x50] sm:$0xff]
        %v217 = vld [vmem:[%s178 + $0x58] sm:$0xff]
        %v218 = vld [vmem:[%s178 + $0x60] sm:$0xff]
        %v219 = vld [vmem:[%s178 + $0x68] sm:$0xff]
        %v220 = vld [vmem:[%s178 + $0x70] sm:$0xff]
        %v221 = vld [vmem:[%s178 + $0x78] sm:$0xff]
        %v222 = vld [vmem:[%s178 + $0x80] sm:$0xff]
        %v223 = vld [vmem:[%s178 + $0x88] sm:$0xff]
        %v224 = vld [vmem:[%s178 + $0x90] sm:$0xff]
        %v225 = vld [vmem:[%s178 + $0x98] sm:$0xff]
        %v246 = vunpack.c.l.b16 %v206
        %v247 = vunpack.c.h.b16 %v206
        %v248 = vunpack.c.l.b16 %v207
        %v249 = vunpack.c.h.b16 %v207
        %v250 = vunpack.c.l.b16 %v208
        %v251 = vunpack.c.h.b16 %v208
        %v252 = vunpack.c.l.b16 %v209
        %v253 = vunpack.c.h.b16 %v209
        %v254 = vunpack.c.l.b16 %v210
        %v255 = vunpack.c.h.b16 %v210
        %v256 = vunpack.c.l.b16 %v211
        %v257 = vunpack.c.h.b16 %v211
        %v258 = vunpack.c.l.b16 %v212
        %v259 = vunpack.c.h.b16 %v212
        %v260 = vunpack.c.l.b16 %v213
        %v261 = vunpack.c.h.b16 %v213
        %v262 = vunpack.c.l.b16 %v214
        %v263 = vunpack.c.h.b16 %v214
        %v264 = vunpack.c.l.b16 %v215
        %v265 = vunpack.c.h.b16 %v215
        %v266 = vunpack.c.l.b16 %v216
        %v267 = vunpack.c.h.b16 %v216
        %v268 = vunpack.c.l.b16 %v217
        %v269 = vunpack.c.h.b16 %v217
        %v270 = vunpack.c.l.b16 %v218
        %v271 = vunpack.c.h.b16 %v218
        %v272 = vunpack.c.l.b16 %v219
        %v273 = vunpack.c.h.b16 %v219
        %v274 = vunpack.c.l.b16 %v220
        %v275 = vunpack.c.h.b16 %v220
        %v276 = vunpack.c.l.b16 %v221
        %v277 = vunpack.c.h.b16 %v221
        %v278 = vunpack.c.l.b16 %v222
        %v279 = vunpack.c.h.b16 %v222
        %v280 = vunpack.c.l.b16 %v223
        %v281 = vunpack.c.h.b16 %v223
        %v282 = vunpack.c.l.b16 %v224
        %v283 = vunpack.c.h.b16 %v224
        %v284 = vunpack.c.l.b16 %v225
        %v285 = vunpack.c.h.b16 %v225
        %v286 = vpack.c.b16 %v254, %v246
        %v287 = vpack.c.b16 %v255, %v247
        %v288 = vpack.c.b16 %v256, %v248
        %v289 = vpack.c.b16 %v257, %v249
        %v290 = vpack.c.b16 %v258, %v250
        %v291 = vpack.c.b16 %v259, %v251
        %v292 = vpack.c.b16 %v260, %v252
        %v293 = vpack.c.b16 %v261, %v253
        %v294 = vpack.c.b16 %v270, %v262
        %v295 = vpack.c.b16 %v271, %v263
        %v296 = vpack.c.b16 %v272, %v264
        %v297 = vpack.c.b16 %v273, %v265
        %v298 = vpack.c.b16 %v274, %v266
        %v299 = vpack.c.b16 %v275, %v267
        %v300 = vpack.c.b16 %v276, %v268
        %v301 = vpack.c.b16 %v277, %v269
        %v302 = vpack.c.b16 %v278, %v278
        %v303 = vpack.c.b16 %v279, %v279
        %v304 = vpack.c.b16 %v280, %v280
        %v305 = vpack.c.b16 %v281, %v281
        %v306 = vpack.c.b16 %v282, %v282
        %v307 = vpack.c.b16 %v283, %v283
        %v308 = vpack.c.b16 %v284, %v284
        %v309 = vpack.c.b16 %v285, %v285
        %vm326 = vcmask 326656
        %v328 = vsel %vm326, %v205, 0
        %vm330 = vcmask 1043456
        %v332 = vsel %vm330, %v302, 0
        %v335 = vsel %vm330, %v303, 0
        %v338 = vsel %vm330, %v304, 0
        %v341 = vsel %vm330, %v305, 0
        %v344 = vsel %vm330, %v306, 0
        %v347 = vsel %vm330, %v307, 0
        %v350 = vsel %vm330, %v308, 0
        %v353 = vsel %vm330, %v309, 0
        %355 = vmatprep.subr.bf16.mxu0 %v287
        %356 = vmatpush1.bf16.msra.mxu0 %v286
        %357 = vmatprep.subr.bf16.mxu0 %v295
        %358 = vmatpush1.bf16.msra.mxu0 %v294
        %359 = vmatprep.subr.bf16.mxu0 %v335
        %360 = vmatpush1.bf16.msra.mxu0 %v332
        %361 = vmatprep.subr.bf16.mxu0 0
        %362 = vmatpush1.bf16.msra.mxu0 0
        %363 = vmatprep.subr.bf16.mxu0 0
        %364 = vmatpush1.bf16.msra.mxu0 0
        %365 = vmatprep.subr.bf16.mxu0 0
        %366 = vmatpush1.bf16.msra.mxu0 0
        %367 = vmatprep.subr.bf16.mxu0 0
        %368 = vmatpush1.bf16.msra.mxu0 0
        %369 = vmatprep.subr.bf16.mxu0 0
        %370 = vmatpush1.bf16.msra.mxu0 0
        %371 = vmatprep.subr.bf16.mxu0 0
        %372 = vmatpush1.bf16.msra.mxu0 0
        %373 = vmatprep.subr.bf16.mxu0 0
        %374 = vmatpush1.bf16.msra.mxu0 0
        %375 = vmatprep.subr.bf16.mxu0 0
        %376 = vmatpush1.bf16.msra.mxu0 0
        %377 = vmatprep.subr.bf16.mxu0 0
        %378 = vmatpush1.bf16.msra.mxu0 0
        %379 = vmatprep.subr.bf16.mxu0 0
        %380 = vmatpush1.bf16.msra.mxu0 0
        %381 = vmatprep.subr.bf16.mxu0 0
        %382 = vmatpush1.bf16.msra.mxu0 0
        %383 = vmatprep.subr.bf16.mxu0 0
        %384 = vmatpush1.bf16.msra.mxu0 0
        %385 = vmatprep.subr.bf16.mxu0 0
        %386 = vmatpush1.bf16.msra.mxu0 0
        %387 = vmatprep.mubr.bf16.mxu0 0
        %388 = vmatmul.mubr.bf16.gmra.mrb[0].mxu0 %v328
        %v389 = vpop.f32.mrb[0].mxu0
        %v390 = vadd.f32 0.0, %v389
        %v391 = vpop.f32.mrb[0].mxu0
        %v392 = vadd.f32 0.0, %v391
        %v393 = vpop.f32.mrb[0].mxu0
        %v394 = vpop.f32.mrb[0].mxu0
        %395 = vdwg.mxu0
        %396 = vmatprep.subr.bf16.mxu0 %v289
        %397 = vmatpush1.bf16.msra.mxu0 %v288
        %398 = vmatprep.subr.bf16.mxu0 %v297
        %399 = vmatpush1.bf16.msra.mxu0 %v296
        %400 = vmatprep.subr.bf16.mxu0 %v341
        %401 = vmatpush1.bf16.msra.mxu0 %v338
        %402 = vmatprep.subr.bf16.mxu0 0
        %403 = vmatpush1.bf16.msra.mxu0 0
        %404 = vmatprep.subr.bf16.mxu0 0
        %405 = vmatpush1.bf16.msra.mxu0 0
        %406 = vmatprep.subr.bf16.mxu0 0
        %407 = vmatpush1.bf16.msra.mxu0 0
        %408 = vmatprep.subr.bf16.mxu0 0
        %409 = vmatpush1.bf16.msra.mxu0 0
        %410 = vmatprep.subr.bf16.mxu0 0
        %411 = vmatpush1.bf16.msra.mxu0 0
        %412 = vmatprep.subr.bf16.mxu0 0
        %413 = vmatpush1.bf16.msra.mxu0 0
        %414 = vmatprep.subr.bf16.mxu0 0
        %415 = vmatpush1.bf16.msra.mxu0 0
        %416 = vmatprep.subr.bf16.mxu0 0
        %417 = vmatpush1.bf16.msra.mxu0 0
        %418 = vmatprep.subr.bf16.mxu0 0
        %419 = vmatpush1.bf16.msra.mxu0 0
        %420 = vmatprep.subr.bf16.mxu0 0
        %421 = vmatpush1.bf16.msra.mxu0 0
        %422 = vmatprep.subr.bf16.mxu0 0
        %423 = vmatpush1.bf16.msra.mxu0 0
        %424 = vmatprep.subr.bf16.mxu0 0
        %425 = vmatpush1.bf16.msra.mxu0 0
        %426 = vmatprep.subr.bf16.mxu0 0
        %427 = vmatpush1.bf16.msra.mxu0 0
        %428 = vmatprep.mubr.bf16.mxu0 0
        %429 = vmatmul.mubr.bf16.gmra.mrb[0].mxu0 %v328
        %v430 = vpop.f32.mrb[0].mxu0
        %v431 = vadd.f32 0.0, %v430
        %v432 = vpop.f32.mrb[0].mxu0
        %v433 = vadd.f32 0.0, %v432
        %v434 = vpop.f32.mrb[0].mxu0
        %v435 = vpop.f32.mrb[0].mxu0
        %436 = vdwg.mxu0
        %437 = vmatprep.subr.bf16.mxu0 %v291
        %438 = vmatpush1.bf16.msra.mxu0 %v290
        %439 = vmatprep.subr.bf16.mxu0 %v299
        %440 = vmatpush1.bf16.msra.mxu0 %v298
        %441 = vmatprep.subr.bf16.mxu0 %v347
        %442 = vmatpush1.bf16.msra.mxu0 %v344
        %443 = vmatprep.subr.bf16.mxu0 0
        %444 = vmatpush1.bf16.msra.mxu0 0
        %445 = vmatprep.subr.bf16.mxu0 0
        %446 = vmatpush1.bf16.msra.mxu0 0
        %447 = vmatprep.subr.bf16.mxu0 0
        %448 = vmatpush1.bf16.msra.mxu0 0
        %449 = vmatprep.subr.bf16.mxu0 0
        %450 = vmatpush1.bf16.msra.mxu0 0
        %451 = vmatprep.subr.bf16.mxu0 0
        %452 = vmatpush1.bf16.msra.mxu0 0
        %453 = vmatprep.subr.bf16.mxu0 0
        %454 = vmatpush1.bf16.msra.mxu0 0
        %455 = vmatprep.subr.bf16.mxu0 0
        %456 = vmatpush1.bf16.msra.mxu0 0
        %457 = vmatprep.subr.bf16.mxu0 0
        %458 = vmatpush1.bf16.msra.mxu0 0
        %459 = vmatprep.subr.bf16.mxu0 0
        %460 = vmatpush1.bf16.msra.mxu0 0
        %461 = vmatprep.subr.bf16.mxu0 0
        %462 = vmatpush1.bf16.msra.mxu0 0
        %463 = vmatprep.subr.bf16.mxu0 0
        %464 = vmatpush1.bf16.msra.mxu0 0
        %465 = vmatprep.subr.bf16.mxu0 0
        %466 = vmatpush1.bf16.msra.mxu0 0
        %467 = vmatprep.subr.bf16.mxu0 0
        %468 = vmatpush1.bf16.msra.mxu0 0
        %469 = vmatprep.mubr.bf16.mxu0 0
        %470 = vmatmul.mubr.bf16.gmra.mrb[0].mxu0 %v328
        %v471 = vpop.f32.mrb[0].mxu0
        %v472 = vadd.f32 0.0, %v471
        %v473 = vpop.f32.mrb[0].mxu0
        %v474 = vadd.f32 0.0, %v473
        %v475 = vpop.f32.mrb[0].mxu0
        %v476 = vpop.f32.mrb[0].mxu0
        %477 = vdwg.mxu0
        %478 = vmatprep.subr.bf16.mxu0 %v293
        %479 = vmatpush1.bf16.msra.mxu0 %v292
        %480 = vmatprep.subr.bf16.mxu0 %v301
        %481 = vmatpush1.bf16.msra.mxu0 %v300
        %482 = vmatprep.subr.bf16.mxu0 %v353
        %483 = vmatpush1.bf16.msra.mxu0 %v350
        %484 = vmatprep.subr.bf16.mxu0 0
        %485 = vmatpush1.bf16.msra.mxu0 0
        %486 = vmatprep.subr.bf16.mxu0 0
        %487 = vmatpush1.bf16.msra.mxu0 0
        %488 = vmatprep.subr.bf16.mxu0 0
        %489 = vmatpush1.bf16.msra.mxu0 0
        %490 = vmatprep.subr.bf16.mxu0 0
        %491 = vmatpush1.bf16.msra.mxu0 0
        %492 = vmatprep.subr.bf16.mxu0 0
        %493 = vmatpush1.bf16.msra.mxu0 0
        %494 = vmatprep.subr.bf16.mxu0 0
        %495 = vmatpush1.bf16.msra.mxu0 0
        %496 = vmatprep.subr.bf16.mxu0 0
        %497 = vmatpush1.bf16.msra.mxu0 0
        %498 = vmatprep.subr.bf16.mxu0 0
        %499 = vmatpush1.bf16.msra.mxu0 0
        %500 = vmatprep.subr.bf16.mxu0 0
        %501 = vmatpush1.bf16.msra.mxu0 0
        %502 = vmatprep.subr.bf16.mxu0 0
        %503 = vmatpush1.bf16.msra.mxu0 0
        %504 = vmatprep.subr.bf16.mxu0 0
        %505 = vmatpush1.bf16.msra.mxu0 0
        %506 = vmatprep.subr.bf16.mxu0 0
        %507 = vmatpush1.bf16.msra.mxu0 0
        %508 = vmatprep.subr.bf16.mxu0 0
        %509 = vmatpush1.bf16.msra.mxu0 0
        %510 = vmatprep.mubr.bf16.mxu0 0
        %511 = vmatmul.mubr.bf16.gmra.mrb[0].mxu0 %v328
        %v512 = vpop.f32.mrb[0].mxu0
        %v513 = vadd.f32 0.0, %v512
        %v514 = vpop.f32.mrb[0].mxu0
        %v515 = vadd.f32 0.0, %v514
        %v516 = vpop.f32.mrb[0].mxu0
        %v517 = vpop.f32.mrb[0].mxu0
        %518 = vdwg.mxu0
        %v527 = vcombine.low %v390, %v392
        %v528 = vcombine.low %v431, %v433
        %v529 = vcombine.low %v472, %v474
        %v530 = vcombine.low %v513, %v515
        %535 = vst [vmem:[%s202] sm:$0x77] %v527
        %536 = vst [vmem:[%s202 + $0x8] sm:$0x77] %v528
        %537 = vst [vmem:[%s202 + $0x10] sm:$0x77] %v529
        %538 = vst [vmem:[%s202 + $0x18] sm:$0x77] %v530
        %s539 = smul.u32 8, %s13
        %p540 = scmp.lt.s32.totalorder %s539, 15
        %s541 = scalar_select %p540, %s539, 15
        %s542 = smul.addr %s541, 4
        %s543 = scalar_lea.vmem %s2, %s542
        // Predicated region
        $region52: #{cae5_forward.48} parent=46 // pred_check
          %p544 = pneg %p78
        $region53: #{cae5_forward.48} parent=46 // pred_check_branch
          %546 = sbr.rel (%p544) target = $region55
        $region54: #{cae5_forward.48} parent=46 // pred_region
          %s547 = smul.u32 8, %s13
        $region55: #{cae5_forward.48} parent=46 // pred_fallthru
          _
      $region47: #{cae5_forward.48} parent=5 // pred_fallthru
        _
      %p548 = scmp.le.s32.totalorder 2, %s8
      // Predicated region
      $region56: #{cae5_forward.48} parent=5 // pred_check
        %p549 = pneg %p548
      $region57: #{cae5_forward.48} parent=5 // pred_check_branch
        %551 = sbr.rel (%p549) target = $region59
      $region58: #{cae5_forward.48} parent=5 // pred_region
        %s552 = ssub.s32 %s8, 2
        // Predicated region
        $region60: #{cae5_forward.48} parent=58 // pred_check
          %p553 = pneg %p84
        $region61: #{cae5_forward.48} parent=58 // pred_check_branch
          %555 = sbr.rel (%p553) target = $region63
        $region62: #{cae5_forward.48} parent=58 // pred_region
          %s556 = smul.u32 8, %s14
          %p557 = scmp.lt.s32.totalorder %s556, 15
          %s558 = scalar_select %p557, %s556, 15
          %s559 = smul.addr %s558, 4
          %s560 = scalar_lea.vmem %s2, %s559
        $region63: #{cae5_forward.48} parent=58 // pred_fallthru
          _
      $region59: #{cae5_forward.48} parent=5 // pred_fallthru
        _
    $region6: #{cae5_forward.48} parent=1 // loop_footer
      %s12 = sadd.s32 1, %s8
    $region7: #{cae5_forward.48} parent=1 // loop_footer_branch
      %7 = sbr.rel target = $region3
    $region8: #{cae5_forward.48} parent=1 // loop_exit
      _

// kernel: cae5_forward.49
$region0: #{cae5_forward.49}
  #allocation0 [shape = 'u32[]', space=smem, size = 0x4, offset = 0x4, fixed_abs, tag = 'smem constant byte address 0x4 - core index']
  #allocation1 [shape = 'u32[144,128]{1,0:T(1,128)}', space=vmem, size = 0x12000, scoped, tag = 'internal scratch']
  %s0 = inlined_call_operand.vmem [shape: bf16[3,32], index: 0, kind: input, shape index: {}]
  %s1 = inlined_call_operand.vmem [shape: bf16[32,2048], index: 1, kind: input, shape index: {}]
  %s2 = inlined_call_operand.vmem [shape: f32[3,2048], index: 2, kind: output, shape index: {}]
  %s3 = sld [smem:[#allocation0]]
  $region64: #{cae5_forward.49} parent=0
    _
  %s5 = ssub.s32 1, %s3
  %s6 = scalar_select 0, %s5, %s3
  $region1: #{cae5_forward.49} parent=0
    #allocation2 [shape = 'u8[131072]{0}', space=vmem, size = 0x20000, scoped, tag = 'input window, operand 1']
    loop: start=0, step=1, limit=4
    $region2: #{cae5_forward.49} parent=1 // loop_pre_header
      _
    $region3: #{cae5_forward.49} parent=1 // loop_header
      %s8 = sphi 0, %s12
      %p9 = scmp.ge.s32.totalorder %s8, 4
      %s16 = sphi 0, %s16
      %s18 = sphi 0, %s16
      %s19 = sphi 0, %s18
      %s33 = sphi 0, %s19
      %s39 = sphi 0, %s41
      %s42 = sphi 0, %s39
      %s43 = sphi 0, %s42
      %s59 = sphi 0, %s43
      %s65 = sphi 0, %s67
      %s68 = sphi 0, %s65
      %s69 = sphi 0, %s68
      %s85 = sphi 0, %s69
    $region4: #{cae5_forward.49} parent=1 // loop_header_branch
      %11 = sbr.rel (%p9) target = $region8
    $region5: #{cae5_forward.49} parent=1 // loop_body
      %s13 = ssub.s32 %s8, 1
      %s14 = ssub.s32 %s8, 2
      %s15 = sadd.s32 %s8, 1
      %s17 = sadd.s32 %s16, 1
      %p20 = scmp.eq.s32.totalorder %s8, 1
      %p21 = scmp.ne.s32.totalorder %s16, %s18
      %p22 = scmp.eq.s32.totalorder %s8, 0
      %p23 = por %p21, %p22
      %p24 = scmp.ne.s32.totalorder %s16, %s18
      %p25 = scmp.eq.s32.totalorder %s13, 1
      %p26 = por %p24, %p25
      %p27 = scmp.ne.s32.totalorder %s18, %s19
      %p28 = scmp.eq.s32.totalorder %s13, 0
      %p29 = por %p27, %p28
      %p30 = scmp.ne.s32.totalorder %s18, %s19
      %p31 = scmp.eq.s32.totalorder %s14, 1
      %p32 = por %p30, %p31
      %p34 = scmp.ne.s32.totalorder %s19, %s33
      %p35 = scmp.eq.s32.totalorder %s14, 0
      %p36 = por %p34, %p35
      %s37 = ssub.s32 %s8, %s15
      %p38 = scmp.eq.s32.totalorder %s37, 0
      %s40 = sadd.s32 %s39, 1
      %s41 = scalar_select %p38, %s39, %s40
      %p44 = pneg %p38
      %p45 = scmp.eq.s32.totalorder %s8, 1
      %p46 = por %p44, %p45
      %p47 = scmp.ne.s32.totalorder %s39, %s42
      %p48 = scmp.eq.s32.totalorder %s8, 0
      %p49 = por %p47, %p48
      %p50 = scmp.ne.s32.totalorder %s39, %s42
      %p51 = scmp.eq.s32.totalorder %s13, 1
      %p52 = por %p50, %p51
      %p53 = scmp.ne.s32.totalorder %s42, %s43
      %p54 = scmp.eq.s32.totalorder %s13, 0
      %p55 = por %p53, %p54
      %p56 = scmp.ne.s32.totalorder %s42, %s43
      %p57 = scmp.eq.s32.totalorder %s14, 1
      %p58 = por %p56, %p57
      %p60 = scmp.ne.s32.totalorder %s43, %s59
      %p61 = scmp.eq.s32.totalorder %s14, 0
      %p62 = por %p60, %p61
      %s63 = ssub.s32 %s8, %s15
      %p64 = scmp.eq.s32.totalorder %s63, 0
      %s66 = sadd.s32 %s65, 1
      %s67 = scalar_select %p64, %s65, %s66
      %p70 = pneg %p64
      %p71 = scmp.eq.s32.totalorder %s8, 1
      %p72 = por %p70, %p71
      %p73 = scmp.ne.s32.totalorder %s65, %s68
      %p74 = scmp.eq.s32.totalorder %s8, 0
      %p75 = por %p73, %p74
      %p76 = scmp.ne.s32.totalorder %s65, %s68
      %p77 = scmp.eq.s32.totalorder %s13, 1
      %p78 = por %p76, %p77
      %p79 = scmp.ne.s32.totalorder %s68, %s69
      %p80 = scmp.eq.s32.totalorder %s13, 0
      %p81 = por %p79, %p80
      %p82 = scmp.ne.s32.totalorder %s68, %s69
      %p83 = scmp.eq.s32.totalorder %s14, 1
      %p84 = por %p82, %p83
      %p86 = scmp.ne.s32.totalorder %s69, %s85
      %p87 = scmp.eq.s32.totalorder %s14, 0
      %p88 = por %p86, %p87
      %p89 = scmp.le.s32.totalorder 1, %s8
      %p90 = scmp.lt.s32.totalorder %s8, 3
      %p91 = pnand %p89, %p90
      %p92 = pneg %p91
      // Predicated region
      $region9: #{cae5_forward.49} parent=5 // pred_check
        _
      $region10: #{cae5_forward.49} parent=5 // pred_check_branch
        %94 = sbr.rel (%p91) target = $region12
      $region11: #{cae5_forward.49} parent=5 // pred_region
        %s95 = ssub.s32 %s8, 1
        // Predicated region
        $region13: #{cae5_forward.49} parent=11 // pred_check
          %p96 = pneg %p29
        $region14: #{cae5_forward.49} parent=11 // pred_check_branch
          %98 = sbr.rel (%p96) target = $region16
        $region15: #{cae5_forward.49} parent=11 // pred_region
          _
        $region16: #{cae5_forward.49} parent=11 // pred_fallthru
          _
      $region12: #{cae5_forward.49} parent=5 // pred_fallthru
        _
      %p99 = scmp.lt.s32.totalorder %s8, 2
      // Predicated region
      $region17: #{cae5_forward.49} parent=5 // pred_check
        %p100 = pneg %p99
      $region18: #{cae5_forward.49} parent=5 // pred_check_branch
        %102 = sbr.rel (%p100) target = $region20
      $region19: #{cae5_forward.49} parent=5 // pred_region
        // Predicated region
        $region21: #{cae5_forward.49} parent=19 // pred_check
          %p103 = pneg %p49
        $region22: #{cae5_forward.49} parent=19 // pred_check_branch
          %105 = sbr.rel (%p103) target = $region24
        $region23: #{cae5_forward.49} parent=19 // pred_region
          %s106 = sand.u32 %s39, 1
          %s107 = sand.u32 %s39, 1
          %s108 = smul.addr %s107, 128
          %s109 = scalar_lea.vmem [#allocation2], %s108
          %s110 = smul.u32 8, %s8
          %s111 = smul.addr %s110, 4
          %s112 = scalar_lea.vmem %s1, %s111
          // Predicated region
          $region25: #{cae5_forward.49} parent=23 // pred_check
            _
          $region26: #{cae5_forward.49} parent=23 // pred_check_branch
            %114 = sbr.rel (0) target = $region28
          $region27: #{cae5_forward.49} parent=23 // pred_region
            // Predicated region
            $region29: #{cae5_forward.49} parent=27 // pred_check
              _
            $region30: #{cae5_forward.49} parent=27 // pred_check_branch
              %116 = sbr.rel (0) target = $region32
            $region31: #{cae5_forward.49} parent=27 // pred_region
              loop: start=0, step=1, limit=1
              $region33: #{cae5_forward.49} parent=31 // loop_pre_header
                _
              $region34: #{cae5_forward.49} parent=31 // loop_header
                %s118 = sphi 0, %s122
                %p119 = scmp.ge.s32.totalorder %s118, 1
                %s123 = sphi %s112, %s112
                %s124 = sphi %s109, %s109
              $region35: #{cae5_forward.49} parent=31 // loop_header_branch
                %121 = sbr.rel (%p119) target = $region39
              $region36: #{cae5_forward.49} parent=31 // loop_body
                %v125 = vld [vmem:[%s123] sm:$0xff]
                %126 = vst [vmem:[%s124] sm:$0xff] %v125
                %v127 = vld [vmem:[%s123 + $0x8] sm:$0xff]
                %128 = vst [vmem:[%s124 + $0x8] sm:$0xff] %v127
                %v129 = vld [vmem:[%s123 + $0x10] sm:$0xff]
                %130 = vst [vmem:[%s124 + $0x10] sm:$0xff] %v129
                %v131 = vld [vmem:[%s123 + $0x18] sm:$0xff]
                %132 = vst [vmem:[%s124 + $0x18] sm:$0xff] %v131
                %v133 = vld [vmem:[%s123 + $0x40] sm:$0xff]
                %134 = vst [vmem:[%s124 + $0x20] sm:$0xff] %v133
                %v135 = vld [vmem:[%s123 + $0x48] sm:$0xff]
                %136 = vst [vmem:[%s124 + $0x28] sm:$0xff] %v135
                %v137 = vld [vmem:[%s123 + $0x50] sm:$0xff]
                %138 = vst [vmem:[%s124 + $0x30] sm:$0xff] %v137
                %v139 = vld [vmem:[%s123 + $0x58] sm:$0xff]
                %140 = vst [vmem:[%s124 + $0x38] sm:$0xff] %v139
                %v141 = vld [vmem:[%s123 + $0x80] sm:$0xff]
                %142 = vst [vmem:[%s124 + $0x40] sm:$0xff] %v141
                %v143 = vld [vmem:[%s123 + $0x88] sm:$0xff]
                %144 = vst [vmem:[%s124 + $0x48] sm:$0xff] %v143
                %v145 = vld [vmem:[%s123 + $0x90] sm:$0xff]
                %146 = vst [vmem:[%s124 + $0x50] sm:$0xff] %v145
                %v147 = vld [vmem:[%s123 + $0x98] sm:$0xff]
                %148 = vst [vmem:[%s124 + $0x58] sm:$0xff] %v147
                %v149 = vld [vmem:[%s123 + $0xc0] sm:$0xff]
                %150 = vst [vmem:[%s124 + $0x60] sm:$0xff] %v149
                %v151 = vld [vmem:[%s123 + $0xc8] sm:$0xff]
                %152 = vst [vmem:[%s124 + $0x68] sm:$0xff] %v151
                %v153 = vld [vmem:[%s123 + $0xd0] sm:$0xff]
                %154 = vst [vmem:[%s124 + $0x70] sm:$0xff] %v153
                %v155 = vld [vmem:[%s123 + $0xd8] sm:$0xff]
                %156 = vst [vmem:[%s124 + $0x78] sm:$0xff] %v155
              $region37: #{cae5_forward.49} parent=31 // loop_footer
                %s122 = sadd.s32 1, %s118
              $region38: #{cae5_forward.49} parent=31 // loop_footer_branch
                %117 = sbr.rel target = $region34
              $region39: #{cae5_forward.49} parent=31 // loop_exit
                _
            $region32: #{cae5_forward.49} parent=27 // pred_fallthru
              _
            // Predicated region
            $region40: #{cae5_forward.49} parent=27 // pred_check
              _
            $region41: #{cae5_forward.49} parent=27 // pred_check_branch
              %158 = sbr.rel target = $region43
            $region42: #{cae5_forward.49} parent=27 // pred_region
              _
            $region43: #{cae5_forward.49} parent=27 // pred_fallthru
              _
          $region28: #{cae5_forward.49} parent=23 // pred_fallthru
            _
          %159 = vnop
        $region24: #{cae5_forward.49} parent=19 // pred_fallthru
          _
      $region20: #{cae5_forward.49} parent=5 // pred_fallthru
        _
      %p160 = scmp.le.s32.totalorder 1, %s8
      %p161 = scmp.lt.s32.totalorder %s8, 3
      %p162 = pnand %p160, %p161
      %p163 = pneg %p162
      // Predicated region
      $region44: #{cae5_forward.49} parent=5 // pred_check
        _
      $region45: #{cae5_forward.49} parent=5 // pred_check_branch
        %165 = sbr.rel (%p162) target = $region47
      $region46: #{cae5_forward.49} parent=5 // pred_region
        %s166 = ssub.s32 %s8, 1
        %s167 = sand.u32 %s42, 1
        %s168 = sand.u32 %s42, 1
        %s169 = smul.addr %s168, 128
        %s170 = scalar_lea.vmem [#allocation2], %s169
        // Predicated region
        $region48: #{cae5_forward.49} parent=46 // pred_check
          %p171 = pneg %p55
        $region49: #{cae5_forward.49} parent=46 // pred_check_branch
          %173 = sbr.rel (%p171) target = $region51
        $region50: #{cae5_forward.49} parent=46 // pred_region
          _
        $region51: #{cae5_forward.49} parent=46 // pred_fallthru
          _
        %p174 = pneg %p29
        %p175 = pneg %p26
        %s176 = sand.u32 %s42, 1
        %s177 = sand.u32 %s42, 1
        %s178 = smul.addr %s177, 128
        %s179 = scalar_lea.vmem [#allocation2], %s178
        %p180 = pneg %p55
        %p181 = pneg %p52
        %p182 = pneg %p81
        %p183 = pneg %p78
        %s184 = smul.u32 8, %s13
        %p185 = scmp.lt.s32.totalorder %s184, 15
        %s186 = scalar_select %p185, %s184, 15
        %s187 = smul.addr %s186, 4
        %s188 = scalar_lea.vmem %s2, %s187
        %s189 = smul.u32 8, %s13
        %s190 = smul.u32 8, %s13
        %p191 = scmp.lt.s32.totalorder %s190, 15
        %s192 = scalar_select %p191, %s190, 15
        %s193 = smul.addr %s192, 4
        %s194 = scalar_lea.vmem %s2, %s193
        %s195 = smul.u32 8, %s13
        %v197 = vld [vmem:[%s0] sm:$0x3]
        %v198 = vld [vmem:[%s170] sm:$0xff]
        %v199 = vld [vmem:[%s170 + $0x8] sm:$0xff]
        %v200 = vld [vmem:[%s170 + $0x10] sm:$0xff]
        %v201 = vld [vmem:[%s170 + $0x18] sm:$0xff]
        %v202 = vld [vmem:[%s170 + $0x20] sm:$0xff]
        %v203 = vld [vmem:[%s170 + $0x28] sm:$0xff]
        %v204 = vld [vmem:[%s170 + $0x30] sm:$0xff]
        %v205 = vld [vmem:[%s170 + $0x38] sm:$0xff]
        %v206 = vld [vmem:[%s170 + $0x40] sm:$0xff]
        %v207 = vld [vmem:[%s170 + $0x48] sm:$0xff]
        %v208 = vld [vmem:[%s170 + $0x50] sm:$0xff]
        %v209 = vld [vmem:[%s170 + $0x58] sm:$0xff]
        %v210 = vld [vmem:[%s170 + $0x60] sm:$0xff]
        %v211 = vld [vmem:[%s170 + $0x68] sm:$0xff]
        %v212 = vld [vmem:[%s170 + $0x70] sm:$0xff]
        %v213 = vld [vmem:[%s170 + $0x78] sm:$0xff]
        %v230 = vunpack.c.l.b16 %v198
        %v231 = vunpack.c.h.b16 %v198
        %v232 = vunpack.c.l.b16 %v199
        %v233 = vunpack.c.h.b16 %v199
        %v234 = vunpack.c.l.b16 %v200
        %v235 = vunpack.c.h.b16 %v200
        %v236 = vunpack.c.l.b16 %v201
        %v237 = vunpack.c.h.b16 %v201
        %v238 = vunpack.c.l.b16 %v202
        %v239 = vunpack.c.h.b16 %v202
        %v240 = vunpack.c.l.b16 %v203
        %v241 = vunpack.c.h.b16 %v203
        %v242 = vunpack.c.l.b16 %v204
        %v243 = vunpack.c.h.b16 %v204
        %v244 = vunpack.c.l.b16 %v205
        %v245 = vunpack.c.h.b16 %v205
        %v246 = vunpack.c.l.b16 %v206
        %v247 = vunpack.c.h.b16 %v206
        %v248 = vunpack.c.l.b16 %v207
        %v249 = vunpack.c.h.b16 %v207
        %v250 = vunpack.c.l.b16 %v208
        %v251 = vunpack.c.h.b16 %v208
        %v252 = vunpack.c.l.b16 %v209
        %v253 = vunpack.c.h.b16 %v209
        %v254 = vunpack.c.l.b16 %v210
        %v255 = vunpack.c.h.b16 %v210
        %v256 = vunpack.c.l.b16 %v211
        %v257 = vunpack.c.h.b16 %v211
        %v258 = vunpack.c.l.b16 %v212
        %v259 = vunpack.c.h.b16 %v212
        %v260 = vunpack.c.l.b16 %v213
        %v261 = vunpack.c.h.b16 %v213
        %v262 = vpack.c.b16 %v238, %v230
        %v263 = vpack.c.b16 %v239, %v231
        %v264 = vpack.c.b16 %v240, %v232
        %v265 = vpack.c.b16 %v241, %v233
        %v266 = vpack.c.b16 %v242, %v234
        %v267 = vpack.c.b16 %v243, %v235
        %v268 = vpack.c.b16 %v244, %v236
        %v269 = vpack.c.b16 %v245, %v237
        %v270 = vpack.c.b16 %v254, %v246
        %v271 = vpack.c.b16 %v255, %v247
        %v272 = vpack.c.b16 %v256, %v248
        %v273 = vpack.c.b16 %v257, %v249
        %v274 = vpack.c.b16 %v258, %v250
        %v275 = vpack.c.b16 %v259, %v251
        %v276 = vpack.c.b16 %v260, %v252
        %v277 = vpack.c.b16 %v261, %v253
        %vm294 = vcmask 261120
        %v296 = vsel %vm294, %v197, 0
        %298 = vmatprep.subr.bf16.mxu0 %v263
        %299 = vmatpush1.bf16.msra.mxu0 %v262
        %300 = vmatprep.subr.bf16.mxu0 %v271
        %301 = vmatpush1.bf16.msra.mxu0 %v270
        %302 = vmatprep.subr.bf16.mxu0 0
        %303 = vmatpush1.bf16.msra.mxu0 0
        %304 = vmatprep.subr.bf16.mxu0 0
        %305 = vmatpush1.bf16.msra.mxu0 0
        %306 = vmatprep.subr.bf16.mxu0 0
        %307 = vmatpush1.bf16.msra.mxu0 0
        %308 = vmatprep.subr.bf16.mxu0 0
        %309 = vmatpush1.bf16.msra.mxu0 0
        %310 = vmatprep.subr.bf16.mxu0 0
        %311 = vmatpush1.bf16.msra.mxu0 0
        %312 = vmatprep.subr.bf16.mxu0 0
        %313 = vmatpush1.bf16.msra.mxu0 0
        %314 = vmatprep.subr.bf16.mxu0 0
        %315 = vmatpush1.bf16.msra.mxu0 0
        %316 = vmatprep.subr.bf16.mxu0 0
        %317 = vmatpush1.bf16.msra.mxu0 0
        %318 = vmatprep.subr.bf16.mxu0 0
        %319 = vmatpush1.bf16.msra.mxu0 0
        %320 = vmatprep.subr.bf16.mxu0 0
        %321 = vmatpush1.bf16.msra.mxu0 0
        %322 = vmatprep.subr.bf16.mxu0 0
        %323 = vmatpush1.bf16.msra.mxu0 0
        %324 = vmatprep.subr.bf16.mxu0 0
        %325 = vmatpush1.bf16.msra.mxu0 0
        %326 = vmatprep.subr.bf16.mxu0 0
        %327 = vmatpush1.bf16.msra.mxu0 0
        %328 = vmatprep.subr.bf16.mxu0 0
        %329 = vmatpush1.bf16.msra.mxu0 0
        %330 = vmatprep.mubr.bf16.mxu0 0
        %331 = vmatmul.mubr.bf16.gmra.mrb[0].mxu0 %v296
        %v332 = vpop.f32.mrb[0].mxu0
        %v333 = vadd.f32 0.0, %v332
        %v334 = vpop.f32.mrb[0].mxu0
        %v335 = vadd.f32 0.0, %v334
        %v336 = vpop.f32.mrb[0].mxu0
        %v337 = vpop.f32.mrb[0].mxu0
        %338 = vdwg.mxu0
        %339 = vmatprep.subr.bf16.mxu0 %v265
        %340 = vmatpush1.bf16.msra.mxu0 %v264
        %341 = vmatprep.subr.bf16.mxu0 %v273
        %342 = vmatpush1.bf16.msra.mxu0 %v272
        %343 = vmatprep.subr.bf16.mxu0 0
        %344 = vmatpush1.bf16.msra.mxu0 0
        %345 = vmatprep.subr.bf16.mxu0 0
        %346 = vmatpush1.bf16.msra.mxu0 0
        %347 = vmatprep.subr.bf16.mxu0 0
        %348 = vmatpush1.bf16.msra.mxu0 0
        %349 = vmatprep.subr.bf16.mxu0 0
        %350 = vmatpush1.bf16.msra.mxu0 0
        %351 = vmatprep.subr.bf16.mxu0 0
        %352 = vmatpush1.bf16.msra.mxu0 0
        %353 = vmatprep.subr.bf16.mxu0 0
        %354 = vmatpush1.bf16.msra.mxu0 0
        %355 = vmatprep.subr.bf16.mxu0 0
        %356 = vmatpush1.bf16.msra.mxu0 0
        %357 = vmatprep.subr.bf16.mxu0 0
        %358 = vmatpush1.bf16.msra.mxu0 0
        %359 = vmatprep.subr.bf16.mxu0 0
        %360 = vmatpush1.bf16.msra.mxu0 0
        %361 = vmatprep.subr.bf16.mxu0 0
        %362 = vmatpush1.bf16.msra.mxu0 0
        %363 = vmatprep.subr.bf16.mxu0 0
        %364 = vmatpush1.bf16.msra.mxu0 0
        %365 = vmatprep.subr.bf16.mxu0 0
        %366 = vmatpush1.bf16.msra.mxu0 0
        %367 = vmatprep.subr.bf16.mxu0 0
        %368 = vmatpush1.bf16.msra.mxu0 0
        %369 = vmatprep.subr.bf16.mxu0 0
        %370 = vmatpush1.bf16.msra.mxu0 0
        %371 = vmatprep.mubr.bf16.mxu0 0
        %372 = vmatmul.mubr.bf16.gmra.mrb[0].mxu0 %v296
        %v373 = vpop.f32.mrb[0].mxu0
        %v374 = vadd.f32 0.0, %v373
        %v375 = vpop.f32.mrb[0].mxu0
        %v376 = vadd.f32 0.0, %v375
        %v377 = vpop.f32.mrb[0].mxu0
        %v378 = vpop.f32.mrb[0].mxu0
        %379 = vdwg.mxu0
        %380 = vmatprep.subr.bf16.mxu0 %v267
        %381 = vmatpush1.bf16.msra.mxu0 %v266
        %382 = vmatprep.subr.bf16.mxu0 %v275
        %383 = vmatpush1.bf16.msra.mxu0 %v274
        %384 = vmatprep.subr.bf16.mxu0 0
        %385 = vmatpush1.bf16.msra.mxu0 0
        %386 = vmatprep.subr.bf16.mxu0 0
        %387 = vmatpush1.bf16.msra.mxu0 0
        %388 = vmatprep.subr.bf16.mxu0 0
        %389 = vmatpush1.bf16.msra.mxu0 0
        %390 = vmatprep.subr.bf16.mxu0 0
        %391 = vmatpush1.bf16.msra.mxu0 0
        %392 = vmatprep.subr.bf16.mxu0 0
        %393 = vmatpush1.bf16.msra.mxu0 0
        %394 = vmatprep.subr.bf16.mxu0 0
        %395 = vmatpush1.bf16.msra.mxu0 0
        %396 = vmatprep.subr.bf16.mxu0 0
        %397 = vmatpush1.bf16.msra.mxu0 0
        %398 = vmatprep.subr.bf16.mxu0 0
        %399 = vmatpush1.bf16.msra.mxu0 0
        %400 = vmatprep.subr.bf16.mxu0 0
        %401 = vmatpush1.bf16.msra.mxu0 0
        %402 = vmatprep.subr.bf16.mxu0 0
        %403 = vmatpush1.bf16.msra.mxu0 0
        %404 = vmatprep.subr.bf16.mxu0 0
        %405 = vmatpush1.bf16.msra.mxu0 0
        %406 = vmatprep.subr.bf16.mxu0 0
        %407 = vmatpush1.bf16.msra.mxu0 0
        %408 = vmatprep.subr.bf16.mxu0 0
        %409 = vmatpush1.bf16.msra.mxu0 0
        %410 = vmatprep.subr.bf16.mxu0 0
        %411 = vmatpush1.bf16.msra.mxu0 0
        %412 = vmatprep.mubr.bf16.mxu0 0
        %413 = vmatmul.mubr.bf16.gmra.mrb[0].mxu0 %v296
        %v414 = vpop.f32.mrb[0].mxu0
        %v415 = vadd.f32 0.0, %v414
        %v416 = vpop.f32.mrb[0].mxu0
        %v417 = vadd.f32 0.0, %v416
        %v418 = vpop.f32.mrb[0].mxu0
        %v419 = vpop.f32.mrb[0].mxu0
        %420 = vdwg.mxu0
        %421 = vmatprep.subr.bf16.mxu0 %v269
        %422 = vmatpush1.bf16.msra.mxu0 %v268
        %423 = vmatprep.subr.bf16.mxu0 %v277
        %424 = vmatpush1.bf16.msra.mxu0 %v276
        %425 = vmatprep.subr.bf16.mxu0 0
        %426 = vmatpush1.bf16.msra.mxu0 0
        %427 = vmatprep.subr.bf16.mxu0 0
        %428 = vmatpush1.bf16.msra.mxu0 0
        %429 = vmatprep.subr.bf16.mxu0 0
        %430 = vmatpush1.bf16.msra.mxu0 0
        %431 = vmatprep.subr.bf16.mxu0 0
        %432 = vmatpush1.bf16.msra.mxu0 0
        %433 = vmatprep.subr.bf16.mxu0 0
        %434 = vmatpush1.bf16.msra.mxu0 0
        %435 = vmatprep.subr.bf16.mxu0 0
        %436 = vmatpush1.bf16.msra.mxu0 0
        %437 = vmatprep.subr.bf16.mxu0 0
        %438 = vmatpush1.bf16.msra.mxu0 0
        %439 = vmatprep.subr.bf16.mxu0 0
        %440 = vmatpush1.bf16.msra.mxu0 0
        %441 = vmatprep.subr.bf16.mxu0 0
        %442 = vmatpush1.bf16.msra.mxu0 0
        %443 = vmatprep.subr.bf16.mxu0 0
        %444 = vmatpush1.bf16.msra.mxu0 0
        %445 = vmatprep.subr.bf16.mxu0 0
        %446 = vmatpush1.bf16.msra.mxu0 0
        %447 = vmatprep.subr.bf16.mxu0 0
        %448 = vmatpush1.bf16.msra.mxu0 0
        %449 = vmatprep.subr.bf16.mxu0 0
        %450 = vmatpush1.bf16.msra.mxu0 0
        %451 = vmatprep.subr.bf16.mxu0 0
        %452 = vmatpush1.bf16.msra.mxu0 0
        %453 = vmatprep.mubr.bf16.mxu0 0
        %454 = vmatmul.mubr.bf16.gmra.mrb[0].mxu0 %v296
        %v455 = vpop.f32.mrb[0].mxu0
        %v456 = vadd.f32 0.0, %v455
        %v457 = vpop.f32.mrb[0].mxu0
        %v458 = vadd.f32 0.0, %v457
        %v459 = vpop.f32.mrb[0].mxu0
        %v460 = vpop.f32.mrb[0].mxu0
        %461 = vdwg.mxu0
        %v470 = vcombine.low %v333, %v335
        %v471 = vcombine.low %v374, %v376
        %v472 = vcombine.low %v415, %v417
        %v473 = vcombine.low %v456, %v458
        %478 = vst [vmem:[%s194] sm:$0x77] %v470
        %479 = vst [vmem:[%s194 + $0x8] sm:$0x77] %v471
        %480 = vst [vmem:[%s194 + $0x10] sm:$0x77] %v472
        %481 = vst [vmem:[%s194 + $0x18] sm:$0x77] %v473
        %s482 = smul.u32 8, %s13
        %p483 = scmp.lt.s32.totalorder %s482, 15
        %s484 = scalar_select %p483, %s482, 15
        %s485 = smul.addr %s484, 4
        %s486 = scalar_lea.vmem %s2, %s485
        // Predicated region
        $region52: #{cae5_forward.49} parent=46 // pred_check
          %p487 = pneg %p78
        $region53: #{cae5_forward.49} parent=46 // pred_check_branch
          %489 = sbr.rel (%p487) target = $region55
        $region54: #{cae5_forward.49} parent=46 // pred_region
          %s490 = smul.u32 8, %s13
        $region55: #{cae5_forward.49} parent=46 // pred_fallthru
          _
      $region47: #{cae5_forward.49} parent=5 // pred_fallthru
        _
      %p491 = scmp.le.s32.totalorder 2, %s8
      // Predicated region
      $region56: #{cae5_forward.49} parent=5 // pred_check
        %p492 = pneg %p491
      $region57: #{cae5_forward.49} parent=5 // pred_check_branch
        %494 = sbr.rel (%p492) target = $region59
      $region58: #{cae5_forward.49} parent=5 // pred_region
        %s495 = ssub.s32 %s8, 2
        // Predicated region
        $region60: #{cae5_forward.49} parent=58 // pred_check
          %p496 = pneg %p84
        $region61: #{cae5_forward.49} parent=58 // pred_check_branch
          %498 = sbr.rel (%p496) target = $region63
        $region62: #{cae5_forward.49} parent=58 // pred_region
          %s499 = smul.u32 8, %s14
          %p500 = scmp.lt.s32.totalorder %s499, 15
          %s501 = scalar_select %p500, %s499, 15
          %s502 = smul.addr %s501, 4
          %s503 = scalar_lea.vmem %s2, %s502
        $region63: #{cae5_forward.49} parent=58 // pred_fallthru
          _
      $region59: #{cae5_forward.49} parent=5 // pred_fallthru
        _
    $region6: #{cae5_forward.49} parent=1 // loop_footer
      %s12 = sadd.s32 1, %s8
    $region7: #{cae5_forward.49} parent=1 // loop_footer_branch
      %7 = sbr.rel target = $region3
    $region8: #{cae5_forward.49} parent=1 // loop_exit
      _

// kernel: cae5_forward.51
$region0: #{cae5_forward.51}
  #allocation0 [shape = 'u32[]', space=smem, size = 0x4, offset = 0x4, fixed_abs, tag = 'smem constant byte address 0x4 - core index']
  #allocation1 [shape = 'u32[144,128]{1,0:T(1,128)}', space=vmem, size = 0x12000, scoped, tag = 'internal scratch']
  %s0 = inlined_call_operand.vmem [shape: bf16[3,24], index: 0, kind: input, shape index: {}]
  %s1 = inlined_call_operand.vmem [shape: bf16[24,2048], index: 1, kind: input, shape index: {}]
  %s2 = inlined_call_operand.vmem [shape: f32[3,2048], index: 2, kind: output, shape index: {}]
  %s3 = sld [smem:[#allocation0]]
  $region64: #{cae5_forward.51} parent=0
    _
  %s5 = ssub.s32 1, %s3
  %s6 = scalar_select 0, %s5, %s3
  $region1: #{cae5_forward.51} parent=0
    #allocation2 [shape = 'u8[98304]{0}', space=vmem, size = 0x18000, scoped, tag = 'input window, operand 1']
    loop: start=0, step=1, limit=4
    $region2: #{cae5_forward.51} parent=1 // loop_pre_header
      _
    $region3: #{cae5_forward.51} parent=1 // loop_header
      %s8 = sphi 0, %s12
      %p9 = scmp.ge.s32.totalorder %s8, 4
      %s16 = sphi 0, %s16
      %s18 = sphi 0, %s16
      %s19 = sphi 0, %s18
      %s33 = sphi 0, %s19
      %s39 = sphi 0, %s41
      %s42 = sphi 0, %s39
      %s43 = sphi 0, %s42
      %s59 = sphi 0, %s43
      %s65 = sphi 0, %s67
      %s68 = sphi 0, %s65
      %s69 = sphi 0, %s68
      %s85 = sphi 0, %s69
    $region4: #{cae5_forward.51} parent=1 // loop_header_branch
      %11 = sbr.rel (%p9) target = $region8
    $region5: #{cae5_forward.51} parent=1 // loop_body
      %s13 = ssub.s32 %s8, 1
      %s14 = ssub.s32 %s8, 2
      %s15 = sadd.s32 %s8, 1
      %s17 = sadd.s32 %s16, 1
      %p20 = scmp.eq.s32.totalorder %s8, 1
      %p21 = scmp.ne.s32.totalorder %s16, %s18
      %p22 = scmp.eq.s32.totalorder %s8, 0
      %p23 = por %p21, %p22
      %p24 = scmp.ne.s32.totalorder %s16, %s18
      %p25 = scmp.eq.s32.totalorder %s13, 1
      %p26 = por %p24, %p25
      %p27 = scmp.ne.s32.totalorder %s18, %s19
      %p28 = scmp.eq.s32.totalorder %s13, 0
      %p29 = por %p27, %p28
      %p30 = scmp.ne.s32.totalorder %s18, %s19
      %p31 = scmp.eq.s32.totalorder %s14, 1
      %p32 = por %p30, %p31
      %p34 = scmp.ne.s32.totalorder %s19, %s33
      %p35 = scmp.eq.s32.totalorder %s14, 0
      %p36 = por %p34, %p35
      %s37 = ssub.s32 %s8, %s15
      %p38 = scmp.eq.s32.totalorder %s37, 0
      %s40 = sadd.s32 %s39, 1
      %s41 = scalar_select %p38, %s39, %s40
      %p44 = pneg %p38
      %p45 = scmp.eq.s32.totalorder %s8, 1
      %p46 = por %p44, %p45
      %p47 = scmp.ne.s32.totalorder %s39, %s42
      %p48 = scmp.eq.s32.totalorder %s8, 0
      %p49 = por %p47, %p48
      %p50 = scmp.ne.s32.totalorder %s39, %s42
      %p51 = scmp.eq.s32.totalorder %s13, 1
      %p52 = por %p50, %p51
      %p53 = scmp.ne.s32.totalorder %s42, %s43
      %p54 = scmp.eq.s32.totalorder %s13, 0
      %p55 = por %p53, %p54
      %p56 = scmp.ne.s32.totalorder %s42, %s43
      %p57 = scmp.eq.s32.totalorder %s14, 1
      %p58 = por %p56, %p57
      %p60 = scmp.ne.s32.totalorder %s43, %s59
      %p61 = scmp.eq.s32.totalorder %s14, 0
      %p62 = por %p60, %p61
      %s63 = ssub.s32 %s8, %s15
      %p64 = scmp.eq.s32.totalorder %s63, 0
      %s66 = sadd.s32 %s65, 1
      %s67 = scalar_select %p64, %s65, %s66
      %p70 = pneg %p64
      %p71 = scmp.eq.s32.totalorder %s8, 1
      %p72 = por %p70, %p71
      %p73 = scmp.ne.s32.totalorder %s65, %s68
      %p74 = scmp.eq.s32.totalorder %s8, 0
      %p75 = por %p73, %p74
      %p76 = scmp.ne.s32.totalorder %s65, %s68
      %p77 = scmp.eq.s32.totalorder %s13, 1
      %p78 = por %p76, %p77
      %p79 = scmp.ne.s32.totalorder %s68, %s69
      %p80 = scmp.eq.s32.totalorder %s13, 0
      %p81 = por %p79, %p80
      %p82 = scmp.ne.s32.totalorder %s68, %s69
      %p83 = scmp.eq.s32.totalorder %s14, 1
      %p84 = por %p82, %p83
      %p86 = scmp.ne.s32.totalorder %s69, %s85
      %p87 = scmp.eq.s32.totalorder %s14, 0
      %p88 = por %p86, %p87
      %p89 = scmp.le.s32.totalorder 1, %s8
      %p90 = scmp.lt.s32.totalorder %s8, 3
      %p91 = pnand %p89, %p90
      %p92 = pneg %p91
      // Predicated region
      $region9: #{cae5_forward.51} parent=5 // pred_check
        _
      $region10: #{cae5_forward.51} parent=5 // pred_check_branch
        %94 = sbr.rel (%p91) target = $region12
      $region11: #{cae5_forward.51} parent=5 // pred_region
        %s95 = ssub.s32 %s8, 1
        // Predicated region
        $region13: #{cae5_forward.51} parent=11 // pred_check
          %p96 = pneg %p29
        $region14: #{cae5_forward.51} parent=11 // pred_check_branch
          %98 = sbr.rel (%p96) target = $region16
        $region15: #{cae5_forward.51} parent=11 // pred_region
          _
        $region16: #{cae5_forward.51} parent=11 // pred_fallthru
          _
      $region12: #{cae5_forward.51} parent=5 // pred_fallthru
        _
      %p99 = scmp.lt.s32.totalorder %s8, 2
      // Predicated region
      $region17: #{cae5_forward.51} parent=5 // pred_check
        %p100 = pneg %p99
      $region18: #{cae5_forward.51} parent=5 // pred_check_branch
        %102 = sbr.rel (%p100) target = $region20
      $region19: #{cae5_forward.51} parent=5 // pred_region
        // Predicated region
        $region21: #{cae5_forward.51} parent=19 // pred_check
          %p103 = pneg %p49
        $region22: #{cae5_forward.51} parent=19 // pred_check_branch
          %105 = sbr.rel (%p103) target = $region24
        $region23: #{cae5_forward.51} parent=19 // pred_region
          %s106 = sand.u32 %s39, 1
          %s107 = sand.u32 %s39, 1
          %s108 = smul.addr %s107, 96
          %s109 = scalar_lea.vmem [#allocation2], %s108
          %s110 = smul.u32 8, %s8
          %s111 = smul.addr %s110, 4
          %s112 = scalar_lea.vmem %s1, %s111
          // Predicated region
          $region25: #{cae5_forward.51} parent=23 // pred_check
            _
          $region26: #{cae5_forward.51} parent=23 // pred_check_branch
            %114 = sbr.rel (0) target = $region28
          $region27: #{cae5_forward.51} parent=23 // pred_region
            // Predicated region
            $region29: #{cae5_forward.51} parent=27 // pred_check
              _
            $region30: #{cae5_forward.51} parent=27 // pred_check_branch
              %116 = sbr.rel (0) target = $region32
            $region31: #{cae5_forward.51} parent=27 // pred_region
              loop: start=0, step=1, limit=1
              $region33: #{cae5_forward.51} parent=31 // loop_pre_header
                _
              $region34: #{cae5_forward.51} parent=31 // loop_header
                %s118 = sphi 0, %s122
                %p119 = scmp.ge.s32.totalorder %s118, 1
                %s123 = sphi %s112, %s112
                %s124 = sphi %s109, %s109
              $region35: #{cae5_forward.51} parent=31 // loop_header_branch
                %121 = sbr.rel (%p119) target = $region39
              $region36: #{cae5_forward.51} parent=31 // loop_body
                %v125 = vld [vmem:[%s123] sm:$0xff]
                %126 = vst [vmem:[%s124] sm:$0xff] %v125
                %v127 = vld [vmem:[%s123 + $0x8] sm:$0xff]
                %128 = vst [vmem:[%s124 + $0x8] sm:$0xff] %v127
                %v129 = vld [vmem:[%s123 + $0x10] sm:$0xff]
                %130 = vst [vmem:[%s124 + $0x10] sm:$0xff] %v129
                %v131 = vld [vmem:[%s123 + $0x18] sm:$0xff]
                %132 = vst [vmem:[%s124 + $0x18] sm:$0xff] %v131
                %v133 = vld [vmem:[%s123 + $0x40] sm:$0xff]
                %134 = vst [vmem:[%s124 + $0x20] sm:$0xff] %v133
                %v135 = vld [vmem:[%s123 + $0x48] sm:$0xff]
                %136 = vst [vmem:[%s124 + $0x28] sm:$0xff] %v135
                %v137 = vld [vmem:[%s123 + $0x50] sm:$0xff]
                %138 = vst [vmem:[%s124 + $0x30] sm:$0xff] %v137
                %v139 = vld [vmem:[%s123 + $0x58] sm:$0xff]
                %140 = vst [vmem:[%s124 + $0x38] sm:$0xff] %v139
                %v141 = vld [vmem:[%s123 + $0x80] sm:$0xff]
                %142 = vst [vmem:[%s124 + $0x40] sm:$0xff] %v141
                %v143 = vld [vmem:[%s123 + $0x88] sm:$0xff]
                %144 = vst [vmem:[%s124 + $0x48] sm:$0xff] %v143
                %v145 = vld [vmem:[%s123 + $0x90] sm:$0xff]
                %146 = vst [vmem:[%s124 + $0x50] sm:$0xff] %v145
                %v147 = vld [vmem:[%s123 + $0x98] sm:$0xff]
                %148 = vst [vmem:[%s124 + $0x58] sm:$0xff] %v147
              $region37: #{cae5_forward.51} parent=31 // loop_footer
                %s122 = sadd.s32 1, %s118
              $region38: #{cae5_forward.51} parent=31 // loop_footer_branch
                %117 = sbr.rel target = $region34
              $region39: #{cae5_forward.51} parent=31 // loop_exit
                _
            $region32: #{cae5_forward.51} parent=27 // pred_fallthru
              _
            // Predicated region
            $region40: #{cae5_forward.51} parent=27 // pred_check
              _
            $region41: #{cae5_forward.51} parent=27 // pred_check_branch
              %150 = sbr.rel target = $region43
            $region42: #{cae5_forward.51} parent=27 // pred_region
              _
            $region43: #{cae5_forward.51} parent=27 // pred_fallthru
              _
          $region28: #{cae5_forward.51} parent=23 // pred_fallthru
            _
          %151 = vnop
        $region24: #{cae5_forward.51} parent=19 // pred_fallthru
          _
      $region20: #{cae5_forward.51} parent=5 // pred_fallthru
        _
      %p152 = scmp.le.s32.totalorder 1, %s8
      %p153 = scmp.lt.s32.totalorder %s8, 3
      %p154 = pnand %p152, %p153
      %p155 = pneg %p154
      // Predicated region
      $region44: #{cae5_forward.51} parent=5 // pred_check
        _
      $region45: #{cae5_forward.51} parent=5 // pred_check_branch
        %157 = sbr.rel (%p154) target = $region47
      $region46: #{cae5_forward.51} parent=5 // pred_region
        %s158 = ssub.s32 %s8, 1
        %s159 = sand.u32 %s42, 1
        %s160 = sand.u32 %s42, 1
        %s161 = smul.addr %s160, 96
        %s162 = scalar_lea.vmem [#allocation2], %s161
        // Predicated region
        $region48: #{cae5_forward.51} parent=46 // pred_check
          %p163 = pneg %p55
        $region49: #{cae5_forward.51} parent=46 // pred_check_branch
          %165 = sbr.rel (%p163) target = $region51
        $region50: #{cae5_forward.51} parent=46 // pred_region
          _
        $region51: #{cae5_forward.51} parent=46 // pred_fallthru
          _
        %p166 = pneg %p29
        %p167 = pneg %p26
        %s168 = sand.u32 %s42, 1
        %s169 = sand.u32 %s42, 1
        %s170 = smul.addr %s169, 96
        %s171 = scalar_lea.vmem [#allocation2], %s170
        %p172 = pneg %p55
        %p173 = pneg %p52
        %p174 = pneg %p81
        %p175 = pneg %p78
        %s176 = smul.u32 8, %s13
        %p177 = scmp.lt.s32.totalorder %s176, 15
        %s178 = scalar_select %p177, %s176, 15
        %s179 = smul.addr %s178, 4
        %s180 = scalar_lea.vmem %s2, %s179
        %s181 = smul.u32 8, %s13
        %s182 = smul.u32 8, %s13
        %p183 = scmp.lt.s32.totalorder %s182, 15
        %s184 = scalar_select %p183, %s182, 15
        %s185 = smul.addr %s184, 4
        %s186 = scalar_lea.vmem %s2, %s185
        %s187 = smul.u32 8, %s13
        %v189 = vld [vmem:[%s0] sm:$0x3]
        %v190 = vld [vmem:[%s162] sm:$0xff]
        %v191 = vld [vmem:[%s162 + $0x8] sm:$0xff]
        %v192 = vld [vmem:[%s162 + $0x10] sm:$0xff]
        %v193 = vld [vmem:[%s162 + $0x18] sm:$0xff]
        %v194 = vld [vmem:[%s162 + $0x20] sm:$0xff]
        %v195 = vld [vmem:[%s162 + $0x28] sm:$0xff]
        %v196 = vld [vmem:[%s162 + $0x30] sm:$0xff]
        %v197 = vld [vmem:[%s162 + $0x38] sm:$0xff]
        %v198 = vld [vmem:[%s162 + $0x40] sm:$0xff]
        %v199 = vld [vmem:[%s162 + $0x48] sm:$0xff]
        %v200 = vld [vmem:[%s162 + $0x50] sm:$0xff]
        %v201 = vld [vmem:[%s162 + $0x58] sm:$0xff]
        %v214 = vunpack.c.l.b16 %v190
        %v215 = vunpack.c.h.b16 %v190
        %v216 = vunpack.c.l.b16 %v191
        %v217 = vunpack.c.h.b16 %v191
        %v218 = vunpack.c.l.b16 %v192
        %v219 = vunpack.c.h.b16 %v192
        %v220 = vunpack.c.l.b16 %v193
        %v221 = vunpack.c.h.b16 %v193
        %v222 = vunpack.c.l.b16 %v194
        %v223 = vunpack.c.h.b16 %v194
        %v224 = vunpack.c.l.b16 %v195
        %v225 = vunpack.c.h.b16 %v195
        %v226 = vunpack.c.l.b16 %v196
        %v227 = vunpack.c.h.b16 %v196
        %v228 = vunpack.c.l.b16 %v197
        %v229 = vunpack.c.h.b16 %v197
        %v230 = vunpack.c.l.b16 %v198
        %v231 = vunpack.c.h.b16 %v198
        %v232 = vunpack.c.l.b16 %v199
        %v233 = vunpack.c.h.b16 %v199
        %v234 = vunpack.c.l.b16 %v200
        %v235 = vunpack.c.h.b16 %v200
        %v236 = vunpack.c.l.b16 %v201
        %v237 = vunpack.c.h.b16 %v201
        %v238 = vpack.c.b16 %v222, %v214
        %v239 = vpack.c.b16 %v223, %v215
        %v240 = vpack.c.b16 %v224, %v216
        %v241 = vpack.c.b16 %v225, %v217
        %v242 = vpack.c.b16 %v226, %v218
        %v243 = vpack.c.b16 %v227, %v219
        %v244 = vpack.c.b16 %v228, %v220
        %v245 = vpack.c.b16 %v229, %v221
        %v246 = vpack.c.b16 %v230, %v230
        %v247 = vpack.c.b16 %v231, %v231
        %v248 = vpack.c.b16 %v232, %v232
        %v249 = vpack.c.b16 %v233, %v233
        %v250 = vpack.c.b16 %v234, %v234
        %v251 = vpack.c.b16 %v235, %v235
        %v252 = vpack.c.b16 %v236, %v236
        %v253 = vpack.c.b16 %v237, %v237
        %vm262 = vcmask 195584
        %v264 = vsel %vm262, %v189, 0
        %vm266 = vcmask 1043456
        %v268 = vsel %vm266, %v246, 0
        %v271 = vsel %vm266, %v247, 0
        %v274 = vsel %vm266, %v248, 0
        %v277 = vsel %vm266, %v249, 0
        %v280 = vsel %vm266, %v250, 0
        %v283 = vsel %vm266, %v251, 0
        %v286 = vsel %vm266, %v252, 0
        %v289 = vsel %vm266, %v253, 0
        %291 = vmatprep.subr.bf16.mxu0 %v239
        %292 = vmatpush1.bf16.msra.mxu0 %v238
        %293 = vmatprep.subr.bf16.mxu0 %v271
        %294 = vmatpush1.bf16.msra.mxu0 %v268
        %295 = vmatprep.subr.bf16.mxu0 0
        %296 = vmatpush1.bf16.msra.mxu0 0
        %297 = vmatprep.subr.bf16.mxu0 0
        %298 = vmatpush1.bf16.msra.mxu0 0
        %299 = vmatprep.subr.bf16.mxu0 0
        %300 = vmatpush1.bf16.msra.mxu0 0
        %301 = vmatprep.subr.bf16.mxu0 0
        %302 = vmatpush1.bf16.msra.mxu0 0
        %303 = vmatprep.subr.bf16.mxu0 0
        %304 = vmatpush1.bf16.msra.mxu0 0
        %305 = vmatprep.subr.bf16.mxu0 0
        %306 = vmatpush1.bf16.msra.mxu0 0
        %307 = vmatprep.subr.bf16.mxu0 0
        %308 = vmatpush1.bf16.msra.mxu0 0
        %309 = vmatprep.subr.bf16.mxu0 0
        %310 = vmatpush1.bf16.msra.mxu0 0
        %311 = vmatprep.subr.bf16.mxu0 0
        %312 = vmatpush1.bf16.msra.mxu0 0
        %313 = vmatprep.subr.bf16.mxu0 0
        %314 = vmatpush1.bf16.msra.mxu0 0
        %315 = vmatprep.subr.bf16.mxu0 0
        %316 = vmatpush1.bf16.msra.mxu0 0
        %317 = vmatprep.subr.bf16.mxu0 0
        %318 = vmatpush1.bf16.msra.mxu0 0
        %319 = vmatprep.subr.bf16.mxu0 0
        %320 = vmatpush1.bf16.msra.mxu0 0
        %321 = vmatprep.subr.bf16.mxu0 0
        %322 = vmatpush1.bf16.msra.mxu0 0
        %323 = vmatprep.mubr.bf16.mxu0 0
        %324 = vmatmul.mubr.bf16.gmra.mrb[0].mxu0 %v264
        %v325 = vpop.f32.mrb[0].mxu0
        %v326 = vadd.f32 0.0, %v325
        %v327 = vpop.f32.mrb[0].mxu0
        %v328 = vadd.f32 0.0, %v327
        %v329 = vpop.f32.mrb[0].mxu0
        %v330 = vpop.f32.mrb[0].mxu0
        %331 = vdwg.mxu0
        %332 = vmatprep.subr.bf16.mxu0 %v241
        %333 = vmatpush1.bf16.msra.mxu0 %v240
        %334 = vmatprep.subr.bf16.mxu0 %v277
        %335 = vmatpush1.bf16.msra.mxu0 %v274
        %336 = vmatprep.subr.bf16.mxu0 0
        %337 = vmatpush1.bf16.msra.mxu0 0
        %338 = vmatprep.subr.bf16.mxu0 0
        %339 = vmatpush1.bf16.msra.mxu0 0
        %340 = vmatprep.subr.bf16.mxu0 0
        %341 = vmatpush1.bf16.msra.mxu0 0
        %342 = vmatprep.subr.bf16.mxu0 0
        %343 = vmatpush1.bf16.msra.mxu0 0
        %344 = vmatprep.subr.bf16.mxu0 0
        %345 = vmatpush1.bf16.msra.mxu0 0
        %346 = vmatprep.subr.bf16.mxu0 0
        %347 = vmatpush1.bf16.msra.mxu0 0
        %348 = vmatprep.subr.bf16.mxu0 0
        %349 = vmatpush1.bf16.msra.mxu0 0
        %350 = vmatprep.subr.bf16.mxu0 0
        %351 = vmatpush1.bf16.msra.mxu0 0
        %352 = vmatprep.subr.bf16.mxu0 0
        %353 = vmatpush1.bf16.msra.mxu0 0
        %354 = vmatprep.subr.bf16.mxu0 0
        %355 = vmatpush1.bf16.msra.mxu0 0
        %356 = vmatprep.subr.bf16.mxu0 0
        %357 = vmatpush1.bf16.msra.mxu0 0
        %358 = vmatprep.subr.bf16.mxu0 0
        %359 = vmatpush1.bf16.msra.mxu0 0
        %360 = vmatprep.subr.bf16.mxu0 0
        %361 = vmatpush1.bf16.msra.mxu0 0
        %362 = vmatprep.subr.bf16.mxu0 0
        %363 = vmatpush1.bf16.msra.mxu0 0
        %364 = vmatprep.mubr.bf16.mxu0 0
        %365 = vmatmul.mubr.bf16.gmra.mrb[0].mxu0 %v264
        %v366 = vpop.f32.mrb[0].mxu0
        %v367 = vadd.f32 0.0, %v366
        %v368 = vpop.f32.mrb[0].mxu0
        %v369 = vadd.f32 0.0, %v368
        %v370 = vpop.f32.mrb[0].mxu0
        %v371 = vpop.f32.mrb[0].mxu0
        %372 = vdwg.mxu0
        %373 = vmatprep.subr.bf16.mxu0 %v243
        %374 = vmatpush1.bf16.msra.mxu0 %v242
        %375 = vmatprep.subr.bf16.mxu0 %v283
        %376 = vmatpush1.bf16.msra.mxu0 %v280
        %377 = vmatprep.subr.bf16.mxu0 0
        %378 = vmatpush1.bf16.msra.mxu0 0
        %379 = vmatprep.subr.bf16.mxu0 0
        %380 = vmatpush1.bf16.msra.mxu0 0
        %381 = vmatprep.subr.bf16.mxu0 0
        %382 = vmatpush1.bf16.msra.mxu0 0
        %383 = vmatprep.subr.bf16.mxu0 0
        %384 = vmatpush1.bf16.msra.mxu0 0
        %385 = vmatprep.subr.bf16.mxu0 0
        %386 = vmatpush1.bf16.msra.mxu0 0
        %387 = vmatprep.subr.bf16.mxu0 0
        %388 = vmatpush1.bf16.msra.mxu0 0
        %389 = vmatprep.subr.bf16.mxu0 0
        %390 = vmatpush1.bf16.msra.mxu0 0
        %391 = vmatprep.subr.bf16.mxu0 0
        %392 = vmatpush1.bf16.msra.mxu0 0
        %393 = vmatprep.subr.bf16.mxu0 0
        %394 = vmatpush1.bf16.msra.mxu0 0
        %395 = vmatprep.subr.bf16.mxu0 0
        %396 = vmatpush1.bf16.msra.mxu0 0
        %397 = vmatprep.subr.bf16.mxu0 0
        %398 = vmatpush1.bf16.msra.mxu0 0
        %399 = vmatprep.subr.bf16.mxu0 0
        %400 = vmatpush1.bf16.msra.mxu0 0
        %401 = vmatprep.subr.bf16.mxu0 0
        %402 = vmatpush1.bf16.msra.mxu0 0
        %403 = vmatprep.subr.bf16.mxu0 0
        %404 = vmatpush1.bf16.msra.mxu0 0
        %405 = vmatprep.mubr.bf16.mxu0 0
        %406 = vmatmul.mubr.bf16.gmra.mrb[0].mxu0 %v264
        %v407 = vpop.f32.mrb[0].mxu0
        %v408 = vadd.f32 0.0, %v407
        %v409 = vpop.f32.mrb[0].mxu0
        %v410 = vadd.f32 0.0, %v409
        %v411 = vpop.f32.mrb[0].mxu0
        %v412 = vpop.f32.mrb[0].mxu0
        %413 = vdwg.mxu0
        %414 = vmatprep.subr.bf16.mxu0 %v245
        %415 = vmatpush1.bf16.msra.mxu0 %v244
        %416 = vmatprep.subr.bf16.mxu0 %v289
        %417 = vmatpush1.bf16.msra.mxu0 %v286
        %418 = vmatprep.subr.bf16.mxu0 0
        %419 = vmatpush1.bf16.msra.mxu0 0
        %420 = vmatprep.subr.bf16.mxu0 0
        %421 = vmatpush1.bf16.msra.mxu0 0
        %422 = vmatprep.subr.bf16.mxu0 0
        %423 = vmatpush1.bf16.msra.mxu0 0
        %424 = vmatprep.subr.bf16.mxu0 0
        %425 = vmatpush1.bf16.msra.mxu0 0
        %426 = vmatprep.subr.bf16.mxu0 0
        %427 = vmatpush1.bf16.msra.mxu0 0
        %428 = vmatprep.subr.bf16.mxu0 0
        %429 = vmatpush1.bf16.msra.mxu0 0
        %430 = vmatprep.subr.bf16.mxu0 0
        %431 = vmatpush1.bf16.msra.mxu0 0
        %432 = vmatprep.subr.bf16.mxu0 0
        %433 = vmatpush1.bf16.msra.mxu0 0
        %434 = vmatprep.subr.bf16.mxu0 0
        %435 = vmatpush1.bf16.msra.mxu0 0
        %436 = vmatprep.subr.bf16.mxu0 0
        %437 = vmatpush1.bf16.msra.mxu0 0
        %438 = vmatprep.subr.bf16.mxu0 0
        %439 = vmatpush1.bf16.msra.mxu0 0
        %440 = vmatprep.subr.bf16.mxu0 0
        %441 = vmatpush1.bf16.msra.mxu0 0
        %442 = vmatprep.subr.bf16.mxu0 0
        %443 = vmatpush1.bf16.msra.mxu0 0
        %444 = vmatprep.subr.bf16.mxu0 0
        %445 = vmatpush1.bf16.msra.mxu0 0
        %446 = vmatprep.mubr.bf16.mxu0 0
        %447 = vmatmul.mubr.bf16.gmra.mrb[0].mxu0 %v264
        %v448 = vpop.f32.mrb[0].mxu0
        %v449 = vadd.f32 0.0, %v448
        %v450 = vpop.f32.mrb[0].mxu0
        %v451 = vadd.f32 0.0, %v450
        %v452 = vpop.f32.mrb[0].mxu0
        %v453 = vpop.f32.mrb[0].mxu0
        %454 = vdwg.mxu0
        %v463 = vcombine.low %v326, %v328
        %v464 = vcombine.low %v367, %v369
        %v465 = vcombine.low %v408, %v410
        %v466 = vcombine.low %v449, %v451
        %471 = vst [vmem:[%s186] sm:$0x77] %v463
        %472 = vst [vmem:[%s186 + $0x8] sm:$0x77] %v464
        %473 = vst [vmem:[%s186 + $0x10] sm:$0x77] %v465
        %474 = vst [vmem:[%s186 + $0x18] sm:$0x77] %v466
        %s475 = smul.u32 8, %s13
        %p476 = scmp.lt.s32.totalorder %s475, 15
        %s477 = scalar_select %p476, %s475, 15
        %s478 = smul.addr %s477, 4
        %s479 = scalar_lea.vmem %s2, %s478
        // Predicated region
        $region52: #{cae5_forward.51} parent=46 // pred_check
          %p480 = pneg %p78
        $region53: #{cae5_forward.51} parent=46 // pred_check_branch
          %482 = sbr.rel (%p480) target = $region55
        $region54: #{cae5_forward.51} parent=46 // pred_region
          %s483 = smul.u32 8, %s13
        $region55: #{cae5_forward.51} parent=46 // pred_fallthru
          _
      $region47: #{cae5_forward.51} parent=5 // pred_fallthru
        _
      %p484 = scmp.le.s32.totalorder 2, %s8
      // Predicated region
      $region56: #{cae5_forward.51} parent=5 // pred_check
        %p485 = pneg %p484
      $region57: #{cae5_forward.51} parent=5 // pred_check_branch
        %487 = sbr.rel (%p485) target = $region59
      $region58: #{cae5_forward.51} parent=5 // pred_region
        %s488 = ssub.s32 %s8, 2
        // Predicated region
        $region60: #{cae5_forward.51} parent=58 // pred_check
          %p489 = pneg %p84
        $region61: #{cae5_forward.51} parent=58 // pred_check_branch
          %491 = sbr.rel (%p489) target = $region63
        $region62: #{cae5_forward.51} parent=58 // pred_region
          %s492 = smul.u32 8, %s14
          %p493 = scmp.lt.s32.totalorder %s492, 15
          %s494 = scalar_select %p493, %s492, 15
          %s495 = smul.addr %s494, 4
          %s496 = scalar_lea.vmem %s2, %s495
        $region63: #{cae5_forward.51} parent=58 // pred_fallthru
          _
      $region59: #{cae5_forward.51} parent=5 // pred_fallthru
        _
    $region6: #{cae5_forward.51} parent=1 // loop_footer
      %s12 = sadd.s32 1, %s8
    $region7: #{cae5_forward.51} parent=1 // loop_footer_branch
      %7 = sbr.rel target = $region3
    $region8: #{cae5_forward.51} parent=1 // loop_exit
      _

</llo_original>
